<compile_context>
chip_gen: v7x
topology: tpu7x:2x2x1
jax: 0.10.0
libtpu: 0.0.40
codegen_flags: <defaults>
</compile_context>

<pallas_src>
import math
import functools

import jax
import jax.numpy as jnp
from jax.experimental import pallas as pl
from jax.experimental.pallas import tpu as pltpu

LN_EPS = 1e-5

_PARAM_ORDER = ('wqkv', 'bqkv', 'wo', 'bo', 'g1', 'be1',
                'w1', 'b1', 'w2', 'b2', 'g2', 'be2')


def _layer_norm(x, gamma, beta):
    mu = jnp.mean(x, axis=-1, keepdims=True)
    var = jnp.mean((x - mu) ** 2, axis=-1, keepdims=True)
    return (x - mu) * jax.lax.rsqrt(var + LN_EPS) * gamma + beta


def fused_encoder_kernel(x_ref,
                         wqkv_ref, bqkv_ref, wo_ref, bo_ref,
                         g1_ref, be1_ref, w1_ref, b1_ref,
                         w2_ref, b2_ref, g2_ref, be2_ref,
                         o_ref, *, nhead, num_layers):
    Bt, S, C = x_ref.shape
    hd = C // nhead
    scale = 1.0 / math.sqrt(hd)

    # Flattened (Bt*S, C) slab so the projection / FFN matmuls have a tall M.
    x = x_ref[...].astype(jnp.float32).reshape(Bt * S, C)

    for l in range(num_layers):
        # ---- Multi-head self-attention -------------------------------------
        # Fused QKV: one wide bf16 matmul, f32 accumulation.
        qkv = jnp.dot(x.astype(jnp.bfloat16), wqkv_ref[l],
                      preferred_element_type=jnp.float32) + bqkv_ref[l]
        qkv = qkv.reshape(Bt, S, 3 * C)
        q = qkv[:, :, 0 * C:1 * C].astype(jnp.bfloat16)
        k = qkv[:, :, 1 * C:2 * C].astype(jnp.bfloat16)
        v = qkv[:, :, 2 * C:3 * C].astype(jnp.bfloat16)

        heads = []
        for h in range(nhead):
            sl = slice(h * hd, (h + 1) * hd)
            qh, kh, vh = q[:, :, sl], k[:, :, sl], v[:, :, sl]
            # Scores: contract the last dims directly (MXU takes the
            # transposed operand natively, no explicit k.T relayout).
            s = jax.lax.dot_general(
                qh, kh,
                dimension_numbers=(((2,), (2,)), ((0,), (0,))),
                preferred_element_type=jnp.float32) * scale        # (Bt, S, S)
            s = s - jnp.max(s, axis=-1, keepdims=True)
            p = jnp.exp(s)
            p = p * pl.reciprocal(jnp.sum(p, axis=-1, keepdims=True),
                                  approx=True)
            heads.append(jax.lax.dot_general(
                p.astype(jnp.bfloat16), vh,
                dimension_numbers=(((2,), (1,)), ((0,), (0,))),
                preferred_element_type=jnp.float32))                # (Bt, S, hd)

        # Lane-dense concat of all heads, then ONE output projection.
        attn = jnp.concatenate(heads, axis=-1).reshape(Bt * S, C)
        attn = jnp.dot(attn.astype(jnp.bfloat16), wo_ref[l],
                       preferred_element_type=jnp.float32) + bo_ref[l]

        x = _layer_norm(x + attn, g1_ref[l], be1_ref[l])

        # ---- Feed-forward (ReLU) -------------------------------------------
        hidden = jnp.dot(x.astype(jnp.bfloat16), w1_ref[l],
                         preferred_element_type=jnp.float32) + b1_ref[l]
        hidden = jnp.maximum(hidden, 0.0)
        ffn = jnp.dot(hidden.astype(jnp.bfloat16), w2_ref[l],
                      preferred_element_type=jnp.float32) + b2_ref[l]
        x = _layer_norm(x + ffn, g2_ref[l], be2_ref[l])

    o_ref[...] = x.reshape(Bt, S, C).astype(o_ref.dtype)


def _const_spec(a):
    nd = a.ndim
    return pl.BlockSpec(a.shape, lambda b, _nd=nd: (0,) * _nd)


def _pick_batch_block(B, S, row_cap=1024):
    """Largest batch block that keeps >=2 grid steps (megacore) and Bt*S <= cap."""
    best = 1
    for bt in range(1, B + 1):
        if B % bt:
            continue
        if bt * S > row_cap:
            continue
        if (B // bt) >= 2 or B == 1:
            best = bt
    return best


def transformer_encoder(x_bsc, stacked, nhead, num_layers):
    """Both encoder layers in a single pallas_call over a (B, S, C) tensor."""
    B, S, C = x_bsc.shape
    assert C % nhead == 0
    block_b = _pick_batch_block(B, S)

    arrays = [x_bsc] + [stacked[n] for n in _PARAM_ORDER]
    in_specs = ([pl.BlockSpec((block_b, S, C), lambda b: (b, 0, 0))]
                + [_const_spec(stacked[n]) for n in _PARAM_ORDER])

    return pl.pallas_call(
        functools.partial(fused_encoder_kernel, nhead=nhead,
                          num_layers=num_layers),
        out_shape=jax.ShapeDtypeStruct((B, S, C), x_bsc.dtype),
        grid=(B // block_b,),
        in_specs=in_specs,
        out_specs=pl.BlockSpec((block_b, S, C), lambda b: (b, 0, 0)),
        compiler_params=pltpu.CompilerParams(
            dimension_semantics=("parallel",),
            vmem_limit_bytes=32 * 1024 * 1024),
    )(*arrays)


def init_layer_params(key, C, ff):
    ks = jax.random.split(key, 8)

    def lin(k, fan_in, shape):
        bound = 1.0 / math.sqrt(fan_in)
        return jax.random.uniform(k, shape, jnp.float32, -bound, bound)

    return {
        'wqkv': lin(ks[0], C, (C, 3 * C)),
        'bqkv': lin(ks[1], C, (1, 3 * C)),
        'wo':   lin(ks[2], C, (C, C)),
        'bo':   lin(ks[3], C, (1, C)),
        'g1': jnp.ones((1, C), jnp.float32), 'be1': jnp.zeros((1, C), jnp.float32),
        'w1':   lin(ks[4], C, (C, ff)),
        'b1':   lin(ks[5], C, (1, ff)),
        'w2':   lin(ks[6], ff, (ff, C)),
        'b2':   lin(ks[7], ff, (1, C)),
        'g2': jnp.ones((1, C), jnp.float32), 'be2': jnp.zeros((1, C), jnp.float32),
    }


def stack_layers(layers):
    """Stack per-layer params along a leading layer axis; bf16 matmul weights."""
    stacked = {k: jnp.stack([lp[k] for lp in layers]) for k in layers[0]}
    for k in ('wqkv', 'wo', 'w1', 'w2'):
        stacked[k] = stacked[k].astype(jnp.bfloat16)
    return stacked


def init_params(key, channels, ff, nhead, num_layers):
    k_row, k_col, *k_layers = jax.random.split(key, 2 + num_layers)
    layers = [init_layer_params(k, channels, ff) for k in k_layers]
    return {
        'row_embed': jax.random.uniform(k_row, (50, channels // 2), jnp.float32),
        'col_embed': jax.random.uniform(k_col, (50, channels // 2), jnp.float32),
        'stacked': stack_layers(layers),
        'nhead': nhead,
        'num_layers': num_layers,
    }


def adjust_transformer_forward(x_f, params):
    """x_f: (B, C, H, W) NCHW, matching the PyTorch module."""
    b, c, h, w = x_f.shape
    col = params['col_embed'][:w]                      # (w, c//2)
    row = params['row_embed'][:h]                      # (h, c//2)
    pos = jnp.concatenate([
        jnp.broadcast_to(col[None, :, :], (h, w, c // 2)),
        jnp.broadcast_to(row[:, None, :], (h, w, c // 2)),
    ], axis=-1).transpose(2, 0, 1)[None]               # (1, c, h, w); broadcasts over B
    src = x_f + pos                                    # pos + x_f (q = k = v)
    src_bsc = src.reshape(b, c, h * w).transpose(0, 2, 1)   # (B, S, C)

    y = transformer_encoder(src_bsc, params['stacked'],
                            params['nhead'], params['num_layers'])

    return y.transpose(0, 2, 1).reshape(b, c, h, w)    # back to NCHW


if __name__ == "__main__":
    # Small shapes consistent with the module: channels=32 stands in for the
    # default 256 (must be divisible by nhead=8 and even for the pos embed).
    B, C, H, W = 2, 32, 8, 8
    NHEAD, FF, NUM_LAYERS = 8, 64, 2

    key = jax.random.PRNGKey(0)
    k_x, k_p = jax.random.split(key)
    x_f = jax.random.normal(k_x, (B, C, H, W), jnp.float32)
    params = init_params(k_p, C, FF, NHEAD, NUM_LAYERS)

    out = adjust_transformer_forward(x_f, params)
    out = jax.block_until_ready(out)
    assert out.shape == (B, C, H, W) and out.dtype == jnp.float32
    print("KERNEL_OK")
</pallas_src>

<mosaic_0001>
module attributes {stable_mosaic.version = 11 : i64} {
  func.func @fused_encoder_kernel(%arg0: i32, %arg1: memref<1x64x32xf32, #tpu.memory_space<vmem>>, %arg2: memref<2x32x96xbf16, #tpu.memory_space<vmem>>, %arg3: memref<2x1x96xf32, #tpu.memory_space<vmem>>, %arg4: memref<2x32x32xbf16, #tpu.memory_space<vmem>>, %arg5: memref<2x1x32xf32, #tpu.memory_space<vmem>>, %arg6: memref<2x1x32xf32, #tpu.memory_space<vmem>>, %arg7: memref<2x1x32xf32, #tpu.memory_space<vmem>>, %arg8: memref<2x32x64xbf16, #tpu.memory_space<vmem>>, %arg9: memref<2x1x64xf32, #tpu.memory_space<vmem>>, %arg10: memref<2x64x32xbf16, #tpu.memory_space<vmem>>, %arg11: memref<2x1x32xf32, #tpu.memory_space<vmem>>, %arg12: memref<2x1x32xf32, #tpu.memory_space<vmem>>, %arg13: memref<2x1x32xf32, #tpu.memory_space<vmem>>, %arg14: memref<1x64x32xf32, #tpu.memory_space<vmem>>) attributes {dimension_semantics = [#tpu.dimension_semantics<parallel>], iteration_bounds = array<i64: 2>, scalar_prefetch = 0 : i64, scratch_operands = 0 : i64, tpu.core_type = #tpu.core_type<tc>, window_params = [{transform_indices = @transform_0, window_bounds = array<i64: 1, 64, 32>}, {pipeline_mode = #tpu.pipeline_mode<synchronous>, transform_indices = @transform_1, window_bounds = array<i64: 2, 32, 96>}, {pipeline_mode = #tpu.pipeline_mode<synchronous>, transform_indices = @transform_2, window_bounds = array<i64: 2, 1, 96>}, {pipeline_mode = #tpu.pipeline_mode<synchronous>, transform_indices = @transform_3, window_bounds = array<i64: 2, 32, 32>}, {pipeline_mode = #tpu.pipeline_mode<synchronous>, transform_indices = @transform_4, window_bounds = array<i64: 2, 1, 32>}, {pipeline_mode = #tpu.pipeline_mode<synchronous>, transform_indices = @transform_5, window_bounds = array<i64: 2, 1, 32>}, {pipeline_mode = #tpu.pipeline_mode<synchronous>, transform_indices = @transform_6, window_bounds = array<i64: 2, 1, 32>}, {pipeline_mode = #tpu.pipeline_mode<synchronous>, transform_indices = @transform_7, window_bounds = array<i64: 2, 32, 64>}, {pipeline_mode = #tpu.pipeline_mode<synchronous>, transform_indices = @transform_8, window_bounds = array<i64: 2, 1, 64>}, {pipeline_mode = #tpu.pipeline_mode<synchronous>, transform_indices = @transform_9, window_bounds = array<i64: 2, 64, 32>}, {pipeline_mode = #tpu.pipeline_mode<synchronous>, transform_indices = @transform_10, window_bounds = array<i64: 2, 1, 32>}, {pipeline_mode = #tpu.pipeline_mode<synchronous>, transform_indices = @transform_11, window_bounds = array<i64: 2, 1, 32>}, {pipeline_mode = #tpu.pipeline_mode<synchronous>, transform_indices = @transform_12, window_bounds = array<i64: 2, 1, 32>}, {transform_indices = @transform_13, window_bounds = array<i64: 1, 64, 32>}]} {
    %c0 = arith.constant 0 : index
    %c0_0 = arith.constant 0 : index
    %c0_1 = arith.constant 0 : index
    %0 = vector.load %arg1[%c0, %c0_0, %c0_1] : memref<1x64x32xf32, #tpu.memory_space<vmem>>, vector<1x64x32xf32>
    %1 = vector.shape_cast %0 : vector<1x64x32xf32> to vector<64x32xf32>
    %2 = arith.truncf %1 : vector<64x32xf32> to vector<64x32xbf16>
    %c0_2 = arith.constant 0 : index
    %c0_3 = arith.constant 0 : index
    %c0_4 = arith.constant 0 : index
    %3 = vector.load %arg2[%c0_2, %c0_3, %c0_4] : memref<2x32x96xbf16, #tpu.memory_space<vmem>>, vector<1x32x96xbf16>
    %4 = vector.shape_cast %3 : vector<1x32x96xbf16> to vector<32x96xbf16>
    %cst = arith.constant dense<0.000000e+00> : vector<64x96xf32>
    %5 = tpu.matmul %2, %4, %cst {dimension_numbers = #tpu.dot_dimension_numbers<[1], [0], [0], [1], [0, 0, 1, 1], [], []>} : vector<64x32xbf16>, vector<32x96xbf16>, vector<64x96xf32> -> vector<64x96xf32>
    %c0_5 = arith.constant 0 : index
    %c0_6 = arith.constant 0 : index
    %c0_7 = arith.constant 0 : index
    %6 = vector.load %arg3[%c0_5, %c0_6, %c0_7] : memref<2x1x96xf32, #tpu.memory_space<vmem>>, vector<1x1x96xf32>
    %7 = vector.shape_cast %6 : vector<1x1x96xf32> to vector<1x96xf32>
    %8 = vector.broadcast %7 : vector<1x96xf32> to vector<64x96xf32>
    %9 = arith.addf %5, %8 : vector<64x96xf32>
    %10 = vector.shape_cast %9 : vector<64x96xf32> to vector<1x64x96xf32>
    %11 = vector.extract_strided_slice %10 {offsets = [0, 0, 0], sizes = [1, 64, 32], strides = [1, 1, 1]} : vector<1x64x96xf32> to vector<1x64x32xf32>
    %12 = arith.truncf %11 : vector<1x64x32xf32> to vector<1x64x32xbf16>
    %13 = vector.extract_strided_slice %10 {offsets = [0, 0, 32], sizes = [1, 64, 32], strides = [1, 1, 1]} : vector<1x64x96xf32> to vector<1x64x32xf32>
    %14 = arith.truncf %13 : vector<1x64x32xf32> to vector<1x64x32xbf16>
    %15 = vector.extract_strided_slice %10 {offsets = [0, 0, 64], sizes = [1, 64, 32], strides = [1, 1, 1]} : vector<1x64x96xf32> to vector<1x64x32xf32>
    %16 = arith.truncf %15 : vector<1x64x32xf32> to vector<1x64x32xbf16>
    %17 = vector.extract_strided_slice %12 {offsets = [0, 0, 0], sizes = [1, 64, 4], strides = [1, 1, 1]} : vector<1x64x32xbf16> to vector<1x64x4xbf16>
    %18 = vector.extract_strided_slice %14 {offsets = [0, 0, 0], sizes = [1, 64, 4], strides = [1, 1, 1]} : vector<1x64x32xbf16> to vector<1x64x4xbf16>
    %19 = vector.extract_strided_slice %16 {offsets = [0, 0, 0], sizes = [1, 64, 4], strides = [1, 1, 1]} : vector<1x64x32xbf16> to vector<1x64x4xbf16>
    %cst_8 = arith.constant dense<0.000000e+00> : vector<1x64x64xf32>
    %20 = tpu.matmul %17, %18, %cst_8 {dimension_numbers = #tpu.dot_dimension_numbers<[2], [2], [1], [1], [0, 0, 0, 1, 1, 1], [0], [0]>} : vector<1x64x4xbf16>, vector<1x64x4xbf16>, vector<1x64x64xf32> -> vector<1x64x64xf32>
    %cst_9 = arith.constant 5.000000e-01 : f32
    %21 = vector.broadcast %cst_9 : f32 to vector<1x64x64xf32>
    %22 = arith.mulf %20, %21 : vector<1x64x64xf32>
    %cst_10 = arith.constant dense<0xFF800000> : vector<1x64xf32>
    %23 = vector.multi_reduction <maximumf>, %22, %cst_10 [2] : vector<1x64x64xf32> to vector<1x64xf32>
    %24 = vector.shape_cast %23 : vector<1x64xf32> to vector<1x64x1xf32>
    %25 = vector.broadcast %24 : vector<1x64x1xf32> to vector<1x64x64xf32>
    %26 = arith.subf %22, %25 : vector<1x64x64xf32>
    %27 = math.exp %26 : vector<1x64x64xf32>
    %cst_11 = arith.constant dense<0.000000e+00> : vector<1x64xf32>
    %28 = vector.multi_reduction <add>, %27, %cst_11 [2] : vector<1x64x64xf32> to vector<1x64xf32>
    %29 = vector.shape_cast %28 : vector<1x64xf32> to vector<1x64x1xf32>
    %30 = tpu.reciprocal %29 {approx = true} : vector<1x64x1xf32> -> vector<1x64x1xf32>
    %31 = vector.broadcast %30 : vector<1x64x1xf32> to vector<1x64x64xf32>
    %32 = arith.mulf %27, %31 : vector<1x64x64xf32>
    %33 = arith.truncf %32 : vector<1x64x64xf32> to vector<1x64x64xbf16>
    %cst_12 = arith.constant dense<0.000000e+00> : vector<1x64x4xf32>
    %34 = tpu.matmul %33, %19, %cst_12 {dimension_numbers = #tpu.dot_dimension_numbers<[2], [1], [1], [2], [0, 0, 0, 1, 1, 2], [0], [0]>} : vector<1x64x64xbf16>, vector<1x64x4xbf16>, vector<1x64x4xf32> -> vector<1x64x4xf32>
    %35 = vector.extract_strided_slice %12 {offsets = [0, 0, 4], sizes = [1, 64, 4], strides = [1, 1, 1]} : vector<1x64x32xbf16> to vector<1x64x4xbf16>
    %36 = vector.extract_strided_slice %14 {offsets = [0, 0, 4], sizes = [1, 64, 4], strides = [1, 1, 1]} : vector<1x64x32xbf16> to vector<1x64x4xbf16>
    %37 = vector.extract_strided_slice %16 {offsets = [0, 0, 4], sizes = [1, 64, 4], strides = [1, 1, 1]} : vector<1x64x32xbf16> to vector<1x64x4xbf16>
    %cst_13 = arith.constant dense<0.000000e+00> : vector<1x64x64xf32>
    %38 = tpu.matmul %35, %36, %cst_13 {dimension_numbers = #tpu.dot_dimension_numbers<[2], [2], [1], [1], [0, 0, 0, 1, 1, 1], [0], [0]>} : vector<1x64x4xbf16>, vector<1x64x4xbf16>, vector<1x64x64xf32> -> vector<1x64x64xf32>
    %cst_14 = arith.constant 5.000000e-01 : f32
    %39 = vector.broadcast %cst_14 : f32 to vector<1x64x64xf32>
    %40 = arith.mulf %38, %39 : vector<1x64x64xf32>
    %cst_15 = arith.constant dense<0xFF800000> : vector<1x64xf32>
    %41 = vector.multi_reduction <maximumf>, %40, %cst_15 [2] : vector<1x64x64xf32> to vector<1x64xf32>
    %42 = vector.shape_cast %41 : vector<1x64xf32> to vector<1x64x1xf32>
    %43 = vector.broadcast %42 : vector<1x64x1xf32> to vector<1x64x64xf32>
    %44 = arith.subf %40, %43 : vector<1x64x64xf32>
    %45 = math.exp %44 : vector<1x64x64xf32>
    %cst_16 = arith.constant dense<0.000000e+00> : vector<1x64xf32>
    %46 = vector.multi_reduction <add>, %45, %cst_16 [2] : vector<1x64x64xf32> to vector<1x64xf32>
    %47 = vector.shape_cast %46 : vector<1x64xf32> to vector<1x64x1xf32>
    %48 = tpu.reciprocal %47 {approx = true} : vector<1x64x1xf32> -> vector<1x64x1xf32>
    %49 = vector.broadcast %48 : vector<1x64x1xf32> to vector<1x64x64xf32>
    %50 = arith.mulf %45, %49 : vector<1x64x64xf32>
    %51 = arith.truncf %50 : vector<1x64x64xf32> to vector<1x64x64xbf16>
    %cst_17 = arith.constant dense<0.000000e+00> : vector<1x64x4xf32>
    %52 = tpu.matmul %51, %37, %cst_17 {dimension_numbers = #tpu.dot_dimension_numbers<[2], [1], [1], [2], [0, 0, 0, 1, 1, 2], [0], [0]>} : vector<1x64x64xbf16>, vector<1x64x4xbf16>, vector<1x64x4xf32> -> vector<1x64x4xf32>
    %53 = vector.extract_strided_slice %12 {offsets = [0, 0, 8], sizes = [1, 64, 4], strides = [1, 1, 1]} : vector<1x64x32xbf16> to vector<1x64x4xbf16>
    %54 = vector.extract_strided_slice %14 {offsets = [0, 0, 8], sizes = [1, 64, 4], strides = [1, 1, 1]} : vector<1x64x32xbf16> to vector<1x64x4xbf16>
    %55 = vector.extract_strided_slice %16 {offsets = [0, 0, 8], sizes = [1, 64, 4], strides = [1, 1, 1]} : vector<1x64x32xbf16> to vector<1x64x4xbf16>
    %cst_18 = arith.constant dense<0.000000e+00> : vector<1x64x64xf32>
    %56 = tpu.matmul %53, %54, %cst_18 {dimension_numbers = #tpu.dot_dimension_numbers<[2], [2], [1], [1], [0, 0, 0, 1, 1, 1], [0], [0]>} : vector<1x64x4xbf16>, vector<1x64x4xbf16>, vector<1x64x64xf32> -> vector<1x64x64xf32>
    %cst_19 = arith.constant 5.000000e-01 : f32
    %57 = vector.broadcast %cst_19 : f32 to vector<1x64x64xf32>
    %58 = arith.mulf %56, %57 : vector<1x64x64xf32>
    %cst_20 = arith.constant dense<0xFF800000> : vector<1x64xf32>
    %59 = vector.multi_reduction <maximumf>, %58, %cst_20 [2] : vector<1x64x64xf32> to vector<1x64xf32>
    %60 = vector.shape_cast %59 : vector<1x64xf32> to vector<1x64x1xf32>
    %61 = vector.broadcast %60 : vector<1x64x1xf32> to vector<1x64x64xf32>
    %62 = arith.subf %58, %61 : vector<1x64x64xf32>
    %63 = math.exp %62 : vector<1x64x64xf32>
    %cst_21 = arith.constant dense<0.000000e+00> : vector<1x64xf32>
    %64 = vector.multi_reduction <add>, %63, %cst_21 [2] : vector<1x64x64xf32> to vector<1x64xf32>
    %65 = vector.shape_cast %64 : vector<1x64xf32> to vector<1x64x1xf32>
    %66 = tpu.reciprocal %65 {approx = true} : vector<1x64x1xf32> -> vector<1x64x1xf32>
    %67 = vector.broadcast %66 : vector<1x64x1xf32> to vector<1x64x64xf32>
    %68 = arith.mulf %63, %67 : vector<1x64x64xf32>
    %69 = arith.truncf %68 : vector<1x64x64xf32> to vector<1x64x64xbf16>
    %cst_22 = arith.constant dense<0.000000e+00> : vector<1x64x4xf32>
    %70 = tpu.matmul %69, %55, %cst_22 {dimension_numbers = #tpu.dot_dimension_numbers<[2], [1], [1], [2], [0, 0, 0, 1, 1, 2], [0], [0]>} : vector<1x64x64xbf16>, vector<1x64x4xbf16>, vector<1x64x4xf32> -> vector<1x64x4xf32>
    %71 = vector.extract_strided_slice %12 {offsets = [0, 0, 12], sizes = [1, 64, 4], strides = [1, 1, 1]} : vector<1x64x32xbf16> to vector<1x64x4xbf16>
    %72 = vector.extract_strided_slice %14 {offsets = [0, 0, 12], sizes = [1, 64, 4], strides = [1, 1, 1]} : vector<1x64x32xbf16> to vector<1x64x4xbf16>
    %73 = vector.extract_strided_slice %16 {offsets = [0, 0, 12], sizes = [1, 64, 4], strides = [1, 1, 1]} : vector<1x64x32xbf16> to vector<1x64x4xbf16>
    %cst_23 = arith.constant dense<0.000000e+00> : vector<1x64x64xf32>
    %74 = tpu.matmul %71, %72, %cst_23 {dimension_numbers = #tpu.dot_dimension_numbers<[2], [2], [1], [1], [0, 0, 0, 1, 1, 1], [0], [0]>} : vector<1x64x4xbf16>, vector<1x64x4xbf16>, vector<1x64x64xf32> -> vector<1x64x64xf32>
    %cst_24 = arith.constant 5.000000e-01 : f32
    %75 = vector.broadcast %cst_24 : f32 to vector<1x64x64xf32>
    %76 = arith.mulf %74, %75 : vector<1x64x64xf32>
    %cst_25 = arith.constant dense<0xFF800000> : vector<1x64xf32>
    %77 = vector.multi_reduction <maximumf>, %76, %cst_25 [2] : vector<1x64x64xf32> to vector<1x64xf32>
    %78 = vector.shape_cast %77 : vector<1x64xf32> to vector<1x64x1xf32>
    %79 = vector.broadcast %78 : vector<1x64x1xf32> to vector<1x64x64xf32>
    %80 = arith.subf %76, %79 : vector<1x64x64xf32>
    %81 = math.exp %80 : vector<1x64x64xf32>
    %cst_26 = arith.constant dense<0.000000e+00> : vector<1x64xf32>
    %82 = vector.multi_reduction <add>, %81, %cst_26 [2] : vector<1x64x64xf32> to vector<1x64xf32>
    %83 = vector.shape_cast %82 : vector<1x64xf32> to vector<1x64x1xf32>
    %84 = tpu.reciprocal %83 {approx = true} : vector<1x64x1xf32> -> vector<1x64x1xf32>
    %85 = vector.broadcast %84 : vector<1x64x1xf32> to vector<1x64x64xf32>
    %86 = arith.mulf %81, %85 : vector<1x64x64xf32>
    %87 = arith.truncf %86 : vector<1x64x64xf32> to vector<1x64x64xbf16>
    %cst_27 = arith.constant dense<0.000000e+00> : vector<1x64x4xf32>
    %88 = tpu.matmul %87, %73, %cst_27 {dimension_numbers = #tpu.dot_dimension_numbers<[2], [1], [1], [2], [0, 0, 0, 1, 1, 2], [0], [0]>} : vector<1x64x64xbf16>, vector<1x64x4xbf16>, vector<1x64x4xf32> -> vector<1x64x4xf32>
    %89 = vector.extract_strided_slice %12 {offsets = [0, 0, 16], sizes = [1, 64, 4], strides = [1, 1, 1]} : vector<1x64x32xbf16> to vector<1x64x4xbf16>
    %90 = vector.extract_strided_slice %14 {offsets = [0, 0, 16], sizes = [1, 64, 4], strides = [1, 1, 1]} : vector<1x64x32xbf16> to vector<1x64x4xbf16>
    %91 = vector.extract_strided_slice %16 {offsets = [0, 0, 16], sizes = [1, 64, 4], strides = [1, 1, 1]} : vector<1x64x32xbf16> to vector<1x64x4xbf16>
    %cst_28 = arith.constant dense<0.000000e+00> : vector<1x64x64xf32>
    %92 = tpu.matmul %89, %90, %cst_28 {dimension_numbers = #tpu.dot_dimension_numbers<[2], [2], [1], [1], [0, 0, 0, 1, 1, 1], [0], [0]>} : vector<1x64x4xbf16>, vector<1x64x4xbf16>, vector<1x64x64xf32> -> vector<1x64x64xf32>
    %cst_29 = arith.constant 5.000000e-01 : f32
    %93 = vector.broadcast %cst_29 : f32 to vector<1x64x64xf32>
    %94 = arith.mulf %92, %93 : vector<1x64x64xf32>
    %cst_30 = arith.constant dense<0xFF800000> : vector<1x64xf32>
    %95 = vector.multi_reduction <maximumf>, %94, %cst_30 [2] : vector<1x64x64xf32> to vector<1x64xf32>
    %96 = vector.shape_cast %95 : vector<1x64xf32> to vector<1x64x1xf32>
    %97 = vector.broadcast %96 : vector<1x64x1xf32> to vector<1x64x64xf32>
    %98 = arith.subf %94, %97 : vector<1x64x64xf32>
    %99 = math.exp %98 : vector<1x64x64xf32>
    %cst_31 = arith.constant dense<0.000000e+00> : vector<1x64xf32>
    %100 = vector.multi_reduction <add>, %99, %cst_31 [2] : vector<1x64x64xf32> to vector<1x64xf32>
    %101 = vector.shape_cast %100 : vector<1x64xf32> to vector<1x64x1xf32>
    %102 = tpu.reciprocal %101 {approx = true} : vector<1x64x1xf32> -> vector<1x64x1xf32>
    %103 = vector.broadcast %102 : vector<1x64x1xf32> to vector<1x64x64xf32>
    %104 = arith.mulf %99, %103 : vector<1x64x64xf32>
    %105 = arith.truncf %104 : vector<1x64x64xf32> to vector<1x64x64xbf16>
    %cst_32 = arith.constant dense<0.000000e+00> : vector<1x64x4xf32>
    %106 = tpu.matmul %105, %91, %cst_32 {dimension_numbers = #tpu.dot_dimension_numbers<[2], [1], [1], [2], [0, 0, 0, 1, 1, 2], [0], [0]>} : vector<1x64x64xbf16>, vector<1x64x4xbf16>, vector<1x64x4xf32> -> vector<1x64x4xf32>
    %107 = vector.extract_strided_slice %12 {offsets = [0, 0, 20], sizes = [1, 64, 4], strides = [1, 1, 1]} : vector<1x64x32xbf16> to vector<1x64x4xbf16>
    %108 = vector.extract_strided_slice %14 {offsets = [0, 0, 20], sizes = [1, 64, 4], strides = [1, 1, 1]} : vector<1x64x32xbf16> to vector<1x64x4xbf16>
    %109 = vector.extract_strided_slice %16 {offsets = [0, 0, 20], sizes = [1, 64, 4], strides = [1, 1, 1]} : vector<1x64x32xbf16> to vector<1x64x4xbf16>
    %cst_33 = arith.constant dense<0.000000e+00> : vector<1x64x64xf32>
    %110 = tpu.matmul %107, %108, %cst_33 {dimension_numbers = #tpu.dot_dimension_numbers<[2], [2], [1], [1], [0, 0, 0, 1, 1, 1], [0], [0]>} : vector<1x64x4xbf16>, vector<1x64x4xbf16>, vector<1x64x64xf32> -> vector<1x64x64xf32>
    %cst_34 = arith.constant 5.000000e-01 : f32
    %111 = vector.broadcast %cst_34 : f32 to vector<1x64x64xf32>
    %112 = arith.mulf %110, %111 : vector<1x64x64xf32>
    %cst_35 = arith.constant dense<0xFF800000> : vector<1x64xf32>
    %113 = vector.multi_reduction <maximumf>, %112, %cst_35 [2] : vector<1x64x64xf32> to vector<1x64xf32>
    %114 = vector.shape_cast %113 : vector<1x64xf32> to vector<1x64x1xf32>
    %115 = vector.broadcast %114 : vector<1x64x1xf32> to vector<1x64x64xf32>
    %116 = arith.subf %112, %115 : vector<1x64x64xf32>
    %117 = math.exp %116 : vector<1x64x64xf32>
    %cst_36 = arith.constant dense<0.000000e+00> : vector<1x64xf32>
    %118 = vector.multi_reduction <add>, %117, %cst_36 [2] : vector<1x64x64xf32> to vector<1x64xf32>
    %119 = vector.shape_cast %118 : vector<1x64xf32> to vector<1x64x1xf32>
    %120 = tpu.reciprocal %119 {approx = true} : vector<1x64x1xf32> -> vector<1x64x1xf32>
    %121 = vector.broadcast %120 : vector<1x64x1xf32> to vector<1x64x64xf32>
    %122 = arith.mulf %117, %121 : vector<1x64x64xf32>
    %123 = arith.truncf %122 : vector<1x64x64xf32> to vector<1x64x64xbf16>
    %cst_37 = arith.constant dense<0.000000e+00> : vector<1x64x4xf32>
    %124 = tpu.matmul %123, %109, %cst_37 {dimension_numbers = #tpu.dot_dimension_numbers<[2], [1], [1], [2], [0, 0, 0, 1, 1, 2], [0], [0]>} : vector<1x64x64xbf16>, vector<1x64x4xbf16>, vector<1x64x4xf32> -> vector<1x64x4xf32>
    %125 = vector.extract_strided_slice %12 {offsets = [0, 0, 24], sizes = [1, 64, 4], strides = [1, 1, 1]} : vector<1x64x32xbf16> to vector<1x64x4xbf16>
    %126 = vector.extract_strided_slice %14 {offsets = [0, 0, 24], sizes = [1, 64, 4], strides = [1, 1, 1]} : vector<1x64x32xbf16> to vector<1x64x4xbf16>
    %127 = vector.extract_strided_slice %16 {offsets = [0, 0, 24], sizes = [1, 64, 4], strides = [1, 1, 1]} : vector<1x64x32xbf16> to vector<1x64x4xbf16>
    %cst_38 = arith.constant dense<0.000000e+00> : vector<1x64x64xf32>
    %128 = tpu.matmul %125, %126, %cst_38 {dimension_numbers = #tpu.dot_dimension_numbers<[2], [2], [1], [1], [0, 0, 0, 1, 1, 1], [0], [0]>} : vector<1x64x4xbf16>, vector<1x64x4xbf16>, vector<1x64x64xf32> -> vector<1x64x64xf32>
    %cst_39 = arith.constant 5.000000e-01 : f32
    %129 = vector.broadcast %cst_39 : f32 to vector<1x64x64xf32>
    %130 = arith.mulf %128, %129 : vector<1x64x64xf32>
    %cst_40 = arith.constant dense<0xFF800000> : vector<1x64xf32>
    %131 = vector.multi_reduction <maximumf>, %130, %cst_40 [2] : vector<1x64x64xf32> to vector<1x64xf32>
    %132 = vector.shape_cast %131 : vector<1x64xf32> to vector<1x64x1xf32>
    %133 = vector.broadcast %132 : vector<1x64x1xf32> to vector<1x64x64xf32>
    %134 = arith.subf %130, %133 : vector<1x64x64xf32>
    %135 = math.exp %134 : vector<1x64x64xf32>
    %cst_41 = arith.constant dense<0.000000e+00> : vector<1x64xf32>
    %136 = vector.multi_reduction <add>, %135, %cst_41 [2] : vector<1x64x64xf32> to vector<1x64xf32>
    %137 = vector.shape_cast %136 : vector<1x64xf32> to vector<1x64x1xf32>
    %138 = tpu.reciprocal %137 {approx = true} : vector<1x64x1xf32> -> vector<1x64x1xf32>
    %139 = vector.broadcast %138 : vector<1x64x1xf32> to vector<1x64x64xf32>
    %140 = arith.mulf %135, %139 : vector<1x64x64xf32>
    %141 = arith.truncf %140 : vector<1x64x64xf32> to vector<1x64x64xbf16>
    %cst_42 = arith.constant dense<0.000000e+00> : vector<1x64x4xf32>
    %142 = tpu.matmul %141, %127, %cst_42 {dimension_numbers = #tpu.dot_dimension_numbers<[2], [1], [1], [2], [0, 0, 0, 1, 1, 2], [0], [0]>} : vector<1x64x64xbf16>, vector<1x64x4xbf16>, vector<1x64x4xf32> -> vector<1x64x4xf32>
    %143 = vector.extract_strided_slice %12 {offsets = [0, 0, 28], sizes = [1, 64, 4], strides = [1, 1, 1]} : vector<1x64x32xbf16> to vector<1x64x4xbf16>
    %144 = vector.extract_strided_slice %14 {offsets = [0, 0, 28], sizes = [1, 64, 4], strides = [1, 1, 1]} : vector<1x64x32xbf16> to vector<1x64x4xbf16>
    %145 = vector.extract_strided_slice %16 {offsets = [0, 0, 28], sizes = [1, 64, 4], strides = [1, 1, 1]} : vector<1x64x32xbf16> to vector<1x64x4xbf16>
    %cst_43 = arith.constant dense<0.000000e+00> : vector<1x64x64xf32>
    %146 = tpu.matmul %143, %144, %cst_43 {dimension_numbers = #tpu.dot_dimension_numbers<[2], [2], [1], [1], [0, 0, 0, 1, 1, 1], [0], [0]>} : vector<1x64x4xbf16>, vector<1x64x4xbf16>, vector<1x64x64xf32> -> vector<1x64x64xf32>
    %cst_44 = arith.constant 5.000000e-01 : f32
    %147 = vector.broadcast %cst_44 : f32 to vector<1x64x64xf32>
    %148 = arith.mulf %146, %147 : vector<1x64x64xf32>
    %cst_45 = arith.constant dense<0xFF800000> : vector<1x64xf32>
    %149 = vector.multi_reduction <maximumf>, %148, %cst_45 [2] : vector<1x64x64xf32> to vector<1x64xf32>
    %150 = vector.shape_cast %149 : vector<1x64xf32> to vector<1x64x1xf32>
    %151 = vector.broadcast %150 : vector<1x64x1xf32> to vector<1x64x64xf32>
    %152 = arith.subf %148, %151 : vector<1x64x64xf32>
    %153 = math.exp %152 : vector<1x64x64xf32>
    %cst_46 = arith.constant dense<0.000000e+00> : vector<1x64xf32>
    %154 = vector.multi_reduction <add>, %153, %cst_46 [2] : vector<1x64x64xf32> to vector<1x64xf32>
    %155 = vector.shape_cast %154 : vector<1x64xf32> to vector<1x64x1xf32>
    %156 = tpu.reciprocal %155 {approx = true} : vector<1x64x1xf32> -> vector<1x64x1xf32>
    %157 = vector.broadcast %156 : vector<1x64x1xf32> to vector<1x64x64xf32>
    %158 = arith.mulf %153, %157 : vector<1x64x64xf32>
    %159 = arith.truncf %158 : vector<1x64x64xf32> to vector<1x64x64xbf16>
    %cst_47 = arith.constant dense<0.000000e+00> : vector<1x64x4xf32>
    %160 = tpu.matmul %159, %145, %cst_47 {dimension_numbers = #tpu.dot_dimension_numbers<[2], [1], [1], [2], [0, 0, 0, 1, 1, 2], [0], [0]>} : vector<1x64x64xbf16>, vector<1x64x4xbf16>, vector<1x64x4xf32> -> vector<1x64x4xf32>
    %161 = tpu.concatenate %34, %52, %70, %88, %106, %124, %142, %160 in 2 : vector<1x64x4xf32>, vector<1x64x4xf32>, vector<1x64x4xf32>, vector<1x64x4xf32>, vector<1x64x4xf32>, vector<1x64x4xf32>, vector<1x64x4xf32>, vector<1x64x4xf32> -> vector<1x64x32xf32>
    %162 = vector.shape_cast %161 : vector<1x64x32xf32> to vector<64x32xf32>
    %163 = arith.truncf %162 : vector<64x32xf32> to vector<64x32xbf16>
    %c0_48 = arith.constant 0 : index
    %c0_49 = arith.constant 0 : index
    %c0_50 = arith.constant 0 : index
    %164 = vector.load %arg4[%c0_48, %c0_49, %c0_50] : memref<2x32x32xbf16, #tpu.memory_space<vmem>>, vector<1x32x32xbf16>
    %165 = vector.shape_cast %164 : vector<1x32x32xbf16> to vector<32x32xbf16>
    %cst_51 = arith.constant dense<0.000000e+00> : vector<64x32xf32>
    %166 = tpu.matmul %163, %165, %cst_51 {dimension_numbers = #tpu.dot_dimension_numbers<[1], [0], [0], [1], [0, 0, 1, 1], [], []>} : vector<64x32xbf16>, vector<32x32xbf16>, vector<64x32xf32> -> vector<64x32xf32>
    %c0_52 = arith.constant 0 : index
    %c0_53 = arith.constant 0 : index
    %c0_54 = arith.constant 0 : index
    %167 = vector.load %arg5[%c0_52, %c0_53, %c0_54] : memref<2x1x32xf32, #tpu.memory_space<vmem>>, vector<1x1x32xf32>
    %168 = vector.shape_cast %167 : vector<1x1x32xf32> to vector<1x32xf32>
    %169 = vector.broadcast %168 : vector<1x32xf32> to vector<64x32xf32>
    %170 = arith.addf %166, %169 : vector<64x32xf32>
    %171 = arith.addf %1, %170 : vector<64x32xf32>
    %c0_55 = arith.constant 0 : index
    %c0_56 = arith.constant 0 : index
    %c0_57 = arith.constant 0 : index
    %172 = vector.load %arg6[%c0_55, %c0_56, %c0_57] : memref<2x1x32xf32, #tpu.memory_space<vmem>>, vector<1x1x32xf32>
    %173 = vector.shape_cast %172 : vector<1x1x32xf32> to vector<1x32xf32>
    %c0_58 = arith.constant 0 : index
    %c0_59 = arith.constant 0 : index
    %c0_60 = arith.constant 0 : index
    %174 = vector.load %arg7[%c0_58, %c0_59, %c0_60] : memref<2x1x32xf32, #tpu.memory_space<vmem>>, vector<1x1x32xf32>
    %175 = vector.shape_cast %174 : vector<1x1x32xf32> to vector<1x32xf32>
    %cst_61 = arith.constant dense<0.000000e+00> : vector<64xf32>
    %176 = vector.multi_reduction <add>, %171, %cst_61 [1] : vector<64x32xf32> to vector<64xf32>
    %177 = vector.shape_cast %176 : vector<64xf32> to vector<64x1xf32>
    %cst_62 = arith.constant 3.200000e+01 : f32
    %178 = vector.broadcast %cst_62 : f32 to vector<64x1xf32>
    %179 = arith.divf %177, %178 : vector<64x1xf32>
    %180 = vector.broadcast %179 : vector<64x1xf32> to vector<64x32xf32>
    %181 = arith.subf %171, %180 : vector<64x32xf32>
    %182 = arith.mulf %181, %181 : vector<64x32xf32>
    %cst_63 = arith.constant dense<0.000000e+00> : vector<64xf32>
    %183 = vector.multi_reduction <add>, %182, %cst_63 [1] : vector<64x32xf32> to vector<64xf32>
    %184 = vector.shape_cast %183 : vector<64xf32> to vector<64x1xf32>
    %cst_64 = arith.constant 3.200000e+01 : f32
    %185 = vector.broadcast %cst_64 : f32 to vector<64x1xf32>
    %186 = arith.divf %184, %185 : vector<64x1xf32>
    %187 = vector.broadcast %179 : vector<64x1xf32> to vector<64x32xf32>
    %188 = arith.subf %171, %187 : vector<64x32xf32>
    %cst_65 = arith.constant 9.99999974E-6 : f32
    %189 = vector.broadcast %cst_65 : f32 to vector<64x1xf32>
    %190 = arith.addf %186, %189 : vector<64x1xf32>
    %191 = math.rsqrt %190 : vector<64x1xf32>
    %192 = vector.broadcast %191 : vector<64x1xf32> to vector<64x32xf32>
    %193 = arith.mulf %188, %192 : vector<64x32xf32>
    %194 = vector.broadcast %173 : vector<1x32xf32> to vector<64x32xf32>
    %195 = arith.mulf %193, %194 : vector<64x32xf32>
    %196 = vector.broadcast %175 : vector<1x32xf32> to vector<64x32xf32>
    %197 = arith.addf %195, %196 : vector<64x32xf32>
    %198 = arith.truncf %197 : vector<64x32xf32> to vector<64x32xbf16>
    %c0_66 = arith.constant 0 : index
    %c0_67 = arith.constant 0 : index
    %c0_68 = arith.constant 0 : index
    %199 = vector.load %arg8[%c0_66, %c0_67, %c0_68] : memref<2x32x64xbf16, #tpu.memory_space<vmem>>, vector<1x32x64xbf16>
    %200 = vector.shape_cast %199 : vector<1x32x64xbf16> to vector<32x64xbf16>
    %cst_69 = arith.constant dense<0.000000e+00> : vector<64x64xf32>
    %201 = tpu.matmul %198, %200, %cst_69 {dimension_numbers = #tpu.dot_dimension_numbers<[1], [0], [0], [1], [0, 0, 1, 1], [], []>} : vector<64x32xbf16>, vector<32x64xbf16>, vector<64x64xf32> -> vector<64x64xf32>
    %c0_70 = arith.constant 0 : index
    %c0_71 = arith.constant 0 : index
    %c0_72 = arith.constant 0 : index
    %202 = vector.load %arg9[%c0_70, %c0_71, %c0_72] : memref<2x1x64xf32, #tpu.memory_space<vmem>>, vector<1x1x64xf32>
    %203 = vector.shape_cast %202 : vector<1x1x64xf32> to vector<1x64xf32>
    %204 = vector.broadcast %203 : vector<1x64xf32> to vector<64x64xf32>
    %205 = arith.addf %201, %204 : vector<64x64xf32>
    %cst_73 = arith.constant 0.000000e+00 : f32
    %206 = vector.broadcast %cst_73 : f32 to vector<64x64xf32>
    %207 = arith.maximumf %205, %206 : vector<64x64xf32>
    %208 = arith.truncf %207 : vector<64x64xf32> to vector<64x64xbf16>
    %c0_74 = arith.constant 0 : index
    %c0_75 = arith.constant 0 : index
    %c0_76 = arith.constant 0 : index
    %209 = vector.load %arg10[%c0_74, %c0_75, %c0_76] : memref<2x64x32xbf16, #tpu.memory_space<vmem>>, vector<1x64x32xbf16>
    %210 = vector.shape_cast %209 : vector<1x64x32xbf16> to vector<64x32xbf16>
    %cst_77 = arith.constant dense<0.000000e+00> : vector<64x32xf32>
    %211 = tpu.matmul %208, %210, %cst_77 {dimension_numbers = #tpu.dot_dimension_numbers<[1], [0], [0], [1], [0, 0, 1, 1], [], []>} : vector<64x64xbf16>, vector<64x32xbf16>, vector<64x32xf32> -> vector<64x32xf32>
    %c0_78 = arith.constant 0 : index
    %c0_79 = arith.constant 0 : index
    %c0_80 = arith.constant 0 : index
    %212 = vector.load %arg11[%c0_78, %c0_79, %c0_80] : memref<2x1x32xf32, #tpu.memory_space<vmem>>, vector<1x1x32xf32>
    %213 = vector.shape_cast %212 : vector<1x1x32xf32> to vector<1x32xf32>
    %214 = vector.broadcast %213 : vector<1x32xf32> to vector<64x32xf32>
    %215 = arith.addf %211, %214 : vector<64x32xf32>
    %216 = arith.addf %197, %215 : vector<64x32xf32>
    %c0_81 = arith.constant 0 : index
    %c0_82 = arith.constant 0 : index
    %c0_83 = arith.constant 0 : index
    %217 = vector.load %arg12[%c0_81, %c0_82, %c0_83] : memref<2x1x32xf32, #tpu.memory_space<vmem>>, vector<1x1x32xf32>
    %218 = vector.shape_cast %217 : vector<1x1x32xf32> to vector<1x32xf32>
    %c0_84 = arith.constant 0 : index
    %c0_85 = arith.constant 0 : index
    %c0_86 = arith.constant 0 : index
    %219 = vector.load %arg13[%c0_84, %c0_85, %c0_86] : memref<2x1x32xf32, #tpu.memory_space<vmem>>, vector<1x1x32xf32>
    %220 = vector.shape_cast %219 : vector<1x1x32xf32> to vector<1x32xf32>
    %cst_87 = arith.constant dense<0.000000e+00> : vector<64xf32>
    %221 = vector.multi_reduction <add>, %216, %cst_87 [1] : vector<64x32xf32> to vector<64xf32>
    %222 = vector.shape_cast %221 : vector<64xf32> to vector<64x1xf32>
    %cst_88 = arith.constant 3.200000e+01 : f32
    %223 = vector.broadcast %cst_88 : f32 to vector<64x1xf32>
    %224 = arith.divf %222, %223 : vector<64x1xf32>
    %225 = vector.broadcast %224 : vector<64x1xf32> to vector<64x32xf32>
    %226 = arith.subf %216, %225 : vector<64x32xf32>
    %227 = arith.mulf %226, %226 : vector<64x32xf32>
    %cst_89 = arith.constant dense<0.000000e+00> : vector<64xf32>
    %228 = vector.multi_reduction <add>, %227, %cst_89 [1] : vector<64x32xf32> to vector<64xf32>
    %229 = vector.shape_cast %228 : vector<64xf32> to vector<64x1xf32>
    %cst_90 = arith.constant 3.200000e+01 : f32
    %230 = vector.broadcast %cst_90 : f32 to vector<64x1xf32>
    %231 = arith.divf %229, %230 : vector<64x1xf32>
    %232 = vector.broadcast %224 : vector<64x1xf32> to vector<64x32xf32>
    %233 = arith.subf %216, %232 : vector<64x32xf32>
    %cst_91 = arith.constant 9.99999974E-6 : f32
    %234 = vector.broadcast %cst_91 : f32 to vector<64x1xf32>
    %235 = arith.addf %231, %234 : vector<64x1xf32>
    %236 = math.rsqrt %235 : vector<64x1xf32>
    %237 = vector.broadcast %236 : vector<64x1xf32> to vector<64x32xf32>
    %238 = arith.mulf %233, %237 : vector<64x32xf32>
    %239 = vector.broadcast %218 : vector<1x32xf32> to vector<64x32xf32>
    %240 = arith.mulf %238, %239 : vector<64x32xf32>
    %241 = vector.broadcast %220 : vector<1x32xf32> to vector<64x32xf32>
    %242 = arith.addf %240, %241 : vector<64x32xf32>
    %243 = arith.truncf %242 : vector<64x32xf32> to vector<64x32xbf16>
    %c1 = arith.constant 1 : index
    %c0_92 = arith.constant 0 : index
    %c0_93 = arith.constant 0 : index
    %244 = vector.load %arg2[%c1, %c0_92, %c0_93] : memref<2x32x96xbf16, #tpu.memory_space<vmem>>, vector<1x32x96xbf16>
    %245 = vector.shape_cast %244 : vector<1x32x96xbf16> to vector<32x96xbf16>
    %cst_94 = arith.constant dense<0.000000e+00> : vector<64x96xf32>
    %246 = tpu.matmul %243, %245, %cst_94 {dimension_numbers = #tpu.dot_dimension_numbers<[1], [0], [0], [1], [0, 0, 1, 1], [], []>} : vector<64x32xbf16>, vector<32x96xbf16>, vector<64x96xf32> -> vector<64x96xf32>
    %c1_95 = arith.constant 1 : index
    %c0_96 = arith.constant 0 : index
    %c0_97 = arith.constant 0 : index
    %247 = vector.load %arg3[%c1_95, %c0_96, %c0_97] : memref<2x1x96xf32, #tpu.memory_space<vmem>>, vector<1x1x96xf32>
    %248 = vector.shape_cast %247 : vector<1x1x96xf32> to vector<1x96xf32>
    %249 = vector.broadcast %248 : vector<1x96xf32> to vector<64x96xf32>
    %250 = arith.addf %246, %249 : vector<64x96xf32>
    %251 = vector.shape_cast %250 : vector<64x96xf32> to vector<1x64x96xf32>
    %252 = vector.extract_strided_slice %251 {offsets = [0, 0, 0], sizes = [1, 64, 32], strides = [1, 1, 1]} : vector<1x64x96xf32> to vector<1x64x32xf32>
    %253 = arith.truncf %252 : vector<1x64x32xf32> to vector<1x64x32xbf16>
    %254 = vector.extract_strided_slice %251 {offsets = [0, 0, 32], sizes = [1, 64, 32], strides = [1, 1, 1]} : vector<1x64x96xf32> to vector<1x64x32xf32>
    %255 = arith.truncf %254 : vector<1x64x32xf32> to vector<1x64x32xbf16>
    %256 = vector.extract_strided_slice %251 {offsets = [0, 0, 64], sizes = [1, 64, 32], strides = [1, 1, 1]} : vector<1x64x96xf32> to vector<1x64x32xf32>
    %257 = arith.truncf %256 : vector<1x64x32xf32> to vector<1x64x32xbf16>
    %258 = vector.extract_strided_slice %253 {offsets = [0, 0, 0], sizes = [1, 64, 4], strides = [1, 1, 1]} : vector<1x64x32xbf16> to vector<1x64x4xbf16>
    %259 = vector.extract_strided_slice %255 {offsets = [0, 0, 0], sizes = [1, 64, 4], strides = [1, 1, 1]} : vector<1x64x32xbf16> to vector<1x64x4xbf16>
    %260 = vector.extract_strided_slice %257 {offsets = [0, 0, 0], sizes = [1, 64, 4], strides = [1, 1, 1]} : vector<1x64x32xbf16> to vector<1x64x4xbf16>
    %cst_98 = arith.constant dense<0.000000e+00> : vector<1x64x64xf32>
    %261 = tpu.matmul %258, %259, %cst_98 {dimension_numbers = #tpu.dot_dimension_numbers<[2], [2], [1], [1], [0, 0, 0, 1, 1, 1], [0], [0]>} : vector<1x64x4xbf16>, vector<1x64x4xbf16>, vector<1x64x64xf32> -> vector<1x64x64xf32>
    %cst_99 = arith.constant 5.000000e-01 : f32
    %262 = vector.broadcast %cst_99 : f32 to vector<1x64x64xf32>
    %263 = arith.mulf %261, %262 : vector<1x64x64xf32>
    %cst_100 = arith.constant dense<0xFF800000> : vector<1x64xf32>
    %264 = vector.multi_reduction <maximumf>, %263, %cst_100 [2] : vector<1x64x64xf32> to vector<1x64xf32>
    %265 = vector.shape_cast %264 : vector<1x64xf32> to vector<1x64x1xf32>
    %266 = vector.broadcast %265 : vector<1x64x1xf32> to vector<1x64x64xf32>
    %267 = arith.subf %263, %266 : vector<1x64x64xf32>
    %268 = math.exp %267 : vector<1x64x64xf32>
    %cst_101 = arith.constant dense<0.000000e+00> : vector<1x64xf32>
    %269 = vector.multi_reduction <add>, %268, %cst_101 [2] : vector<1x64x64xf32> to vector<1x64xf32>
    %270 = vector.shape_cast %269 : vector<1x64xf32> to vector<1x64x1xf32>
    %271 = tpu.reciprocal %270 {approx = true} : vector<1x64x1xf32> -> vector<1x64x1xf32>
    %272 = vector.broadcast %271 : vector<1x64x1xf32> to vector<1x64x64xf32>
    %273 = arith.mulf %268, %272 : vector<1x64x64xf32>
    %274 = arith.truncf %273 : vector<1x64x64xf32> to vector<1x64x64xbf16>
    %cst_102 = arith.constant dense<0.000000e+00> : vector<1x64x4xf32>
    %275 = tpu.matmul %274, %260, %cst_102 {dimension_numbers = #tpu.dot_dimension_numbers<[2], [1], [1], [2], [0, 0, 0, 1, 1, 2], [0], [0]>} : vector<1x64x64xbf16>, vector<1x64x4xbf16>, vector<1x64x4xf32> -> vector<1x64x4xf32>
    %276 = vector.extract_strided_slice %253 {offsets = [0, 0, 4], sizes = [1, 64, 4], strides = [1, 1, 1]} : vector<1x64x32xbf16> to vector<1x64x4xbf16>
    %277 = vector.extract_strided_slice %255 {offsets = [0, 0, 4], sizes = [1, 64, 4], strides = [1, 1, 1]} : vector<1x64x32xbf16> to vector<1x64x4xbf16>
    %278 = vector.extract_strided_slice %257 {offsets = [0, 0, 4], sizes = [1, 64, 4], strides = [1, 1, 1]} : vector<1x64x32xbf16> to vector<1x64x4xbf16>
    %cst_103 = arith.constant dense<0.000000e+00> : vector<1x64x64xf32>
    %279 = tpu.matmul %276, %277, %cst_103 {dimension_numbers = #tpu.dot_dimension_numbers<[2], [2], [1], [1], [0, 0, 0, 1, 1, 1], [0], [0]>} : vector<1x64x4xbf16>, vector<1x64x4xbf16>, vector<1x64x64xf32> -> vector<1x64x64xf32>
    %cst_104 = arith.constant 5.000000e-01 : f32
    %280 = vector.broadcast %cst_104 : f32 to vector<1x64x64xf32>
    %281 = arith.mulf %279, %280 : vector<1x64x64xf32>
    %cst_105 = arith.constant dense<0xFF800000> : vector<1x64xf32>
    %282 = vector.multi_reduction <maximumf>, %281, %cst_105 [2] : vector<1x64x64xf32> to vector<1x64xf32>
    %283 = vector.shape_cast %282 : vector<1x64xf32> to vector<1x64x1xf32>
    %284 = vector.broadcast %283 : vector<1x64x1xf32> to vector<1x64x64xf32>
    %285 = arith.subf %281, %284 : vector<1x64x64xf32>
    %286 = math.exp %285 : vector<1x64x64xf32>
    %cst_106 = arith.constant dense<0.000000e+00> : vector<1x64xf32>
    %287 = vector.multi_reduction <add>, %286, %cst_106 [2] : vector<1x64x64xf32> to vector<1x64xf32>
    %288 = vector.shape_cast %287 : vector<1x64xf32> to vector<1x64x1xf32>
    %289 = tpu.reciprocal %288 {approx = true} : vector<1x64x1xf32> -> vector<1x64x1xf32>
    %290 = vector.broadcast %289 : vector<1x64x1xf32> to vector<1x64x64xf32>
    %291 = arith.mulf %286, %290 : vector<1x64x64xf32>
    %292 = arith.truncf %291 : vector<1x64x64xf32> to vector<1x64x64xbf16>
    %cst_107 = arith.constant dense<0.000000e+00> : vector<1x64x4xf32>
    %293 = tpu.matmul %292, %278, %cst_107 {dimension_numbers = #tpu.dot_dimension_numbers<[2], [1], [1], [2], [0, 0, 0, 1, 1, 2], [0], [0]>} : vector<1x64x64xbf16>, vector<1x64x4xbf16>, vector<1x64x4xf32> -> vector<1x64x4xf32>
    %294 = vector.extract_strided_slice %253 {offsets = [0, 0, 8], sizes = [1, 64, 4], strides = [1, 1, 1]} : vector<1x64x32xbf16> to vector<1x64x4xbf16>
    %295 = vector.extract_strided_slice %255 {offsets = [0, 0, 8], sizes = [1, 64, 4], strides = [1, 1, 1]} : vector<1x64x32xbf16> to vector<1x64x4xbf16>
    %296 = vector.extract_strided_slice %257 {offsets = [0, 0, 8], sizes = [1, 64, 4], strides = [1, 1, 1]} : vector<1x64x32xbf16> to vector<1x64x4xbf16>
    %cst_108 = arith.constant dense<0.000000e+00> : vector<1x64x64xf32>
    %297 = tpu.matmul %294, %295, %cst_108 {dimension_numbers = #tpu.dot_dimension_numbers<[2], [2], [1], [1], [0, 0, 0, 1, 1, 1], [0], [0]>} : vector<1x64x4xbf16>, vector<1x64x4xbf16>, vector<1x64x64xf32> -> vector<1x64x64xf32>
    %cst_109 = arith.constant 5.000000e-01 : f32
    %298 = vector.broadcast %cst_109 : f32 to vector<1x64x64xf32>
    %299 = arith.mulf %297, %298 : vector<1x64x64xf32>
    %cst_110 = arith.constant dense<0xFF800000> : vector<1x64xf32>
    %300 = vector.multi_reduction <maximumf>, %299, %cst_110 [2] : vector<1x64x64xf32> to vector<1x64xf32>
    %301 = vector.shape_cast %300 : vector<1x64xf32> to vector<1x64x1xf32>
    %302 = vector.broadcast %301 : vector<1x64x1xf32> to vector<1x64x64xf32>
    %303 = arith.subf %299, %302 : vector<1x64x64xf32>
    %304 = math.exp %303 : vector<1x64x64xf32>
    %cst_111 = arith.constant dense<0.000000e+00> : vector<1x64xf32>
    %305 = vector.multi_reduction <add>, %304, %cst_111 [2] : vector<1x64x64xf32> to vector<1x64xf32>
    %306 = vector.shape_cast %305 : vector<1x64xf32> to vector<1x64x1xf32>
    %307 = tpu.reciprocal %306 {approx = true} : vector<1x64x1xf32> -> vector<1x64x1xf32>
    %308 = vector.broadcast %307 : vector<1x64x1xf32> to vector<1x64x64xf32>
    %309 = arith.mulf %304, %308 : vector<1x64x64xf32>
    %310 = arith.truncf %309 : vector<1x64x64xf32> to vector<1x64x64xbf16>
    %cst_112 = arith.constant dense<0.000000e+00> : vector<1x64x4xf32>
    %311 = tpu.matmul %310, %296, %cst_112 {dimension_numbers = #tpu.dot_dimension_numbers<[2], [1], [1], [2], [0, 0, 0, 1, 1, 2], [0], [0]>} : vector<1x64x64xbf16>, vector<1x64x4xbf16>, vector<1x64x4xf32> -> vector<1x64x4xf32>
    %312 = vector.extract_strided_slice %253 {offsets = [0, 0, 12], sizes = [1, 64, 4], strides = [1, 1, 1]} : vector<1x64x32xbf16> to vector<1x64x4xbf16>
    %313 = vector.extract_strided_slice %255 {offsets = [0, 0, 12], sizes = [1, 64, 4], strides = [1, 1, 1]} : vector<1x64x32xbf16> to vector<1x64x4xbf16>
    %314 = vector.extract_strided_slice %257 {offsets = [0, 0, 12], sizes = [1, 64, 4], strides = [1, 1, 1]} : vector<1x64x32xbf16> to vector<1x64x4xbf16>
    %cst_113 = arith.constant dense<0.000000e+00> : vector<1x64x64xf32>
    %315 = tpu.matmul %312, %313, %cst_113 {dimension_numbers = #tpu.dot_dimension_numbers<[2], [2], [1], [1], [0, 0, 0, 1, 1, 1], [0], [0]>} : vector<1x64x4xbf16>, vector<1x64x4xbf16>, vector<1x64x64xf32> -> vector<1x64x64xf32>
    %cst_114 = arith.constant 5.000000e-01 : f32
    %316 = vector.broadcast %cst_114 : f32 to vector<1x64x64xf32>
    %317 = arith.mulf %315, %316 : vector<1x64x64xf32>
    %cst_115 = arith.constant dense<0xFF800000> : vector<1x64xf32>
    %318 = vector.multi_reduction <maximumf>, %317, %cst_115 [2] : vector<1x64x64xf32> to vector<1x64xf32>
    %319 = vector.shape_cast %318 : vector<1x64xf32> to vector<1x64x1xf32>
    %320 = vector.broadcast %319 : vector<1x64x1xf32> to vector<1x64x64xf32>
    %321 = arith.subf %317, %320 : vector<1x64x64xf32>
    %322 = math.exp %321 : vector<1x64x64xf32>
    %cst_116 = arith.constant dense<0.000000e+00> : vector<1x64xf32>
    %323 = vector.multi_reduction <add>, %322, %cst_116 [2] : vector<1x64x64xf32> to vector<1x64xf32>
    %324 = vector.shape_cast %323 : vector<1x64xf32> to vector<1x64x1xf32>
    %325 = tpu.reciprocal %324 {approx = true} : vector<1x64x1xf32> -> vector<1x64x1xf32>
    %326 = vector.broadcast %325 : vector<1x64x1xf32> to vector<1x64x64xf32>
    %327 = arith.mulf %322, %326 : vector<1x64x64xf32>
    %328 = arith.truncf %327 : vector<1x64x64xf32> to vector<1x64x64xbf16>
    %cst_117 = arith.constant dense<0.000000e+00> : vector<1x64x4xf32>
    %329 = tpu.matmul %328, %314, %cst_117 {dimension_numbers = #tpu.dot_dimension_numbers<[2], [1], [1], [2], [0, 0, 0, 1, 1, 2], [0], [0]>} : vector<1x64x64xbf16>, vector<1x64x4xbf16>, vector<1x64x4xf32> -> vector<1x64x4xf32>
    %330 = vector.extract_strided_slice %253 {offsets = [0, 0, 16], sizes = [1, 64, 4], strides = [1, 1, 1]} : vector<1x64x32xbf16> to vector<1x64x4xbf16>
    %331 = vector.extract_strided_slice %255 {offsets = [0, 0, 16], sizes = [1, 64, 4], strides = [1, 1, 1]} : vector<1x64x32xbf16> to vector<1x64x4xbf16>
    %332 = vector.extract_strided_slice %257 {offsets = [0, 0, 16], sizes = [1, 64, 4], strides = [1, 1, 1]} : vector<1x64x32xbf16> to vector<1x64x4xbf16>
    %cst_118 = arith.constant dense<0.000000e+00> : vector<1x64x64xf32>
    %333 = tpu.matmul %330, %331, %cst_118 {dimension_numbers = #tpu.dot_dimension_numbers<[2], [2], [1], [1], [0, 0, 0, 1, 1, 1], [0], [0]>} : vector<1x64x4xbf16>, vector<1x64x4xbf16>, vector<1x64x64xf32> -> vector<1x64x64xf32>
    %cst_119 = arith.constant 5.000000e-01 : f32
    %334 = vector.broadcast %cst_119 : f32 to vector<1x64x64xf32>
    %335 = arith.mulf %333, %334 : vector<1x64x64xf32>
    %cst_120 = arith.constant dense<0xFF800000> : vector<1x64xf32>
    %336 = vector.multi_reduction <maximumf>, %335, %cst_120 [2] : vector<1x64x64xf32> to vector<1x64xf32>
    %337 = vector.shape_cast %336 : vector<1x64xf32> to vector<1x64x1xf32>
    %338 = vector.broadcast %337 : vector<1x64x1xf32> to vector<1x64x64xf32>
    %339 = arith.subf %335, %338 : vector<1x64x64xf32>
    %340 = math.exp %339 : vector<1x64x64xf32>
    %cst_121 = arith.constant dense<0.000000e+00> : vector<1x64xf32>
    %341 = vector.multi_reduction <add>, %340, %cst_121 [2] : vector<1x64x64xf32> to vector<1x64xf32>
    %342 = vector.shape_cast %341 : vector<1x64xf32> to vector<1x64x1xf32>
    %343 = tpu.reciprocal %342 {approx = true} : vector<1x64x1xf32> -> vector<1x64x1xf32>
    %344 = vector.broadcast %343 : vector<1x64x1xf32> to vector<1x64x64xf32>
    %345 = arith.mulf %340, %344 : vector<1x64x64xf32>
    %346 = arith.truncf %345 : vector<1x64x64xf32> to vector<1x64x64xbf16>
    %cst_122 = arith.constant dense<0.000000e+00> : vector<1x64x4xf32>
    %347 = tpu.matmul %346, %332, %cst_122 {dimension_numbers = #tpu.dot_dimension_numbers<[2], [1], [1], [2], [0, 0, 0, 1, 1, 2], [0], [0]>} : vector<1x64x64xbf16>, vector<1x64x4xbf16>, vector<1x64x4xf32> -> vector<1x64x4xf32>
    %348 = vector.extract_strided_slice %253 {offsets = [0, 0, 20], sizes = [1, 64, 4], strides = [1, 1, 1]} : vector<1x64x32xbf16> to vector<1x64x4xbf16>
    %349 = vector.extract_strided_slice %255 {offsets = [0, 0, 20], sizes = [1, 64, 4], strides = [1, 1, 1]} : vector<1x64x32xbf16> to vector<1x64x4xbf16>
    %350 = vector.extract_strided_slice %257 {offsets = [0, 0, 20], sizes = [1, 64, 4], strides = [1, 1, 1]} : vector<1x64x32xbf16> to vector<1x64x4xbf16>
    %cst_123 = arith.constant dense<0.000000e+00> : vector<1x64x64xf32>
    %351 = tpu.matmul %348, %349, %cst_123 {dimension_numbers = #tpu.dot_dimension_numbers<[2], [2], [1], [1], [0, 0, 0, 1, 1, 1], [0], [0]>} : vector<1x64x4xbf16>, vector<1x64x4xbf16>, vector<1x64x64xf32> -> vector<1x64x64xf32>
    %cst_124 = arith.constant 5.000000e-01 : f32
    %352 = vector.broadcast %cst_124 : f32 to vector<1x64x64xf32>
    %353 = arith.mulf %351, %352 : vector<1x64x64xf32>
    %cst_125 = arith.constant dense<0xFF800000> : vector<1x64xf32>
    %354 = vector.multi_reduction <maximumf>, %353, %cst_125 [2] : vector<1x64x64xf32> to vector<1x64xf32>
    %355 = vector.shape_cast %354 : vector<1x64xf32> to vector<1x64x1xf32>
    %356 = vector.broadcast %355 : vector<1x64x1xf32> to vector<1x64x64xf32>
    %357 = arith.subf %353, %356 : vector<1x64x64xf32>
    %358 = math.exp %357 : vector<1x64x64xf32>
    %cst_126 = arith.constant dense<0.000000e+00> : vector<1x64xf32>
    %359 = vector.multi_reduction <add>, %358, %cst_126 [2] : vector<1x64x64xf32> to vector<1x64xf32>
    %360 = vector.shape_cast %359 : vector<1x64xf32> to vector<1x64x1xf32>
    %361 = tpu.reciprocal %360 {approx = true} : vector<1x64x1xf32> -> vector<1x64x1xf32>
    %362 = vector.broadcast %361 : vector<1x64x1xf32> to vector<1x64x64xf32>
    %363 = arith.mulf %358, %362 : vector<1x64x64xf32>
    %364 = arith.truncf %363 : vector<1x64x64xf32> to vector<1x64x64xbf16>
    %cst_127 = arith.constant dense<0.000000e+00> : vector<1x64x4xf32>
    %365 = tpu.matmul %364, %350, %cst_127 {dimension_numbers = #tpu.dot_dimension_numbers<[2], [1], [1], [2], [0, 0, 0, 1, 1, 2], [0], [0]>} : vector<1x64x64xbf16>, vector<1x64x4xbf16>, vector<1x64x4xf32> -> vector<1x64x4xf32>
    %366 = vector.extract_strided_slice %253 {offsets = [0, 0, 24], sizes = [1, 64, 4], strides = [1, 1, 1]} : vector<1x64x32xbf16> to vector<1x64x4xbf16>
    %367 = vector.extract_strided_slice %255 {offsets = [0, 0, 24], sizes = [1, 64, 4], strides = [1, 1, 1]} : vector<1x64x32xbf16> to vector<1x64x4xbf16>
    %368 = vector.extract_strided_slice %257 {offsets = [0, 0, 24], sizes = [1, 64, 4], strides = [1, 1, 1]} : vector<1x64x32xbf16> to vector<1x64x4xbf16>
    %cst_128 = arith.constant dense<0.000000e+00> : vector<1x64x64xf32>
    %369 = tpu.matmul %366, %367, %cst_128 {dimension_numbers = #tpu.dot_dimension_numbers<[2], [2], [1], [1], [0, 0, 0, 1, 1, 1], [0], [0]>} : vector<1x64x4xbf16>, vector<1x64x4xbf16>, vector<1x64x64xf32> -> vector<1x64x64xf32>
    %cst_129 = arith.constant 5.000000e-01 : f32
    %370 = vector.broadcast %cst_129 : f32 to vector<1x64x64xf32>
    %371 = arith.mulf %369, %370 : vector<1x64x64xf32>
    %cst_130 = arith.constant dense<0xFF800000> : vector<1x64xf32>
    %372 = vector.multi_reduction <maximumf>, %371, %cst_130 [2] : vector<1x64x64xf32> to vector<1x64xf32>
    %373 = vector.shape_cast %372 : vector<1x64xf32> to vector<1x64x1xf32>
    %374 = vector.broadcast %373 : vector<1x64x1xf32> to vector<1x64x64xf32>
    %375 = arith.subf %371, %374 : vector<1x64x64xf32>
    %376 = math.exp %375 : vector<1x64x64xf32>
    %cst_131 = arith.constant dense<0.000000e+00> : vector<1x64xf32>
    %377 = vector.multi_reduction <add>, %376, %cst_131 [2] : vector<1x64x64xf32> to vector<1x64xf32>
    %378 = vector.shape_cast %377 : vector<1x64xf32> to vector<1x64x1xf32>
    %379 = tpu.reciprocal %378 {approx = true} : vector<1x64x1xf32> -> vector<1x64x1xf32>
    %380 = vector.broadcast %379 : vector<1x64x1xf32> to vector<1x64x64xf32>
    %381 = arith.mulf %376, %380 : vector<1x64x64xf32>
    %382 = arith.truncf %381 : vector<1x64x64xf32> to vector<1x64x64xbf16>
    %cst_132 = arith.constant dense<0.000000e+00> : vector<1x64x4xf32>
    %383 = tpu.matmul %382, %368, %cst_132 {dimension_numbers = #tpu.dot_dimension_numbers<[2], [1], [1], [2], [0, 0, 0, 1, 1, 2], [0], [0]>} : vector<1x64x64xbf16>, vector<1x64x4xbf16>, vector<1x64x4xf32> -> vector<1x64x4xf32>
    %384 = vector.extract_strided_slice %253 {offsets = [0, 0, 28], sizes = [1, 64, 4], strides = [1, 1, 1]} : vector<1x64x32xbf16> to vector<1x64x4xbf16>
    %385 = vector.extract_strided_slice %255 {offsets = [0, 0, 28], sizes = [1, 64, 4], strides = [1, 1, 1]} : vector<1x64x32xbf16> to vector<1x64x4xbf16>
    %386 = vector.extract_strided_slice %257 {offsets = [0, 0, 28], sizes = [1, 64, 4], strides = [1, 1, 1]} : vector<1x64x32xbf16> to vector<1x64x4xbf16>
    %cst_133 = arith.constant dense<0.000000e+00> : vector<1x64x64xf32>
    %387 = tpu.matmul %384, %385, %cst_133 {dimension_numbers = #tpu.dot_dimension_numbers<[2], [2], [1], [1], [0, 0, 0, 1, 1, 1], [0], [0]>} : vector<1x64x4xbf16>, vector<1x64x4xbf16>, vector<1x64x64xf32> -> vector<1x64x64xf32>
    %cst_134 = arith.constant 5.000000e-01 : f32
    %388 = vector.broadcast %cst_134 : f32 to vector<1x64x64xf32>
    %389 = arith.mulf %387, %388 : vector<1x64x64xf32>
    %cst_135 = arith.constant dense<0xFF800000> : vector<1x64xf32>
    %390 = vector.multi_reduction <maximumf>, %389, %cst_135 [2] : vector<1x64x64xf32> to vector<1x64xf32>
    %391 = vector.shape_cast %390 : vector<1x64xf32> to vector<1x64x1xf32>
    %392 = vector.broadcast %391 : vector<1x64x1xf32> to vector<1x64x64xf32>
    %393 = arith.subf %389, %392 : vector<1x64x64xf32>
    %394 = math.exp %393 : vector<1x64x64xf32>
    %cst_136 = arith.constant dense<0.000000e+00> : vector<1x64xf32>
    %395 = vector.multi_reduction <add>, %394, %cst_136 [2] : vector<1x64x64xf32> to vector<1x64xf32>
    %396 = vector.shape_cast %395 : vector<1x64xf32> to vector<1x64x1xf32>
    %397 = tpu.reciprocal %396 {approx = true} : vector<1x64x1xf32> -> vector<1x64x1xf32>
    %398 = vector.broadcast %397 : vector<1x64x1xf32> to vector<1x64x64xf32>
    %399 = arith.mulf %394, %398 : vector<1x64x64xf32>
    %400 = arith.truncf %399 : vector<1x64x64xf32> to vector<1x64x64xbf16>
    %cst_137 = arith.constant dense<0.000000e+00> : vector<1x64x4xf32>
    %401 = tpu.matmul %400, %386, %cst_137 {dimension_numbers = #tpu.dot_dimension_numbers<[2], [1], [1], [2], [0, 0, 0, 1, 1, 2], [0], [0]>} : vector<1x64x64xbf16>, vector<1x64x4xbf16>, vector<1x64x4xf32> -> vector<1x64x4xf32>
    %402 = tpu.concatenate %275, %293, %311, %329, %347, %365, %383, %401 in 2 : vector<1x64x4xf32>, vector<1x64x4xf32>, vector<1x64x4xf32>, vector<1x64x4xf32>, vector<1x64x4xf32>, vector<1x64x4xf32>, vector<1x64x4xf32>, vector<1x64x4xf32> -> vector<1x64x32xf32>
    %403 = vector.shape_cast %402 : vector<1x64x32xf32> to vector<64x32xf32>
    %404 = arith.truncf %403 : vector<64x32xf32> to vector<64x32xbf16>
    %c1_138 = arith.constant 1 : index
    %c0_139 = arith.constant 0 : index
    %c0_140 = arith.constant 0 : index
    %405 = vector.load %arg4[%c1_138, %c0_139, %c0_140] : memref<2x32x32xbf16, #tpu.memory_space<vmem>>, vector<1x32x32xbf16>
    %406 = vector.shape_cast %405 : vector<1x32x32xbf16> to vector<32x32xbf16>
    %cst_141 = arith.constant dense<0.000000e+00> : vector<64x32xf32>
    %407 = tpu.matmul %404, %406, %cst_141 {dimension_numbers = #tpu.dot_dimension_numbers<[1], [0], [0], [1], [0, 0, 1, 1], [], []>} : vector<64x32xbf16>, vector<32x32xbf16>, vector<64x32xf32> -> vector<64x32xf32>
    %c1_142 = arith.constant 1 : index
    %c0_143 = arith.constant 0 : index
    %c0_144 = arith.constant 0 : index
    %408 = vector.load %arg5[%c1_142, %c0_143, %c0_144] : memref<2x1x32xf32, #tpu.memory_space<vmem>>, vector<1x1x32xf32>
    %409 = vector.shape_cast %408 : vector<1x1x32xf32> to vector<1x32xf32>
    %410 = vector.broadcast %409 : vector<1x32xf32> to vector<64x32xf32>
    %411 = arith.addf %407, %410 : vector<64x32xf32>
    %412 = arith.addf %242, %411 : vector<64x32xf32>
    %c1_145 = arith.constant 1 : index
    %c0_146 = arith.constant 0 : index
    %c0_147 = arith.constant 0 : index
    %413 = vector.load %arg6[%c1_145, %c0_146, %c0_147] : memref<2x1x32xf32, #tpu.memory_space<vmem>>, vector<1x1x32xf32>
    %414 = vector.shape_cast %413 : vector<1x1x32xf32> to vector<1x32xf32>
    %c1_148 = arith.constant 1 : index
    %c0_149 = arith.constant 0 : index
    %c0_150 = arith.constant 0 : index
    %415 = vector.load %arg7[%c1_148, %c0_149, %c0_150] : memref<2x1x32xf32, #tpu.memory_space<vmem>>, vector<1x1x32xf32>
    %416 = vector.shape_cast %415 : vector<1x1x32xf32> to vector<1x32xf32>
    %cst_151 = arith.constant dense<0.000000e+00> : vector<64xf32>
    %417 = vector.multi_reduction <add>, %412, %cst_151 [1] : vector<64x32xf32> to vector<64xf32>
    %418 = vector.shape_cast %417 : vector<64xf32> to vector<64x1xf32>
    %cst_152 = arith.constant 3.200000e+01 : f32
    %419 = vector.broadcast %cst_152 : f32 to vector<64x1xf32>
    %420 = arith.divf %418, %419 : vector<64x1xf32>
    %421 = vector.broadcast %420 : vector<64x1xf32> to vector<64x32xf32>
    %422 = arith.subf %412, %421 : vector<64x32xf32>
    %423 = arith.mulf %422, %422 : vector<64x32xf32>
    %cst_153 = arith.constant dense<0.000000e+00> : vector<64xf32>
    %424 = vector.multi_reduction <add>, %423, %cst_153 [1] : vector<64x32xf32> to vector<64xf32>
    %425 = vector.shape_cast %424 : vector<64xf32> to vector<64x1xf32>
    %cst_154 = arith.constant 3.200000e+01 : f32
    %426 = vector.broadcast %cst_154 : f32 to vector<64x1xf32>
    %427 = arith.divf %425, %426 : vector<64x1xf32>
    %428 = vector.broadcast %420 : vector<64x1xf32> to vector<64x32xf32>
    %429 = arith.subf %412, %428 : vector<64x32xf32>
    %cst_155 = arith.constant 9.99999974E-6 : f32
    %430 = vector.broadcast %cst_155 : f32 to vector<64x1xf32>
    %431 = arith.addf %427, %430 : vector<64x1xf32>
    %432 = math.rsqrt %431 : vector<64x1xf32>
    %433 = vector.broadcast %432 : vector<64x1xf32> to vector<64x32xf32>
    %434 = arith.mulf %429, %433 : vector<64x32xf32>
    %435 = vector.broadcast %414 : vector<1x32xf32> to vector<64x32xf32>
    %436 = arith.mulf %434, %435 : vector<64x32xf32>
    %437 = vector.broadcast %416 : vector<1x32xf32> to vector<64x32xf32>
    %438 = arith.addf %436, %437 : vector<64x32xf32>
    %439 = arith.truncf %438 : vector<64x32xf32> to vector<64x32xbf16>
    %c1_156 = arith.constant 1 : index
    %c0_157 = arith.constant 0 : index
    %c0_158 = arith.constant 0 : index
    %440 = vector.load %arg8[%c1_156, %c0_157, %c0_158] : memref<2x32x64xbf16, #tpu.memory_space<vmem>>, vector<1x32x64xbf16>
    %441 = vector.shape_cast %440 : vector<1x32x64xbf16> to vector<32x64xbf16>
    %cst_159 = arith.constant dense<0.000000e+00> : vector<64x64xf32>
    %442 = tpu.matmul %439, %441, %cst_159 {dimension_numbers = #tpu.dot_dimension_numbers<[1], [0], [0], [1], [0, 0, 1, 1], [], []>} : vector<64x32xbf16>, vector<32x64xbf16>, vector<64x64xf32> -> vector<64x64xf32>
    %c1_160 = arith.constant 1 : index
    %c0_161 = arith.constant 0 : index
    %c0_162 = arith.constant 0 : index
    %443 = vector.load %arg9[%c1_160, %c0_161, %c0_162] : memref<2x1x64xf32, #tpu.memory_space<vmem>>, vector<1x1x64xf32>
    %444 = vector.shape_cast %443 : vector<1x1x64xf32> to vector<1x64xf32>
    %445 = vector.broadcast %444 : vector<1x64xf32> to vector<64x64xf32>
    %446 = arith.addf %442, %445 : vector<64x64xf32>
    %cst_163 = arith.constant 0.000000e+00 : f32
    %447 = vector.broadcast %cst_163 : f32 to vector<64x64xf32>
    %448 = arith.maximumf %446, %447 : vector<64x64xf32>
    %449 = arith.truncf %448 : vector<64x64xf32> to vector<64x64xbf16>
    %c1_164 = arith.constant 1 : index
    %c0_165 = arith.constant 0 : index
    %c0_166 = arith.constant 0 : index
    %450 = vector.load %arg10[%c1_164, %c0_165, %c0_166] : memref<2x64x32xbf16, #tpu.memory_space<vmem>>, vector<1x64x32xbf16>
    %451 = vector.shape_cast %450 : vector<1x64x32xbf16> to vector<64x32xbf16>
    %cst_167 = arith.constant dense<0.000000e+00> : vector<64x32xf32>
    %452 = tpu.matmul %449, %451, %cst_167 {dimension_numbers = #tpu.dot_dimension_numbers<[1], [0], [0], [1], [0, 0, 1, 1], [], []>} : vector<64x64xbf16>, vector<64x32xbf16>, vector<64x32xf32> -> vector<64x32xf32>
    %c1_168 = arith.constant 1 : index
    %c0_169 = arith.constant 0 : index
    %c0_170 = arith.constant 0 : index
    %453 = vector.load %arg11[%c1_168, %c0_169, %c0_170] : memref<2x1x32xf32, #tpu.memory_space<vmem>>, vector<1x1x32xf32>
    %454 = vector.shape_cast %453 : vector<1x1x32xf32> to vector<1x32xf32>
    %455 = vector.broadcast %454 : vector<1x32xf32> to vector<64x32xf32>
    %456 = arith.addf %452, %455 : vector<64x32xf32>
    %457 = arith.addf %438, %456 : vector<64x32xf32>
    %c1_171 = arith.constant 1 : index
    %c0_172 = arith.constant 0 : index
    %c0_173 = arith.constant 0 : index
    %458 = vector.load %arg12[%c1_171, %c0_172, %c0_173] : memref<2x1x32xf32, #tpu.memory_space<vmem>>, vector<1x1x32xf32>
    %459 = vector.shape_cast %458 : vector<1x1x32xf32> to vector<1x32xf32>
    %c1_174 = arith.constant 1 : index
    %c0_175 = arith.constant 0 : index
    %c0_176 = arith.constant 0 : index
    %460 = vector.load %arg13[%c1_174, %c0_175, %c0_176] : memref<2x1x32xf32, #tpu.memory_space<vmem>>, vector<1x1x32xf32>
    %461 = vector.shape_cast %460 : vector<1x1x32xf32> to vector<1x32xf32>
    %cst_177 = arith.constant dense<0.000000e+00> : vector<64xf32>
    %462 = vector.multi_reduction <add>, %457, %cst_177 [1] : vector<64x32xf32> to vector<64xf32>
    %463 = vector.shape_cast %462 : vector<64xf32> to vector<64x1xf32>
    %cst_178 = arith.constant 3.200000e+01 : f32
    %464 = vector.broadcast %cst_178 : f32 to vector<64x1xf32>
    %465 = arith.divf %463, %464 : vector<64x1xf32>
    %466 = vector.broadcast %465 : vector<64x1xf32> to vector<64x32xf32>
    %467 = arith.subf %457, %466 : vector<64x32xf32>
    %468 = arith.mulf %467, %467 : vector<64x32xf32>
    %cst_179 = arith.constant dense<0.000000e+00> : vector<64xf32>
    %469 = vector.multi_reduction <add>, %468, %cst_179 [1] : vector<64x32xf32> to vector<64xf32>
    %470 = vector.shape_cast %469 : vector<64xf32> to vector<64x1xf32>
    %cst_180 = arith.constant 3.200000e+01 : f32
    %471 = vector.broadcast %cst_180 : f32 to vector<64x1xf32>
    %472 = arith.divf %470, %471 : vector<64x1xf32>
    %473 = vector.broadcast %465 : vector<64x1xf32> to vector<64x32xf32>
    %474 = arith.subf %457, %473 : vector<64x32xf32>
    %cst_181 = arith.constant 9.99999974E-6 : f32
    %475 = vector.broadcast %cst_181 : f32 to vector<64x1xf32>
    %476 = arith.addf %472, %475 : vector<64x1xf32>
    %477 = math.rsqrt %476 : vector<64x1xf32>
    %478 = vector.broadcast %477 : vector<64x1xf32> to vector<64x32xf32>
    %479 = arith.mulf %474, %478 : vector<64x32xf32>
    %480 = vector.broadcast %459 : vector<1x32xf32> to vector<64x32xf32>
    %481 = arith.mulf %479, %480 : vector<64x32xf32>
    %482 = vector.broadcast %461 : vector<1x32xf32> to vector<64x32xf32>
    %483 = arith.addf %481, %482 : vector<64x32xf32>
    %484 = vector.shape_cast %483 : vector<64x32xf32> to vector<1x64x32xf32>
    %c0_182 = arith.constant 0 : index
    %c0_183 = arith.constant 0 : index
    %c0_184 = arith.constant 0 : index
    %485 = vector.load %arg14[%c0_182, %c0_183, %c0_184] : memref<1x64x32xf32, #tpu.memory_space<vmem>>, vector<1x64x32xf32>
    tpu.vector_store %arg14[%c0_182, %c0_183, %c0_184], %484 {strides = array<i32>} : memref<1x64x32xf32, #tpu.memory_space<vmem>>, vector<1x64x32xf32>,
    return
  }
  func.func @transform_0(%arg0: i32) -> (i32, i32, i32) {
    %c0_i32 = arith.constant 0 : i32
    %c0_i32_0 = arith.constant 0 : i32
    %c0_i32_1 = arith.constant 0 : i32
    return %arg0, %c0_i32, %c0_i32_0 : i32, i32, i32
  }
  func.func @transform_1(%arg0: i32) -> (i32, i32, i32) {
    %c0_i32 = arith.constant 0 : i32
    %c0_i32_0 = arith.constant 0 : i32
    %c0_i32_1 = arith.constant 0 : i32
    %c0_i32_2 = arith.constant 0 : i32
    return %c0_i32, %c0_i32_0, %c0_i32_1 : i32, i32, i32
  }
  func.func @transform_2(%arg0: i32) -> (i32, i32, i32) {
    %c0_i32 = arith.constant 0 : i32
    %c0_i32_0 = arith.constant 0 : i32
    %c0_i32_1 = arith.constant 0 : i32
    %c0_i32_2 = arith.constant 0 : i32
    return %c0_i32, %c0_i32_0, %c0_i32_1 : i32, i32, i32
  }
  func.func @transform_3(%arg0: i32) -> (i32, i32, i32) {
    %c0_i32 = arith.constant 0 : i32
    %c0_i32_0 = arith.constant 0 : i32
    %c0_i32_1 = arith.constant 0 : i32
    %c0_i32_2 = arith.constant 0 : i32
    return %c0_i32, %c0_i32_0, %c0_i32_1 : i32, i32, i32
  }
  func.func @transform_4(%arg0: i32) -> (i32, i32, i32) {
    %c0_i32 = arith.constant 0 : i32
    %c0_i32_0 = arith.constant 0 : i32
    %c0_i32_1 = arith.constant 0 : i32
    %c0_i32_2 = arith.constant 0 : i32
    return %c0_i32, %c0_i32_0, %c0_i32_1 : i32, i32, i32
  }
  func.func @transform_5(%arg0: i32) -> (i32, i32, i32) {
    %c0_i32 = arith.constant 0 : i32
    %c0_i32_0 = arith.constant 0 : i32
    %c0_i32_1 = arith.constant 0 : i32
    %c0_i32_2 = arith.constant 0 : i32
    return %c0_i32, %c0_i32_0, %c0_i32_1 : i32, i32, i32
  }
  func.func @transform_6(%arg0: i32) -> (i32, i32, i32) {
    %c0_i32 = arith.constant 0 : i32
    %c0_i32_0 = arith.constant 0 : i32
    %c0_i32_1 = arith.constant 0 : i32
    %c0_i32_2 = arith.constant 0 : i32
    return %c0_i32, %c0_i32_0, %c0_i32_1 : i32, i32, i32
  }
  func.func @transform_7(%arg0: i32) -> (i32, i32, i32) {
    %c0_i32 = arith.constant 0 : i32
    %c0_i32_0 = arith.constant 0 : i32
    %c0_i32_1 = arith.constant 0 : i32
    %c0_i32_2 = arith.constant 0 : i32
    return %c0_i32, %c0_i32_0, %c0_i32_1 : i32, i32, i32
  }
  func.func @transform_8(%arg0: i32) -> (i32, i32, i32) {
    %c0_i32 = arith.constant 0 : i32
    %c0_i32_0 = arith.constant 0 : i32
    %c0_i32_1 = arith.constant 0 : i32
    %c0_i32_2 = arith.constant 0 : i32
    return %c0_i32, %c0_i32_0, %c0_i32_1 : i32, i32, i32
  }
  func.func @transform_9(%arg0: i32) -> (i32, i32, i32) {
    %c0_i32 = arith.constant 0 : i32
    %c0_i32_0 = arith.constant 0 : i32
    %c0_i32_1 = arith.constant 0 : i32
    %c0_i32_2 = arith.constant 0 : i32
    return %c0_i32, %c0_i32_0, %c0_i32_1 : i32, i32, i32
  }
  func.func @transform_10(%arg0: i32) -> (i32, i32, i32) {
    %c0_i32 = arith.constant 0 : i32
    %c0_i32_0 = arith.constant 0 : i32
    %c0_i32_1 = arith.constant 0 : i32
    %c0_i32_2 = arith.constant 0 : i32
    return %c0_i32, %c0_i32_0, %c0_i32_1 : i32, i32, i32
  }
  func.func @transform_11(%arg0: i32) -> (i32, i32, i32) {
    %c0_i32 = arith.constant 0 : i32
    %c0_i32_0 = arith.constant 0 : i32
    %c0_i32_1 = arith.constant 0 : i32
    %c0_i32_2 = arith.constant 0 : i32
    return %c0_i32, %c0_i32_0, %c0_i32_1 : i32, i32, i32
  }
  func.func @transform_12(%arg0: i32) -> (i32, i32, i32) {
    %c0_i32 = arith.constant 0 : i32
    %c0_i32_0 = arith.constant 0 : i32
    %c0_i32_1 = arith.constant 0 : i32
    %c0_i32_2 = arith.constant 0 : i32
    return %c0_i32, %c0_i32_0, %c0_i32_1 : i32, i32, i32
  }
  func.func @transform_13(%arg0: i32) -> (i32, i32, i32) {
    %c0_i32 = arith.constant 0 : i32
    %c0_i32_0 = arith.constant 0 : i32
    %c0_i32_1 = arith.constant 0 : i32
    return %arg0, %c0_i32, %c0_i32_0 : i32, i32, i32
  }
}

</mosaic_0001>

<llo_original>
// kernel: tpu_custom_call.1
$region0: #{tpu_custom_call.1}
  #allocation0 [shape = 'u32[]', space=smem, size = 0x4, offset = 0x4, fixed_abs, tag = 'smem constant byte address 0x4 - core index']
  #allocation1 [shape = 'u32[144,128]{1,0:T(1,128)}', space=vmem, size = 0x12000, scoped, tag = 'internal scratch']
  %s0 = inlined_call_operand.vmem [shape: f32[2,64,32], index: 0, kind: input, shape index: {}]
  %s1 = inlined_call_operand.vmem [shape: bf16[2,32,96], index: 1, kind: input, shape index: {}]
  %s2 = inlined_call_operand.vmem [shape: f32[2,1,96], index: 2, kind: input, shape index: {}]
  %s3 = inlined_call_operand.vmem [shape: bf16[2,32,32], index: 3, kind: input, shape index: {}]
  %s4 = inlined_call_operand.vmem [shape: f32[2,1,32], index: 4, kind: input, shape index: {}]
  %s5 = inlined_call_operand.vmem [shape: f32[2,1,32], index: 5, kind: input, shape index: {}]
  %s6 = inlined_call_operand.vmem [shape: f32[2,1,32], index: 6, kind: input, shape index: {}]
  %s7 = inlined_call_operand.vmem [shape: bf16[2,32,64], index: 7, kind: input, shape index: {}]
  %s8 = inlined_call_operand.vmem [shape: f32[2,1,64], index: 8, kind: input, shape index: {}]
  %s9 = inlined_call_operand.vmem [shape: bf16[2,64,32], index: 9, kind: input, shape index: {}]
  %s10 = inlined_call_operand.vmem [shape: f32[2,1,32], index: 10, kind: input, shape index: {}]
  %s11 = inlined_call_operand.vmem [shape: f32[2,1,32], index: 11, kind: input, shape index: {}]
  %s12 = inlined_call_operand.vmem [shape: f32[2,1,32], index: 12, kind: input, shape index: {}]
  %s13 = inlined_call_operand.vmem [shape: f32[2,64,32], index: 13, kind: output, shape index: {}]
  %s14 = sld [smem:[#allocation0]]
  $region85: #{tpu_custom_call.1} parent=0
    _
  %s16 = ssub.s32 1, %s14
  %s17 = scalar_select 0, %s16, %s14
  loop: start=0, step=1, limit=4
  $region2: #{tpu_custom_call.1} parent=0 // loop_pre_header
    _
  $region3: #{tpu_custom_call.1} parent=0 // loop_header
    %s19 = sphi 0, %s23
    %p20 = scmp.ge.s32.totalorder %s19, 4
    %s29 = sphi 0, %s31
    %s32 = sphi 0, %s29
    %s33 = sphi 0, %s32
    %s49 = sphi 0, %s33
    %s53 = sphi 0, %s53
    %s55 = sphi 0, %s53
    %s56 = sphi 0, %s55
    %s70 = sphi 0, %s56
    %s74 = sphi 0, %s74
    %s76 = sphi 0, %s74
    %s77 = sphi 0, %s76
    %s91 = sphi 0, %s77
    %s95 = sphi 0, %s95
    %s97 = sphi 0, %s95
    %s98 = sphi 0, %s97
    %s112 = sphi 0, %s98
    %s116 = sphi 0, %s116
    %s118 = sphi 0, %s116
    %s119 = sphi 0, %s118
    %s133 = sphi 0, %s119
    %s137 = sphi 0, %s137
    %s139 = sphi 0, %s137
    %s140 = sphi 0, %s139
    %s154 = sphi 0, %s140
    %s158 = sphi 0, %s158
    %s160 = sphi 0, %s158
    %s161 = sphi 0, %s160
    %s175 = sphi 0, %s161
    %s179 = sphi 0, %s179
    %s181 = sphi 0, %s179
    %s182 = sphi 0, %s181
    %s196 = sphi 0, %s182
    %s200 = sphi 0, %s200
    %s202 = sphi 0, %s200
    %s203 = sphi 0, %s202
    %s217 = sphi 0, %s203
    %s221 = sphi 0, %s221
    %s223 = sphi 0, %s221
    %s224 = sphi 0, %s223
    %s238 = sphi 0, %s224
    %s242 = sphi 0, %s242
    %s244 = sphi 0, %s242
    %s245 = sphi 0, %s244
    %s259 = sphi 0, %s245
    %s263 = sphi 0, %s263
    %s265 = sphi 0, %s263
    %s266 = sphi 0, %s265
    %s280 = sphi 0, %s266
    %s284 = sphi 0, %s284
    %s286 = sphi 0, %s284
    %s287 = sphi 0, %s286
    %s301 = sphi 0, %s287
    %s307 = sphi 0, %s309
    %s310 = sphi 0, %s307
    %s311 = sphi 0, %s310
    %s327 = sphi 0, %s311
  $region4: #{tpu_custom_call.1} parent=0 // loop_header_branch
    %22 = sbr.rel (%p20) target = $region8
  $region5: #{tpu_custom_call.1} parent=0 // loop_body
    %s24 = ssub.s32 %s19, 1
    %s25 = ssub.s32 %s19, 2
    %s26 = sadd.s32 %s19, 1
    %s27 = ssub.s32 %s19, %s26
    %p28 = scmp.eq.s32.totalorder %s27, 0
    %s30 = sadd.s32 %s29, 1
    %s31 = scalar_select %p28, %s29, %s30
    %p34 = pneg %p28
    %p35 = scmp.eq.s32.totalorder %s19, 1
    %p36 = por %p34, %p35
    %p37 = scmp.ne.s32.totalorder %s29, %s32
    %p38 = scmp.eq.s32.totalorder %s19, 0
    %p39 = por %p37, %p38
    %p40 = scmp.ne.s32.totalorder %s29, %s32
    %p41 = scmp.eq.s32.totalorder %s24, 1
    %p42 = por %p40, %p41
    %p43 = scmp.ne.s32.totalorder %s32, %s33
    %p44 = scmp.eq.s32.totalorder %s24, 0
    %p45 = por %p43, %p44
    %p46 = scmp.ne.s32.totalorder %s32, %s33
    %p47 = scmp.eq.s32.totalorder %s25, 1
    %p48 = por %p46, %p47
    %p50 = scmp.ne.s32.totalorder %s33, %s49
    %p51 = scmp.eq.s32.totalorder %s25, 0
    %p52 = por %p50, %p51
    %s54 = sadd.s32 %s53, 1
    %p57 = scmp.eq.s32.totalorder %s19, 1
    %p58 = scmp.ne.s32.totalorder %s53, %s55
    %p59 = scmp.eq.s32.totalorder %s19, 0
    %p60 = por %p58, %p59
    %p61 = scmp.ne.s32.totalorder %s53, %s55
    %p62 = scmp.eq.s32.totalorder %s24, 1
    %p63 = por %p61, %p62
    %p64 = scmp.ne.s32.totalorder %s55, %s56
    %p65 = scmp.eq.s32.totalorder %s24, 0
    %p66 = por %p64, %p65
    %p67 = scmp.ne.s32.totalorder %s55, %s56
    %p68 = scmp.eq.s32.totalorder %s25, 1
    %p69 = por %p67, %p68
    %p71 = scmp.ne.s32.totalorder %s56, %s70
    %p72 = scmp.eq.s32.totalorder %s25, 0
    %p73 = por %p71, %p72
    %s75 = sadd.s32 %s74, 1
    %p78 = scmp.eq.s32.totalorder %s19, 1
    %p79 = scmp.ne.s32.totalorder %s74, %s76
    %p80 = scmp.eq.s32.totalorder %s19, 0
    %p81 = por %p79, %p80
    %p82 = scmp.ne.s32.totalorder %s74, %s76
    %p83 = scmp.eq.s32.totalorder %s24, 1
    %p84 = por %p82, %p83
    %p85 = scmp.ne.s32.totalorder %s76, %s77
    %p86 = scmp.eq.s32.totalorder %s24, 0
    %p87 = por %p85, %p86
    %p88 = scmp.ne.s32.totalorder %s76, %s77
    %p89 = scmp.eq.s32.totalorder %s25, 1
    %p90 = por %p88, %p89
    %p92 = scmp.ne.s32.totalorder %s77, %s91
    %p93 = scmp.eq.s32.totalorder %s25, 0
    %p94 = por %p92, %p93
    %s96 = sadd.s32 %s95, 1
    %p99 = scmp.eq.s32.totalorder %s19, 1
    %p100 = scmp.ne.s32.totalorder %s95, %s97
    %p101 = scmp.eq.s32.totalorder %s19, 0
    %p102 = por %p100, %p101
    %p103 = scmp.ne.s32.totalorder %s95, %s97
    %p104 = scmp.eq.s32.totalorder %s24, 1
    %p105 = por %p103, %p104
    %p106 = scmp.ne.s32.totalorder %s97, %s98
    %p107 = scmp.eq.s32.totalorder %s24, 0
    %p108 = por %p106, %p107
    %p109 = scmp.ne.s32.totalorder %s97, %s98
    %p110 = scmp.eq.s32.totalorder %s25, 1
    %p111 = por %p109, %p110
    %p113 = scmp.ne.s32.totalorder %s98, %s112
    %p114 = scmp.eq.s32.totalorder %s25, 0
    %p115 = por %p113, %p114
    %s117 = sadd.s32 %s116, 1
    %p120 = scmp.eq.s32.totalorder %s19, 1
    %p121 = scmp.ne.s32.totalorder %s116, %s118
    %p122 = scmp.eq.s32.totalorder %s19, 0
    %p123 = por %p121, %p122
    %p124 = scmp.ne.s32.totalorder %s116, %s118
    %p125 = scmp.eq.s32.totalorder %s24, 1
    %p126 = por %p124, %p125
    %p127 = scmp.ne.s32.totalorder %s118, %s119
    %p128 = scmp.eq.s32.totalorder %s24, 0
    %p129 = por %p127, %p128
    %p130 = scmp.ne.s32.totalorder %s118, %s119
    %p131 = scmp.eq.s32.totalorder %s25, 1
    %p132 = por %p130, %p131
    %p134 = scmp.ne.s32.totalorder %s119, %s133
    %p135 = scmp.eq.s32.totalorder %s25, 0
    %p136 = por %p134, %p135
    %s138 = sadd.s32 %s137, 1
    %p141 = scmp.eq.s32.totalorder %s19, 1
    %p142 = scmp.ne.s32.totalorder %s137, %s139
    %p143 = scmp.eq.s32.totalorder %s19, 0
    %p144 = por %p142, %p143
    %p145 = scmp.ne.s32.totalorder %s137, %s139
    %p146 = scmp.eq.s32.totalorder %s24, 1
    %p147 = por %p145, %p146
    %p148 = scmp.ne.s32.totalorder %s139, %s140
    %p149 = scmp.eq.s32.totalorder %s24, 0
    %p150 = por %p148, %p149
    %p151 = scmp.ne.s32.totalorder %s139, %s140
    %p152 = scmp.eq.s32.totalorder %s25, 1
    %p153 = por %p151, %p152
    %p155 = scmp.ne.s32.totalorder %s140, %s154
    %p156 = scmp.eq.s32.totalorder %s25, 0
    %p157 = por %p155, %p156
    %s159 = sadd.s32 %s158, 1
    %p162 = scmp.eq.s32.totalorder %s19, 1
    %p163 = scmp.ne.s32.totalorder %s158, %s160
    %p164 = scmp.eq.s32.totalorder %s19, 0
    %p165 = por %p163, %p164
    %p166 = scmp.ne.s32.totalorder %s158, %s160
    %p167 = scmp.eq.s32.totalorder %s24, 1
    %p168 = por %p166, %p167
    %p169 = scmp.ne.s32.totalorder %s160, %s161
    %p170 = scmp.eq.s32.totalorder %s24, 0
    %p171 = por %p169, %p170
    %p172 = scmp.ne.s32.totalorder %s160, %s161
    %p173 = scmp.eq.s32.totalorder %s25, 1
    %p174 = por %p172, %p173
    %p176 = scmp.ne.s32.totalorder %s161, %s175
    %p177 = scmp.eq.s32.totalorder %s25, 0
    %p178 = por %p176, %p177
    %s180 = sadd.s32 %s179, 1
    %p183 = scmp.eq.s32.totalorder %s19, 1
    %p184 = scmp.ne.s32.totalorder %s179, %s181
    %p185 = scmp.eq.s32.totalorder %s19, 0
    %p186 = por %p184, %p185
    %p187 = scmp.ne.s32.totalorder %s179, %s181
    %p188 = scmp.eq.s32.totalorder %s24, 1
    %p189 = por %p187, %p188
    %p190 = scmp.ne.s32.totalorder %s181, %s182
    %p191 = scmp.eq.s32.totalorder %s24, 0
    %p192 = por %p190, %p191
    %p193 = scmp.ne.s32.totalorder %s181, %s182
    %p194 = scmp.eq.s32.totalorder %s25, 1
    %p195 = por %p193, %p194
    %p197 = scmp.ne.s32.totalorder %s182, %s196
    %p198 = scmp.eq.s32.totalorder %s25, 0
    %p199 = por %p197, %p198
    %s201 = sadd.s32 %s200, 1
    %p204 = scmp.eq.s32.totalorder %s19, 1
    %p205 = scmp.ne.s32.totalorder %s200, %s202
    %p206 = scmp.eq.s32.totalorder %s19, 0
    %p207 = por %p205, %p206
    %p208 = scmp.ne.s32.totalorder %s200, %s202
    %p209 = scmp.eq.s32.totalorder %s24, 1
    %p210 = por %p208, %p209
    %p211 = scmp.ne.s32.totalorder %s202, %s203
    %p212 = scmp.eq.s32.totalorder %s24, 0
    %p213 = por %p211, %p212
    %p214 = scmp.ne.s32.totalorder %s202, %s203
    %p215 = scmp.eq.s32.totalorder %s25, 1
    %p216 = por %p214, %p215
    %p218 = scmp.ne.s32.totalorder %s203, %s217
    %p219 = scmp.eq.s32.totalorder %s25, 0
    %p220 = por %p218, %p219
    %s222 = sadd.s32 %s221, 1
    %p225 = scmp.eq.s32.totalorder %s19, 1
    %p226 = scmp.ne.s32.totalorder %s221, %s223
    %p227 = scmp.eq.s32.totalorder %s19, 0
    %p228 = por %p226, %p227
    %p229 = scmp.ne.s32.totalorder %s221, %s223
    %p230 = scmp.eq.s32.totalorder %s24, 1
    %p231 = por %p229, %p230
    %p232 = scmp.ne.s32.totalorder %s223, %s224
    %p233 = scmp.eq.s32.totalorder %s24, 0
    %p234 = por %p232, %p233
    %p235 = scmp.ne.s32.totalorder %s223, %s224
    %p236 = scmp.eq.s32.totalorder %s25, 1
    %p237 = por %p235, %p236
    %p239 = scmp.ne.s32.totalorder %s224, %s238
    %p240 = scmp.eq.s32.totalorder %s25, 0
    %p241 = por %p239, %p240
    %s243 = sadd.s32 %s242, 1
    %p246 = scmp.eq.s32.totalorder %s19, 1
    %p247 = scmp.ne.s32.totalorder %s242, %s244
    %p248 = scmp.eq.s32.totalorder %s19, 0
    %p249 = por %p247, %p248
    %p250 = scmp.ne.s32.totalorder %s242, %s244
    %p251 = scmp.eq.s32.totalorder %s24, 1
    %p252 = por %p250, %p251
    %p253 = scmp.ne.s32.totalorder %s244, %s245
    %p254 = scmp.eq.s32.totalorder %s24, 0
    %p255 = por %p253, %p254
    %p256 = scmp.ne.s32.totalorder %s244, %s245
    %p257 = scmp.eq.s32.totalorder %s25, 1
    %p258 = por %p256, %p257
    %p260 = scmp.ne.s32.totalorder %s245, %s259
    %p261 = scmp.eq.s32.totalorder %s25, 0
    %p262 = por %p260, %p261
    %s264 = sadd.s32 %s263, 1
    %p267 = scmp.eq.s32.totalorder %s19, 1
    %p268 = scmp.ne.s32.totalorder %s263, %s265
    %p269 = scmp.eq.s32.totalorder %s19, 0
    %p270 = por %p268, %p269
    %p271 = scmp.ne.s32.totalorder %s263, %s265
    %p272 = scmp.eq.s32.totalorder %s24, 1
    %p273 = por %p271, %p272
    %p274 = scmp.ne.s32.totalorder %s265, %s266
    %p275 = scmp.eq.s32.totalorder %s24, 0
    %p276 = por %p274, %p275
    %p277 = scmp.ne.s32.totalorder %s265, %s266
    %p278 = scmp.eq.s32.totalorder %s25, 1
    %p279 = por %p277, %p278
    %p281 = scmp.ne.s32.totalorder %s266, %s280
    %p282 = scmp.eq.s32.totalorder %s25, 0
    %p283 = por %p281, %p282
    %s285 = sadd.s32 %s284, 1
    %p288 = scmp.eq.s32.totalorder %s19, 1
    %p289 = scmp.ne.s32.totalorder %s284, %s286
    %p290 = scmp.eq.s32.totalorder %s19, 0
    %p291 = por %p289, %p290
    %p292 = scmp.ne.s32.totalorder %s284, %s286
    %p293 = scmp.eq.s32.totalorder %s24, 1
    %p294 = por %p292, %p293
    %p295 = scmp.ne.s32.totalorder %s286, %s287
    %p296 = scmp.eq.s32.totalorder %s24, 0
    %p297 = por %p295, %p296
    %p298 = scmp.ne.s32.totalorder %s286, %s287
    %p299 = scmp.eq.s32.totalorder %s25, 1
    %p300 = por %p298, %p299
    %p302 = scmp.ne.s32.totalorder %s287, %s301
    %p303 = scmp.eq.s32.totalorder %s25, 0
    %p304 = por %p302, %p303
    %s305 = ssub.s32 %s19, %s26
    %p306 = scmp.eq.s32.totalorder %s305, 0
    %s308 = sadd.s32 %s307, 1
    %s309 = scalar_select %p306, %s307, %s308
    %p312 = pneg %p306
    %p313 = scmp.eq.s32.totalorder %s19, 1
    %p314 = por %p312, %p313
    %p315 = scmp.ne.s32.totalorder %s307, %s310
    %p316 = scmp.eq.s32.totalorder %s19, 0
    %p317 = por %p315, %p316
    %p318 = scmp.ne.s32.totalorder %s307, %s310
    %p319 = scmp.eq.s32.totalorder %s24, 1
    %p320 = por %p318, %p319
    %p321 = scmp.ne.s32.totalorder %s310, %s311
    %p322 = scmp.eq.s32.totalorder %s24, 0
    %p323 = por %p321, %p322
    %p324 = scmp.ne.s32.totalorder %s310, %s311
    %p325 = scmp.eq.s32.totalorder %s25, 1
    %p326 = por %p324, %p325
    %p328 = scmp.ne.s32.totalorder %s311, %s327
    %p329 = scmp.eq.s32.totalorder %s25, 0
    %p330 = por %p328, %p329
    %p331 = scmp.le.s32.totalorder 1, %s19
    %p332 = scmp.lt.s32.totalorder %s19, 3
    %p333 = pnand %p331, %p332
    %p334 = pneg %p333
    // Predicated region
    $region9: #{tpu_custom_call.1} parent=5 // pred_check
      _
    $region10: #{tpu_custom_call.1} parent=5 // pred_check_branch
      %336 = sbr.rel (%p333) target = $region12
    $region11: #{tpu_custom_call.1} parent=5 // pred_region
      %s337 = ssub.s32 %s19, 1
      // Predicated region
      $region13: #{tpu_custom_call.1} parent=11 // pred_check
        %p338 = pneg %p66
      $region14: #{tpu_custom_call.1} parent=11 // pred_check_branch
        %340 = sbr.rel (%p338) target = $region16
      $region15: #{tpu_custom_call.1} parent=11 // pred_region
        _
      $region16: #{tpu_custom_call.1} parent=11 // pred_fallthru
        _
      // Predicated region
      $region17: #{tpu_custom_call.1} parent=11 // pred_check
        %p341 = pneg %p87
      $region18: #{tpu_custom_call.1} parent=11 // pred_check_branch
        %343 = sbr.rel (%p341) target = $region20
      $region19: #{tpu_custom_call.1} parent=11 // pred_region
        _
      $region20: #{tpu_custom_call.1} parent=11 // pred_fallthru
        _
      // Predicated region
      $region21: #{tpu_custom_call.1} parent=11 // pred_check
        %p344 = pneg %p108
      $region22: #{tpu_custom_call.1} parent=11 // pred_check_branch
        %346 = sbr.rel (%p344) target = $region24
      $region23: #{tpu_custom_call.1} parent=11 // pred_region
        _
      $region24: #{tpu_custom_call.1} parent=11 // pred_fallthru
        _
      // Predicated region
      $region25: #{tpu_custom_call.1} parent=11 // pred_check
        %p347 = pneg %p129
      $region26: #{tpu_custom_call.1} parent=11 // pred_check_branch
        %349 = sbr.rel (%p347) target = $region28
      $region27: #{tpu_custom_call.1} parent=11 // pred_region
        _
      $region28: #{tpu_custom_call.1} parent=11 // pred_fallthru
        _
      // Predicated region
      $region29: #{tpu_custom_call.1} parent=11 // pred_check
        %p350 = pneg %p150
      $region30: #{tpu_custom_call.1} parent=11 // pred_check_branch
        %352 = sbr.rel (%p350) target = $region32
      $region31: #{tpu_custom_call.1} parent=11 // pred_region
        _
      $region32: #{tpu_custom_call.1} parent=11 // pred_fallthru
        _
      // Predicated region
      $region33: #{tpu_custom_call.1} parent=11 // pred_check
        %p353 = pneg %p171
      $region34: #{tpu_custom_call.1} parent=11 // pred_check_branch
        %355 = sbr.rel (%p353) target = $region36
      $region35: #{tpu_custom_call.1} parent=11 // pred_region
        _
      $region36: #{tpu_custom_call.1} parent=11 // pred_fallthru
        _
      // Predicated region
      $region37: #{tpu_custom_call.1} parent=11 // pred_check
        %p356 = pneg %p192
      $region38: #{tpu_custom_call.1} parent=11 // pred_check_branch
        %358 = sbr.rel (%p356) target = $region40
      $region39: #{tpu_custom_call.1} parent=11 // pred_region
        _
      $region40: #{tpu_custom_call.1} parent=11 // pred_fallthru
        _
      // Predicated region
      $region41: #{tpu_custom_call.1} parent=11 // pred_check
        %p359 = pneg %p213
      $region42: #{tpu_custom_call.1} parent=11 // pred_check_branch
        %361 = sbr.rel (%p359) target = $region44
      $region43: #{tpu_custom_call.1} parent=11 // pred_region
        _
      $region44: #{tpu_custom_call.1} parent=11 // pred_fallthru
        _
      // Predicated region
      $region45: #{tpu_custom_call.1} parent=11 // pred_check
        %p362 = pneg %p234
      $region46: #{tpu_custom_call.1} parent=11 // pred_check_branch
        %364 = sbr.rel (%p362) target = $region48
      $region47: #{tpu_custom_call.1} parent=11 // pred_region
        _
      $region48: #{tpu_custom_call.1} parent=11 // pred_fallthru
        _
      // Predicated region
      $region49: #{tpu_custom_call.1} parent=11 // pred_check
        %p365 = pneg %p255
      $region50: #{tpu_custom_call.1} parent=11 // pred_check_branch
        %367 = sbr.rel (%p365) target = $region52
      $region51: #{tpu_custom_call.1} parent=11 // pred_region
        _
      $region52: #{tpu_custom_call.1} parent=11 // pred_fallthru
        _
      // Predicated region
      $region53: #{tpu_custom_call.1} parent=11 // pred_check
        %p368 = pneg %p276
      $region54: #{tpu_custom_call.1} parent=11 // pred_check_branch
        %370 = sbr.rel (%p368) target = $region56
      $region55: #{tpu_custom_call.1} parent=11 // pred_region
        _
      $region56: #{tpu_custom_call.1} parent=11 // pred_fallthru
        _
      // Predicated region
      $region57: #{tpu_custom_call.1} parent=11 // pred_check
        %p371 = pneg %p297
      $region58: #{tpu_custom_call.1} parent=11 // pred_check_branch
        %373 = sbr.rel (%p371) target = $region60
      $region59: #{tpu_custom_call.1} parent=11 // pred_region
        _
      $region60: #{tpu_custom_call.1} parent=11 // pred_fallthru
        _
    $region12: #{tpu_custom_call.1} parent=5 // pred_fallthru
      _
    %p374 = scmp.lt.s32.totalorder %s19, 2
    // Predicated region
    $region61: #{tpu_custom_call.1} parent=5 // pred_check
      %p375 = pneg %p374
    $region62: #{tpu_custom_call.1} parent=5 // pred_check_branch
      %377 = sbr.rel (%p375) target = $region64
    $region63: #{tpu_custom_call.1} parent=5 // pred_region
      // Predicated region
      $region65: #{tpu_custom_call.1} parent=63 // pred_check
        %p378 = pneg %p39
      $region66: #{tpu_custom_call.1} parent=63 // pred_check_branch
        %380 = sbr.rel (%p378) target = $region68
      $region67: #{tpu_custom_call.1} parent=63 // pred_region
        %p381 = scmp.lt.s32.totalorder %s19, 1
        %s382 = scalar_select %p381, %s19, 1
        %s383 = smul.addr %s382, 8
        %s384 = smul.addr %s383, 8
        %s385 = scalar_lea.vmem %s0, %s384
      $region68: #{tpu_custom_call.1} parent=63 // pred_fallthru
        _
    $region64: #{tpu_custom_call.1} parent=5 // pred_fallthru
      _
    %p386 = scmp.le.s32.totalorder 1, %s19
    %p387 = scmp.lt.s32.totalorder %s19, 3
    %p388 = pnand %p386, %p387
    %p389 = pneg %p388
    // Predicated region
    $region69: #{tpu_custom_call.1} parent=5 // pred_check
      _
    $region70: #{tpu_custom_call.1} parent=5 // pred_check_branch
      %391 = sbr.rel (%p388) target = $region72
    $region71: #{tpu_custom_call.1} parent=5 // pred_region
      %s392 = ssub.s32 %s19, 1
      %p393 = scmp.lt.s32.totalorder %s24, 1
      %s394 = scalar_select %p393, %s24, 1
      %s395 = smul.addr %s394, 8
      %s396 = smul.addr %s395, 8
      %s397 = scalar_lea.vmem %s0, %s396
      %p398 = pneg %p45
      %p399 = pneg %p42
      %p400 = pneg %p66
      %p401 = pneg %p63
      %p402 = pneg %p87
      %p403 = pneg %p84
      %p404 = pneg %p108
      %p405 = pneg %p105
      %p406 = pneg %p129
      %p407 = pneg %p126
      %p408 = pneg %p150
      %p409 = pneg %p147
      %p410 = pneg %p171
      %p411 = pneg %p168
      %p412 = pneg %p192
      %p413 = pneg %p189
      %p414 = pneg %p213
      %p415 = pneg %p210
      %p416 = pneg %p234
      %p417 = pneg %p231
      %p418 = pneg %p255
      %p419 = pneg %p252
      %p420 = pneg %p276
      %p421 = pneg %p273
      %p422 = pneg %p297
      %p423 = pneg %p294
      %p424 = pneg %p323
      %p425 = pneg %p320
      %p426 = scmp.lt.s32.totalorder %s24, 1
      %s427 = scalar_select %p426, %s24, 1
      %s428 = smul.addr %s427, 8
      %s429 = smul.addr %s428, 8
      %s430 = scalar_lea.vmem %s13, %s429
      %p431 = scmp.lt.s32.totalorder %s24, 1
      %s432 = scalar_select %p431, %s24, 1
      %s433 = smul.addr %s432, 8
      %s434 = smul.addr %s433, 8
      %s435 = scalar_lea.vmem %s0, %s434
      %p436 = scmp.lt.s32.totalorder %s24, 1
      %s437 = scalar_select %p436, %s24, 1
      %s438 = smul.addr %s437, 8
      %s439 = smul.addr %s438, 8
      %s440 = scalar_lea.vmem %s13, %s439
      %v442 = vld [vmem:[%s435] sm:$0xff]
      %v443 = vld [vmem:[%s435 + $0x8] sm:$0xff]
      %v444 = vld [vmem:[%s435 + $0x10] sm:$0xff]
      %v445 = vld [vmem:[%s435 + $0x18] sm:$0xff]
      %v446 = vld [vmem:[%s435 + $0x20] sm:$0xff]
      %v447 = vld [vmem:[%s435 + $0x28] sm:$0xff]
      %v448 = vld [vmem:[%s435 + $0x30] sm:$0xff]
      %v449 = vld [vmem:[%s435 + $0x38] sm:$0xff]
      %v450 = vpack.c.bf16 %v443, %v442
      %v451 = vpack.c.bf16 %v445, %v444
      %v452 = vpack.c.bf16 %v447, %v446
      %v453 = vpack.c.bf16 %v449, %v448
      %v454 = vld [vmem:[%s1] sm:$0xf]
      %v455 = vld [vmem:[%s1 + $0x4] sm:$0xf]
      %v456 = vld [vmem:[%s1 + $0x8] sm:$0xf]
      %v457 = vld [vmem:[%s1 + $0xc] sm:$0xf]
      %v458 = vld [vmem:[%s2] sm:$0x1]
      %v460 = vlaneseq
      %v461 = vshrl.u32 %v460, 7
      %v462 = vsub.s32 0, %v461
      %v463 = vrot.slane %v458, %v462
      %v469 = vunpack.c.l.b16 %v454
      %v470 = vunpack.c.l.b16 %v455
      %v471 = vunpack.c.l.b16 %v456
      %v472 = vunpack.c.l.b16 %v457
      %v473 = vpack.c.b16 %v470, %v469
      %v474 = vpack.c.b16 %v472, %v471
      %vm477 = vcmask 261120
      %v479 = vsel %vm477, %v450, 0
      %v482 = vsel %vm477, %v451, 0
      %v485 = vsel %vm477, %v452, 0
      %v488 = vsel %vm477, %v453, 0
      %490 = vmatprep.subr.bf16.mxu0 0
      %491 = vmatpush1.bf16.msra.mxu0 %v473
      %492 = vmatprep.subr.bf16.mxu0 0
      %493 = vmatpush1.bf16.msra.mxu0 %v474
      %494 = vmatprep.subr.bf16.mxu0 0
      %495 = vmatpush1.bf16.msra.mxu0 0
      %496 = vmatprep.subr.bf16.mxu0 0
      %497 = vmatpush1.bf16.msra.mxu0 0
      %498 = vmatprep.subr.bf16.mxu0 0
      %499 = vmatpush1.bf16.msra.mxu0 0
      %500 = vmatprep.subr.bf16.mxu0 0
      %501 = vmatpush1.bf16.msra.mxu0 0
      %502 = vmatprep.subr.bf16.mxu0 0
      %503 = vmatpush1.bf16.msra.mxu0 0
      %504 = vmatprep.subr.bf16.mxu0 0
      %505 = vmatpush1.bf16.msra.mxu0 0
      %506 = vmatprep.subr.bf16.mxu0 0
      %507 = vmatpush1.bf16.msra.mxu0 0
      %508 = vmatprep.subr.bf16.mxu0 0
      %509 = vmatpush1.bf16.msra.mxu0 0
      %510 = vmatprep.subr.bf16.mxu0 0
      %511 = vmatpush1.bf16.msra.mxu0 0
      %512 = vmatprep.subr.bf16.mxu0 0
      %513 = vmatpush1.bf16.msra.mxu0 0
      %514 = vmatprep.subr.bf16.mxu0 0
      %515 = vmatpush1.bf16.msra.mxu0 0
      %516 = vmatprep.subr.bf16.mxu0 0
      %517 = vmatpush1.bf16.msra.mxu0 0
      %518 = vmatprep.subr.bf16.mxu0 0
      %519 = vmatpush1.bf16.msra.mxu0 0
      %520 = vmatprep.subr.bf16.mxu0 0
      %521 = vmatpush1.bf16.msra.mxu0 0
      %522 = vmatprep.mubr.bf16.mxu0 0
      %523 = vmatmul.mubr.bf16.gmra.mrb[0].mxu0 %v479
      %v524 = vpop.f32.mrb[0].mxu0
      %v525 = vadd.f32 %v463, %v524
      %v526 = vpop.f32.mrb[0].mxu0
      %v527 = vpop.f32.mrb[0].mxu0
      %v528 = vadd.f32 %v463, %v527
      %v529 = vpop.f32.mrb[0].mxu0
      %530 = vmatprep.mubr.bf16.mxu0 0
      %531 = vmatmul.mubr.bf16.gmra.mrb[0].mxu0 %v482
      %v532 = vpop.f32.mrb[0].mxu0
      %v533 = vadd.f32 %v463, %v532
      %v534 = vpop.f32.mrb[0].mxu0
      %v535 = vpop.f32.mrb[0].mxu0
      %v536 = vadd.f32 %v463, %v535
      %v537 = vpop.f32.mrb[0].mxu0
      %538 = vmatprep.mubr.bf16.mxu0 0
      %539 = vmatmul.mubr.bf16.gmra.mrb[0].mxu0 %v485
      %v540 = vpop.f32.mrb[0].mxu0
      %v541 = vadd.f32 %v463, %v540
      %v542 = vpop.f32.mrb[0].mxu0
      %v543 = vpop.f32.mrb[0].mxu0
      %v544 = vadd.f32 %v463, %v543
      %v545 = vpop.f32.mrb[0].mxu0
      %546 = vmatprep.mubr.bf16.mxu0 0
      %547 = vmatmul.mubr.bf16.gmra.mrb[0].mxu0 %v488
      %v548 = vpop.f32.mrb[0].mxu0
      %v549 = vadd.f32 %v463, %v548
      %v550 = vpop.f32.mrb[0].mxu0
      %v551 = vpop.f32.mrb[0].mxu0
      %v552 = vadd.f32 %v463, %v551
      %v553 = vpop.f32.mrb[0].mxu0
      %554 = vdwg.mxu0
      %v555 = vpack.c.bf16 %v528, %v525
      %v556 = vpack.c.bf16 %v536, %v533
      %v557 = vpack.c.bf16 %v544, %v541
      %v558 = vpack.c.bf16 %v552, %v549
      %563 = vrot.lane.b32.xlu0 %v555, 96
      %v564 = vpop.permute.xlu0 %563
      %565 = vrot.lane.b32.xlu0 %v556, 96
      %v566 = vpop.permute.xlu0 %565
      %567 = vrot.lane.b32.xlu0 %v557, 96
      %v568 = vpop.permute.xlu0 %567
      %569 = vrot.lane.b32.xlu0 %v558, 96
      %v570 = vpop.permute.xlu0 %569
      %vm571 = vcmask 31744
      %v573 = vsel %vm571, %v555, 0
      %v576 = vsel %vm571, %v556, 0
      %v579 = vsel %vm571, %v557, 0
      %v582 = vsel %vm571, %v558, 0
      %v585 = vsel %vm571, %v564, 0
      %v588 = vsel %vm571, %v566, 0
      %v591 = vsel %vm571, %v568, 0
      %v594 = vsel %vm571, %v570, 0
      %596 = vmatprep.subr.bf16.mxu0 0
      %597 = vmatpush1.bf16.xpose.msra.mxu0 %v585
      %598 = vmatprep.subr.bf16.mxu0 0
      %599 = vmatpush1.bf16.xpose.msra.mxu0 %v588
      %600 = vmatprep.subr.bf16.mxu0 0
      %601 = vmatpush1.bf16.xpose.msra.mxu0 %v591
      %602 = vmatprep.subr.bf16.mxu0 0
      %603 = vmatpush1.bf16.xpose.msra.mxu0 %v594
      %604 = vmatprep.subr.bf16.mxu0 0
      %605 = vmatpush1.bf16.xpose.msra.mxu0 0
      %606 = vmatprep.subr.bf16.mxu0 0
      %607 = vmatpush1.bf16.xpose.msra.mxu0 0
      %608 = vmatprep.subr.bf16.mxu0 0
      %609 = vmatpush1.bf16.xpose.msra.mxu0 0
      %610 = vmatprep.subr.bf16.mxu0 0
      %611 = vmatpush1.bf16.xpose.msra.mxu0 0
      %612 = vmatprep.subr.bf16.mxu0 0
      %613 = vmatpush1.bf16.xpose.msra.mxu0 0
      %614 = vmatprep.subr.bf16.mxu0 0
      %615 = vmatpush1.bf16.xpose.msra.mxu0 0
      %616 = vmatprep.subr.bf16.mxu0 0
      %617 = vmatpush1.bf16.xpose.msra.mxu0 0
      %618 = vmatprep.subr.bf16.mxu0 0
      %619 = vmatpush1.bf16.xpose.msra.mxu0 0
      %620 = vmatprep.subr.bf16.mxu0 0
      %621 = vmatpush1.bf16.xpose.msra.mxu0 0
      %622 = vmatprep.subr.bf16.mxu0 0
      %623 = vmatpush1.bf16.xpose.msra.mxu0 0
      %624 = vmatprep.subr.bf16.mxu0 0
      %625 = vmatpush1.bf16.xpose.msra.mxu0 0
      %626 = vmatprep.subr.bf16.mxu0 0
      %627 = vmatpush1.bf16.xpose.msra.mxu0 0
      %628 = vmatprep.mubr.bf16.mxu0 0
      %629 = vmatmul.mubr.bf16.gmra.mrb[0].mxu0 %v573
      %v630 = vpop.f32.mrb[0].mxu0
      %v631 = vadd.f32 0.0, %v630
      %v632 = vpop.f32.mrb[0].mxu0
      %v633 = vpop.f32.mrb[0].mxu0
      %v634 = vadd.f32 0.0, %v633
      %v635 = vpop.f32.mrb[0].mxu0
      %636 = vmatprep.mubr.bf16.mxu0 0
      %637 = vmatmul.mubr.bf16.gmra.mrb[0].mxu0 %v576
      %v638 = vpop.f32.mrb[0].mxu0
      %v639 = vadd.f32 0.0, %v638
      %v640 = vpop.f32.mrb[0].mxu0
      %v641 = vpop.f32.mrb[0].mxu0
      %v642 = vadd.f32 0.0, %v641
      %v643 = vpop.f32.mrb[0].mxu0
      %644 = vmatprep.mubr.bf16.mxu0 0
      %645 = vmatmul.mubr.bf16.gmra.mrb[0].mxu0 %v579
      %v646 = vpop.f32.mrb[0].mxu0
      %v647 = vadd.f32 0.0, %v646
      %v648 = vpop.f32.mrb[0].mxu0
      %v649 = vpop.f32.mrb[0].mxu0
      %v650 = vadd.f32 0.0, %v649
      %v651 = vpop.f32.mrb[0].mxu0
      %652 = vmatprep.mubr.bf16.mxu0 0
      %653 = vmatmul.mubr.bf16.gmra.mrb[0].mxu0 %v582
      %v654 = vpop.f32.mrb[0].mxu0
      %v655 = vadd.f32 0.0, %v654
      %v656 = vpop.f32.mrb[0].mxu0
      %v657 = vpop.f32.mrb[0].mxu0
      %v658 = vadd.f32 0.0, %v657
      %v659 = vpop.f32.mrb[0].mxu0
      %660 = vdwg.mxu0
      %v661 = vmul.f32 %v631, 0.5
      %v662 = vmul.f32 %v634, 0.5
      %v663 = vmul.f32 %v639, 0.5
      %v664 = vmul.f32 %v642, 0.5
      %v665 = vmul.f32 %v647, 0.5
      %v666 = vmul.f32 %v650, 0.5
      %v667 = vmul.f32 %v655, 0.5
      %v668 = vmul.f32 %v658, 0.5
      %vm669 = vcmask 523264
      %v670 = vsel %vm669, %v661, -inf
      %671 = vmax.xlane.f32.xlu0 %v670
      %v672 = vpop.xlane.xlu0 %671
      %v673 = vsel %vm669, %v662, -inf
      %674 = vmax.xlane.f32.xlu0 %v673
      %v675 = vpop.xlane.xlu0 %674
      %v676 = vsel %vm669, %v663, -inf
      %677 = vmax.xlane.f32.xlu0 %v676
      %v678 = vpop.xlane.xlu0 %677
      %v679 = vsel %vm669, %v664, -inf
      %680 = vmax.xlane.f32.xlu0 %v679
      %v681 = vpop.xlane.xlu0 %680
      %v682 = vsel %vm669, %v665, -inf
      %683 = vmax.xlane.f32.xlu0 %v682
      %v684 = vpop.xlane.xlu0 %683
      %v685 = vsel %vm669, %v666, -inf
      %686 = vmax.xlane.f32.xlu0 %v685
      %v687 = vpop.xlane.xlu0 %686
      %v688 = vsel %vm669, %v667, -inf
      %689 = vmax.xlane.f32.xlu0 %v688
      %v690 = vpop.xlane.xlu0 %689
      %v691 = vsel %vm669, %v668, -inf
      %692 = vmax.xlane.f32.xlu0 %v691
      %v693 = vpop.xlane.xlu0 %692
      %v694 = vsub.f32 %v661, %v672
      %v695 = vsub.f32 %v662, %v675
      %v696 = vsub.f32 %v663, %v678
      %v697 = vsub.f32 %v664, %v681
      %v698 = vsub.f32 %v665, %v684
      %v699 = vsub.f32 %v666, %v687
      %v700 = vsub.f32 %v667, %v690
      %v701 = vsub.f32 %v668, %v693
      %v702 = vmul.f32 %v694, 1.442695
      %v703 = vpow.pop %v702
      %v704 = vmul.f32 %v695, 1.442695
      %v705 = vpow.pop %v704
      %v706 = vmul.f32 %v696, 1.442695
      %v707 = vpow.pop %v706
      %v708 = vmul.f32 %v697, 1.442695
      %v709 = vpow.pop %v708
      %v710 = vmul.f32 %v698, 1.442695
      %v711 = vpow.pop %v710
      %v712 = vmul.f32 %v699, 1.442695
      %v713 = vpow.pop %v712
      %v714 = vmul.f32 %v700, 1.442695
      %v715 = vpow.pop %v714
      %v716 = vmul.f32 %v701, 1.442695
      %v717 = vpow.pop %v716
      %v718 = vsel %vm669, %v703, 0.0
      %719 = vadd.xlane.f32.xlu0 %v718
      %v720 = vpop.xlane.xlu0 %719
      %v721 = vsel %vm669, %v705, 0.0
      %722 = vadd.xlane.f32.xlu0 %v721
      %v723 = vpop.xlane.xlu0 %722
      %v724 = vsel %vm669, %v707, 0.0
      %725 = vadd.xlane.f32.xlu0 %v724
      %v726 = vpop.xlane.xlu0 %725
      %v727 = vsel %vm669, %v709, 0.0
      %728 = vadd.xlane.f32.xlu0 %v727
      %v729 = vpop.xlane.xlu0 %728
      %v730 = vsel %vm669, %v711, 0.0
      %731 = vadd.xlane.f32.xlu0 %v730
      %v732 = vpop.xlane.xlu0 %731
      %v733 = vsel %vm669, %v713, 0.0
      %734 = vadd.xlane.f32.xlu0 %v733
      %v735 = vpop.xlane.xlu0 %734
      %v736 = vsel %vm669, %v715, 0.0
      %737 = vadd.xlane.f32.xlu0 %v736
      %v738 = vpop.xlane.xlu0 %737
      %v739 = vsel %vm669, %v717, 0.0
      %740 = vadd.xlane.f32.xlu0 %v739
      %v741 = vpop.xlane.xlu0 %740
      %v742 = vrcp.pop %v720
      %v743 = vrcp.pop %v723
      %v744 = vrcp.pop %v726
      %v745 = vrcp.pop %v729
      %v746 = vrcp.pop %v732
      %v747 = vrcp.pop %v735
      %v748 = vrcp.pop %v738
      %v749 = vrcp.pop %v741
      %v750 = vmul.f32 %v703, %v742
      %v751 = vmul.f32 %v705, %v743
      %v752 = vmul.f32 %v707, %v744
      %v753 = vmul.f32 %v709, %v745
      %v754 = vmul.f32 %v711, %v746
      %v755 = vmul.f32 %v713, %v747
      %v756 = vmul.f32 %v715, %v748
      %v757 = vmul.f32 %v717, %v749
      %v758 = vpack.c.bf16 %v751, %v750
      %v759 = vpack.c.bf16 %v753, %v752
      %v760 = vpack.c.bf16 %v755, %v754
      %v761 = vpack.c.bf16 %v757, %v756
      %762 = vrot.lane.b32.xlu0 %v555, 64
      %v763 = vpop.permute.xlu0 %762
      %764 = vrot.lane.b32.xlu0 %v556, 64
      %v765 = vpop.permute.xlu0 %764
      %766 = vrot.lane.b32.xlu0 %v557, 64
      %v767 = vpop.permute.xlu0 %766
      %768 = vrot.lane.b32.xlu0 %v558, 64
      %v769 = vpop.permute.xlu0 %768
      %v775 = vsel %vm669, %v758, 0
      %v778 = vsel %vm669, %v759, 0
      %v781 = vsel %vm669, %v760, 0
      %v784 = vsel %vm669, %v761, 0
      %786 = vmatprep.subr.bf16.mxu0 0
      %787 = vmatpush1.bf16.msra.mxu0 %v763
      %788 = vmatprep.subr.bf16.mxu0 0
      %789 = vmatpush1.bf16.msra.mxu0 %v765
      %790 = vmatprep.subr.bf16.mxu0 0
      %791 = vmatpush1.bf16.msra.mxu0 %v767
      %792 = vmatprep.subr.bf16.mxu0 0
      %793 = vmatpush1.bf16.msra.mxu0 %v769
      %794 = vmatprep.subr.bf16.mxu0 0
      %795 = vmatpush1.bf16.msra.mxu0 0
      %796 = vmatprep.subr.bf16.mxu0 0
      %797 = vmatpush1.bf16.msra.mxu0 0
      %798 = vmatprep.subr.bf16.mxu0 0
      %799 = vmatpush1.bf16.msra.mxu0 0
      %800 = vmatprep.subr.bf16.mxu0 0
      %801 = vmatpush1.bf16.msra.mxu0 0
      %802 = vmatprep.subr.bf16.mxu0 0
      %803 = vmatpush1.bf16.msra.mxu0 0
      %804 = vmatprep.subr.bf16.mxu0 0
      %805 = vmatpush1.bf16.msra.mxu0 0
      %806 = vmatprep.subr.bf16.mxu0 0
      %807 = vmatpush1.bf16.msra.mxu0 0
      %808 = vmatprep.subr.bf16.mxu0 0
      %809 = vmatpush1.bf16.msra.mxu0 0
      %810 = vmatprep.subr.bf16.mxu0 0
      %811 = vmatpush1.bf16.msra.mxu0 0
      %812 = vmatprep.subr.bf16.mxu0 0
      %813 = vmatpush1.bf16.msra.mxu0 0
      %814 = vmatprep.subr.bf16.mxu0 0
      %815 = vmatpush1.bf16.msra.mxu0 0
      %816 = vmatprep.subr.bf16.mxu0 0
      %817 = vmatpush1.bf16.msra.mxu0 0
      %818 = vmatprep.mubr.bf16.mxu0 0
      %819 = vmatmul.mubr.bf16.gmra.mrb[0].mxu0 %v775
      %v820 = vpop.f32.mrb[0].mxu0
      %v821 = vadd.f32 0.0, %v820
      %v822 = vpop.f32.mrb[0].mxu0
      %v823 = vpop.f32.mrb[0].mxu0
      %v824 = vadd.f32 0.0, %v823
      %v825 = vpop.f32.mrb[0].mxu0
      %826 = vmatprep.mubr.bf16.mxu0 0
      %827 = vmatmul.mubr.bf16.gmra.mrb[0].mxu0 %v778
      %v828 = vpop.f32.mrb[0].mxu0
      %v829 = vadd.f32 0.0, %v828
      %v830 = vpop.f32.mrb[0].mxu0
      %v831 = vpop.f32.mrb[0].mxu0
      %v832 = vadd.f32 0.0, %v831
      %v833 = vpop.f32.mrb[0].mxu0
      %834 = vmatprep.mubr.bf16.mxu0 0
      %835 = vmatmul.mubr.bf16.gmra.mrb[0].mxu0 %v781
      %v836 = vpop.f32.mrb[0].mxu0
      %v837 = vadd.f32 0.0, %v836
      %v838 = vpop.f32.mrb[0].mxu0
      %v839 = vpop.f32.mrb[0].mxu0
      %v840 = vadd.f32 0.0, %v839
      %v841 = vpop.f32.mrb[0].mxu0
      %842 = vmatprep.mubr.bf16.mxu0 0
      %843 = vmatmul.mubr.bf16.gmra.mrb[0].mxu0 %v784
      %v844 = vpop.f32.mrb[0].mxu0
      %v845 = vadd.f32 0.0, %v844
      %v846 = vpop.f32.mrb[0].mxu0
      %v847 = vpop.f32.mrb[0].mxu0
      %v848 = vadd.f32 0.0, %v847
      %v849 = vpop.f32.mrb[0].mxu0
      %850 = vdwg.mxu0
      %851 = vrot.lane.b32.xlu0 %v555, 124
      %v852 = vpop.permute.xlu0 %851
      %853 = vrot.lane.b32.xlu0 %v556, 124
      %v854 = vpop.permute.xlu0 %853
      %855 = vrot.lane.b32.xlu0 %v557, 124
      %v856 = vpop.permute.xlu0 %855
      %857 = vrot.lane.b32.xlu0 %v558, 124
      %v858 = vpop.permute.xlu0 %857
      %859 = vrot.lane.b32.xlu0 %v555, 92
      %v860 = vpop.permute.xlu0 %859
      %861 = vrot.lane.b32.xlu0 %v556, 92
      %v862 = vpop.permute.xlu0 %861
      %863 = vrot.lane.b32.xlu0 %v557, 92
      %v864 = vpop.permute.xlu0 %863
      %865 = vrot.lane.b32.xlu0 %v558, 92
      %v866 = vpop.permute.xlu0 %865
      %v868 = vsel %vm571, %v852, 0
      %v871 = vsel %vm571, %v854, 0
      %v874 = vsel %vm571, %v856, 0
      %v877 = vsel %vm571, %v858, 0
      %v880 = vsel %vm571, %v860, 0
      %v883 = vsel %vm571, %v862, 0
      %v886 = vsel %vm571, %v864, 0
      %v889 = vsel %vm571, %v866, 0
      %891 = vmatprep.subr.bf16.mxu0 0
      %892 = vmatpush1.bf16.xpose.msra.mxu0 %v880
      %893 = vmatprep.subr.bf16.mxu0 0
      %894 = vmatpush1.bf16.xpose.msra.mxu0 %v883
      %895 = vmatprep.subr.bf16.mxu0 0
      %896 = vmatpush1.bf16.xpose.msra.mxu0 %v886
      %897 = vmatprep.subr.bf16.mxu0 0
      %898 = vmatpush1.bf16.xpose.msra.mxu0 %v889
      %899 = vmatprep.subr.bf16.mxu0 0
      %900 = vmatpush1.bf16.xpose.msra.mxu0 0
      %901 = vmatprep.subr.bf16.mxu0 0
      %902 = vmatpush1.bf16.xpose.msra.mxu0 0
      %903 = vmatprep.subr.bf16.mxu0 0
      %904 = vmatpush1.bf16.xpose.msra.mxu0 0
      %905 = vmatprep.subr.bf16.mxu0 0
      %906 = vmatpush1.bf16.xpose.msra.mxu0 0
      %907 = vmatprep.subr.bf16.mxu0 0
      %908 = vmatpush1.bf16.xpose.msra.mxu0 0
      %909 = vmatprep.subr.bf16.mxu0 0
      %910 = vmatpush1.bf16.xpose.msra.mxu0 0
      %911 = vmatprep.subr.bf16.mxu0 0
      %912 = vmatpush1.bf16.xpose.msra.mxu0 0
      %913 = vmatprep.subr.bf16.mxu0 0
      %914 = vmatpush1.bf16.xpose.msra.mxu0 0
      %915 = vmatprep.subr.bf16.mxu0 0
      %916 = vmatpush1.bf16.xpose.msra.mxu0 0
      %917 = vmatprep.subr.bf16.mxu0 0
      %918 = vmatpush1.bf16.xpose.msra.mxu0 0
      %919 = vmatprep.subr.bf16.mxu0 0
      %920 = vmatpush1.bf16.xpose.msra.mxu0 0
      %921 = vmatprep.subr.bf16.mxu0 0
      %922 = vmatpush1.bf16.xpose.msra.mxu0 0
      %923 = vmatprep.mubr.bf16.mxu0 0
      %924 = vmatmul.mubr.bf16.gmra.mrb[0].mxu0 %v868
      %v925 = vpop.f32.mrb[0].mxu0
      %v926 = vadd.f32 0.0, %v925
      %v927 = vpop.f32.mrb[0].mxu0
      %v928 = vpop.f32.mrb[0].mxu0
      %v929 = vadd.f32 0.0, %v928
      %v930 = vpop.f32.mrb[0].mxu0
      %931 = vmatprep.mubr.bf16.mxu0 0
      %932 = vmatmul.mubr.bf16.gmra.mrb[0].mxu0 %v871
      %v933 = vpop.f32.mrb[0].mxu0
      %v934 = vadd.f32 0.0, %v933
      %v935 = vpop.f32.mrb[0].mxu0
      %v936 = vpop.f32.mrb[0].mxu0
      %v937 = vadd.f32 0.0, %v936
      %v938 = vpop.f32.mrb[0].mxu0
      %939 = vmatprep.mubr.bf16.mxu0 0
      %940 = vmatmul.mubr.bf16.gmra.mrb[0].mxu0 %v874
      %v941 = vpop.f32.mrb[0].mxu0
      %v942 = vadd.f32 0.0, %v941
      %v943 = vpop.f32.mrb[0].mxu0
      %v944 = vpop.f32.mrb[0].mxu0
      %v945 = vadd.f32 0.0, %v944
      %v946 = vpop.f32.mrb[0].mxu0
      %947 = vmatprep.mubr.bf16.mxu0 0
      %948 = vmatmul.mubr.bf16.gmra.mrb[0].mxu0 %v877
      %v949 = vpop.f32.mrb[0].mxu0
      %v950 = vadd.f32 0.0, %v949
      %v951 = vpop.f32.mrb[0].mxu0
      %v952 = vpop.f32.mrb[0].mxu0
      %v953 = vadd.f32 0.0, %v952
      %v954 = vpop.f32.mrb[0].mxu0
      %955 = vdwg.mxu0
      %v956 = vmul.f32 %v926, 0.5
      %v957 = vmul.f32 %v929, 0.5
      %v958 = vmul.f32 %v934, 0.5
      %v959 = vmul.f32 %v937, 0.5
      %v960 = vmul.f32 %v942, 0.5
      %v961 = vmul.f32 %v945, 0.5
      %v962 = vmul.f32 %v950, 0.5
      %v963 = vmul.f32 %v953, 0.5
      %v964 = vsel %vm669, %v956, -inf
      %965 = vmax.xlane.f32.xlu0 %v964
      %v966 = vpop.xlane.xlu0 %965
      %v967 = vsel %vm669, %v957, -inf
      %968 = vmax.xlane.f32.xlu0 %v967
      %v969 = vpop.xlane.xlu0 %968
      %v970 = vsel %vm669, %v958, -inf
      %971 = vmax.xlane.f32.xlu0 %v970
      %v972 = vpop.xlane.xlu0 %971
      %v973 = vsel %vm669, %v959, -inf
      %974 = vmax.xlane.f32.xlu0 %v973
      %v975 = vpop.xlane.xlu0 %974
      %v976 = vsel %vm669, %v960, -inf
      %977 = vmax.xlane.f32.xlu0 %v976
      %v978 = vpop.xlane.xlu0 %977
      %v979 = vsel %vm669, %v961, -inf
      %980 = vmax.xlane.f32.xlu0 %v979
      %v981 = vpop.xlane.xlu0 %980
      %v982 = vsel %vm669, %v962, -inf
      %983 = vmax.xlane.f32.xlu0 %v982
      %v984 = vpop.xlane.xlu0 %983
      %v985 = vsel %vm669, %v963, -inf
      %986 = vmax.xlane.f32.xlu0 %v985
      %v987 = vpop.xlane.xlu0 %986
      %v988 = vsub.f32 %v956, %v966
      %v989 = vsub.f32 %v957, %v969
      %v990 = vsub.f32 %v958, %v972
      %v991 = vsub.f32 %v959, %v975
      %v992 = vsub.f32 %v960, %v978
      %v993 = vsub.f32 %v961, %v981
      %v994 = vsub.f32 %v962, %v984
      %v995 = vsub.f32 %v963, %v987
      %v996 = vmul.f32 %v988, 1.442695
      %v997 = vpow.pop %v996
      %v998 = vmul.f32 %v989, 1.442695
      %v999 = vpow.pop %v998
      %v1000 = vmul.f32 %v990, 1.442695
      %v1001 = vpow.pop %v1000
      %v1002 = vmul.f32 %v991, 1.442695
      %v1003 = vpow.pop %v1002
      %v1004 = vmul.f32 %v992, 1.442695
      %v1005 = vpow.pop %v1004
      %v1006 = vmul.f32 %v993, 1.442695
      %v1007 = vpow.pop %v1006
      %v1008 = vmul.f32 %v994, 1.442695
      %v1009 = vpow.pop %v1008
      %v1010 = vmul.f32 %v995, 1.442695
      %v1011 = vpow.pop %v1010
      %v1012 = vsel %vm669, %v997, 0.0
      %1013 = vadd.xlane.f32.xlu0 %v1012
      %v1014 = vpop.xlane.xlu0 %1013
      %v1015 = vsel %vm669, %v999, 0.0
      %1016 = vadd.xlane.f32.xlu0 %v1015
      %v1017 = vpop.xlane.xlu0 %1016
      %v1018 = vsel %vm669, %v1001, 0.0
      %1019 = vadd.xlane.f32.xlu0 %v1018
      %v1020 = vpop.xlane.xlu0 %1019
      %v1021 = vsel %vm669, %v1003, 0.0
      %1022 = vadd.xlane.f32.xlu0 %v1021
      %v1023 = vpop.xlane.xlu0 %1022
      %v1024 = vsel %vm669, %v1005, 0.0
      %1025 = vadd.xlane.f32.xlu0 %v1024
      %v1026 = vpop.xlane.xlu0 %1025
      %v1027 = vsel %vm669, %v1007, 0.0
      %1028 = vadd.xlane.f32.xlu0 %v1027
      %v1029 = vpop.xlane.xlu0 %1028
      %v1030 = vsel %vm669, %v1009, 0.0
      %1031 = vadd.xlane.f32.xlu0 %v1030
      %v1032 = vpop.xlane.xlu0 %1031
      %v1033 = vsel %vm669, %v1011, 0.0
      %1034 = vadd.xlane.f32.xlu0 %v1033
      %v1035 = vpop.xlane.xlu0 %1034
      %v1036 = vrcp.pop %v1014
      %v1037 = vrcp.pop %v1017
      %v1038 = vrcp.pop %v1020
      %v1039 = vrcp.pop %v1023
      %v1040 = vrcp.pop %v1026
      %v1041 = vrcp.pop %v1029
      %v1042 = vrcp.pop %v1032
      %v1043 = vrcp.pop %v1035
      %v1044 = vmul.f32 %v997, %v1036
      %v1045 = vmul.f32 %v999, %v1037
      %v1046 = vmul.f32 %v1001, %v1038
      %v1047 = vmul.f32 %v1003, %v1039
      %v1048 = vmul.f32 %v1005, %v1040
      %v1049 = vmul.f32 %v1007, %v1041
      %v1050 = vmul.f32 %v1009, %v1042
      %v1051 = vmul.f32 %v1011, %v1043
      %v1052 = vpack.c.bf16 %v1045, %v1044
      %v1053 = vpack.c.bf16 %v1047, %v1046
      %v1054 = vpack.c.bf16 %v1049, %v1048
      %v1055 = vpack.c.bf16 %v1051, %v1050
      %1056 = vrot.lane.b32.xlu0 %v555, 60
      %v1057 = vpop.permute.xlu0 %1056
      %1058 = vrot.lane.b32.xlu0 %v556, 60
      %v1059 = vpop.permute.xlu0 %1058
      %1060 = vrot.lane.b32.xlu0 %v557, 60
      %v1061 = vpop.permute.xlu0 %1060
      %1062 = vrot.lane.b32.xlu0 %v558, 60
      %v1063 = vpop.permute.xlu0 %1062
      %v1069 = vsel %vm669, %v1052, 0
      %v1072 = vsel %vm669, %v1053, 0
      %v1075 = vsel %vm669, %v1054, 0
      %v1078 = vsel %vm669, %v1055, 0
      %1080 = vmatprep.subr.bf16.mxu0 0
      %1081 = vmatpush1.bf16.msra.mxu0 %v1057
      %1082 = vmatprep.subr.bf16.mxu0 0
      %1083 = vmatpush1.bf16.msra.mxu0 %v1059
      %1084 = vmatprep.subr.bf16.mxu0 0
      %1085 = vmatpush1.bf16.msra.mxu0 %v1061
      %1086 = vmatprep.subr.bf16.mxu0 0
      %1087 = vmatpush1.bf16.msra.mxu0 %v1063
      %1088 = vmatprep.subr.bf16.mxu0 0
      %1089 = vmatpush1.bf16.msra.mxu0 0
      %1090 = vmatprep.subr.bf16.mxu0 0
      %1091 = vmatpush1.bf16.msra.mxu0 0
      %1092 = vmatprep.subr.bf16.mxu0 0
      %1093 = vmatpush1.bf16.msra.mxu0 0
      %1094 = vmatprep.subr.bf16.mxu0 0
      %1095 = vmatpush1.bf16.msra.mxu0 0
      %1096 = vmatprep.subr.bf16.mxu0 0
      %1097 = vmatpush1.bf16.msra.mxu0 0
      %1098 = vmatprep.subr.bf16.mxu0 0
      %1099 = vmatpush1.bf16.msra.mxu0 0
      %1100 = vmatprep.subr.bf16.mxu0 0
      %1101 = vmatpush1.bf16.msra.mxu0 0
      %1102 = vmatprep.subr.bf16.mxu0 0
      %1103 = vmatpush1.bf16.msra.mxu0 0
      %1104 = vmatprep.subr.bf16.mxu0 0
      %1105 = vmatpush1.bf16.msra.mxu0 0
      %1106 = vmatprep.subr.bf16.mxu0 0
      %1107 = vmatpush1.bf16.msra.mxu0 0
      %1108 = vmatprep.subr.bf16.mxu0 0
      %1109 = vmatpush1.bf16.msra.mxu0 0
      %1110 = vmatprep.subr.bf16.mxu0 0
      %1111 = vmatpush1.bf16.msra.mxu0 0
      %1112 = vmatprep.mubr.bf16.mxu0 0
      %1113 = vmatmul.mubr.bf16.gmra.mrb[0].mxu0 %v1069
      %v1114 = vpop.f32.mrb[0].mxu0
      %v1115 = vadd.f32 0.0, %v1114
      %v1116 = vpop.f32.mrb[0].mxu0
      %v1117 = vpop.f32.mrb[0].mxu0
      %v1118 = vadd.f32 0.0, %v1117
      %v1119 = vpop.f32.mrb[0].mxu0
      %1120 = vmatprep.mubr.bf16.mxu0 0
      %1121 = vmatmul.mubr.bf16.gmra.mrb[0].mxu0 %v1072
      %v1122 = vpop.f32.mrb[0].mxu0
      %v1123 = vadd.f32 0.0, %v1122
      %v1124 = vpop.f32.mrb[0].mxu0
      %v1125 = vpop.f32.mrb[0].mxu0
      %v1126 = vadd.f32 0.0, %v1125
      %v1127 = vpop.f32.mrb[0].mxu0
      %1128 = vmatprep.mubr.bf16.mxu0 0
      %1129 = vmatmul.mubr.bf16.gmra.mrb[0].mxu0 %v1075
      %v1130 = vpop.f32.mrb[0].mxu0
      %v1131 = vadd.f32 0.0, %v1130
      %v1132 = vpop.f32.mrb[0].mxu0
      %v1133 = vpop.f32.mrb[0].mxu0
      %v1134 = vadd.f32 0.0, %v1133
      %v1135 = vpop.f32.mrb[0].mxu0
      %1136 = vmatprep.mubr.bf16.mxu0 0
      %1137 = vmatmul.mubr.bf16.gmra.mrb[0].mxu0 %v1078
      %v1138 = vpop.f32.mrb[0].mxu0
      %v1139 = vadd.f32 0.0, %v1138
      %v1140 = vpop.f32.mrb[0].mxu0
      %v1141 = vpop.f32.mrb[0].mxu0
      %v1142 = vadd.f32 0.0, %v1141
      %v1143 = vpop.f32.mrb[0].mxu0
      %1144 = vdwg.mxu0
      %1145 = vrot.lane.b32.xlu0 %v555, 120
      %v1146 = vpop.permute.xlu0 %1145
      %1147 = vrot.lane.b32.xlu0 %v556, 120
      %v1148 = vpop.permute.xlu0 %1147
      %1149 = vrot.lane.b32.xlu0 %v557, 120
      %v1150 = vpop.permute.xlu0 %1149
      %1151 = vrot.lane.b32.xlu0 %v558, 120
      %v1152 = vpop.permute.xlu0 %1151
      %1153 = vrot.lane.b32.xlu0 %v555, 88
      %v1154 = vpop.permute.xlu0 %1153
      %1155 = vrot.lane.b32.xlu0 %v556, 88
      %v1156 = vpop.permute.xlu0 %1155
      %1157 = vrot.lane.b32.xlu0 %v557, 88
      %v1158 = vpop.permute.xlu0 %1157
      %1159 = vrot.lane.b32.xlu0 %v558, 88
      %v1160 = vpop.permute.xlu0 %1159
      %v1162 = vsel %vm571, %v1146, 0
      %v1165 = vsel %vm571, %v1148, 0
      %v1168 = vsel %vm571, %v1150, 0
      %v1171 = vsel %vm571, %v1152, 0
      %v1174 = vsel %vm571, %v1154, 0
      %v1177 = vsel %vm571, %v1156, 0
      %v1180 = vsel %vm571, %v1158, 0
      %v1183 = vsel %vm571, %v1160, 0
      %1185 = vmatprep.subr.bf16.mxu0 0
      %1186 = vmatpush1.bf16.xpose.msra.mxu0 %v1174
      %1187 = vmatprep.subr.bf16.mxu0 0
      %1188 = vmatpush1.bf16.xpose.msra.mxu0 %v1177
      %1189 = vmatprep.subr.bf16.mxu0 0
      %1190 = vmatpush1.bf16.xpose.msra.mxu0 %v1180
      %1191 = vmatprep.subr.bf16.mxu0 0
      %1192 = vmatpush1.bf16.xpose.msra.mxu0 %v1183
      %1193 = vmatprep.subr.bf16.mxu0 0
      %1194 = vmatpush1.bf16.xpose.msra.mxu0 0
      %1195 = vmatprep.subr.bf16.mxu0 0
      %1196 = vmatpush1.bf16.xpose.msra.mxu0 0
      %1197 = vmatprep.subr.bf16.mxu0 0
      %1198 = vmatpush1.bf16.xpose.msra.mxu0 0
      %1199 = vmatprep.subr.bf16.mxu0 0
      %1200 = vmatpush1.bf16.xpose.msra.mxu0 0
      %1201 = vmatprep.subr.bf16.mxu0 0
      %1202 = vmatpush1.bf16.xpose.msra.mxu0 0
      %1203 = vmatprep.subr.bf16.mxu0 0
      %1204 = vmatpush1.bf16.xpose.msra.mxu0 0
      %1205 = vmatprep.subr.bf16.mxu0 0
      %1206 = vmatpush1.bf16.xpose.msra.mxu0 0
      %1207 = vmatprep.subr.bf16.mxu0 0
      %1208 = vmatpush1.bf16.xpose.msra.mxu0 0
      %1209 = vmatprep.subr.bf16.mxu0 0
      %1210 = vmatpush1.bf16.xpose.msra.mxu0 0
      %1211 = vmatprep.subr.bf16.mxu0 0
      %1212 = vmatpush1.bf16.xpose.msra.mxu0 0
      %1213 = vmatprep.subr.bf16.mxu0 0
      %1214 = vmatpush1.bf16.xpose.msra.mxu0 0
      %1215 = vmatprep.subr.bf16.mxu0 0
      %1216 = vmatpush1.bf16.xpose.msra.mxu0 0
      %1217 = vmatprep.mubr.bf16.mxu0 0
      %1218 = vmatmul.mubr.bf16.gmra.mrb[0].mxu0 %v1162
      %v1219 = vpop.f32.mrb[0].mxu0
      %v1220 = vadd.f32 0.0, %v1219
      %v1221 = vpop.f32.mrb[0].mxu0
      %v1222 = vpop.f32.mrb[0].mxu0
      %v1223 = vadd.f32 0.0, %v1222
      %v1224 = vpop.f32.mrb[0].mxu0
      %1225 = vmatprep.mubr.bf16.mxu0 0
      %1226 = vmatmul.mubr.bf16.gmra.mrb[0].mxu0 %v1165
      %v1227 = vpop.f32.mrb[0].mxu0
      %v1228 = vadd.f32 0.0, %v1227
      %v1229 = vpop.f32.mrb[0].mxu0
      %v1230 = vpop.f32.mrb[0].mxu0
      %v1231 = vadd.f32 0.0, %v1230
      %v1232 = vpop.f32.mrb[0].mxu0
      %1233 = vmatprep.mubr.bf16.mxu0 0
      %1234 = vmatmul.mubr.bf16.gmra.mrb[0].mxu0 %v1168
      %v1235 = vpop.f32.mrb[0].mxu0
      %v1236 = vadd.f32 0.0, %v1235
      %v1237 = vpop.f32.mrb[0].mxu0
      %v1238 = vpop.f32.mrb[0].mxu0
      %v1239 = vadd.f32 0.0, %v1238
      %v1240 = vpop.f32.mrb[0].mxu0
      %1241 = vmatprep.mubr.bf16.mxu0 0
      %1242 = vmatmul.mubr.bf16.gmra.mrb[0].mxu0 %v1171
      %v1243 = vpop.f32.mrb[0].mxu0
      %v1244 = vadd.f32 0.0, %v1243
      %v1245 = vpop.f32.mrb[0].mxu0
      %v1246 = vpop.f32.mrb[0].mxu0
      %v1247 = vadd.f32 0.0, %v1246
      %v1248 = vpop.f32.mrb[0].mxu0
      %1249 = vdwg.mxu0
      %v1250 = vmul.f32 %v1220, 0.5
      %v1251 = vmul.f32 %v1223, 0.5
      %v1252 = vmul.f32 %v1228, 0.5
      %v1253 = vmul.f32 %v1231, 0.5
      %v1254 = vmul.f32 %v1236, 0.5
      %v1255 = vmul.f32 %v1239, 0.5
      %v1256 = vmul.f32 %v1244, 0.5
      %v1257 = vmul.f32 %v1247, 0.5
      %v1258 = vsel %vm669, %v1250, -inf
      %1259 = vmax.xlane.f32.xlu0 %v1258
      %v1260 = vpop.xlane.xlu0 %1259
      %v1261 = vsel %vm669, %v1251, -inf
      %1262 = vmax.xlane.f32.xlu0 %v1261
      %v1263 = vpop.xlane.xlu0 %1262
      %v1264 = vsel %vm669, %v1252, -inf
      %1265 = vmax.xlane.f32.xlu0 %v1264
      %v1266 = vpop.xlane.xlu0 %1265
      %v1267 = vsel %vm669, %v1253, -inf
      %1268 = vmax.xlane.f32.xlu0 %v1267
      %v1269 = vpop.xlane.xlu0 %1268
      %v1270 = vsel %vm669, %v1254, -inf
      %1271 = vmax.xlane.f32.xlu0 %v1270
      %v1272 = vpop.xlane.xlu0 %1271
      %v1273 = vsel %vm669, %v1255, -inf
      %1274 = vmax.xlane.f32.xlu0 %v1273
      %v1275 = vpop.xlane.xlu0 %1274
      %v1276 = vsel %vm669, %v1256, -inf
      %1277 = vmax.xlane.f32.xlu0 %v1276
      %v1278 = vpop.xlane.xlu0 %1277
      %v1279 = vsel %vm669, %v1257, -inf
      %1280 = vmax.xlane.f32.xlu0 %v1279
      %v1281 = vpop.xlane.xlu0 %1280
      %v1282 = vsub.f32 %v1250, %v1260
      %v1283 = vsub.f32 %v1251, %v1263
      %v1284 = vsub.f32 %v1252, %v1266
      %v1285 = vsub.f32 %v1253, %v1269
      %v1286 = vsub.f32 %v1254, %v1272
      %v1287 = vsub.f32 %v1255, %v1275
      %v1288 = vsub.f32 %v1256, %v1278
      %v1289 = vsub.f32 %v1257, %v1281
      %v1290 = vmul.f32 %v1282, 1.442695
      %v1291 = vpow.pop %v1290
      %v1292 = vmul.f32 %v1283, 1.442695
      %v1293 = vpow.pop %v1292
      %v1294 = vmul.f32 %v1284, 1.442695
      %v1295 = vpow.pop %v1294
      %v1296 = vmul.f32 %v1285, 1.442695
      %v1297 = vpow.pop %v1296
      %v1298 = vmul.f32 %v1286, 1.442695
      %v1299 = vpow.pop %v1298
      %v1300 = vmul.f32 %v1287, 1.442695
      %v1301 = vpow.pop %v1300
      %v1302 = vmul.f32 %v1288, 1.442695
      %v1303 = vpow.pop %v1302
      %v1304 = vmul.f32 %v1289, 1.442695
      %v1305 = vpow.pop %v1304
      %v1306 = vsel %vm669, %v1291, 0.0
      %1307 = vadd.xlane.f32.xlu0 %v1306
      %v1308 = vpop.xlane.xlu0 %1307
      %v1309 = vsel %vm669, %v1293, 0.0
      %1310 = vadd.xlane.f32.xlu0 %v1309
      %v1311 = vpop.xlane.xlu0 %1310
      %v1312 = vsel %vm669, %v1295, 0.0
      %1313 = vadd.xlane.f32.xlu0 %v1312
      %v1314 = vpop.xlane.xlu0 %1313
      %v1315 = vsel %vm669, %v1297, 0.0
      %1316 = vadd.xlane.f32.xlu0 %v1315
      %v1317 = vpop.xlane.xlu0 %1316
      %v1318 = vsel %vm669, %v1299, 0.0
      %1319 = vadd.xlane.f32.xlu0 %v1318
      %v1320 = vpop.xlane.xlu0 %1319
      %v1321 = vsel %vm669, %v1301, 0.0
      %1322 = vadd.xlane.f32.xlu0 %v1321
      %v1323 = vpop.xlane.xlu0 %1322
      %v1324 = vsel %vm669, %v1303, 0.0
      %1325 = vadd.xlane.f32.xlu0 %v1324
      %v1326 = vpop.xlane.xlu0 %1325
      %v1327 = vsel %vm669, %v1305, 0.0
      %1328 = vadd.xlane.f32.xlu0 %v1327
      %v1329 = vpop.xlane.xlu0 %1328
      %v1330 = vrcp.pop %v1308
      %v1331 = vrcp.pop %v1311
      %v1332 = vrcp.pop %v1314
      %v1333 = vrcp.pop %v1317
      %v1334 = vrcp.pop %v1320
      %v1335 = vrcp.pop %v1323
      %v1336 = vrcp.pop %v1326
      %v1337 = vrcp.pop %v1329
      %v1338 = vmul.f32 %v1291, %v1330
      %v1339 = vmul.f32 %v1293, %v1331
      %v1340 = vmul.f32 %v1295, %v1332
      %v1341 = vmul.f32 %v1297, %v1333
      %v1342 = vmul.f32 %v1299, %v1334
      %v1343 = vmul.f32 %v1301, %v1335
      %v1344 = vmul.f32 %v1303, %v1336
      %v1345 = vmul.f32 %v1305, %v1337
      %v1346 = vpack.c.bf16 %v1339, %v1338
      %v1347 = vpack.c.bf16 %v1341, %v1340
      %v1348 = vpack.c.bf16 %v1343, %v1342
      %v1349 = vpack.c.bf16 %v1345, %v1344
      %1350 = vrot.lane.b32.xlu0 %v555, 56
      %v1351 = vpop.permute.xlu0 %1350
      %1352 = vrot.lane.b32.xlu0 %v556, 56
      %v1353 = vpop.permute.xlu0 %1352
      %1354 = vrot.lane.b32.xlu0 %v557, 56
      %v1355 = vpop.permute.xlu0 %1354
      %1356 = vrot.lane.b32.xlu0 %v558, 56
      %v1357 = vpop.permute.xlu0 %1356
      %v1363 = vsel %vm669, %v1346, 0
      %v1366 = vsel %vm669, %v1347, 0
      %v1369 = vsel %vm669, %v1348, 0
      %v1372 = vsel %vm669, %v1349, 0
      %1374 = vmatprep.subr.bf16.mxu0 0
      %1375 = vmatpush1.bf16.msra.mxu0 %v1351
      %1376 = vmatprep.subr.bf16.mxu0 0
      %1377 = vmatpush1.bf16.msra.mxu0 %v1353
      %1378 = vmatprep.subr.bf16.mxu0 0
      %1379 = vmatpush1.bf16.msra.mxu0 %v1355
      %1380 = vmatprep.subr.bf16.mxu0 0
      %1381 = vmatpush1.bf16.msra.mxu0 %v1357
      %1382 = vmatprep.subr.bf16.mxu0 0
      %1383 = vmatpush1.bf16.msra.mxu0 0
      %1384 = vmatprep.subr.bf16.mxu0 0
      %1385 = vmatpush1.bf16.msra.mxu0 0
      %1386 = vmatprep.subr.bf16.mxu0 0
      %1387 = vmatpush1.bf16.msra.mxu0 0
      %1388 = vmatprep.subr.bf16.mxu0 0
      %1389 = vmatpush1.bf16.msra.mxu0 0
      %1390 = vmatprep.subr.bf16.mxu0 0
      %1391 = vmatpush1.bf16.msra.mxu0 0
      %1392 = vmatprep.subr.bf16.mxu0 0
      %1393 = vmatpush1.bf16.msra.mxu0 0
      %1394 = vmatprep.subr.bf16.mxu0 0
      %1395 = vmatpush1.bf16.msra.mxu0 0
      %1396 = vmatprep.subr.bf16.mxu0 0
      %1397 = vmatpush1.bf16.msra.mxu0 0
      %1398 = vmatprep.subr.bf16.mxu0 0
      %1399 = vmatpush1.bf16.msra.mxu0 0
      %1400 = vmatprep.subr.bf16.mxu0 0
      %1401 = vmatpush1.bf16.msra.mxu0 0
      %1402 = vmatprep.subr.bf16.mxu0 0
      %1403 = vmatpush1.bf16.msra.mxu0 0
      %1404 = vmatprep.subr.bf16.mxu0 0
      %1405 = vmatpush1.bf16.msra.mxu0 0
      %1406 = vmatprep.mubr.bf16.mxu0 0
      %1407 = vmatmul.mubr.bf16.gmra.mrb[0].mxu0 %v1363
      %v1408 = vpop.f32.mrb[0].mxu0
      %v1409 = vadd.f32 0.0, %v1408
      %v1410 = vpop.f32.mrb[0].mxu0
      %v1411 = vpop.f32.mrb[0].mxu0
      %v1412 = vadd.f32 0.0, %v1411
      %v1413 = vpop.f32.mrb[0].mxu0
      %1414 = vmatprep.mubr.bf16.mxu0 0
      %1415 = vmatmul.mubr.bf16.gmra.mrb[0].mxu0 %v1366
      %v1416 = vpop.f32.mrb[0].mxu0
      %v1417 = vadd.f32 0.0, %v1416
      %v1418 = vpop.f32.mrb[0].mxu0
      %v1419 = vpop.f32.mrb[0].mxu0
      %v1420 = vadd.f32 0.0, %v1419
      %v1421 = vpop.f32.mrb[0].mxu0
      %1422 = vmatprep.mubr.bf16.mxu0 0
      %1423 = vmatmul.mubr.bf16.gmra.mrb[0].mxu0 %v1369
      %v1424 = vpop.f32.mrb[0].mxu0
      %v1425 = vadd.f32 0.0, %v1424
      %v1426 = vpop.f32.mrb[0].mxu0
      %v1427 = vpop.f32.mrb[0].mxu0
      %v1428 = vadd.f32 0.0, %v1427
      %v1429 = vpop.f32.mrb[0].mxu0
      %1430 = vmatprep.mubr.bf16.mxu0 0
      %1431 = vmatmul.mubr.bf16.gmra.mrb[0].mxu0 %v1372
      %v1432 = vpop.f32.mrb[0].mxu0
      %v1433 = vadd.f32 0.0, %v1432
      %v1434 = vpop.f32.mrb[0].mxu0
      %v1435 = vpop.f32.mrb[0].mxu0
      %v1436 = vadd.f32 0.0, %v1435
      %v1437 = vpop.f32.mrb[0].mxu0
      %1438 = vdwg.mxu0
      %1439 = vrot.lane.b32.xlu0 %v555, 116
      %v1440 = vpop.permute.xlu0 %1439
      %1441 = vrot.lane.b32.xlu0 %v556, 116
      %v1442 = vpop.permute.xlu0 %1441
      %1443 = vrot.lane.b32.xlu0 %v557, 116
      %v1444 = vpop.permute.xlu0 %1443
      %1445 = vrot.lane.b32.xlu0 %v558, 116
      %v1446 = vpop.permute.xlu0 %1445
      %1447 = vrot.lane.b32.xlu0 %v555, 84
      %v1448 = vpop.permute.xlu0 %1447
      %1449 = vrot.lane.b32.xlu0 %v556, 84
      %v1450 = vpop.permute.xlu0 %1449
      %1451 = vrot.lane.b32.xlu0 %v557, 84
      %v1452 = vpop.permute.xlu0 %1451
      %1453 = vrot.lane.b32.xlu0 %v558, 84
      %v1454 = vpop.permute.xlu0 %1453
      %v1456 = vsel %vm571, %v1440, 0
      %v1459 = vsel %vm571, %v1442, 0
      %v1462 = vsel %vm571, %v1444, 0
      %v1465 = vsel %vm571, %v1446, 0
      %v1468 = vsel %vm571, %v1448, 0
      %v1471 = vsel %vm571, %v1450, 0
      %v1474 = vsel %vm571, %v1452, 0
      %v1477 = vsel %vm571, %v1454, 0
      %1479 = vmatprep.subr.bf16.mxu0 0
      %1480 = vmatpush1.bf16.xpose.msra.mxu0 %v1468
      %1481 = vmatprep.subr.bf16.mxu0 0
      %1482 = vmatpush1.bf16.xpose.msra.mxu0 %v1471
      %1483 = vmatprep.subr.bf16.mxu0 0
      %1484 = vmatpush1.bf16.xpose.msra.mxu0 %v1474
      %1485 = vmatprep.subr.bf16.mxu0 0
      %1486 = vmatpush1.bf16.xpose.msra.mxu0 %v1477
      %1487 = vmatprep.subr.bf16.mxu0 0
      %1488 = vmatpush1.bf16.xpose.msra.mxu0 0
      %1489 = vmatprep.subr.bf16.mxu0 0
      %1490 = vmatpush1.bf16.xpose.msra.mxu0 0
      %1491 = vmatprep.subr.bf16.mxu0 0
      %1492 = vmatpush1.bf16.xpose.msra.mxu0 0
      %1493 = vmatprep.subr.bf16.mxu0 0
      %1494 = vmatpush1.bf16.xpose.msra.mxu0 0
      %1495 = vmatprep.subr.bf16.mxu0 0
      %1496 = vmatpush1.bf16.xpose.msra.mxu0 0
      %1497 = vmatprep.subr.bf16.mxu0 0
      %1498 = vmatpush1.bf16.xpose.msra.mxu0 0
      %1499 = vmatprep.subr.bf16.mxu0 0
      %1500 = vmatpush1.bf16.xpose.msra.mxu0 0
      %1501 = vmatprep.subr.bf16.mxu0 0
      %1502 = vmatpush1.bf16.xpose.msra.mxu0 0
      %1503 = vmatprep.subr.bf16.mxu0 0
      %1504 = vmatpush1.bf16.xpose.msra.mxu0 0
      %1505 = vmatprep.subr.bf16.mxu0 0
      %1506 = vmatpush1.bf16.xpose.msra.mxu0 0
      %1507 = vmatprep.subr.bf16.mxu0 0
      %1508 = vmatpush1.bf16.xpose.msra.mxu0 0
      %1509 = vmatprep.subr.bf16.mxu0 0
      %1510 = vmatpush1.bf16.xpose.msra.mxu0 0
      %1511 = vmatprep.mubr.bf16.mxu0 0
      %1512 = vmatmul.mubr.bf16.gmra.mrb[0].mxu0 %v1456
      %v1513 = vpop.f32.mrb[0].mxu0
      %v1514 = vadd.f32 0.0, %v1513
      %v1515 = vpop.f32.mrb[0].mxu0
      %v1516 = vpop.f32.mrb[0].mxu0
      %v1517 = vadd.f32 0.0, %v1516
      %v1518 = vpop.f32.mrb[0].mxu0
      %1519 = vmatprep.mubr.bf16.mxu0 0
      %1520 = vmatmul.mubr.bf16.gmra.mrb[0].mxu0 %v1459
      %v1521 = vpop.f32.mrb[0].mxu0
      %v1522 = vadd.f32 0.0, %v1521
      %v1523 = vpop.f32.mrb[0].mxu0
      %v1524 = vpop.f32.mrb[0].mxu0
      %v1525 = vadd.f32 0.0, %v1524
      %v1526 = vpop.f32.mrb[0].mxu0
      %1527 = vmatprep.mubr.bf16.mxu0 0
      %1528 = vmatmul.mubr.bf16.gmra.mrb[0].mxu0 %v1462
      %v1529 = vpop.f32.mrb[0].mxu0
      %v1530 = vadd.f32 0.0, %v1529
      %v1531 = vpop.f32.mrb[0].mxu0
      %v1532 = vpop.f32.mrb[0].mxu0
      %v1533 = vadd.f32 0.0, %v1532
      %v1534 = vpop.f32.mrb[0].mxu0
      %1535 = vmatprep.mubr.bf16.mxu0 0
      %1536 = vmatmul.mubr.bf16.gmra.mrb[0].mxu0 %v1465
      %v1537 = vpop.f32.mrb[0].mxu0
      %v1538 = vadd.f32 0.0, %v1537
      %v1539 = vpop.f32.mrb[0].mxu0
      %v1540 = vpop.f32.mrb[0].mxu0
      %v1541 = vadd.f32 0.0, %v1540
      %v1542 = vpop.f32.mrb[0].mxu0
      %1543 = vdwg.mxu0
      %v1544 = vmul.f32 %v1514, 0.5
      %v1545 = vmul.f32 %v1517, 0.5
      %v1546 = vmul.f32 %v1522, 0.5
      %v1547 = vmul.f32 %v1525, 0.5
      %v1548 = vmul.f32 %v1530, 0.5
      %v1549 = vmul.f32 %v1533, 0.5
      %v1550 = vmul.f32 %v1538, 0.5
      %v1551 = vmul.f32 %v1541, 0.5
      %v1552 = vsel %vm669, %v1544, -inf
      %1553 = vmax.xlane.f32.xlu0 %v1552
      %v1554 = vpop.xlane.xlu0 %1553
      %v1555 = vsel %vm669, %v1545, -inf
      %1556 = vmax.xlane.f32.xlu0 %v1555
      %v1557 = vpop.xlane.xlu0 %1556
      %v1558 = vsel %vm669, %v1546, -inf
      %1559 = vmax.xlane.f32.xlu0 %v1558
      %v1560 = vpop.xlane.xlu0 %1559
      %v1561 = vsel %vm669, %v1547, -inf
      %1562 = vmax.xlane.f32.xlu0 %v1561
      %v1563 = vpop.xlane.xlu0 %1562
      %v1564 = vsel %vm669, %v1548, -inf
      %1565 = vmax.xlane.f32.xlu0 %v1564
      %v1566 = vpop.xlane.xlu0 %1565
      %v1567 = vsel %vm669, %v1549, -inf
      %1568 = vmax.xlane.f32.xlu0 %v1567
      %v1569 = vpop.xlane.xlu0 %1568
      %v1570 = vsel %vm669, %v1550, -inf
      %1571 = vmax.xlane.f32.xlu0 %v1570
      %v1572 = vpop.xlane.xlu0 %1571
      %v1573 = vsel %vm669, %v1551, -inf
      %1574 = vmax.xlane.f32.xlu0 %v1573
      %v1575 = vpop.xlane.xlu0 %1574
      %v1576 = vsub.f32 %v1544, %v1554
      %v1577 = vsub.f32 %v1545, %v1557
      %v1578 = vsub.f32 %v1546, %v1560
      %v1579 = vsub.f32 %v1547, %v1563
      %v1580 = vsub.f32 %v1548, %v1566
      %v1581 = vsub.f32 %v1549, %v1569
      %v1582 = vsub.f32 %v1550, %v1572
      %v1583 = vsub.f32 %v1551, %v1575
      %v1584 = vmul.f32 %v1576, 1.442695
      %v1585 = vpow.pop %v1584
      %v1586 = vmul.f32 %v1577, 1.442695
      %v1587 = vpow.pop %v1586
      %v1588 = vmul.f32 %v1578, 1.442695
      %v1589 = vpow.pop %v1588
      %v1590 = vmul.f32 %v1579, 1.442695
      %v1591 = vpow.pop %v1590
      %v1592 = vmul.f32 %v1580, 1.442695
      %v1593 = vpow.pop %v1592
      %v1594 = vmul.f32 %v1581, 1.442695
      %v1595 = vpow.pop %v1594
      %v1596 = vmul.f32 %v1582, 1.442695
      %v1597 = vpow.pop %v1596
      %v1598 = vmul.f32 %v1583, 1.442695
      %v1599 = vpow.pop %v1598
      %v1600 = vsel %vm669, %v1585, 0.0
      %1601 = vadd.xlane.f32.xlu0 %v1600
      %v1602 = vpop.xlane.xlu0 %1601
      %v1603 = vsel %vm669, %v1587, 0.0
      %1604 = vadd.xlane.f32.xlu0 %v1603
      %v1605 = vpop.xlane.xlu0 %1604
      %v1606 = vsel %vm669, %v1589, 0.0
      %1607 = vadd.xlane.f32.xlu0 %v1606
      %v1608 = vpop.xlane.xlu0 %1607
      %v1609 = vsel %vm669, %v1591, 0.0
      %1610 = vadd.xlane.f32.xlu0 %v1609
      %v1611 = vpop.xlane.xlu0 %1610
      %v1612 = vsel %vm669, %v1593, 0.0
      %1613 = vadd.xlane.f32.xlu0 %v1612
      %v1614 = vpop.xlane.xlu0 %1613
      %v1615 = vsel %vm669, %v1595, 0.0
      %1616 = vadd.xlane.f32.xlu0 %v1615
      %v1617 = vpop.xlane.xlu0 %1616
      %v1618 = vsel %vm669, %v1597, 0.0
      %1619 = vadd.xlane.f32.xlu0 %v1618
      %v1620 = vpop.xlane.xlu0 %1619
      %v1621 = vsel %vm669, %v1599, 0.0
      %1622 = vadd.xlane.f32.xlu0 %v1621
      %v1623 = vpop.xlane.xlu0 %1622
      %v1624 = vrcp.pop %v1602
      %v1625 = vrcp.pop %v1605
      %v1626 = vrcp.pop %v1608
      %v1627 = vrcp.pop %v1611
      %v1628 = vrcp.pop %v1614
      %v1629 = vrcp.pop %v1617
      %v1630 = vrcp.pop %v1620
      %v1631 = vrcp.pop %v1623
      %v1632 = vmul.f32 %v1585, %v1624
      %v1633 = vmul.f32 %v1587, %v1625
      %v1634 = vmul.f32 %v1589, %v1626
      %v1635 = vmul.f32 %v1591, %v1627
      %v1636 = vmul.f32 %v1593, %v1628
      %v1637 = vmul.f32 %v1595, %v1629
      %v1638 = vmul.f32 %v1597, %v1630
      %v1639 = vmul.f32 %v1599, %v1631
      %v1640 = vpack.c.bf16 %v1633, %v1632
      %v1641 = vpack.c.bf16 %v1635, %v1634
      %v1642 = vpack.c.bf16 %v1637, %v1636
      %v1643 = vpack.c.bf16 %v1639, %v1638
      %1644 = vrot.lane.b32.xlu0 %v555, 52
      %v1645 = vpop.permute.xlu0 %1644
      %1646 = vrot.lane.b32.xlu0 %v556, 52
      %v1647 = vpop.permute.xlu0 %1646
      %1648 = vrot.lane.b32.xlu0 %v557, 52
      %v1649 = vpop.permute.xlu0 %1648
      %1650 = vrot.lane.b32.xlu0 %v558, 52
      %v1651 = vpop.permute.xlu0 %1650
      %v1657 = vsel %vm669, %v1640, 0
      %v1660 = vsel %vm669, %v1641, 0
      %v1663 = vsel %vm669, %v1642, 0
      %v1666 = vsel %vm669, %v1643, 0
      %1668 = vmatprep.subr.bf16.mxu0 0
      %1669 = vmatpush1.bf16.msra.mxu0 %v1645
      %1670 = vmatprep.subr.bf16.mxu0 0
      %1671 = vmatpush1.bf16.msra.mxu0 %v1647
      %1672 = vmatprep.subr.bf16.mxu0 0
      %1673 = vmatpush1.bf16.msra.mxu0 %v1649
      %1674 = vmatprep.subr.bf16.mxu0 0
      %1675 = vmatpush1.bf16.msra.mxu0 %v1651
      %1676 = vmatprep.subr.bf16.mxu0 0
      %1677 = vmatpush1.bf16.msra.mxu0 0
      %1678 = vmatprep.subr.bf16.mxu0 0
      %1679 = vmatpush1.bf16.msra.mxu0 0
      %1680 = vmatprep.subr.bf16.mxu0 0
      %1681 = vmatpush1.bf16.msra.mxu0 0
      %1682 = vmatprep.subr.bf16.mxu0 0
      %1683 = vmatpush1.bf16.msra.mxu0 0
      %1684 = vmatprep.subr.bf16.mxu0 0
      %1685 = vmatpush1.bf16.msra.mxu0 0
      %1686 = vmatprep.subr.bf16.mxu0 0
      %1687 = vmatpush1.bf16.msra.mxu0 0
      %1688 = vmatprep.subr.bf16.mxu0 0
      %1689 = vmatpush1.bf16.msra.mxu0 0
      %1690 = vmatprep.subr.bf16.mxu0 0
      %1691 = vmatpush1.bf16.msra.mxu0 0
      %1692 = vmatprep.subr.bf16.mxu0 0
      %1693 = vmatpush1.bf16.msra.mxu0 0
      %1694 = vmatprep.subr.bf16.mxu0 0
      %1695 = vmatpush1.bf16.msra.mxu0 0
      %1696 = vmatprep.subr.bf16.mxu0 0
      %1697 = vmatpush1.bf16.msra.mxu0 0
      %1698 = vmatprep.subr.bf16.mxu0 0
      %1699 = vmatpush1.bf16.msra.mxu0 0
      %1700 = vmatprep.mubr.bf16.mxu0 0
      %1701 = vmatmul.mubr.bf16.gmra.mrb[0].mxu0 %v1657
      %v1702 = vpop.f32.mrb[0].mxu0
      %v1703 = vadd.f32 0.0, %v1702
      %v1704 = vpop.f32.mrb[0].mxu0
      %v1705 = vpop.f32.mrb[0].mxu0
      %v1706 = vadd.f32 0.0, %v1705
      %v1707 = vpop.f32.mrb[0].mxu0
      %1708 = vmatprep.mubr.bf16.mxu0 0
      %1709 = vmatmul.mubr.bf16.gmra.mrb[0].mxu0 %v1660
      %v1710 = vpop.f32.mrb[0].mxu0
      %v1711 = vadd.f32 0.0, %v1710
      %v1712 = vpop.f32.mrb[0].mxu0
      %v1713 = vpop.f32.mrb[0].mxu0
      %v1714 = vadd.f32 0.0, %v1713
      %v1715 = vpop.f32.mrb[0].mxu0
      %1716 = vmatprep.mubr.bf16.mxu0 0
      %1717 = vmatmul.mubr.bf16.gmra.mrb[0].mxu0 %v1663
      %v1718 = vpop.f32.mrb[0].mxu0
      %v1719 = vadd.f32 0.0, %v1718
      %v1720 = vpop.f32.mrb[0].mxu0
      %v1721 = vpop.f32.mrb[0].mxu0
      %v1722 = vadd.f32 0.0, %v1721
      %v1723 = vpop.f32.mrb[0].mxu0
      %1724 = vmatprep.mubr.bf16.mxu0 0
      %1725 = vmatmul.mubr.bf16.gmra.mrb[0].mxu0 %v1666
      %v1726 = vpop.f32.mrb[0].mxu0
      %v1727 = vadd.f32 0.0, %v1726
      %v1728 = vpop.f32.mrb[0].mxu0
      %v1729 = vpop.f32.mrb[0].mxu0
      %v1730 = vadd.f32 0.0, %v1729
      %v1731 = vpop.f32.mrb[0].mxu0
      %1732 = vdwg.mxu0
      %1733 = vrot.lane.b32.xlu0 %v555, 112
      %v1734 = vpop.permute.xlu0 %1733
      %1735 = vrot.lane.b32.xlu0 %v556, 112
      %v1736 = vpop.permute.xlu0 %1735
      %1737 = vrot.lane.b32.xlu0 %v557, 112
      %v1738 = vpop.permute.xlu0 %1737
      %1739 = vrot.lane.b32.xlu0 %v558, 112
      %v1740 = vpop.permute.xlu0 %1739
      %1741 = vrot.lane.b32.xlu0 %v555, 80
      %v1742 = vpop.permute.xlu0 %1741
      %1743 = vrot.lane.b32.xlu0 %v556, 80
      %v1744 = vpop.permute.xlu0 %1743
      %1745 = vrot.lane.b32.xlu0 %v557, 80
      %v1746 = vpop.permute.xlu0 %1745
      %1747 = vrot.lane.b32.xlu0 %v558, 80
      %v1748 = vpop.permute.xlu0 %1747
      %v1750 = vsel %vm571, %v1734, 0
      %v1753 = vsel %vm571, %v1736, 0
      %v1756 = vsel %vm571, %v1738, 0
      %v1759 = vsel %vm571, %v1740, 0
      %v1762 = vsel %vm571, %v1742, 0
      %v1765 = vsel %vm571, %v1744, 0
      %v1768 = vsel %vm571, %v1746, 0
      %v1771 = vsel %vm571, %v1748, 0
      %1773 = vmatprep.subr.bf16.mxu0 0
      %1774 = vmatpush1.bf16.xpose.msra.mxu0 %v1762
      %1775 = vmatprep.subr.bf16.mxu0 0
      %1776 = vmatpush1.bf16.xpose.msra.mxu0 %v1765
      %1777 = vmatprep.subr.bf16.mxu0 0
      %1778 = vmatpush1.bf16.xpose.msra.mxu0 %v1768
      %1779 = vmatprep.subr.bf16.mxu0 0
      %1780 = vmatpush1.bf16.xpose.msra.mxu0 %v1771
      %1781 = vmatprep.subr.bf16.mxu0 0
      %1782 = vmatpush1.bf16.xpose.msra.mxu0 0
      %1783 = vmatprep.subr.bf16.mxu0 0
      %1784 = vmatpush1.bf16.xpose.msra.mxu0 0
      %1785 = vmatprep.subr.bf16.mxu0 0
      %1786 = vmatpush1.bf16.xpose.msra.mxu0 0
      %1787 = vmatprep.subr.bf16.mxu0 0
      %1788 = vmatpush1.bf16.xpose.msra.mxu0 0
      %1789 = vmatprep.subr.bf16.mxu0 0
      %1790 = vmatpush1.bf16.xpose.msra.mxu0 0
      %1791 = vmatprep.subr.bf16.mxu0 0
      %1792 = vmatpush1.bf16.xpose.msra.mxu0 0
      %1793 = vmatprep.subr.bf16.mxu0 0
      %1794 = vmatpush1.bf16.xpose.msra.mxu0 0
      %1795 = vmatprep.subr.bf16.mxu0 0
      %1796 = vmatpush1.bf16.xpose.msra.mxu0 0
      %1797 = vmatprep.subr.bf16.mxu0 0
      %1798 = vmatpush1.bf16.xpose.msra.mxu0 0
      %1799 = vmatprep.subr.bf16.mxu0 0
      %1800 = vmatpush1.bf16.xpose.msra.mxu0 0
      %1801 = vmatprep.subr.bf16.mxu0 0
      %1802 = vmatpush1.bf16.xpose.msra.mxu0 0
      %1803 = vmatprep.subr.bf16.mxu0 0
      %1804 = vmatpush1.bf16.xpose.msra.mxu0 0
      %1805 = vmatprep.mubr.bf16.mxu0 0
      %1806 = vmatmul.mubr.bf16.gmra.mrb[0].mxu0 %v1750
      %v1807 = vpop.f32.mrb[0].mxu0
      %v1808 = vadd.f32 0.0, %v1807
      %v1809 = vpop.f32.mrb[0].mxu0
      %v1810 = vpop.f32.mrb[0].mxu0
      %v1811 = vadd.f32 0.0, %v1810
      %v1812 = vpop.f32.mrb[0].mxu0
      %1813 = vmatprep.mubr.bf16.mxu0 0
      %1814 = vmatmul.mubr.bf16.gmra.mrb[0].mxu0 %v1753
      %v1815 = vpop.f32.mrb[0].mxu0
      %v1816 = vadd.f32 0.0, %v1815
      %v1817 = vpop.f32.mrb[0].mxu0
      %v1818 = vpop.f32.mrb[0].mxu0
      %v1819 = vadd.f32 0.0, %v1818
      %v1820 = vpop.f32.mrb[0].mxu0
      %1821 = vmatprep.mubr.bf16.mxu0 0
      %1822 = vmatmul.mubr.bf16.gmra.mrb[0].mxu0 %v1756
      %v1823 = vpop.f32.mrb[0].mxu0
      %v1824 = vadd.f32 0.0, %v1823
      %v1825 = vpop.f32.mrb[0].mxu0
      %v1826 = vpop.f32.mrb[0].mxu0
      %v1827 = vadd.f32 0.0, %v1826
      %v1828 = vpop.f32.mrb[0].mxu0
      %1829 = vmatprep.mubr.bf16.mxu0 0
      %1830 = vmatmul.mubr.bf16.gmra.mrb[0].mxu0 %v1759
      %v1831 = vpop.f32.mrb[0].mxu0
      %v1832 = vadd.f32 0.0, %v1831
      %v1833 = vpop.f32.mrb[0].mxu0
      %v1834 = vpop.f32.mrb[0].mxu0
      %v1835 = vadd.f32 0.0, %v1834
      %v1836 = vpop.f32.mrb[0].mxu0
      %1837 = vdwg.mxu0
      %v1838 = vmul.f32 %v1808, 0.5
      %v1839 = vmul.f32 %v1811, 0.5
      %v1840 = vmul.f32 %v1816, 0.5
      %v1841 = vmul.f32 %v1819, 0.5
      %v1842 = vmul.f32 %v1824, 0.5
      %v1843 = vmul.f32 %v1827, 0.5
      %v1844 = vmul.f32 %v1832, 0.5
      %v1845 = vmul.f32 %v1835, 0.5
      %v1846 = vsel %vm669, %v1838, -inf
      %1847 = vmax.xlane.f32.xlu0 %v1846
      %v1848 = vpop.xlane.xlu0 %1847
      %v1849 = vsel %vm669, %v1839, -inf
      %1850 = vmax.xlane.f32.xlu0 %v1849
      %v1851 = vpop.xlane.xlu0 %1850
      %v1852 = vsel %vm669, %v1840, -inf
      %1853 = vmax.xlane.f32.xlu0 %v1852
      %v1854 = vpop.xlane.xlu0 %1853
      %v1855 = vsel %vm669, %v1841, -inf
      %1856 = vmax.xlane.f32.xlu0 %v1855
      %v1857 = vpop.xlane.xlu0 %1856
      %v1858 = vsel %vm669, %v1842, -inf
      %1859 = vmax.xlane.f32.xlu0 %v1858
      %v1860 = vpop.xlane.xlu0 %1859
      %v1861 = vsel %vm669, %v1843, -inf
      %1862 = vmax.xlane.f32.xlu0 %v1861
      %v1863 = vpop.xlane.xlu0 %1862
      %v1864 = vsel %vm669, %v1844, -inf
      %1865 = vmax.xlane.f32.xlu0 %v1864
      %v1866 = vpop.xlane.xlu0 %1865
      %v1867 = vsel %vm669, %v1845, -inf
      %1868 = vmax.xlane.f32.xlu0 %v1867
      %v1869 = vpop.xlane.xlu0 %1868
      %v1870 = vsub.f32 %v1838, %v1848
      %v1871 = vsub.f32 %v1839, %v1851
      %v1872 = vsub.f32 %v1840, %v1854
      %v1873 = vsub.f32 %v1841, %v1857
      %v1874 = vsub.f32 %v1842, %v1860
      %v1875 = vsub.f32 %v1843, %v1863
      %v1876 = vsub.f32 %v1844, %v1866
      %v1877 = vsub.f32 %v1845, %v1869
      %v1878 = vmul.f32 %v1870, 1.442695
      %v1879 = vpow.pop %v1878
      %v1880 = vmul.f32 %v1871, 1.442695
      %v1881 = vpow.pop %v1880
      %v1882 = vmul.f32 %v1872, 1.442695
      %v1883 = vpow.pop %v1882
      %v1884 = vmul.f32 %v1873, 1.442695
      %v1885 = vpow.pop %v1884
      %v1886 = vmul.f32 %v1874, 1.442695
      %v1887 = vpow.pop %v1886
      %v1888 = vmul.f32 %v1875, 1.442695
      %v1889 = vpow.pop %v1888
      %v1890 = vmul.f32 %v1876, 1.442695
      %v1891 = vpow.pop %v1890
      %v1892 = vmul.f32 %v1877, 1.442695
      %v1893 = vpow.pop %v1892
      %v1894 = vsel %vm669, %v1879, 0.0
      %1895 = vadd.xlane.f32.xlu0 %v1894
      %v1896 = vpop.xlane.xlu0 %1895
      %v1897 = vsel %vm669, %v1881, 0.0
      %1898 = vadd.xlane.f32.xlu0 %v1897
      %v1899 = vpop.xlane.xlu0 %1898
      %v1900 = vsel %vm669, %v1883, 0.0
      %1901 = vadd.xlane.f32.xlu0 %v1900
      %v1902 = vpop.xlane.xlu0 %1901
      %v1903 = vsel %vm669, %v1885, 0.0
      %1904 = vadd.xlane.f32.xlu0 %v1903
      %v1905 = vpop.xlane.xlu0 %1904
      %v1906 = vsel %vm669, %v1887, 0.0
      %1907 = vadd.xlane.f32.xlu0 %v1906
      %v1908 = vpop.xlane.xlu0 %1907
      %v1909 = vsel %vm669, %v1889, 0.0
      %1910 = vadd.xlane.f32.xlu0 %v1909
      %v1911 = vpop.xlane.xlu0 %1910
      %v1912 = vsel %vm669, %v1891, 0.0
      %1913 = vadd.xlane.f32.xlu0 %v1912
      %v1914 = vpop.xlane.xlu0 %1913
      %v1915 = vsel %vm669, %v1893, 0.0
      %1916 = vadd.xlane.f32.xlu0 %v1915
      %v1917 = vpop.xlane.xlu0 %1916
      %v1918 = vrcp.pop %v1896
      %v1919 = vrcp.pop %v1899
      %v1920 = vrcp.pop %v1902
      %v1921 = vrcp.pop %v1905
      %v1922 = vrcp.pop %v1908
      %v1923 = vrcp.pop %v1911
      %v1924 = vrcp.pop %v1914
      %v1925 = vrcp.pop %v1917
      %v1926 = vmul.f32 %v1879, %v1918
      %v1927 = vmul.f32 %v1881, %v1919
      %v1928 = vmul.f32 %v1883, %v1920
      %v1929 = vmul.f32 %v1885, %v1921
      %v1930 = vmul.f32 %v1887, %v1922
      %v1931 = vmul.f32 %v1889, %v1923
      %v1932 = vmul.f32 %v1891, %v1924
      %v1933 = vmul.f32 %v1893, %v1925
      %v1934 = vpack.c.bf16 %v1927, %v1926
      %v1935 = vpack.c.bf16 %v1929, %v1928
      %v1936 = vpack.c.bf16 %v1931, %v1930
      %v1937 = vpack.c.bf16 %v1933, %v1932
      %1938 = vrot.lane.b32.xlu0 %v555, 48
      %v1939 = vpop.permute.xlu0 %1938
      %1940 = vrot.lane.b32.xlu0 %v556, 48
      %v1941 = vpop.permute.xlu0 %1940
      %1942 = vrot.lane.b32.xlu0 %v557, 48
      %v1943 = vpop.permute.xlu0 %1942
      %1944 = vrot.lane.b32.xlu0 %v558, 48
      %v1945 = vpop.permute.xlu0 %1944
      %v1951 = vsel %vm669, %v1934, 0
      %v1954 = vsel %vm669, %v1935, 0
      %v1957 = vsel %vm669, %v1936, 0
      %v1960 = vsel %vm669, %v1937, 0
      %1962 = vmatprep.subr.bf16.mxu0 0
      %1963 = vmatpush1.bf16.msra.mxu0 %v1939
      %1964 = vmatprep.subr.bf16.mxu0 0
      %1965 = vmatpush1.bf16.msra.mxu0 %v1941
      %1966 = vmatprep.subr.bf16.mxu0 0
      %1967 = vmatpush1.bf16.msra.mxu0 %v1943
      %1968 = vmatprep.subr.bf16.mxu0 0
      %1969 = vmatpush1.bf16.msra.mxu0 %v1945
      %1970 = vmatprep.subr.bf16.mxu0 0
      %1971 = vmatpush1.bf16.msra.mxu0 0
      %1972 = vmatprep.subr.bf16.mxu0 0
      %1973 = vmatpush1.bf16.msra.mxu0 0
      %1974 = vmatprep.subr.bf16.mxu0 0
      %1975 = vmatpush1.bf16.msra.mxu0 0
      %1976 = vmatprep.subr.bf16.mxu0 0
      %1977 = vmatpush1.bf16.msra.mxu0 0
      %1978 = vmatprep.subr.bf16.mxu0 0
      %1979 = vmatpush1.bf16.msra.mxu0 0
      %1980 = vmatprep.subr.bf16.mxu0 0
      %1981 = vmatpush1.bf16.msra.mxu0 0
      %1982 = vmatprep.subr.bf16.mxu0 0
      %1983 = vmatpush1.bf16.msra.mxu0 0
      %1984 = vmatprep.subr.bf16.mxu0 0
      %1985 = vmatpush1.bf16.msra.mxu0 0
      %1986 = vmatprep.subr.bf16.mxu0 0
      %1987 = vmatpush1.bf16.msra.mxu0 0
      %1988 = vmatprep.subr.bf16.mxu0 0
      %1989 = vmatpush1.bf16.msra.mxu0 0
      %1990 = vmatprep.subr.bf16.mxu0 0
      %1991 = vmatpush1.bf16.msra.mxu0 0
      %1992 = vmatprep.subr.bf16.mxu0 0
      %1993 = vmatpush1.bf16.msra.mxu0 0
      %1994 = vmatprep.mubr.bf16.mxu0 0
      %1995 = vmatmul.mubr.bf16.gmra.mrb[0].mxu0 %v1951
      %v1996 = vpop.f32.mrb[0].mxu0
      %v1997 = vadd.f32 0.0, %v1996
      %v1998 = vpop.f32.mrb[0].mxu0
      %v1999 = vpop.f32.mrb[0].mxu0
      %v2000 = vadd.f32 0.0, %v1999
      %v2001 = vpop.f32.mrb[0].mxu0
      %2002 = vmatprep.mubr.bf16.mxu0 0
      %2003 = vmatmul.mubr.bf16.gmra.mrb[0].mxu0 %v1954
      %v2004 = vpop.f32.mrb[0].mxu0
      %v2005 = vadd.f32 0.0, %v2004
      %v2006 = vpop.f32.mrb[0].mxu0
      %v2007 = vpop.f32.mrb[0].mxu0
      %v2008 = vadd.f32 0.0, %v2007
      %v2009 = vpop.f32.mrb[0].mxu0
      %2010 = vmatprep.mubr.bf16.mxu0 0
      %2011 = vmatmul.mubr.bf16.gmra.mrb[0].mxu0 %v1957
      %v2012 = vpop.f32.mrb[0].mxu0
      %v2013 = vadd.f32 0.0, %v2012
      %v2014 = vpop.f32.mrb[0].mxu0
      %v2015 = vpop.f32.mrb[0].mxu0
      %v2016 = vadd.f32 0.0, %v2015
      %v2017 = vpop.f32.mrb[0].mxu0
      %2018 = vmatprep.mubr.bf16.mxu0 0
      %2019 = vmatmul.mubr.bf16.gmra.mrb[0].mxu0 %v1960
      %v2020 = vpop.f32.mrb[0].mxu0
      %v2021 = vadd.f32 0.0, %v2020
      %v2022 = vpop.f32.mrb[0].mxu0
      %v2023 = vpop.f32.mrb[0].mxu0
      %v2024 = vadd.f32 0.0, %v2023
      %v2025 = vpop.f32.mrb[0].mxu0
      %2026 = vdwg.mxu0
      %2027 = vrot.lane.b32.xlu0 %v555, 108
      %v2028 = vpop.permute.xlu0 %2027
      %2029 = vrot.lane.b32.xlu0 %v556, 108
      %v2030 = vpop.permute.xlu0 %2029
      %2031 = vrot.lane.b32.xlu0 %v557, 108
      %v2032 = vpop.permute.xlu0 %2031
      %2033 = vrot.lane.b32.xlu0 %v558, 108
      %v2034 = vpop.permute.xlu0 %2033
      %2035 = vrot.lane.b32.xlu0 %v555, 76
      %v2036 = vpop.permute.xlu0 %2035
      %2037 = vrot.lane.b32.xlu0 %v556, 76
      %v2038 = vpop.permute.xlu0 %2037
      %2039 = vrot.lane.b32.xlu0 %v557, 76
      %v2040 = vpop.permute.xlu0 %2039
      %2041 = vrot.lane.b32.xlu0 %v558, 76
      %v2042 = vpop.permute.xlu0 %2041
      %v2044 = vsel %vm571, %v2028, 0
      %v2047 = vsel %vm571, %v2030, 0
      %v2050 = vsel %vm571, %v2032, 0
      %v2053 = vsel %vm571, %v2034, 0
      %v2056 = vsel %vm571, %v2036, 0
      %v2059 = vsel %vm571, %v2038, 0
      %v2062 = vsel %vm571, %v2040, 0
      %v2065 = vsel %vm571, %v2042, 0
      %2067 = vmatprep.subr.bf16.mxu0 0
      %2068 = vmatpush1.bf16.xpose.msra.mxu0 %v2056
      %2069 = vmatprep.subr.bf16.mxu0 0
      %2070 = vmatpush1.bf16.xpose.msra.mxu0 %v2059
      %2071 = vmatprep.subr.bf16.mxu0 0
      %2072 = vmatpush1.bf16.xpose.msra.mxu0 %v2062
      %2073 = vmatprep.subr.bf16.mxu0 0
      %2074 = vmatpush1.bf16.xpose.msra.mxu0 %v2065
      %2075 = vmatprep.subr.bf16.mxu0 0
      %2076 = vmatpush1.bf16.xpose.msra.mxu0 0
      %2077 = vmatprep.subr.bf16.mxu0 0
      %2078 = vmatpush1.bf16.xpose.msra.mxu0 0
      %2079 = vmatprep.subr.bf16.mxu0 0
      %2080 = vmatpush1.bf16.xpose.msra.mxu0 0
      %2081 = vmatprep.subr.bf16.mxu0 0
      %2082 = vmatpush1.bf16.xpose.msra.mxu0 0
      %2083 = vmatprep.subr.bf16.mxu0 0
      %2084 = vmatpush1.bf16.xpose.msra.mxu0 0
      %2085 = vmatprep.subr.bf16.mxu0 0
      %2086 = vmatpush1.bf16.xpose.msra.mxu0 0
      %2087 = vmatprep.subr.bf16.mxu0 0
      %2088 = vmatpush1.bf16.xpose.msra.mxu0 0
      %2089 = vmatprep.subr.bf16.mxu0 0
      %2090 = vmatpush1.bf16.xpose.msra.mxu0 0
      %2091 = vmatprep.subr.bf16.mxu0 0
      %2092 = vmatpush1.bf16.xpose.msra.mxu0 0
      %2093 = vmatprep.subr.bf16.mxu0 0
      %2094 = vmatpush1.bf16.xpose.msra.mxu0 0
      %2095 = vmatprep.subr.bf16.mxu0 0
      %2096 = vmatpush1.bf16.xpose.msra.mxu0 0
      %2097 = vmatprep.subr.bf16.mxu0 0
      %2098 = vmatpush1.bf16.xpose.msra.mxu0 0
      %2099 = vmatprep.mubr.bf16.mxu0 0
      %2100 = vmatmul.mubr.bf16.gmra.mrb[0].mxu0 %v2044
      %v2101 = vpop.f32.mrb[0].mxu0
      %v2102 = vadd.f32 0.0, %v2101
      %v2103 = vpop.f32.mrb[0].mxu0
      %v2104 = vpop.f32.mrb[0].mxu0
      %v2105 = vadd.f32 0.0, %v2104
      %v2106 = vpop.f32.mrb[0].mxu0
      %2107 = vmatprep.mubr.bf16.mxu0 0
      %2108 = vmatmul.mubr.bf16.gmra.mrb[0].mxu0 %v2047
      %v2109 = vpop.f32.mrb[0].mxu0
      %v2110 = vadd.f32 0.0, %v2109
      %v2111 = vpop.f32.mrb[0].mxu0
      %v2112 = vpop.f32.mrb[0].mxu0
      %v2113 = vadd.f32 0.0, %v2112
      %v2114 = vpop.f32.mrb[0].mxu0
      %2115 = vmatprep.mubr.bf16.mxu0 0
      %2116 = vmatmul.mubr.bf16.gmra.mrb[0].mxu0 %v2050
      %v2117 = vpop.f32.mrb[0].mxu0
      %v2118 = vadd.f32 0.0, %v2117
      %v2119 = vpop.f32.mrb[0].mxu0
      %v2120 = vpop.f32.mrb[0].mxu0
      %v2121 = vadd.f32 0.0, %v2120
      %v2122 = vpop.f32.mrb[0].mxu0
      %2123 = vmatprep.mubr.bf16.mxu0 0
      %2124 = vmatmul.mubr.bf16.gmra.mrb[0].mxu0 %v2053
      %v2125 = vpop.f32.mrb[0].mxu0
      %v2126 = vadd.f32 0.0, %v2125
      %v2127 = vpop.f32.mrb[0].mxu0
      %v2128 = vpop.f32.mrb[0].mxu0
      %v2129 = vadd.f32 0.0, %v2128
      %v2130 = vpop.f32.mrb[0].mxu0
      %2131 = vdwg.mxu0
      %v2132 = vmul.f32 %v2102, 0.5
      %v2133 = vmul.f32 %v2105, 0.5
      %v2134 = vmul.f32 %v2110, 0.5
      %v2135 = vmul.f32 %v2113, 0.5
      %v2136 = vmul.f32 %v2118, 0.5
      %v2137 = vmul.f32 %v2121, 0.5
      %v2138 = vmul.f32 %v2126, 0.5
      %v2139 = vmul.f32 %v2129, 0.5
      %v2140 = vsel %vm669, %v2132, -inf
      %2141 = vmax.xlane.f32.xlu0 %v2140
      %v2142 = vpop.xlane.xlu0 %2141
      %v2143 = vsel %vm669, %v2133, -inf
      %2144 = vmax.xlane.f32.xlu0 %v2143
      %v2145 = vpop.xlane.xlu0 %2144
      %v2146 = vsel %vm669, %v2134, -inf
      %2147 = vmax.xlane.f32.xlu0 %v2146
      %v2148 = vpop.xlane.xlu0 %2147
      %v2149 = vsel %vm669, %v2135, -inf
      %2150 = vmax.xlane.f32.xlu0 %v2149
      %v2151 = vpop.xlane.xlu0 %2150
      %v2152 = vsel %vm669, %v2136, -inf
      %2153 = vmax.xlane.f32.xlu0 %v2152
      %v2154 = vpop.xlane.xlu0 %2153
      %v2155 = vsel %vm669, %v2137, -inf
      %2156 = vmax.xlane.f32.xlu0 %v2155
      %v2157 = vpop.xlane.xlu0 %2156
      %v2158 = vsel %vm669, %v2138, -inf
      %2159 = vmax.xlane.f32.xlu0 %v2158
      %v2160 = vpop.xlane.xlu0 %2159
      %v2161 = vsel %vm669, %v2139, -inf
      %2162 = vmax.xlane.f32.xlu0 %v2161
      %v2163 = vpop.xlane.xlu0 %2162
      %v2164 = vsub.f32 %v2132, %v2142
      %v2165 = vsub.f32 %v2133, %v2145
      %v2166 = vsub.f32 %v2134, %v2148
      %v2167 = vsub.f32 %v2135, %v2151
      %v2168 = vsub.f32 %v2136, %v2154
      %v2169 = vsub.f32 %v2137, %v2157
      %v2170 = vsub.f32 %v2138, %v2160
      %v2171 = vsub.f32 %v2139, %v2163
      %v2172 = vmul.f32 %v2164, 1.442695
      %v2173 = vpow.pop %v2172
      %v2174 = vmul.f32 %v2165, 1.442695
      %v2175 = vpow.pop %v2174
      %v2176 = vmul.f32 %v2166, 1.442695
      %v2177 = vpow.pop %v2176
      %v2178 = vmul.f32 %v2167, 1.442695
      %v2179 = vpow.pop %v2178
      %v2180 = vmul.f32 %v2168, 1.442695
      %v2181 = vpow.pop %v2180
      %v2182 = vmul.f32 %v2169, 1.442695
      %v2183 = vpow.pop %v2182
      %v2184 = vmul.f32 %v2170, 1.442695
      %v2185 = vpow.pop %v2184
      %v2186 = vmul.f32 %v2171, 1.442695
      %v2187 = vpow.pop %v2186
      %v2188 = vsel %vm669, %v2173, 0.0
      %2189 = vadd.xlane.f32.xlu0 %v2188
      %v2190 = vpop.xlane.xlu0 %2189
      %v2191 = vsel %vm669, %v2175, 0.0
      %2192 = vadd.xlane.f32.xlu0 %v2191
      %v2193 = vpop.xlane.xlu0 %2192
      %v2194 = vsel %vm669, %v2177, 0.0
      %2195 = vadd.xlane.f32.xlu0 %v2194
      %v2196 = vpop.xlane.xlu0 %2195
      %v2197 = vsel %vm669, %v2179, 0.0
      %2198 = vadd.xlane.f32.xlu0 %v2197
      %v2199 = vpop.xlane.xlu0 %2198
      %v2200 = vsel %vm669, %v2181, 0.0
      %2201 = vadd.xlane.f32.xlu0 %v2200
      %v2202 = vpop.xlane.xlu0 %2201
      %v2203 = vsel %vm669, %v2183, 0.0
      %2204 = vadd.xlane.f32.xlu0 %v2203
      %v2205 = vpop.xlane.xlu0 %2204
      %v2206 = vsel %vm669, %v2185, 0.0
      %2207 = vadd.xlane.f32.xlu0 %v2206
      %v2208 = vpop.xlane.xlu0 %2207
      %v2209 = vsel %vm669, %v2187, 0.0
      %2210 = vadd.xlane.f32.xlu0 %v2209
      %v2211 = vpop.xlane.xlu0 %2210
      %v2212 = vrcp.pop %v2190
      %v2213 = vrcp.pop %v2193
      %v2214 = vrcp.pop %v2196
      %v2215 = vrcp.pop %v2199
      %v2216 = vrcp.pop %v2202
      %v2217 = vrcp.pop %v2205
      %v2218 = vrcp.pop %v2208
      %v2219 = vrcp.pop %v2211
      %v2220 = vmul.f32 %v2173, %v2212
      %v2221 = vmul.f32 %v2175, %v2213
      %v2222 = vmul.f32 %v2177, %v2214
      %v2223 = vmul.f32 %v2179, %v2215
      %v2224 = vmul.f32 %v2181, %v2216
      %v2225 = vmul.f32 %v2183, %v2217
      %v2226 = vmul.f32 %v2185, %v2218
      %v2227 = vmul.f32 %v2187, %v2219
      %v2228 = vpack.c.bf16 %v2221, %v2220
      %v2229 = vpack.c.bf16 %v2223, %v2222
      %v2230 = vpack.c.bf16 %v2225, %v2224
      %v2231 = vpack.c.bf16 %v2227, %v2226
      %2232 = vrot.lane.b32.xlu0 %v555, 44
      %v2233 = vpop.permute.xlu0 %2232
      %2234 = vrot.lane.b32.xlu0 %v556, 44
      %v2235 = vpop.permute.xlu0 %2234
      %2236 = vrot.lane.b32.xlu0 %v557, 44
      %v2237 = vpop.permute.xlu0 %2236
      %2238 = vrot.lane.b32.xlu0 %v558, 44
      %v2239 = vpop.permute.xlu0 %2238
      %v2245 = vsel %vm669, %v2228, 0
      %v2248 = vsel %vm669, %v2229, 0
      %v2251 = vsel %vm669, %v2230, 0
      %v2254 = vsel %vm669, %v2231, 0
      %2256 = vmatprep.subr.bf16.mxu0 0
      %2257 = vmatpush1.bf16.msra.mxu0 %v2233
      %2258 = vmatprep.subr.bf16.mxu0 0
      %2259 = vmatpush1.bf16.msra.mxu0 %v2235
      %2260 = vmatprep.subr.bf16.mxu0 0
      %2261 = vmatpush1.bf16.msra.mxu0 %v2237
      %2262 = vmatprep.subr.bf16.mxu0 0
      %2263 = vmatpush1.bf16.msra.mxu0 %v2239
      %2264 = vmatprep.subr.bf16.mxu0 0
      %2265 = vmatpush1.bf16.msra.mxu0 0
      %2266 = vmatprep.subr.bf16.mxu0 0
      %2267 = vmatpush1.bf16.msra.mxu0 0
      %2268 = vmatprep.subr.bf16.mxu0 0
      %2269 = vmatpush1.bf16.msra.mxu0 0
      %2270 = vmatprep.subr.bf16.mxu0 0
      %2271 = vmatpush1.bf16.msra.mxu0 0
      %2272 = vmatprep.subr.bf16.mxu0 0
      %2273 = vmatpush1.bf16.msra.mxu0 0
      %2274 = vmatprep.subr.bf16.mxu0 0
      %2275 = vmatpush1.bf16.msra.mxu0 0
      %2276 = vmatprep.subr.bf16.mxu0 0
      %2277 = vmatpush1.bf16.msra.mxu0 0
      %2278 = vmatprep.subr.bf16.mxu0 0
      %2279 = vmatpush1.bf16.msra.mxu0 0
      %2280 = vmatprep.subr.bf16.mxu0 0
      %2281 = vmatpush1.bf16.msra.mxu0 0
      %2282 = vmatprep.subr.bf16.mxu0 0
      %2283 = vmatpush1.bf16.msra.mxu0 0
      %2284 = vmatprep.subr.bf16.mxu0 0
      %2285 = vmatpush1.bf16.msra.mxu0 0
      %2286 = vmatprep.subr.bf16.mxu0 0
      %2287 = vmatpush1.bf16.msra.mxu0 0
      %2288 = vmatprep.mubr.bf16.mxu0 0
      %2289 = vmatmul.mubr.bf16.gmra.mrb[0].mxu0 %v2245
      %v2290 = vpop.f32.mrb[0].mxu0
      %v2291 = vadd.f32 0.0, %v2290
      %v2292 = vpop.f32.mrb[0].mxu0
      %v2293 = vpop.f32.mrb[0].mxu0
      %v2294 = vadd.f32 0.0, %v2293
      %v2295 = vpop.f32.mrb[0].mxu0
      %2296 = vmatprep.mubr.bf16.mxu0 0
      %2297 = vmatmul.mubr.bf16.gmra.mrb[0].mxu0 %v2248
      %v2298 = vpop.f32.mrb[0].mxu0
      %v2299 = vadd.f32 0.0, %v2298
      %v2300 = vpop.f32.mrb[0].mxu0
      %v2301 = vpop.f32.mrb[0].mxu0
      %v2302 = vadd.f32 0.0, %v2301
      %v2303 = vpop.f32.mrb[0].mxu0
      %2304 = vmatprep.mubr.bf16.mxu0 0
      %2305 = vmatmul.mubr.bf16.gmra.mrb[0].mxu0 %v2251
      %v2306 = vpop.f32.mrb[0].mxu0
      %v2307 = vadd.f32 0.0, %v2306
      %v2308 = vpop.f32.mrb[0].mxu0
      %v2309 = vpop.f32.mrb[0].mxu0
      %v2310 = vadd.f32 0.0, %v2309
      %v2311 = vpop.f32.mrb[0].mxu0
      %2312 = vmatprep.mubr.bf16.mxu0 0
      %2313 = vmatmul.mubr.bf16.gmra.mrb[0].mxu0 %v2254
      %v2314 = vpop.f32.mrb[0].mxu0
      %v2315 = vadd.f32 0.0, %v2314
      %v2316 = vpop.f32.mrb[0].mxu0
      %v2317 = vpop.f32.mrb[0].mxu0
      %v2318 = vadd.f32 0.0, %v2317
      %v2319 = vpop.f32.mrb[0].mxu0
      %2320 = vdwg.mxu0
      %2321 = vrot.lane.b32.xlu0 %v555, 104
      %v2322 = vpop.permute.xlu0 %2321
      %2323 = vrot.lane.b32.xlu0 %v556, 104
      %v2324 = vpop.permute.xlu0 %2323
      %2325 = vrot.lane.b32.xlu0 %v557, 104
      %v2326 = vpop.permute.xlu0 %2325
      %2327 = vrot.lane.b32.xlu0 %v558, 104
      %v2328 = vpop.permute.xlu0 %2327
      %2329 = vrot.lane.b32.xlu0 %v555, 72
      %v2330 = vpop.permute.xlu0 %2329
      %2331 = vrot.lane.b32.xlu0 %v556, 72
      %v2332 = vpop.permute.xlu0 %2331
      %2333 = vrot.lane.b32.xlu0 %v557, 72
      %v2334 = vpop.permute.xlu0 %2333
      %2335 = vrot.lane.b32.xlu0 %v558, 72
      %v2336 = vpop.permute.xlu0 %2335
      %v2338 = vsel %vm571, %v2322, 0
      %v2341 = vsel %vm571, %v2324, 0
      %v2344 = vsel %vm571, %v2326, 0
      %v2347 = vsel %vm571, %v2328, 0
      %v2350 = vsel %vm571, %v2330, 0
      %v2353 = vsel %vm571, %v2332, 0
      %v2356 = vsel %vm571, %v2334, 0
      %v2359 = vsel %vm571, %v2336, 0
      %2361 = vmatprep.subr.bf16.mxu0 0
      %2362 = vmatpush1.bf16.xpose.msra.mxu0 %v2350
      %2363 = vmatprep.subr.bf16.mxu0 0
      %2364 = vmatpush1.bf16.xpose.msra.mxu0 %v2353
      %2365 = vmatprep.subr.bf16.mxu0 0
      %2366 = vmatpush1.bf16.xpose.msra.mxu0 %v2356
      %2367 = vmatprep.subr.bf16.mxu0 0
      %2368 = vmatpush1.bf16.xpose.msra.mxu0 %v2359
      %2369 = vmatprep.subr.bf16.mxu0 0
      %2370 = vmatpush1.bf16.xpose.msra.mxu0 0
      %2371 = vmatprep.subr.bf16.mxu0 0
      %2372 = vmatpush1.bf16.xpose.msra.mxu0 0
      %2373 = vmatprep.subr.bf16.mxu0 0
      %2374 = vmatpush1.bf16.xpose.msra.mxu0 0
      %2375 = vmatprep.subr.bf16.mxu0 0
      %2376 = vmatpush1.bf16.xpose.msra.mxu0 0
      %2377 = vmatprep.subr.bf16.mxu0 0
      %2378 = vmatpush1.bf16.xpose.msra.mxu0 0
      %2379 = vmatprep.subr.bf16.mxu0 0
      %2380 = vmatpush1.bf16.xpose.msra.mxu0 0
      %2381 = vmatprep.subr.bf16.mxu0 0
      %2382 = vmatpush1.bf16.xpose.msra.mxu0 0
      %2383 = vmatprep.subr.bf16.mxu0 0
      %2384 = vmatpush1.bf16.xpose.msra.mxu0 0
      %2385 = vmatprep.subr.bf16.mxu0 0
      %2386 = vmatpush1.bf16.xpose.msra.mxu0 0
      %2387 = vmatprep.subr.bf16.mxu0 0
      %2388 = vmatpush1.bf16.xpose.msra.mxu0 0
      %2389 = vmatprep.subr.bf16.mxu0 0
      %2390 = vmatpush1.bf16.xpose.msra.mxu0 0
      %2391 = vmatprep.subr.bf16.mxu0 0
      %2392 = vmatpush1.bf16.xpose.msra.mxu0 0
      %2393 = vmatprep.mubr.bf16.mxu0 0
      %2394 = vmatmul.mubr.bf16.gmra.mrb[0].mxu0 %v2338
      %v2395 = vpop.f32.mrb[0].mxu0
      %v2396 = vadd.f32 0.0, %v2395
      %v2397 = vpop.f32.mrb[0].mxu0
      %v2398 = vpop.f32.mrb[0].mxu0
      %v2399 = vadd.f32 0.0, %v2398
      %v2400 = vpop.f32.mrb[0].mxu0
      %2401 = vmatprep.mubr.bf16.mxu0 0
      %2402 = vmatmul.mubr.bf16.gmra.mrb[0].mxu0 %v2341
      %v2403 = vpop.f32.mrb[0].mxu0
      %v2404 = vadd.f32 0.0, %v2403
      %v2405 = vpop.f32.mrb[0].mxu0
      %v2406 = vpop.f32.mrb[0].mxu0
      %v2407 = vadd.f32 0.0, %v2406
      %v2408 = vpop.f32.mrb[0].mxu0
      %2409 = vmatprep.mubr.bf16.mxu0 0
      %2410 = vmatmul.mubr.bf16.gmra.mrb[0].mxu0 %v2344
      %v2411 = vpop.f32.mrb[0].mxu0
      %v2412 = vadd.f32 0.0, %v2411
      %v2413 = vpop.f32.mrb[0].mxu0
      %v2414 = vpop.f32.mrb[0].mxu0
      %v2415 = vadd.f32 0.0, %v2414
      %v2416 = vpop.f32.mrb[0].mxu0
      %2417 = vmatprep.mubr.bf16.mxu0 0
      %2418 = vmatmul.mubr.bf16.gmra.mrb[0].mxu0 %v2347
      %v2419 = vpop.f32.mrb[0].mxu0
      %v2420 = vadd.f32 0.0, %v2419
      %v2421 = vpop.f32.mrb[0].mxu0
      %v2422 = vpop.f32.mrb[0].mxu0
      %v2423 = vadd.f32 0.0, %v2422
      %v2424 = vpop.f32.mrb[0].mxu0
      %2425 = vdwg.mxu0
      %v2426 = vmul.f32 %v2396, 0.5
      %v2427 = vmul.f32 %v2399, 0.5
      %v2428 = vmul.f32 %v2404, 0.5
      %v2429 = vmul.f32 %v2407, 0.5
      %v2430 = vmul.f32 %v2412, 0.5
      %v2431 = vmul.f32 %v2415, 0.5
      %v2432 = vmul.f32 %v2420, 0.5
      %v2433 = vmul.f32 %v2423, 0.5
      %v2434 = vsel %vm669, %v2426, -inf
      %2435 = vmax.xlane.f32.xlu0 %v2434
      %v2436 = vpop.xlane.xlu0 %2435
      %v2437 = vsel %vm669, %v2427, -inf
      %2438 = vmax.xlane.f32.xlu0 %v2437
      %v2439 = vpop.xlane.xlu0 %2438
      %v2440 = vsel %vm669, %v2428, -inf
      %2441 = vmax.xlane.f32.xlu0 %v2440
      %v2442 = vpop.xlane.xlu0 %2441
      %v2443 = vsel %vm669, %v2429, -inf
      %2444 = vmax.xlane.f32.xlu0 %v2443
      %v2445 = vpop.xlane.xlu0 %2444
      %v2446 = vsel %vm669, %v2430, -inf
      %2447 = vmax.xlane.f32.xlu0 %v2446
      %v2448 = vpop.xlane.xlu0 %2447
      %v2449 = vsel %vm669, %v2431, -inf
      %2450 = vmax.xlane.f32.xlu0 %v2449
      %v2451 = vpop.xlane.xlu0 %2450
      %v2452 = vsel %vm669, %v2432, -inf
      %2453 = vmax.xlane.f32.xlu0 %v2452
      %v2454 = vpop.xlane.xlu0 %2453
      %v2455 = vsel %vm669, %v2433, -inf
      %2456 = vmax.xlane.f32.xlu0 %v2455
      %v2457 = vpop.xlane.xlu0 %2456
      %v2458 = vsub.f32 %v2426, %v2436
      %v2459 = vsub.f32 %v2427, %v2439
      %v2460 = vsub.f32 %v2428, %v2442
      %v2461 = vsub.f32 %v2429, %v2445
      %v2462 = vsub.f32 %v2430, %v2448
      %v2463 = vsub.f32 %v2431, %v2451
      %v2464 = vsub.f32 %v2432, %v2454
      %v2465 = vsub.f32 %v2433, %v2457
      %v2466 = vmul.f32 %v2458, 1.442695
      %v2467 = vpow.pop %v2466
      %v2468 = vmul.f32 %v2459, 1.442695
      %v2469 = vpow.pop %v2468
      %v2470 = vmul.f32 %v2460, 1.442695
      %v2471 = vpow.pop %v2470
      %v2472 = vmul.f32 %v2461, 1.442695
      %v2473 = vpow.pop %v2472
      %v2474 = vmul.f32 %v2462, 1.442695
      %v2475 = vpow.pop %v2474
      %v2476 = vmul.f32 %v2463, 1.442695
      %v2477 = vpow.pop %v2476
      %v2478 = vmul.f32 %v2464, 1.442695
      %v2479 = vpow.pop %v2478
      %v2480 = vmul.f32 %v2465, 1.442695
      %v2481 = vpow.pop %v2480
      %v2482 = vsel %vm669, %v2467, 0.0
      %2483 = vadd.xlane.f32.xlu0 %v2482
      %v2484 = vpop.xlane.xlu0 %2483
      %v2485 = vsel %vm669, %v2469, 0.0
      %2486 = vadd.xlane.f32.xlu0 %v2485
      %v2487 = vpop.xlane.xlu0 %2486
      %v2488 = vsel %vm669, %v2471, 0.0
      %2489 = vadd.xlane.f32.xlu0 %v2488
      %v2490 = vpop.xlane.xlu0 %2489
      %v2491 = vsel %vm669, %v2473, 0.0
      %2492 = vadd.xlane.f32.xlu0 %v2491
      %v2493 = vpop.xlane.xlu0 %2492
      %v2494 = vsel %vm669, %v2475, 0.0
      %2495 = vadd.xlane.f32.xlu0 %v2494
      %v2496 = vpop.xlane.xlu0 %2495
      %v2497 = vsel %vm669, %v2477, 0.0
      %2498 = vadd.xlane.f32.xlu0 %v2497
      %v2499 = vpop.xlane.xlu0 %2498
      %v2500 = vsel %vm669, %v2479, 0.0
      %2501 = vadd.xlane.f32.xlu0 %v2500
      %v2502 = vpop.xlane.xlu0 %2501
      %v2503 = vsel %vm669, %v2481, 0.0
      %2504 = vadd.xlane.f32.xlu0 %v2503
      %v2505 = vpop.xlane.xlu0 %2504
      %v2506 = vrcp.pop %v2484
      %v2507 = vrcp.pop %v2487
      %v2508 = vrcp.pop %v2490
      %v2509 = vrcp.pop %v2493
      %v2510 = vrcp.pop %v2496
      %v2511 = vrcp.pop %v2499
      %v2512 = vrcp.pop %v2502
      %v2513 = vrcp.pop %v2505
      %v2514 = vmul.f32 %v2467, %v2506
      %v2515 = vmul.f32 %v2469, %v2507
      %v2516 = vmul.f32 %v2471, %v2508
      %v2517 = vmul.f32 %v2473, %v2509
      %v2518 = vmul.f32 %v2475, %v2510
      %v2519 = vmul.f32 %v2477, %v2511
      %v2520 = vmul.f32 %v2479, %v2512
      %v2521 = vmul.f32 %v2481, %v2513
      %v2522 = vpack.c.bf16 %v2515, %v2514
      %v2523 = vpack.c.bf16 %v2517, %v2516
      %v2524 = vpack.c.bf16 %v2519, %v2518
      %v2525 = vpack.c.bf16 %v2521, %v2520
      %2526 = vrot.lane.b32.xlu0 %v555, 40
      %v2527 = vpop.permute.xlu0 %2526
      %2528 = vrot.lane.b32.xlu0 %v556, 40
      %v2529 = vpop.permute.xlu0 %2528
      %2530 = vrot.lane.b32.xlu0 %v557, 40
      %v2531 = vpop.permute.xlu0 %2530
      %2532 = vrot.lane.b32.xlu0 %v558, 40
      %v2533 = vpop.permute.xlu0 %2532
      %v2539 = vsel %vm669, %v2522, 0
      %v2542 = vsel %vm669, %v2523, 0
      %v2545 = vsel %vm669, %v2524, 0
      %v2548 = vsel %vm669, %v2525, 0
      %2550 = vmatprep.subr.bf16.mxu0 0
      %2551 = vmatpush1.bf16.msra.mxu0 %v2527
      %2552 = vmatprep.subr.bf16.mxu0 0
      %2553 = vmatpush1.bf16.msra.mxu0 %v2529
      %2554 = vmatprep.subr.bf16.mxu0 0
      %2555 = vmatpush1.bf16.msra.mxu0 %v2531
      %2556 = vmatprep.subr.bf16.mxu0 0
      %2557 = vmatpush1.bf16.msra.mxu0 %v2533
      %2558 = vmatprep.subr.bf16.mxu0 0
      %2559 = vmatpush1.bf16.msra.mxu0 0
      %2560 = vmatprep.subr.bf16.mxu0 0
      %2561 = vmatpush1.bf16.msra.mxu0 0
      %2562 = vmatprep.subr.bf16.mxu0 0
      %2563 = vmatpush1.bf16.msra.mxu0 0
      %2564 = vmatprep.subr.bf16.mxu0 0
      %2565 = vmatpush1.bf16.msra.mxu0 0
      %2566 = vmatprep.subr.bf16.mxu0 0
      %2567 = vmatpush1.bf16.msra.mxu0 0
      %2568 = vmatprep.subr.bf16.mxu0 0
      %2569 = vmatpush1.bf16.msra.mxu0 0
      %2570 = vmatprep.subr.bf16.mxu0 0
      %2571 = vmatpush1.bf16.msra.mxu0 0
      %2572 = vmatprep.subr.bf16.mxu0 0
      %2573 = vmatpush1.bf16.msra.mxu0 0
      %2574 = vmatprep.subr.bf16.mxu0 0
      %2575 = vmatpush1.bf16.msra.mxu0 0
      %2576 = vmatprep.subr.bf16.mxu0 0
      %2577 = vmatpush1.bf16.msra.mxu0 0
      %2578 = vmatprep.subr.bf16.mxu0 0
      %2579 = vmatpush1.bf16.msra.mxu0 0
      %2580 = vmatprep.subr.bf16.mxu0 0
      %2581 = vmatpush1.bf16.msra.mxu0 0
      %2582 = vmatprep.mubr.bf16.mxu0 0
      %2583 = vmatmul.mubr.bf16.gmra.mrb[0].mxu0 %v2539
      %v2584 = vpop.f32.mrb[0].mxu0
      %v2585 = vadd.f32 0.0, %v2584
      %v2586 = vpop.f32.mrb[0].mxu0
      %v2587 = vpop.f32.mrb[0].mxu0
      %v2588 = vadd.f32 0.0, %v2587
      %v2589 = vpop.f32.mrb[0].mxu0
      %2590 = vmatprep.mubr.bf16.mxu0 0
      %2591 = vmatmul.mubr.bf16.gmra.mrb[0].mxu0 %v2542
      %v2592 = vpop.f32.mrb[0].mxu0
      %v2593 = vadd.f32 0.0, %v2592
      %v2594 = vpop.f32.mrb[0].mxu0
      %v2595 = vpop.f32.mrb[0].mxu0
      %v2596 = vadd.f32 0.0, %v2595
      %v2597 = vpop.f32.mrb[0].mxu0
      %2598 = vmatprep.mubr.bf16.mxu0 0
      %2599 = vmatmul.mubr.bf16.gmra.mrb[0].mxu0 %v2545
      %v2600 = vpop.f32.mrb[0].mxu0
      %v2601 = vadd.f32 0.0, %v2600
      %v2602 = vpop.f32.mrb[0].mxu0
      %v2603 = vpop.f32.mrb[0].mxu0
      %v2604 = vadd.f32 0.0, %v2603
      %v2605 = vpop.f32.mrb[0].mxu0
      %2606 = vmatprep.mubr.bf16.mxu0 0
      %2607 = vmatmul.mubr.bf16.gmra.mrb[0].mxu0 %v2548
      %v2608 = vpop.f32.mrb[0].mxu0
      %v2609 = vadd.f32 0.0, %v2608
      %v2610 = vpop.f32.mrb[0].mxu0
      %v2611 = vpop.f32.mrb[0].mxu0
      %v2612 = vadd.f32 0.0, %v2611
      %v2613 = vpop.f32.mrb[0].mxu0
      %2614 = vdwg.mxu0
      %2615 = vrot.lane.b32.xlu0 %v555, 100
      %v2616 = vpop.permute.xlu0 %2615
      %2617 = vrot.lane.b32.xlu0 %v556, 100
      %v2618 = vpop.permute.xlu0 %2617
      %2619 = vrot.lane.b32.xlu0 %v557, 100
      %v2620 = vpop.permute.xlu0 %2619
      %2621 = vrot.lane.b32.xlu0 %v558, 100
      %v2622 = vpop.permute.xlu0 %2621
      %2623 = vrot.lane.b32.xlu0 %v555, 68
      %v2624 = vpop.permute.xlu0 %2623
      %2625 = vrot.lane.b32.xlu0 %v556, 68
      %v2626 = vpop.permute.xlu0 %2625
      %2627 = vrot.lane.b32.xlu0 %v557, 68
      %v2628 = vpop.permute.xlu0 %2627
      %2629 = vrot.lane.b32.xlu0 %v558, 68
      %v2630 = vpop.permute.xlu0 %2629
      %v2632 = vsel %vm571, %v2616, 0
      %v2635 = vsel %vm571, %v2618, 0
      %v2638 = vsel %vm571, %v2620, 0
      %v2641 = vsel %vm571, %v2622, 0
      %v2644 = vsel %vm571, %v2624, 0
      %v2647 = vsel %vm571, %v2626, 0
      %v2650 = vsel %vm571, %v2628, 0
      %v2653 = vsel %vm571, %v2630, 0
      %2655 = vmatprep.subr.bf16.mxu0 0
      %2656 = vmatpush1.bf16.xpose.msra.mxu0 %v2644
      %2657 = vmatprep.subr.bf16.mxu0 0
      %2658 = vmatpush1.bf16.xpose.msra.mxu0 %v2647
      %2659 = vmatprep.subr.bf16.mxu0 0
      %2660 = vmatpush1.bf16.xpose.msra.mxu0 %v2650
      %2661 = vmatprep.subr.bf16.mxu0 0
      %2662 = vmatpush1.bf16.xpose.msra.mxu0 %v2653
      %2663 = vmatprep.subr.bf16.mxu0 0
      %2664 = vmatpush1.bf16.xpose.msra.mxu0 0
      %2665 = vmatprep.subr.bf16.mxu0 0
      %2666 = vmatpush1.bf16.xpose.msra.mxu0 0
      %2667 = vmatprep.subr.bf16.mxu0 0
      %2668 = vmatpush1.bf16.xpose.msra.mxu0 0
      %2669 = vmatprep.subr.bf16.mxu0 0
      %2670 = vmatpush1.bf16.xpose.msra.mxu0 0
      %2671 = vmatprep.subr.bf16.mxu0 0
      %2672 = vmatpush1.bf16.xpose.msra.mxu0 0
      %2673 = vmatprep.subr.bf16.mxu0 0
      %2674 = vmatpush1.bf16.xpose.msra.mxu0 0
      %2675 = vmatprep.subr.bf16.mxu0 0
      %2676 = vmatpush1.bf16.xpose.msra.mxu0 0
      %2677 = vmatprep.subr.bf16.mxu0 0
      %2678 = vmatpush1.bf16.xpose.msra.mxu0 0
      %2679 = vmatprep.subr.bf16.mxu0 0
      %2680 = vmatpush1.bf16.xpose.msra.mxu0 0
      %2681 = vmatprep.subr.bf16.mxu0 0
      %2682 = vmatpush1.bf16.xpose.msra.mxu0 0
      %2683 = vmatprep.subr.bf16.mxu0 0
      %2684 = vmatpush1.bf16.xpose.msra.mxu0 0
      %2685 = vmatprep.subr.bf16.mxu0 0
      %2686 = vmatpush1.bf16.xpose.msra.mxu0 0
      %2687 = vmatprep.mubr.bf16.mxu0 0
      %2688 = vmatmul.mubr.bf16.gmra.mrb[0].mxu0 %v2632
      %v2689 = vpop.f32.mrb[0].mxu0
      %v2690 = vadd.f32 0.0, %v2689
      %v2691 = vpop.f32.mrb[0].mxu0
      %v2692 = vpop.f32.mrb[0].mxu0
      %v2693 = vadd.f32 0.0, %v2692
      %v2694 = vpop.f32.mrb[0].mxu0
      %2695 = vmatprep.mubr.bf16.mxu0 0
      %2696 = vmatmul.mubr.bf16.gmra.mrb[0].mxu0 %v2635
      %v2697 = vpop.f32.mrb[0].mxu0
      %v2698 = vadd.f32 0.0, %v2697
      %v2699 = vpop.f32.mrb[0].mxu0
      %v2700 = vpop.f32.mrb[0].mxu0
      %v2701 = vadd.f32 0.0, %v2700
      %v2702 = vpop.f32.mrb[0].mxu0
      %2703 = vmatprep.mubr.bf16.mxu0 0
      %2704 = vmatmul.mubr.bf16.gmra.mrb[0].mxu0 %v2638
      %v2705 = vpop.f32.mrb[0].mxu0
      %v2706 = vadd.f32 0.0, %v2705
      %v2707 = vpop.f32.mrb[0].mxu0
      %v2708 = vpop.f32.mrb[0].mxu0
      %v2709 = vadd.f32 0.0, %v2708
      %v2710 = vpop.f32.mrb[0].mxu0
      %2711 = vmatprep.mubr.bf16.mxu0 0
      %2712 = vmatmul.mubr.bf16.gmra.mrb[0].mxu0 %v2641
      %v2713 = vpop.f32.mrb[0].mxu0
      %v2714 = vadd.f32 0.0, %v2713
      %v2715 = vpop.f32.mrb[0].mxu0
      %v2716 = vpop.f32.mrb[0].mxu0
      %v2717 = vadd.f32 0.0, %v2716
      %v2718 = vpop.f32.mrb[0].mxu0
      %2719 = vdwg.mxu0
      %v2720 = vmul.f32 %v2690, 0.5
      %v2721 = vmul.f32 %v2693, 0.5
      %v2722 = vmul.f32 %v2698, 0.5
      %v2723 = vmul.f32 %v2701, 0.5
      %v2724 = vmul.f32 %v2706, 0.5
      %v2725 = vmul.f32 %v2709, 0.5
      %v2726 = vmul.f32 %v2714, 0.5
      %v2727 = vmul.f32 %v2717, 0.5
      %v2728 = vsel %vm669, %v2720, -inf
      %2729 = vmax.xlane.f32.xlu0 %v2728
      %v2730 = vpop.xlane.xlu0 %2729
      %v2731 = vsel %vm669, %v2721, -inf
      %2732 = vmax.xlane.f32.xlu0 %v2731
      %v2733 = vpop.xlane.xlu0 %2732
      %v2734 = vsel %vm669, %v2722, -inf
      %2735 = vmax.xlane.f32.xlu0 %v2734
      %v2736 = vpop.xlane.xlu0 %2735
      %v2737 = vsel %vm669, %v2723, -inf
      %2738 = vmax.xlane.f32.xlu0 %v2737
      %v2739 = vpop.xlane.xlu0 %2738
      %v2740 = vsel %vm669, %v2724, -inf
      %2741 = vmax.xlane.f32.xlu0 %v2740
      %v2742 = vpop.xlane.xlu0 %2741
      %v2743 = vsel %vm669, %v2725, -inf
      %2744 = vmax.xlane.f32.xlu0 %v2743
      %v2745 = vpop.xlane.xlu0 %2744
      %v2746 = vsel %vm669, %v2726, -inf
      %2747 = vmax.xlane.f32.xlu0 %v2746
      %v2748 = vpop.xlane.xlu0 %2747
      %v2749 = vsel %vm669, %v2727, -inf
      %2750 = vmax.xlane.f32.xlu0 %v2749
      %v2751 = vpop.xlane.xlu0 %2750
      %v2752 = vsub.f32 %v2720, %v2730
      %v2753 = vsub.f32 %v2721, %v2733
      %v2754 = vsub.f32 %v2722, %v2736
      %v2755 = vsub.f32 %v2723, %v2739
      %v2756 = vsub.f32 %v2724, %v2742
      %v2757 = vsub.f32 %v2725, %v2745
      %v2758 = vsub.f32 %v2726, %v2748
      %v2759 = vsub.f32 %v2727, %v2751
      %v2760 = vmul.f32 %v2752, 1.442695
      %v2761 = vpow.pop %v2760
      %v2762 = vmul.f32 %v2753, 1.442695
      %v2763 = vpow.pop %v2762
      %v2764 = vmul.f32 %v2754, 1.442695
      %v2765 = vpow.pop %v2764
      %v2766 = vmul.f32 %v2755, 1.442695
      %v2767 = vpow.pop %v2766
      %v2768 = vmul.f32 %v2756, 1.442695
      %v2769 = vpow.pop %v2768
      %v2770 = vmul.f32 %v2757, 1.442695
      %v2771 = vpow.pop %v2770
      %v2772 = vmul.f32 %v2758, 1.442695
      %v2773 = vpow.pop %v2772
      %v2774 = vmul.f32 %v2759, 1.442695
      %v2775 = vpow.pop %v2774
      %v2776 = vsel %vm669, %v2761, 0.0
      %2777 = vadd.xlane.f32.xlu0 %v2776
      %v2778 = vpop.xlane.xlu0 %2777
      %v2779 = vsel %vm669, %v2763, 0.0
      %2780 = vadd.xlane.f32.xlu0 %v2779
      %v2781 = vpop.xlane.xlu0 %2780
      %v2782 = vsel %vm669, %v2765, 0.0
      %2783 = vadd.xlane.f32.xlu0 %v2782
      %v2784 = vpop.xlane.xlu0 %2783
      %v2785 = vsel %vm669, %v2767, 0.0
      %2786 = vadd.xlane.f32.xlu0 %v2785
      %v2787 = vpop.xlane.xlu0 %2786
      %v2788 = vsel %vm669, %v2769, 0.0
      %2789 = vadd.xlane.f32.xlu0 %v2788
      %v2790 = vpop.xlane.xlu0 %2789
      %v2791 = vsel %vm669, %v2771, 0.0
      %2792 = vadd.xlane.f32.xlu0 %v2791
      %v2793 = vpop.xlane.xlu0 %2792
      %v2794 = vsel %vm669, %v2773, 0.0
      %2795 = vadd.xlane.f32.xlu0 %v2794
      %v2796 = vpop.xlane.xlu0 %2795
      %v2797 = vsel %vm669, %v2775, 0.0
      %2798 = vadd.xlane.f32.xlu0 %v2797
      %v2799 = vpop.xlane.xlu0 %2798
      %v2800 = vrcp.pop %v2778
      %v2801 = vrcp.pop %v2781
      %v2802 = vrcp.pop %v2784
      %v2803 = vrcp.pop %v2787
      %v2804 = vrcp.pop %v2790
      %v2805 = vrcp.pop %v2793
      %v2806 = vrcp.pop %v2796
      %v2807 = vrcp.pop %v2799
      %v2808 = vmul.f32 %v2761, %v2800
      %v2809 = vmul.f32 %v2763, %v2801
      %v2810 = vmul.f32 %v2765, %v2802
      %v2811 = vmul.f32 %v2767, %v2803
      %v2812 = vmul.f32 %v2769, %v2804
      %v2813 = vmul.f32 %v2771, %v2805
      %v2814 = vmul.f32 %v2773, %v2806
      %v2815 = vmul.f32 %v2775, %v2807
      %v2816 = vpack.c.bf16 %v2809, %v2808
      %v2817 = vpack.c.bf16 %v2811, %v2810
      %v2818 = vpack.c.bf16 %v2813, %v2812
      %v2819 = vpack.c.bf16 %v2815, %v2814
      %2820 = vrot.lane.b32.xlu0 %v555, 36
      %v2821 = vpop.permute.xlu0 %2820
      %2822 = vrot.lane.b32.xlu0 %v556, 36
      %v2823 = vpop.permute.xlu0 %2822
      %2824 = vrot.lane.b32.xlu0 %v557, 36
      %v2825 = vpop.permute.xlu0 %2824
      %2826 = vrot.lane.b32.xlu0 %v558, 36
      %v2827 = vpop.permute.xlu0 %2826
      %v2833 = vsel %vm669, %v2816, 0
      %v2836 = vsel %vm669, %v2817, 0
      %v2839 = vsel %vm669, %v2818, 0
      %v2842 = vsel %vm669, %v2819, 0
      %2844 = vmatprep.subr.bf16.mxu0 0
      %2845 = vmatpush1.bf16.msra.mxu0 %v2821
      %2846 = vmatprep.subr.bf16.mxu0 0
      %2847 = vmatpush1.bf16.msra.mxu0 %v2823
      %2848 = vmatprep.subr.bf16.mxu0 0
      %2849 = vmatpush1.bf16.msra.mxu0 %v2825
      %2850 = vmatprep.subr.bf16.mxu0 0
      %2851 = vmatpush1.bf16.msra.mxu0 %v2827
      %2852 = vmatprep.subr.bf16.mxu0 0
      %2853 = vmatpush1.bf16.msra.mxu0 0
      %2854 = vmatprep.subr.bf16.mxu0 0
      %2855 = vmatpush1.bf16.msra.mxu0 0
      %2856 = vmatprep.subr.bf16.mxu0 0
      %2857 = vmatpush1.bf16.msra.mxu0 0
      %2858 = vmatprep.subr.bf16.mxu0 0
      %2859 = vmatpush1.bf16.msra.mxu0 0
      %2860 = vmatprep.subr.bf16.mxu0 0
      %2861 = vmatpush1.bf16.msra.mxu0 0
      %2862 = vmatprep.subr.bf16.mxu0 0
      %2863 = vmatpush1.bf16.msra.mxu0 0
      %2864 = vmatprep.subr.bf16.mxu0 0
      %2865 = vmatpush1.bf16.msra.mxu0 0
      %2866 = vmatprep.subr.bf16.mxu0 0
      %2867 = vmatpush1.bf16.msra.mxu0 0
      %2868 = vmatprep.subr.bf16.mxu0 0
      %2869 = vmatpush1.bf16.msra.mxu0 0
      %2870 = vmatprep.subr.bf16.mxu0 0
      %2871 = vmatpush1.bf16.msra.mxu0 0
      %2872 = vmatprep.subr.bf16.mxu0 0
      %2873 = vmatpush1.bf16.msra.mxu0 0
      %2874 = vmatprep.subr.bf16.mxu0 0
      %2875 = vmatpush1.bf16.msra.mxu0 0
      %2876 = vmatprep.mubr.bf16.mxu0 0
      %2877 = vmatmul.mubr.bf16.gmra.mrb[0].mxu0 %v2833
      %v2878 = vpop.f32.mrb[0].mxu0
      %v2879 = vadd.f32 0.0, %v2878
      %v2880 = vpop.f32.mrb[0].mxu0
      %v2881 = vpop.f32.mrb[0].mxu0
      %v2882 = vadd.f32 0.0, %v2881
      %v2883 = vpop.f32.mrb[0].mxu0
      %2884 = vmatprep.mubr.bf16.mxu0 0
      %2885 = vmatmul.mubr.bf16.gmra.mrb[0].mxu0 %v2836
      %v2886 = vpop.f32.mrb[0].mxu0
      %v2887 = vadd.f32 0.0, %v2886
      %v2888 = vpop.f32.mrb[0].mxu0
      %v2889 = vpop.f32.mrb[0].mxu0
      %v2890 = vadd.f32 0.0, %v2889
      %v2891 = vpop.f32.mrb[0].mxu0
      %2892 = vmatprep.mubr.bf16.mxu0 0
      %2893 = vmatmul.mubr.bf16.gmra.mrb[0].mxu0 %v2839
      %v2894 = vpop.f32.mrb[0].mxu0
      %v2895 = vadd.f32 0.0, %v2894
      %v2896 = vpop.f32.mrb[0].mxu0
      %v2897 = vpop.f32.mrb[0].mxu0
      %v2898 = vadd.f32 0.0, %v2897
      %v2899 = vpop.f32.mrb[0].mxu0
      %2900 = vmatprep.mubr.bf16.mxu0 0
      %2901 = vmatmul.mubr.bf16.gmra.mrb[0].mxu0 %v2842
      %v2902 = vpop.f32.mrb[0].mxu0
      %v2903 = vadd.f32 0.0, %v2902
      %v2904 = vpop.f32.mrb[0].mxu0
      %v2905 = vpop.f32.mrb[0].mxu0
      %v2906 = vadd.f32 0.0, %v2905
      %v2907 = vpop.f32.mrb[0].mxu0
      %2908 = vdwg.mxu0
      %2917 = vrot.lane.b32.xlu0 %v1115, 4
      %v2918 = vpop.permute.xlu0 %2917
      %2919 = vrot.lane.b32.xlu0 %v1118, 4
      %v2920 = vpop.permute.xlu0 %2919
      %2921 = vrot.lane.b32.xlu0 %v1123, 4
      %v2922 = vpop.permute.xlu0 %2921
      %2923 = vrot.lane.b32.xlu0 %v1126, 4
      %v2924 = vpop.permute.xlu0 %2923
      %2925 = vrot.lane.b32.xlu0 %v1131, 4
      %v2926 = vpop.permute.xlu0 %2925
      %2927 = vrot.lane.b32.xlu0 %v1134, 4
      %v2928 = vpop.permute.xlu0 %2927
      %2929 = vrot.lane.b32.xlu0 %v1139, 4
      %v2930 = vpop.permute.xlu0 %2929
      %2931 = vrot.lane.b32.xlu0 %v1142, 4
      %v2932 = vpop.permute.xlu0 %2931
      %2949 = vrot.lane.b32.xlu0 %v1409, 8
      %v2950 = vpop.permute.xlu0 %2949
      %2951 = vrot.lane.b32.xlu0 %v1412, 8
      %v2952 = vpop.permute.xlu0 %2951
      %2953 = vrot.lane.b32.xlu0 %v1417, 8
      %v2954 = vpop.permute.xlu0 %2953
      %2955 = vrot.lane.b32.xlu0 %v1420, 8
      %v2956 = vpop.permute.xlu0 %2955
      %2957 = vrot.lane.b32.xlu0 %v1425, 8
      %v2958 = vpop.permute.xlu0 %2957
      %2959 = vrot.lane.b32.xlu0 %v1428, 8
      %v2960 = vpop.permute.xlu0 %2959
      %2961 = vrot.lane.b32.xlu0 %v1433, 8
      %v2962 = vpop.permute.xlu0 %2961
      %2963 = vrot.lane.b32.xlu0 %v1436, 8
      %v2964 = vpop.permute.xlu0 %2963
      %2981 = vrot.lane.b32.xlu0 %v1703, 12
      %v2982 = vpop.permute.xlu0 %2981
      %2983 = vrot.lane.b32.xlu0 %v1706, 12
      %v2984 = vpop.permute.xlu0 %2983
      %2985 = vrot.lane.b32.xlu0 %v1711, 12
      %v2986 = vpop.permute.xlu0 %2985
      %2987 = vrot.lane.b32.xlu0 %v1714, 12
      %v2988 = vpop.permute.xlu0 %2987
      %2989 = vrot.lane.b32.xlu0 %v1719, 12
      %v2990 = vpop.permute.xlu0 %2989
      %2991 = vrot.lane.b32.xlu0 %v1722, 12
      %v2992 = vpop.permute.xlu0 %2991
      %2993 = vrot.lane.b32.xlu0 %v1727, 12
      %v2994 = vpop.permute.xlu0 %2993
      %2995 = vrot.lane.b32.xlu0 %v1730, 12
      %v2996 = vpop.permute.xlu0 %2995
      %3013 = vrot.lane.b32.xlu0 %v1997, 16
      %v3014 = vpop.permute.xlu0 %3013
      %3015 = vrot.lane.b32.xlu0 %v2000, 16
      %v3016 = vpop.permute.xlu0 %3015
      %3017 = vrot.lane.b32.xlu0 %v2005, 16
      %v3018 = vpop.permute.xlu0 %3017
      %3019 = vrot.lane.b32.xlu0 %v2008, 16
      %v3020 = vpop.permute.xlu0 %3019
      %3021 = vrot.lane.b32.xlu0 %v2013, 16
      %v3022 = vpop.permute.xlu0 %3021
      %3023 = vrot.lane.b32.xlu0 %v2016, 16
      %v3024 = vpop.permute.xlu0 %3023
      %3025 = vrot.lane.b32.xlu0 %v2021, 16
      %v3026 = vpop.permute.xlu0 %3025
      %3027 = vrot.lane.b32.xlu0 %v2024, 16
      %v3028 = vpop.permute.xlu0 %3027
      %3045 = vrot.lane.b32.xlu0 %v2291, 20
      %v3046 = vpop.permute.xlu0 %3045
      %3047 = vrot.lane.b32.xlu0 %v2294, 20
      %v3048 = vpop.permute.xlu0 %3047
      %3049 = vrot.lane.b32.xlu0 %v2299, 20
      %v3050 = vpop.permute.xlu0 %3049
      %3051 = vrot.lane.b32.xlu0 %v2302, 20
      %v3052 = vpop.permute.xlu0 %3051
      %3053 = vrot.lane.b32.xlu0 %v2307, 20
      %v3054 = vpop.permute.xlu0 %3053
      %3055 = vrot.lane.b32.xlu0 %v2310, 20
      %v3056 = vpop.permute.xlu0 %3055
      %3057 = vrot.lane.b32.xlu0 %v2315, 20
      %v3058 = vpop.permute.xlu0 %3057
      %3059 = vrot.lane.b32.xlu0 %v2318, 20
      %v3060 = vpop.permute.xlu0 %3059
      %3077 = vrot.lane.b32.xlu0 %v2585, 24
      %v3078 = vpop.permute.xlu0 %3077
      %3079 = vrot.lane.b32.xlu0 %v2588, 24
      %v3080 = vpop.permute.xlu0 %3079
      %3081 = vrot.lane.b32.xlu0 %v2593, 24
      %v3082 = vpop.permute.xlu0 %3081
      %3083 = vrot.lane.b32.xlu0 %v2596, 24
      %v3084 = vpop.permute.xlu0 %3083
      %3085 = vrot.lane.b32.xlu0 %v2601, 24
      %v3086 = vpop.permute.xlu0 %3085
      %3087 = vrot.lane.b32.xlu0 %v2604, 24
      %v3088 = vpop.permute.xlu0 %3087
      %3089 = vrot.lane.b32.xlu0 %v2609, 24
      %v3090 = vpop.permute.xlu0 %3089
      %3091 = vrot.lane.b32.xlu0 %v2612, 24
      %v3092 = vpop.permute.xlu0 %3091
      %3109 = vrot.lane.b32.xlu0 %v2879, 28
      %v3110 = vpop.permute.xlu0 %3109
      %3111 = vrot.lane.b32.xlu0 %v2882, 28
      %v3112 = vpop.permute.xlu0 %3111
      %3113 = vrot.lane.b32.xlu0 %v2887, 28
      %v3114 = vpop.permute.xlu0 %3113
      %3115 = vrot.lane.b32.xlu0 %v2890, 28
      %v3116 = vpop.permute.xlu0 %3115
      %3117 = vrot.lane.b32.xlu0 %v2895, 28
      %v3118 = vpop.permute.xlu0 %3117
      %3119 = vrot.lane.b32.xlu0 %v2898, 28
      %v3120 = vpop.permute.xlu0 %3119
      %3121 = vrot.lane.b32.xlu0 %v2903, 28
      %v3122 = vpop.permute.xlu0 %3121
      %3123 = vrot.lane.b32.xlu0 %v2906, 28
      %v3124 = vpop.permute.xlu0 %3123
      %v3133 = vsel %vm571, %v821, %v2918
      %v3134 = vsel %vm571, %v824, %v2920
      %v3135 = vsel %vm571, %v829, %v2922
      %v3136 = vsel %vm571, %v832, %v2924
      %v3137 = vsel %vm571, %v837, %v2926
      %v3138 = vsel %vm571, %v840, %v2928
      %v3139 = vsel %vm571, %v845, %v2930
      %v3140 = vsel %vm571, %v848, %v2932
      %vm3141 = vcmask 64512
      %v3142 = vsel %vm3141, %v3133, %v2950
      %v3143 = vsel %vm3141, %v3134, %v2952
      %v3144 = vsel %vm3141, %v3135, %v2954
      %v3145 = vsel %vm3141, %v3136, %v2956
      %v3146 = vsel %vm3141, %v3137, %v2958
      %v3147 = vsel %vm3141, %v3138, %v2960
      %v3148 = vsel %vm3141, %v3139, %v2962
      %v3149 = vsel %vm3141, %v3140, %v2964
      %vm3150 = vcmask 97280
      %v3151 = vsel %vm3150, %v3142, %v2982
      %v3152 = vsel %vm3150, %v3143, %v2984
      %v3153 = vsel %vm3150, %v3144, %v2986
      %v3154 = vsel %vm3150, %v3145, %v2988
      %v3155 = vsel %vm3150, %v3146, %v2990
      %v3156 = vsel %vm3150, %v3147, %v2992
      %v3157 = vsel %vm3150, %v3148, %v2994
      %v3158 = vsel %vm3150, %v3149, %v2996
      %vm3159 = vcmask 130048
      %v3160 = vsel %vm3159, %v3151, %v3014
      %v3161 = vsel %vm3159, %v3152, %v3016
      %v3162 = vsel %vm3159, %v3153, %v3018
      %v3163 = vsel %vm3159, %v3154, %v3020
      %v3164 = vsel %vm3159, %v3155, %v3022
      %v3165 = vsel %vm3159, %v3156, %v3024
      %v3166 = vsel %vm3159, %v3157, %v3026
      %v3167 = vsel %vm3159, %v3158, %v3028
      %vm3168 = vcmask 162816
      %v3169 = vsel %vm3168, %v3160, %v3046
      %v3170 = vsel %vm3168, %v3161, %v3048
      %v3171 = vsel %vm3168, %v3162, %v3050
      %v3172 = vsel %vm3168, %v3163, %v3052
      %v3173 = vsel %vm3168, %v3164, %v3054
      %v3174 = vsel %vm3168, %v3165, %v3056
      %v3175 = vsel %vm3168, %v3166, %v3058
      %v3176 = vsel %vm3168, %v3167, %v3060
      %vm3177 = vcmask 195584
      %v3178 = vsel %vm3177, %v3169, %v3078
      %v3179 = vsel %vm3177, %v3170, %v3080
      %v3180 = vsel %vm3177, %v3171, %v3082
      %v3181 = vsel %vm3177, %v3172, %v3084
      %v3182 = vsel %vm3177, %v3173, %v3086
      %v3183 = vsel %vm3177, %v3174, %v3088
      %v3184 = vsel %vm3177, %v3175, %v3090
      %v3185 = vsel %vm3177, %v3176, %v3092
      %vm3186 = vcmask 228352
      %v3187 = vsel %vm3186, %v3178, %v3110
      %v3188 = vsel %vm3186, %v3179, %v3112
      %v3189 = vsel %vm3186, %v3180, %v3114
      %v3190 = vsel %vm3186, %v3181, %v3116
      %v3191 = vsel %vm3186, %v3182, %v3118
      %v3192 = vsel %vm3186, %v3183, %v3120
      %v3193 = vsel %vm3186, %v3184, %v3122
      %v3194 = vsel %vm3186, %v3185, %v3124
      %v3195 = vpack.c.bf16 %v3188, %v3187
      %v3196 = vpack.c.bf16 %v3190, %v3189
      %v3197 = vpack.c.bf16 %v3192, %v3191
      %v3198 = vpack.c.bf16 %v3194, %v3193
      %v3199 = vld [vmem:[%s3] sm:$0xf]
      %v3200 = vld [vmem:[%s3 + $0x4] sm:$0xf]
      %v3201 = vld [vmem:[%s3 + $0x8] sm:$0xf]
      %v3202 = vld [vmem:[%s3 + $0xc] sm:$0xf]
      %v3203 = vld [vmem:[%s4] sm:$0x1]
      %v3205 = vlaneseq
      %v3206 = vshrl.u32 %v3205, 7
      %v3207 = vsub.s32 0, %v3206
      %v3208 = vrot.slane %v3203, %v3207
      %v3214 = vunpack.c.l.b16 %v3199
      %v3215 = vunpack.c.l.b16 %v3200
      %v3216 = vunpack.c.l.b16 %v3201
      %v3217 = vunpack.c.l.b16 %v3202
      %v3218 = vpack.c.b16 %v3215, %v3214
      %v3219 = vpack.c.b16 %v3217, %v3216
      %v3223 = vsel %vm477, %v3195, 0
      %v3226 = vsel %vm477, %v3196, 0
      %v3229 = vsel %vm477, %v3197, 0
      %v3232 = vsel %vm477, %v3198, 0
      %3234 = vmatprep.subr.bf16.mxu0 0
      %3235 = vmatpush1.bf16.msra.mxu0 %v3218
      %3236 = vmatprep.subr.bf16.mxu0 0
      %3237 = vmatpush1.bf16.msra.mxu0 %v3219
      %3238 = vmatprep.subr.bf16.mxu0 0
      %3239 = vmatpush1.bf16.msra.mxu0 0
      %3240 = vmatprep.subr.bf16.mxu0 0
      %3241 = vmatpush1.bf16.msra.mxu0 0
      %3242 = vmatprep.subr.bf16.mxu0 0
      %3243 = vmatpush1.bf16.msra.mxu0 0
      %3244 = vmatprep.subr.bf16.mxu0 0
      %3245 = vmatpush1.bf16.msra.mxu0 0
      %3246 = vmatprep.subr.bf16.mxu0 0
      %3247 = vmatpush1.bf16.msra.mxu0 0
      %3248 = vmatprep.subr.bf16.mxu0 0
      %3249 = vmatpush1.bf16.msra.mxu0 0
      %3250 = vmatprep.subr.bf16.mxu0 0
      %3251 = vmatpush1.bf16.msra.mxu0 0
      %3252 = vmatprep.subr.bf16.mxu0 0
      %3253 = vmatpush1.bf16.msra.mxu0 0
      %3254 = vmatprep.subr.bf16.mxu0 0
      %3255 = vmatpush1.bf16.msra.mxu0 0
      %3256 = vmatprep.subr.bf16.mxu0 0
      %3257 = vmatpush1.bf16.msra.mxu0 0
      %3258 = vmatprep.subr.bf16.mxu0 0
      %3259 = vmatpush1.bf16.msra.mxu0 0
      %3260 = vmatprep.subr.bf16.mxu0 0
      %3261 = vmatpush1.bf16.msra.mxu0 0
      %3262 = vmatprep.subr.bf16.mxu0 0
      %3263 = vmatpush1.bf16.msra.mxu0 0
      %3264 = vmatprep.subr.bf16.mxu0 0
      %3265 = vmatpush1.bf16.msra.mxu0 0
      %3266 = vmatprep.mubr.bf16.mxu0 0
      %3267 = vmatmul.mubr.bf16.gmra.mrb[0].mxu0 %v3223
      %v3268 = vpop.f32.mrb[0].mxu0
      %v3269 = vadd.f32 %v3208, %v3268
      %v3270 = vpop.f32.mrb[0].mxu0
      %v3271 = vpop.f32.mrb[0].mxu0
      %v3272 = vadd.f32 %v3208, %v3271
      %v3273 = vpop.f32.mrb[0].mxu0
      %3274 = vmatprep.mubr.bf16.mxu0 0
      %3275 = vmatmul.mubr.bf16.gmra.mrb[0].mxu0 %v3226
      %v3276 = vpop.f32.mrb[0].mxu0
      %v3277 = vadd.f32 %v3208, %v3276
      %v3278 = vpop.f32.mrb[0].mxu0
      %v3279 = vpop.f32.mrb[0].mxu0
      %v3280 = vadd.f32 %v3208, %v3279
      %v3281 = vpop.f32.mrb[0].mxu0
      %3282 = vmatprep.mubr.bf16.mxu0 0
      %3283 = vmatmul.mubr.bf16.gmra.mrb[0].mxu0 %v3229
      %v3284 = vpop.f32.mrb[0].mxu0
      %v3285 = vadd.f32 %v3208, %v3284
      %v3286 = vpop.f32.mrb[0].mxu0
      %v3287 = vpop.f32.mrb[0].mxu0
      %v3288 = vadd.f32 %v3208, %v3287
      %v3289 = vpop.f32.mrb[0].mxu0
      %3290 = vmatprep.mubr.bf16.mxu0 0
      %3291 = vmatmul.mubr.bf16.gmra.mrb[0].mxu0 %v3232
      %v3292 = vpop.f32.mrb[0].mxu0
      %v3293 = vadd.f32 %v3208, %v3292
      %v3294 = vpop.f32.mrb[0].mxu0
      %v3295 = vpop.f32.mrb[0].mxu0
      %v3296 = vadd.f32 %v3208, %v3295
      %v3297 = vpop.f32.mrb[0].mxu0
      %3298 = vdwg.mxu0
      %v3299 = vadd.f32 %v442, %v3269
      %v3300 = vadd.f32 %v443, %v3272
      %v3301 = vadd.f32 %v444, %v3277
      %v3302 = vadd.f32 %v445, %v3280
      %v3303 = vadd.f32 %v446, %v3285
      %v3304 = vadd.f32 %v447, %v3288
      %v3305 = vadd.f32 %v448, %v3293
      %v3306 = vadd.f32 %v449, %v3296
      %v3307 = vld [vmem:[%s5] sm:$0x1]
      %v3308 = vld [vmem:[%s6] sm:$0x1]
      %v3309 = vsel %vm477, %v3299, 0.0
      %3310 = vadd.xlane.f32.xlu0 %v3309
      %v3311 = vpop.xlane.xlu0 %3310
      %v3312 = vsel %vm477, %v3300, 0.0
      %3313 = vadd.xlane.f32.xlu0 %v3312
      %v3314 = vpop.xlane.xlu0 %3313
      %v3315 = vsel %vm477, %v3301, 0.0
      %3316 = vadd.xlane.f32.xlu0 %v3315
      %v3317 = vpop.xlane.xlu0 %3316
      %v3318 = vsel %vm477, %v3302, 0.0
      %3319 = vadd.xlane.f32.xlu0 %v3318
      %v3320 = vpop.xlane.xlu0 %3319
      %v3321 = vsel %vm477, %v3303, 0.0
      %3322 = vadd.xlane.f32.xlu0 %v3321
      %v3323 = vpop.xlane.xlu0 %3322
      %v3324 = vsel %vm477, %v3304, 0.0
      %3325 = vadd.xlane.f32.xlu0 %v3324
      %v3326 = vpop.xlane.xlu0 %3325
      %v3327 = vsel %vm477, %v3305, 0.0
      %3328 = vadd.xlane.f32.xlu0 %v3327
      %v3329 = vpop.xlane.xlu0 %3328
      %v3330 = vsel %vm477, %v3306, 0.0
      %3331 = vadd.xlane.f32.xlu0 %v3330
      %v3332 = vpop.xlane.xlu0 %3331
      %v3333 = vrcp.pop 32.0
      %v3334 = vmul.f32 %v3311, %v3333
      %v3335 = vmul.f32 %v3314, %v3333
      %v3336 = vmul.f32 %v3317, %v3333
      %v3337 = vmul.f32 %v3320, %v3333
      %v3338 = vmul.f32 %v3323, %v3333
      %v3339 = vmul.f32 %v3326, %v3333
      %v3340 = vmul.f32 %v3329, %v3333
      %v3341 = vmul.f32 %v3332, %v3333
      %v3342 = vsub.f32 %v3299, %v3334
      %v3343 = vsub.f32 %v3300, %v3335
      %v3344 = vsub.f32 %v3301, %v3336
      %v3345 = vsub.f32 %v3302, %v3337
      %v3346 = vsub.f32 %v3303, %v3338
      %v3347 = vsub.f32 %v3304, %v3339
      %v3348 = vsub.f32 %v3305, %v3340
      %v3349 = vsub.f32 %v3306, %v3341
      %v3350 = vmul.f32 %v3342, %v3342
      %v3351 = vmul.f32 %v3343, %v3343
      %v3352 = vmul.f32 %v3344, %v3344
      %v3353 = vmul.f32 %v3345, %v3345
      %v3354 = vmul.f32 %v3346, %v3346
      %v3355 = vmul.f32 %v3347, %v3347
      %v3356 = vmul.f32 %v3348, %v3348
      %v3357 = vmul.f32 %v3349, %v3349
      %v3358 = vsel %vm477, %v3350, 0.0
      %3359 = vadd.xlane.f32.xlu0 %v3358
      %v3360 = vpop.xlane.xlu0 %3359
      %v3361 = vsel %vm477, %v3351, 0.0
      %3362 = vadd.xlane.f32.xlu0 %v3361
      %v3363 = vpop.xlane.xlu0 %3362
      %v3364 = vsel %vm477, %v3352, 0.0
      %3365 = vadd.xlane.f32.xlu0 %v3364
      %v3366 = vpop.xlane.xlu0 %3365
      %v3367 = vsel %vm477, %v3353, 0.0
      %3368 = vadd.xlane.f32.xlu0 %v3367
      %v3369 = vpop.xlane.xlu0 %3368
      %v3370 = vsel %vm477, %v3354, 0.0
      %3371 = vadd.xlane.f32.xlu0 %v3370
      %v3372 = vpop.xlane.xlu0 %3371
      %v3373 = vsel %vm477, %v3355, 0.0
      %3374 = vadd.xlane.f32.xlu0 %v3373
      %v3375 = vpop.xlane.xlu0 %3374
      %v3376 = vsel %vm477, %v3356, 0.0
      %3377 = vadd.xlane.f32.xlu0 %v3376
      %v3378 = vpop.xlane.xlu0 %3377
      %v3379 = vsel %vm477, %v3357, 0.0
      %3380 = vadd.xlane.f32.xlu0 %v3379
      %v3381 = vpop.xlane.xlu0 %3380
      %v3382 = vmul.f32 %v3360, %v3333
      %v3383 = vmul.f32 %v3363, %v3333
      %v3384 = vmul.f32 %v3366, %v3333
      %v3385 = vmul.f32 %v3369, %v3333
      %v3386 = vmul.f32 %v3372, %v3333
      %v3387 = vmul.f32 %v3375, %v3333
      %v3388 = vmul.f32 %v3378, %v3333
      %v3389 = vmul.f32 %v3381, %v3333
      %v3390 = vadd.f32 %v3382, 1e-05
      %v3391 = vadd.f32 %v3383, 1e-05
      %v3392 = vadd.f32 %v3384, 1e-05
      %v3393 = vadd.f32 %v3385, 1e-05
      %v3394 = vadd.f32 %v3386, 1e-05
      %v3395 = vadd.f32 %v3387, 1e-05
      %v3396 = vadd.f32 %v3388, 1e-05
      %v3397 = vadd.f32 %v3389, 1e-05
      %v3398 = vrsqrt.pop %v3390
      %v3399 = vrsqrt.pop %v3391
      %v3400 = vrsqrt.pop %v3392
      %v3401 = vrsqrt.pop %v3393
      %v3402 = vrsqrt.pop %v3394
      %v3403 = vrsqrt.pop %v3395
      %v3404 = vrsqrt.pop %v3396
      %v3405 = vrsqrt.pop %v3397
      %v3406 = vmul.f32 %v3342, %v3398
      %v3407 = vmul.f32 %v3343, %v3399
      %v3408 = vmul.f32 %v3344, %v3400
      %v3409 = vmul.f32 %v3345, %v3401
      %v3410 = vmul.f32 %v3346, %v3402
      %v3411 = vmul.f32 %v3347, %v3403
      %v3412 = vmul.f32 %v3348, %v3404
      %v3413 = vmul.f32 %v3349, %v3405
      %v3415 = vlaneseq
      %v3416 = vshrl.u32 %v3415, 7
      %v3417 = vsub.s32 0, %v3416
      %v3418 = vrot.slane %v3307, %v3417
      %v3420 = vmul.f32 %v3406, %v3418
      %v3421 = vmul.f32 %v3407, %v3418
      %v3422 = vmul.f32 %v3408, %v3418
      %v3423 = vmul.f32 %v3409, %v3418
      %v3424 = vmul.f32 %v3410, %v3418
      %v3425 = vmul.f32 %v3411, %v3418
      %v3426 = vmul.f32 %v3412, %v3418
      %v3427 = vmul.f32 %v3413, %v3418
      %v3429 = vlaneseq
      %v3430 = vshrl.u32 %v3429, 7
      %v3431 = vsub.s32 0, %v3430
      %v3432 = vrot.slane %v3308, %v3431
      %v3434 = vadd.f32 %v3420, %v3432
      %v3435 = vadd.f32 %v3421, %v3432
      %v3436 = vadd.f32 %v3422, %v3432
      %v3437 = vadd.f32 %v3423, %v3432
      %v3438 = vadd.f32 %v3424, %v3432
      %v3439 = vadd.f32 %v3425, %v3432
      %v3440 = vadd.f32 %v3426, %v3432
      %v3441 = vadd.f32 %v3427, %v3432
      %v3442 = vpack.c.bf16 %v3435, %v3434
      %v3443 = vpack.c.bf16 %v3437, %v3436
      %v3444 = vpack.c.bf16 %v3439, %v3438
      %v3445 = vpack.c.bf16 %v3441, %v3440
      %v3446 = vld [vmem:[%s7] sm:$0xf]
      %v3447 = vld [vmem:[%s7 + $0x4] sm:$0xf]
      %v3448 = vld [vmem:[%s7 + $0x8] sm:$0xf]
      %v3449 = vld [vmem:[%s7 + $0xc] sm:$0xf]
      %v3450 = vld [vmem:[%s8] sm:$0x1]
      %v3452 = vlaneseq
      %v3453 = vshrl.u32 %v3452, 7
      %v3454 = vsub.s32 0, %v3453
      %v3455 = vrot.slane %v3450, %v3454
      %v3461 = vunpack.c.l.b16 %v3446
      %v3462 = vunpack.c.l.b16 %v3447
      %v3463 = vunpack.c.l.b16 %v3448
      %v3464 = vunpack.c.l.b16 %v3449
      %v3465 = vpack.c.b16 %v3462, %v3461
      %v3466 = vpack.c.b16 %v3464, %v3463
      %v3470 = vsel %vm477, %v3442, 0
      %v3473 = vsel %vm477, %v3443, 0
      %v3476 = vsel %vm477, %v3444, 0
      %v3479 = vsel %vm477, %v3445, 0
      %3481 = vmatprep.subr.bf16.mxu0 0
      %3482 = vmatpush1.bf16.msra.mxu0 %v3465
      %3483 = vmatprep.subr.bf16.mxu0 0
      %3484 = vmatpush1.bf16.msra.mxu0 %v3466
      %3485 = vmatprep.subr.bf16.mxu0 0
      %3486 = vmatpush1.bf16.msra.mxu0 0
      %3487 = vmatprep.subr.bf16.mxu0 0
      %3488 = vmatpush1.bf16.msra.mxu0 0
      %3489 = vmatprep.subr.bf16.mxu0 0
      %3490 = vmatpush1.bf16.msra.mxu0 0
      %3491 = vmatprep.subr.bf16.mxu0 0
      %3492 = vmatpush1.bf16.msra.mxu0 0
      %3493 = vmatprep.subr.bf16.mxu0 0
      %3494 = vmatpush1.bf16.msra.mxu0 0
      %3495 = vmatprep.subr.bf16.mxu0 0
      %3496 = vmatpush1.bf16.msra.mxu0 0
      %3497 = vmatprep.subr.bf16.mxu0 0
      %3498 = vmatpush1.bf16.msra.mxu0 0
      %3499 = vmatprep.subr.bf16.mxu0 0
      %3500 = vmatpush1.bf16.msra.mxu0 0
      %3501 = vmatprep.subr.bf16.mxu0 0
      %3502 = vmatpush1.bf16.msra.mxu0 0
      %3503 = vmatprep.subr.bf16.mxu0 0
      %3504 = vmatpush1.bf16.msra.mxu0 0
      %3505 = vmatprep.subr.bf16.mxu0 0
      %3506 = vmatpush1.bf16.msra.mxu0 0
      %3507 = vmatprep.subr.bf16.mxu0 0
      %3508 = vmatpush1.bf16.msra.mxu0 0
      %3509 = vmatprep.subr.bf16.mxu0 0
      %3510 = vmatpush1.bf16.msra.mxu0 0
      %3511 = vmatprep.subr.bf16.mxu0 0
      %3512 = vmatpush1.bf16.msra.mxu0 0
      %3513 = vmatprep.mubr.bf16.mxu0 0
      %3514 = vmatmul.mubr.bf16.gmra.mrb[0].mxu0 %v3470
      %v3515 = vpop.f32.mrb[0].mxu0
      %v3516 = vadd.f32 %v3455, %v3515
      %v3517 = vpop.f32.mrb[0].mxu0
      %v3518 = vpop.f32.mrb[0].mxu0
      %v3519 = vadd.f32 %v3455, %v3518
      %v3520 = vpop.f32.mrb[0].mxu0
      %3521 = vmatprep.mubr.bf16.mxu0 0
      %3522 = vmatmul.mubr.bf16.gmra.mrb[0].mxu0 %v3473
      %v3523 = vpop.f32.mrb[0].mxu0
      %v3524 = vadd.f32 %v3455, %v3523
      %v3525 = vpop.f32.mrb[0].mxu0
      %v3526 = vpop.f32.mrb[0].mxu0
      %v3527 = vadd.f32 %v3455, %v3526
      %v3528 = vpop.f32.mrb[0].mxu0
      %3529 = vmatprep.mubr.bf16.mxu0 0
      %3530 = vmatmul.mubr.bf16.gmra.mrb[0].mxu0 %v3476
      %v3531 = vpop.f32.mrb[0].mxu0
      %v3532 = vadd.f32 %v3455, %v3531
      %v3533 = vpop.f32.mrb[0].mxu0
      %v3534 = vpop.f32.mrb[0].mxu0
      %v3535 = vadd.f32 %v3455, %v3534
      %v3536 = vpop.f32.mrb[0].mxu0
      %3537 = vmatprep.mubr.bf16.mxu0 0
      %3538 = vmatmul.mubr.bf16.gmra.mrb[0].mxu0 %v3479
      %v3539 = vpop.f32.mrb[0].mxu0
      %v3540 = vadd.f32 %v3455, %v3539
      %v3541 = vpop.f32.mrb[0].mxu0
      %v3542 = vpop.f32.mrb[0].mxu0
      %v3543 = vadd.f32 %v3455, %v3542
      %v3544 = vpop.f32.mrb[0].mxu0
      %3545 = vdwg.mxu0
      %v3546 = vmax.f32 %v3516, 0.0
      %v3547 = vmax.f32 %v3519, 0.0
      %v3548 = vmax.f32 %v3524, 0.0
      %v3549 = vmax.f32 %v3527, 0.0
      %v3550 = vmax.f32 %v3532, 0.0
      %v3551 = vmax.f32 %v3535, 0.0
      %v3552 = vmax.f32 %v3540, 0.0
      %v3553 = vmax.f32 %v3543, 0.0
      %v3554 = vpack.c.bf16 %v3547, %v3546
      %v3555 = vpack.c.bf16 %v3549, %v3548
      %v3556 = vpack.c.bf16 %v3551, %v3550
      %v3557 = vpack.c.bf16 %v3553, %v3552
      %v3558 = vld [vmem:[%s9] sm:$0xf]
      %v3559 = vld [vmem:[%s9 + $0x4] sm:$0xf]
      %v3560 = vld [vmem:[%s9 + $0x8] sm:$0xf]
      %v3561 = vld [vmem:[%s9 + $0xc] sm:$0xf]
      %v3562 = vld [vmem:[%s9 + $0x10] sm:$0xf]
      %v3563 = vld [vmem:[%s9 + $0x14] sm:$0xf]
      %v3564 = vld [vmem:[%s9 + $0x18] sm:$0xf]
      %v3565 = vld [vmem:[%s9 + $0x1c] sm:$0xf]
      %v3566 = vld [vmem:[%s10] sm:$0x1]
      %v3568 = vlaneseq
      %v3569 = vshrl.u32 %v3568, 7
      %v3570 = vsub.s32 0, %v3569
      %v3571 = vrot.slane %v3566, %v3570
      %v3581 = vunpack.c.l.b16 %v3558
      %v3582 = vunpack.c.l.b16 %v3559
      %v3583 = vunpack.c.l.b16 %v3560
      %v3584 = vunpack.c.l.b16 %v3561
      %v3585 = vunpack.c.l.b16 %v3562
      %v3586 = vunpack.c.l.b16 %v3563
      %v3587 = vunpack.c.l.b16 %v3564
      %v3588 = vunpack.c.l.b16 %v3565
      %v3589 = vpack.c.b16 %v3582, %v3581
      %v3590 = vpack.c.b16 %v3584, %v3583
      %v3591 = vpack.c.b16 %v3586, %v3585
      %v3592 = vpack.c.b16 %v3588, %v3587
      %v3598 = vsel %vm669, %v3554, 0
      %v3601 = vsel %vm669, %v3555, 0
      %v3604 = vsel %vm669, %v3556, 0
      %v3607 = vsel %vm669, %v3557, 0
      %3609 = vmatprep.subr.bf16.mxu0 0
      %3610 = vmatpush1.bf16.msra.mxu0 %v3589
      %3611 = vmatprep.subr.bf16.mxu0 0
      %3612 = vmatpush1.bf16.msra.mxu0 %v3590
      %3613 = vmatprep.subr.bf16.mxu0 0
      %3614 = vmatpush1.bf16.msra.mxu0 %v3591
      %3615 = vmatprep.subr.bf16.mxu0 0
      %3616 = vmatpush1.bf16.msra.mxu0 %v3592
      %3617 = vmatprep.subr.bf16.mxu0 0
      %3618 = vmatpush1.bf16.msra.mxu0 0
      %3619 = vmatprep.subr.bf16.mxu0 0
      %3620 = vmatpush1.bf16.msra.mxu0 0
      %3621 = vmatprep.subr.bf16.mxu0 0
      %3622 = vmatpush1.bf16.msra.mxu0 0
      %3623 = vmatprep.subr.bf16.mxu0 0
      %3624 = vmatpush1.bf16.msra.mxu0 0
      %3625 = vmatprep.subr.bf16.mxu0 0
      %3626 = vmatpush1.bf16.msra.mxu0 0
      %3627 = vmatprep.subr.bf16.mxu0 0
      %3628 = vmatpush1.bf16.msra.mxu0 0
      %3629 = vmatprep.subr.bf16.mxu0 0
      %3630 = vmatpush1.bf16.msra.mxu0 0
      %3631 = vmatprep.subr.bf16.mxu0 0
      %3632 = vmatpush1.bf16.msra.mxu0 0
      %3633 = vmatprep.subr.bf16.mxu0 0
      %3634 = vmatpush1.bf16.msra.mxu0 0
      %3635 = vmatprep.subr.bf16.mxu0 0
      %3636 = vmatpush1.bf16.msra.mxu0 0
      %3637 = vmatprep.subr.bf16.mxu0 0
      %3638 = vmatpush1.bf16.msra.mxu0 0
      %3639 = vmatprep.subr.bf16.mxu0 0
      %3640 = vmatpush1.bf16.msra.mxu0 0
      %3641 = vmatprep.mubr.bf16.mxu0 0
      %3642 = vmatmul.mubr.bf16.gmra.mrb[0].mxu0 %v3598
      %v3643 = vpop.f32.mrb[0].mxu0
      %v3644 = vadd.f32 %v3571, %v3643
      %v3645 = vpop.f32.mrb[0].mxu0
      %v3646 = vpop.f32.mrb[0].mxu0
      %v3647 = vadd.f32 %v3571, %v3646
      %v3648 = vpop.f32.mrb[0].mxu0
      %3649 = vmatprep.mubr.bf16.mxu0 0
      %3650 = vmatmul.mubr.bf16.gmra.mrb[0].mxu0 %v3601
      %v3651 = vpop.f32.mrb[0].mxu0
      %v3652 = vadd.f32 %v3571, %v3651
      %v3653 = vpop.f32.mrb[0].mxu0
      %v3654 = vpop.f32.mrb[0].mxu0
      %v3655 = vadd.f32 %v3571, %v3654
      %v3656 = vpop.f32.mrb[0].mxu0
      %3657 = vmatprep.mubr.bf16.mxu0 0
      %3658 = vmatmul.mubr.bf16.gmra.mrb[0].mxu0 %v3604
      %v3659 = vpop.f32.mrb[0].mxu0
      %v3660 = vadd.f32 %v3571, %v3659
      %v3661 = vpop.f32.mrb[0].mxu0
      %v3662 = vpop.f32.mrb[0].mxu0
      %v3663 = vadd.f32 %v3571, %v3662
      %v3664 = vpop.f32.mrb[0].mxu0
      %3665 = vmatprep.mubr.bf16.mxu0 0
      %3666 = vmatmul.mubr.bf16.gmra.mrb[0].mxu0 %v3607
      %v3667 = vpop.f32.mrb[0].mxu0
      %v3668 = vadd.f32 %v3571, %v3667
      %v3669 = vpop.f32.mrb[0].mxu0
      %v3670 = vpop.f32.mrb[0].mxu0
      %v3671 = vadd.f32 %v3571, %v3670
      %v3672 = vpop.f32.mrb[0].mxu0
      %3673 = vdwg.mxu0
      %v3674 = vadd.f32 %v3434, %v3644
      %v3675 = vadd.f32 %v3435, %v3647
      %v3676 = vadd.f32 %v3436, %v3652
      %v3677 = vadd.f32 %v3437, %v3655
      %v3678 = vadd.f32 %v3438, %v3660
      %v3679 = vadd.f32 %v3439, %v3663
      %v3680 = vadd.f32 %v3440, %v3668
      %v3681 = vadd.f32 %v3441, %v3671
      %v3682 = vld [vmem:[%s11] sm:$0x1]
      %v3683 = vld [vmem:[%s12] sm:$0x1]
      %v3684 = vsel %vm477, %v3674, 0.0
      %3685 = vadd.xlane.f32.xlu0 %v3684
      %v3686 = vpop.xlane.xlu0 %3685
      %v3687 = vsel %vm477, %v3675, 0.0
      %3688 = vadd.xlane.f32.xlu0 %v3687
      %v3689 = vpop.xlane.xlu0 %3688
      %v3690 = vsel %vm477, %v3676, 0.0
      %3691 = vadd.xlane.f32.xlu0 %v3690
      %v3692 = vpop.xlane.xlu0 %3691
      %v3693 = vsel %vm477, %v3677, 0.0
      %3694 = vadd.xlane.f32.xlu0 %v3693
      %v3695 = vpop.xlane.xlu0 %3694
      %v3696 = vsel %vm477, %v3678, 0.0
      %3697 = vadd.xlane.f32.xlu0 %v3696
      %v3698 = vpop.xlane.xlu0 %3697
      %v3699 = vsel %vm477, %v3679, 0.0
      %3700 = vadd.xlane.f32.xlu0 %v3699
      %v3701 = vpop.xlane.xlu0 %3700
      %v3702 = vsel %vm477, %v3680, 0.0
      %3703 = vadd.xlane.f32.xlu0 %v3702
      %v3704 = vpop.xlane.xlu0 %3703
      %v3705 = vsel %vm477, %v3681, 0.0
      %3706 = vadd.xlane.f32.xlu0 %v3705
      %v3707 = vpop.xlane.xlu0 %3706
      %v3708 = vmul.f32 %v3686, %v3333
      %v3709 = vmul.f32 %v3689, %v3333
      %v3710 = vmul.f32 %v3692, %v3333
      %v3711 = vmul.f32 %v3695, %v3333
      %v3712 = vmul.f32 %v3698, %v3333
      %v3713 = vmul.f32 %v3701, %v3333
      %v3714 = vmul.f32 %v3704, %v3333
      %v3715 = vmul.f32 %v3707, %v3333
      %v3716 = vsub.f32 %v3674, %v3708
      %v3717 = vsub.f32 %v3675, %v3709
      %v3718 = vsub.f32 %v3676, %v3710
      %v3719 = vsub.f32 %v3677, %v3711
      %v3720 = vsub.f32 %v3678, %v3712
      %v3721 = vsub.f32 %v3679, %v3713
      %v3722 = vsub.f32 %v3680, %v3714
      %v3723 = vsub.f32 %v3681, %v3715
      %v3724 = vmul.f32 %v3716, %v3716
      %v3725 = vmul.f32 %v3717, %v3717
      %v3726 = vmul.f32 %v3718, %v3718
      %v3727 = vmul.f32 %v3719, %v3719
      %v3728 = vmul.f32 %v3720, %v3720
      %v3729 = vmul.f32 %v3721, %v3721
      %v3730 = vmul.f32 %v3722, %v3722
      %v3731 = vmul.f32 %v3723, %v3723
      %v3732 = vsel %vm477, %v3724, 0.0
      %3733 = vadd.xlane.f32.xlu0 %v3732
      %v3734 = vpop.xlane.xlu0 %3733
      %v3735 = vsel %vm477, %v3725, 0.0
      %3736 = vadd.xlane.f32.xlu0 %v3735
      %v3737 = vpop.xlane.xlu0 %3736
      %v3738 = vsel %vm477, %v3726, 0.0
      %3739 = vadd.xlane.f32.xlu0 %v3738
      %v3740 = vpop.xlane.xlu0 %3739
      %v3741 = vsel %vm477, %v3727, 0.0
      %3742 = vadd.xlane.f32.xlu0 %v3741
      %v3743 = vpop.xlane.xlu0 %3742
      %v3744 = vsel %vm477, %v3728, 0.0
      %3745 = vadd.xlane.f32.xlu0 %v3744
      %v3746 = vpop.xlane.xlu0 %3745
      %v3747 = vsel %vm477, %v3729, 0.0
      %3748 = vadd.xlane.f32.xlu0 %v3747
      %v3749 = vpop.xlane.xlu0 %3748
      %v3750 = vsel %vm477, %v3730, 0.0
      %3751 = vadd.xlane.f32.xlu0 %v3750
      %v3752 = vpop.xlane.xlu0 %3751
      %v3753 = vsel %vm477, %v3731, 0.0
      %3754 = vadd.xlane.f32.xlu0 %v3753
      %v3755 = vpop.xlane.xlu0 %3754
      %v3756 = vmul.f32 %v3734, %v3333
      %v3757 = vmul.f32 %v3737, %v3333
      %v3758 = vmul.f32 %v3740, %v3333
      %v3759 = vmul.f32 %v3743, %v3333
      %v3760 = vmul.f32 %v3746, %v3333
      %v3761 = vmul.f32 %v3749, %v3333
      %v3762 = vmul.f32 %v3752, %v3333
      %v3763 = vmul.f32 %v3755, %v3333
      %v3764 = vadd.f32 %v3756, 1e-05
      %v3765 = vadd.f32 %v3757, 1e-05
      %v3766 = vadd.f32 %v3758, 1e-05
      %v3767 = vadd.f32 %v3759, 1e-05
      %v3768 = vadd.f32 %v3760, 1e-05
      %v3769 = vadd.f32 %v3761, 1e-05
      %v3770 = vadd.f32 %v3762, 1e-05
      %v3771 = vadd.f32 %v3763, 1e-05
      %v3772 = vrsqrt.pop %v3764
      %v3773 = vrsqrt.pop %v3765
      %v3774 = vrsqrt.pop %v3766
      %v3775 = vrsqrt.pop %v3767
      %v3776 = vrsqrt.pop %v3768
      %v3777 = vrsqrt.pop %v3769
      %v3778 = vrsqrt.pop %v3770
      %v3779 = vrsqrt.pop %v3771
      %v3780 = vmul.f32 %v3716, %v3772
      %v3781 = vmul.f32 %v3717, %v3773
      %v3782 = vmul.f32 %v3718, %v3774
      %v3783 = vmul.f32 %v3719, %v3775
      %v3784 = vmul.f32 %v3720, %v3776
      %v3785 = vmul.f32 %v3721, %v3777
      %v3786 = vmul.f32 %v3722, %v3778
      %v3787 = vmul.f32 %v3723, %v3779
      %v3789 = vlaneseq
      %v3790 = vshrl.u32 %v3789, 7
      %v3791 = vsub.s32 0, %v3790
      %v3792 = vrot.slane %v3682, %v3791
      %v3794 = vmul.f32 %v3780, %v3792
      %v3795 = vmul.f32 %v3781, %v3792
      %v3796 = vmul.f32 %v3782, %v3792
      %v3797 = vmul.f32 %v3783, %v3792
      %v3798 = vmul.f32 %v3784, %v3792
      %v3799 = vmul.f32 %v3785, %v3792
      %v3800 = vmul.f32 %v3786, %v3792
      %v3801 = vmul.f32 %v3787, %v3792
      %v3803 = vlaneseq
      %v3804 = vshrl.u32 %v3803, 7
      %v3805 = vsub.s32 0, %v3804
      %v3806 = vrot.slane %v3683, %v3805
      %v3808 = vadd.f32 %v3794, %v3806
      %v3809 = vadd.f32 %v3795, %v3806
      %v3810 = vadd.f32 %v3796, %v3806
      %v3811 = vadd.f32 %v3797, %v3806
      %v3812 = vadd.f32 %v3798, %v3806
      %v3813 = vadd.f32 %v3799, %v3806
      %v3814 = vadd.f32 %v3800, %v3806
      %v3815 = vadd.f32 %v3801, %v3806
      %v3816 = vpack.c.bf16 %v3809, %v3808
      %v3817 = vpack.c.bf16 %v3811, %v3810
      %v3818 = vpack.c.bf16 %v3813, %v3812
      %v3819 = vpack.c.bf16 %v3815, %v3814
      %s3820 = scalar_lea.vmem %s1, 16
      %v3821 = vld [vmem:[%s3820] sm:$0xf]
      %v3822 = vld [vmem:[%s3820 + $0x4] sm:$0xf]
      %v3823 = vld [vmem:[%s3820 + $0x8] sm:$0xf]
      %v3824 = vld [vmem:[%s3820 + $0xc] sm:$0xf]
      %s3825 = scalar_lea.vmem %s2, 1
      %v3826 = vld [vmem:[%s3825] sm:$0x1]
      %v3828 = vlaneseq
      %v3829 = vshrl.u32 %v3828, 7
      %v3830 = vsub.s32 0, %v3829
      %v3831 = vrot.slane %v3826, %v3830
      %v3837 = vunpack.c.l.b16 %v3821
      %v3838 = vunpack.c.l.b16 %v3822
      %v3839 = vunpack.c.l.b16 %v3823
      %v3840 = vunpack.c.l.b16 %v3824
      %v3841 = vpack.c.b16 %v3838, %v3837
      %v3842 = vpack.c.b16 %v3840, %v3839
      %v3846 = vsel %vm477, %v3816, 0
      %v3849 = vsel %vm477, %v3817, 0
      %v3852 = vsel %vm477, %v3818, 0
      %v3855 = vsel %vm477, %v3819, 0
      %3857 = vmatprep.subr.bf16.mxu0 0
      %3858 = vmatpush1.bf16.msra.mxu0 %v3841
      %3859 = vmatprep.subr.bf16.mxu0 0
      %3860 = vmatpush1.bf16.msra.mxu0 %v3842
      %3861 = vmatprep.subr.bf16.mxu0 0
      %3862 = vmatpush1.bf16.msra.mxu0 0
      %3863 = vmatprep.subr.bf16.mxu0 0
      %3864 = vmatpush1.bf16.msra.mxu0 0
      %3865 = vmatprep.subr.bf16.mxu0 0
      %3866 = vmatpush1.bf16.msra.mxu0 0
      %3867 = vmatprep.subr.bf16.mxu0 0
      %3868 = vmatpush1.bf16.msra.mxu0 0
      %3869 = vmatprep.subr.bf16.mxu0 0
      %3870 = vmatpush1.bf16.msra.mxu0 0
      %3871 = vmatprep.subr.bf16.mxu0 0
      %3872 = vmatpush1.bf16.msra.mxu0 0
      %3873 = vmatprep.subr.bf16.mxu0 0
      %3874 = vmatpush1.bf16.msra.mxu0 0
      %3875 = vmatprep.subr.bf16.mxu0 0
      %3876 = vmatpush1.bf16.msra.mxu0 0
      %3877 = vmatprep.subr.bf16.mxu0 0
      %3878 = vmatpush1.bf16.msra.mxu0 0
      %3879 = vmatprep.subr.bf16.mxu0 0
      %3880 = vmatpush1.bf16.msra.mxu0 0
      %3881 = vmatprep.subr.bf16.mxu0 0
      %3882 = vmatpush1.bf16.msra.mxu0 0
      %3883 = vmatprep.subr.bf16.mxu0 0
      %3884 = vmatpush1.bf16.msra.mxu0 0
      %3885 = vmatprep.subr.bf16.mxu0 0
      %3886 = vmatpush1.bf16.msra.mxu0 0
      %3887 = vmatprep.subr.bf16.mxu0 0
      %3888 = vmatpush1.bf16.msra.mxu0 0
      %3889 = vmatprep.mubr.bf16.mxu0 0
      %3890 = vmatmul.mubr.bf16.gmra.mrb[0].mxu0 %v3846
      %v3891 = vpop.f32.mrb[0].mxu0
      %v3892 = vadd.f32 %v3831, %v3891
      %v3893 = vpop.f32.mrb[0].mxu0
      %v3894 = vpop.f32.mrb[0].mxu0
      %v3895 = vadd.f32 %v3831, %v3894
      %v3896 = vpop.f32.mrb[0].mxu0
      %3897 = vmatprep.mubr.bf16.mxu0 0
      %3898 = vmatmul.mubr.bf16.gmra.mrb[0].mxu0 %v3849
      %v3899 = vpop.f32.mrb[0].mxu0
      %v3900 = vadd.f32 %v3831, %v3899
      %v3901 = vpop.f32.mrb[0].mxu0
      %v3902 = vpop.f32.mrb[0].mxu0
      %v3903 = vadd.f32 %v3831, %v3902
      %v3904 = vpop.f32.mrb[0].mxu0
      %3905 = vmatprep.mubr.bf16.mxu0 0
      %3906 = vmatmul.mubr.bf16.gmra.mrb[0].mxu0 %v3852
      %v3907 = vpop.f32.mrb[0].mxu0
      %v3908 = vadd.f32 %v3831, %v3907
      %v3909 = vpop.f32.mrb[0].mxu0
      %v3910 = vpop.f32.mrb[0].mxu0
      %v3911 = vadd.f32 %v3831, %v3910
      %v3912 = vpop.f32.mrb[0].mxu0
      %3913 = vmatprep.mubr.bf16.mxu0 0
      %3914 = vmatmul.mubr.bf16.gmra.mrb[0].mxu0 %v3855
      %v3915 = vpop.f32.mrb[0].mxu0
      %v3916 = vadd.f32 %v3831, %v3915
      %v3917 = vpop.f32.mrb[0].mxu0
      %v3918 = vpop.f32.mrb[0].mxu0
      %v3919 = vadd.f32 %v3831, %v3918
      %v3920 = vpop.f32.mrb[0].mxu0
      %3921 = vdwg.mxu0
      %v3922 = vpack.c.bf16 %v3895, %v3892
      %v3923 = vpack.c.bf16 %v3903, %v3900
      %v3924 = vpack.c.bf16 %v3911, %v3908
      %v3925 = vpack.c.bf16 %v3919, %v3916
      %3930 = vrot.lane.b32.xlu0 %v3922, 96
      %v3931 = vpop.permute.xlu0 %3930
      %3932 = vrot.lane.b32.xlu0 %v3923, 96
      %v3933 = vpop.permute.xlu0 %3932
      %3934 = vrot.lane.b32.xlu0 %v3924, 96
      %v3935 = vpop.permute.xlu0 %3934
      %3936 = vrot.lane.b32.xlu0 %v3925, 96
      %v3937 = vpop.permute.xlu0 %3936
      %v3939 = vsel %vm571, %v3922, 0
      %v3942 = vsel %vm571, %v3923, 0
      %v3945 = vsel %vm571, %v3924, 0
      %v3948 = vsel %vm571, %v3925, 0
      %v3951 = vsel %vm571, %v3931, 0
      %v3954 = vsel %vm571, %v3933, 0
      %v3957 = vsel %vm571, %v3935, 0
      %v3960 = vsel %vm571, %v3937, 0
      %3962 = vmatprep.subr.bf16.mxu0 0
      %3963 = vmatpush1.bf16.xpose.msra.mxu0 %v3951
      %3964 = vmatprep.subr.bf16.mxu0 0
      %3965 = vmatpush1.bf16.xpose.msra.mxu0 %v3954
      %3966 = vmatprep.subr.bf16.mxu0 0
      %3967 = vmatpush1.bf16.xpose.msra.mxu0 %v3957
      %3968 = vmatprep.subr.bf16.mxu0 0
      %3969 = vmatpush1.bf16.xpose.msra.mxu0 %v3960
      %3970 = vmatprep.subr.bf16.mxu0 0
      %3971 = vmatpush1.bf16.xpose.msra.mxu0 0
      %3972 = vmatprep.subr.bf16.mxu0 0
      %3973 = vmatpush1.bf16.xpose.msra.mxu0 0
      %3974 = vmatprep.subr.bf16.mxu0 0
      %3975 = vmatpush1.bf16.xpose.msra.mxu0 0
      %3976 = vmatprep.subr.bf16.mxu0 0
      %3977 = vmatpush1.bf16.xpose.msra.mxu0 0
      %3978 = vmatprep.subr.bf16.mxu0 0
      %3979 = vmatpush1.bf16.xpose.msra.mxu0 0
      %3980 = vmatprep.subr.bf16.mxu0 0
      %3981 = vmatpush1.bf16.xpose.msra.mxu0 0
      %3982 = vmatprep.subr.bf16.mxu0 0
      %3983 = vmatpush1.bf16.xpose.msra.mxu0 0
      %3984 = vmatprep.subr.bf16.mxu0 0
      %3985 = vmatpush1.bf16.xpose.msra.mxu0 0
      %3986 = vmatprep.subr.bf16.mxu0 0
      %3987 = vmatpush1.bf16.xpose.msra.mxu0 0
      %3988 = vmatprep.subr.bf16.mxu0 0
      %3989 = vmatpush1.bf16.xpose.msra.mxu0 0
      %3990 = vmatprep.subr.bf16.mxu0 0
      %3991 = vmatpush1.bf16.xpose.msra.mxu0 0
      %3992 = vmatprep.subr.bf16.mxu0 0
      %3993 = vmatpush1.bf16.xpose.msra.mxu0 0
      %3994 = vmatprep.mubr.bf16.mxu0 0
      %3995 = vmatmul.mubr.bf16.gmra.mrb[0].mxu0 %v3939
      %v3996 = vpop.f32.mrb[0].mxu0
      %v3997 = vadd.f32 0.0, %v3996
      %v3998 = vpop.f32.mrb[0].mxu0
      %v3999 = vpop.f32.mrb[0].mxu0
      %v4000 = vadd.f32 0.0, %v3999
      %v4001 = vpop.f32.mrb[0].mxu0
      %4002 = vmatprep.mubr.bf16.mxu0 0
      %4003 = vmatmul.mubr.bf16.gmra.mrb[0].mxu0 %v3942
      %v4004 = vpop.f32.mrb[0].mxu0
      %v4005 = vadd.f32 0.0, %v4004
      %v4006 = vpop.f32.mrb[0].mxu0
      %v4007 = vpop.f32.mrb[0].mxu0
      %v4008 = vadd.f32 0.0, %v4007
      %v4009 = vpop.f32.mrb[0].mxu0
      %4010 = vmatprep.mubr.bf16.mxu0 0
      %4011 = vmatmul.mubr.bf16.gmra.mrb[0].mxu0 %v3945
      %v4012 = vpop.f32.mrb[0].mxu0
      %v4013 = vadd.f32 0.0, %v4012
      %v4014 = vpop.f32.mrb[0].mxu0
      %v4015 = vpop.f32.mrb[0].mxu0
      %v4016 = vadd.f32 0.0, %v4015
      %v4017 = vpop.f32.mrb[0].mxu0
      %4018 = vmatprep.mubr.bf16.mxu0 0
      %4019 = vmatmul.mubr.bf16.gmra.mrb[0].mxu0 %v3948
      %v4020 = vpop.f32.mrb[0].mxu0
      %v4021 = vadd.f32 0.0, %v4020
      %v4022 = vpop.f32.mrb[0].mxu0
      %v4023 = vpop.f32.mrb[0].mxu0
      %v4024 = vadd.f32 0.0, %v4023
      %v4025 = vpop.f32.mrb[0].mxu0
      %4026 = vdwg.mxu0
      %v4027 = vmul.f32 %v3997, 0.5
      %v4028 = vmul.f32 %v4000, 0.5
      %v4029 = vmul.f32 %v4005, 0.5
      %v4030 = vmul.f32 %v4008, 0.5
      %v4031 = vmul.f32 %v4013, 0.5
      %v4032 = vmul.f32 %v4016, 0.5
      %v4033 = vmul.f32 %v4021, 0.5
      %v4034 = vmul.f32 %v4024, 0.5
      %v4035 = vsel %vm669, %v4027, -inf
      %4036 = vmax.xlane.f32.xlu0 %v4035
      %v4037 = vpop.xlane.xlu0 %4036
      %v4038 = vsel %vm669, %v4028, -inf
      %4039 = vmax.xlane.f32.xlu0 %v4038
      %v4040 = vpop.xlane.xlu0 %4039
      %v4041 = vsel %vm669, %v4029, -inf
      %4042 = vmax.xlane.f32.xlu0 %v4041
      %v4043 = vpop.xlane.xlu0 %4042
      %v4044 = vsel %vm669, %v4030, -inf
      %4045 = vmax.xlane.f32.xlu0 %v4044
      %v4046 = vpop.xlane.xlu0 %4045
      %v4047 = vsel %vm669, %v4031, -inf
      %4048 = vmax.xlane.f32.xlu0 %v4047
      %v4049 = vpop.xlane.xlu0 %4048
      %v4050 = vsel %vm669, %v4032, -inf
      %4051 = vmax.xlane.f32.xlu0 %v4050
      %v4052 = vpop.xlane.xlu0 %4051
      %v4053 = vsel %vm669, %v4033, -inf
      %4054 = vmax.xlane.f32.xlu0 %v4053
      %v4055 = vpop.xlane.xlu0 %4054
      %v4056 = vsel %vm669, %v4034, -inf
      %4057 = vmax.xlane.f32.xlu0 %v4056
      %v4058 = vpop.xlane.xlu0 %4057
      %v4059 = vsub.f32 %v4027, %v4037
      %v4060 = vsub.f32 %v4028, %v4040
      %v4061 = vsub.f32 %v4029, %v4043
      %v4062 = vsub.f32 %v4030, %v4046
      %v4063 = vsub.f32 %v4031, %v4049
      %v4064 = vsub.f32 %v4032, %v4052
      %v4065 = vsub.f32 %v4033, %v4055
      %v4066 = vsub.f32 %v4034, %v4058
      %v4067 = vmul.f32 %v4059, 1.442695
      %v4068 = vpow.pop %v4067
      %v4069 = vmul.f32 %v4060, 1.442695
      %v4070 = vpow.pop %v4069
      %v4071 = vmul.f32 %v4061, 1.442695
      %v4072 = vpow.pop %v4071
      %v4073 = vmul.f32 %v4062, 1.442695
      %v4074 = vpow.pop %v4073
      %v4075 = vmul.f32 %v4063, 1.442695
      %v4076 = vpow.pop %v4075
      %v4077 = vmul.f32 %v4064, 1.442695
      %v4078 = vpow.pop %v4077
      %v4079 = vmul.f32 %v4065, 1.442695
      %v4080 = vpow.pop %v4079
      %v4081 = vmul.f32 %v4066, 1.442695
      %v4082 = vpow.pop %v4081
      %v4083 = vsel %vm669, %v4068, 0.0
      %4084 = vadd.xlane.f32.xlu0 %v4083
      %v4085 = vpop.xlane.xlu0 %4084
      %v4086 = vsel %vm669, %v4070, 0.0
      %4087 = vadd.xlane.f32.xlu0 %v4086
      %v4088 = vpop.xlane.xlu0 %4087
      %v4089 = vsel %vm669, %v4072, 0.0
      %4090 = vadd.xlane.f32.xlu0 %v4089
      %v4091 = vpop.xlane.xlu0 %4090
      %v4092 = vsel %vm669, %v4074, 0.0
      %4093 = vadd.xlane.f32.xlu0 %v4092
      %v4094 = vpop.xlane.xlu0 %4093
      %v4095 = vsel %vm669, %v4076, 0.0
      %4096 = vadd.xlane.f32.xlu0 %v4095
      %v4097 = vpop.xlane.xlu0 %4096
      %v4098 = vsel %vm669, %v4078, 0.0
      %4099 = vadd.xlane.f32.xlu0 %v4098
      %v4100 = vpop.xlane.xlu0 %4099
      %v4101 = vsel %vm669, %v4080, 0.0
      %4102 = vadd.xlane.f32.xlu0 %v4101
      %v4103 = vpop.xlane.xlu0 %4102
      %v4104 = vsel %vm669, %v4082, 0.0
      %4105 = vadd.xlane.f32.xlu0 %v4104
      %v4106 = vpop.xlane.xlu0 %4105
      %v4107 = vrcp.pop %v4085
      %v4108 = vrcp.pop %v4088
      %v4109 = vrcp.pop %v4091
      %v4110 = vrcp.pop %v4094
      %v4111 = vrcp.pop %v4097
      %v4112 = vrcp.pop %v4100
      %v4113 = vrcp.pop %v4103
      %v4114 = vrcp.pop %v4106
      %v4115 = vmul.f32 %v4068, %v4107
      %v4116 = vmul.f32 %v4070, %v4108
      %v4117 = vmul.f32 %v4072, %v4109
      %v4118 = vmul.f32 %v4074, %v4110
      %v4119 = vmul.f32 %v4076, %v4111
      %v4120 = vmul.f32 %v4078, %v4112
      %v4121 = vmul.f32 %v4080, %v4113
      %v4122 = vmul.f32 %v4082, %v4114
      %v4123 = vpack.c.bf16 %v4116, %v4115
      %v4124 = vpack.c.bf16 %v4118, %v4117
      %v4125 = vpack.c.bf16 %v4120, %v4119
      %v4126 = vpack.c.bf16 %v4122, %v4121
      %4127 = vrot.lane.b32.xlu0 %v3922, 64
      %v4128 = vpop.permute.xlu0 %4127
      %4129 = vrot.lane.b32.xlu0 %v3923, 64
      %v4130 = vpop.permute.xlu0 %4129
      %4131 = vrot.lane.b32.xlu0 %v3924, 64
      %v4132 = vpop.permute.xlu0 %4131
      %4133 = vrot.lane.b32.xlu0 %v3925, 64
      %v4134 = vpop.permute.xlu0 %4133
      %v4140 = vsel %vm669, %v4123, 0
      %v4143 = vsel %vm669, %v4124, 0
      %v4146 = vsel %vm669, %v4125, 0
      %v4149 = vsel %vm669, %v4126, 0
      %4151 = vmatprep.subr.bf16.mxu0 0
      %4152 = vmatpush1.bf16.msra.mxu0 %v4128
      %4153 = vmatprep.subr.bf16.mxu0 0
      %4154 = vmatpush1.bf16.msra.mxu0 %v4130
      %4155 = vmatprep.subr.bf16.mxu0 0
      %4156 = vmatpush1.bf16.msra.mxu0 %v4132
      %4157 = vmatprep.subr.bf16.mxu0 0
      %4158 = vmatpush1.bf16.msra.mxu0 %v4134
      %4159 = vmatprep.subr.bf16.mxu0 0
      %4160 = vmatpush1.bf16.msra.mxu0 0
      %4161 = vmatprep.subr.bf16.mxu0 0
      %4162 = vmatpush1.bf16.msra.mxu0 0
      %4163 = vmatprep.subr.bf16.mxu0 0
      %4164 = vmatpush1.bf16.msra.mxu0 0
      %4165 = vmatprep.subr.bf16.mxu0 0
      %4166 = vmatpush1.bf16.msra.mxu0 0
      %4167 = vmatprep.subr.bf16.mxu0 0
      %4168 = vmatpush1.bf16.msra.mxu0 0
      %4169 = vmatprep.subr.bf16.mxu0 0
      %4170 = vmatpush1.bf16.msra.mxu0 0
      %4171 = vmatprep.subr.bf16.mxu0 0
      %4172 = vmatpush1.bf16.msra.mxu0 0
      %4173 = vmatprep.subr.bf16.mxu0 0
      %4174 = vmatpush1.bf16.msra.mxu0 0
      %4175 = vmatprep.subr.bf16.mxu0 0
      %4176 = vmatpush1.bf16.msra.mxu0 0
      %4177 = vmatprep.subr.bf16.mxu0 0
      %4178 = vmatpush1.bf16.msra.mxu0 0
      %4179 = vmatprep.subr.bf16.mxu0 0
      %4180 = vmatpush1.bf16.msra.mxu0 0
      %4181 = vmatprep.subr.bf16.mxu0 0
      %4182 = vmatpush1.bf16.msra.mxu0 0
      %4183 = vmatprep.mubr.bf16.mxu0 0
      %4184 = vmatmul.mubr.bf16.gmra.mrb[0].mxu0 %v4140
      %v4185 = vpop.f32.mrb[0].mxu0
      %v4186 = vadd.f32 0.0, %v4185
      %v4187 = vpop.f32.mrb[0].mxu0
      %v4188 = vpop.f32.mrb[0].mxu0
      %v4189 = vadd.f32 0.0, %v4188
      %v4190 = vpop.f32.mrb[0].mxu0
      %4191 = vmatprep.mubr.bf16.mxu0 0
      %4192 = vmatmul.mubr.bf16.gmra.mrb[0].mxu0 %v4143
      %v4193 = vpop.f32.mrb[0].mxu0
      %v4194 = vadd.f32 0.0, %v4193
      %v4195 = vpop.f32.mrb[0].mxu0
      %v4196 = vpop.f32.mrb[0].mxu0
      %v4197 = vadd.f32 0.0, %v4196
      %v4198 = vpop.f32.mrb[0].mxu0
      %4199 = vmatprep.mubr.bf16.mxu0 0
      %4200 = vmatmul.mubr.bf16.gmra.mrb[0].mxu0 %v4146
      %v4201 = vpop.f32.mrb[0].mxu0
      %v4202 = vadd.f32 0.0, %v4201
      %v4203 = vpop.f32.mrb[0].mxu0
      %v4204 = vpop.f32.mrb[0].mxu0
      %v4205 = vadd.f32 0.0, %v4204
      %v4206 = vpop.f32.mrb[0].mxu0
      %4207 = vmatprep.mubr.bf16.mxu0 0
      %4208 = vmatmul.mubr.bf16.gmra.mrb[0].mxu0 %v4149
      %v4209 = vpop.f32.mrb[0].mxu0
      %v4210 = vadd.f32 0.0, %v4209
      %v4211 = vpop.f32.mrb[0].mxu0
      %v4212 = vpop.f32.mrb[0].mxu0
      %v4213 = vadd.f32 0.0, %v4212
      %v4214 = vpop.f32.mrb[0].mxu0
      %4215 = vdwg.mxu0
      %4216 = vrot.lane.b32.xlu0 %v3922, 124
      %v4217 = vpop.permute.xlu0 %4216
      %4218 = vrot.lane.b32.xlu0 %v3923, 124
      %v4219 = vpop.permute.xlu0 %4218
      %4220 = vrot.lane.b32.xlu0 %v3924, 124
      %v4221 = vpop.permute.xlu0 %4220
      %4222 = vrot.lane.b32.xlu0 %v3925, 124
      %v4223 = vpop.permute.xlu0 %4222
      %4224 = vrot.lane.b32.xlu0 %v3922, 92
      %v4225 = vpop.permute.xlu0 %4224
      %4226 = vrot.lane.b32.xlu0 %v3923, 92
      %v4227 = vpop.permute.xlu0 %4226
      %4228 = vrot.lane.b32.xlu0 %v3924, 92
      %v4229 = vpop.permute.xlu0 %4228
      %4230 = vrot.lane.b32.xlu0 %v3925, 92
      %v4231 = vpop.permute.xlu0 %4230
      %v4233 = vsel %vm571, %v4217, 0
      %v4236 = vsel %vm571, %v4219, 0
      %v4239 = vsel %vm571, %v4221, 0
      %v4242 = vsel %vm571, %v4223, 0
      %v4245 = vsel %vm571, %v4225, 0
      %v4248 = vsel %vm571, %v4227, 0
      %v4251 = vsel %vm571, %v4229, 0
      %v4254 = vsel %vm571, %v4231, 0
      %4256 = vmatprep.subr.bf16.mxu0 0
      %4257 = vmatpush1.bf16.xpose.msra.mxu0 %v4245
      %4258 = vmatprep.subr.bf16.mxu0 0
      %4259 = vmatpush1.bf16.xpose.msra.mxu0 %v4248
      %4260 = vmatprep.subr.bf16.mxu0 0
      %4261 = vmatpush1.bf16.xpose.msra.mxu0 %v4251
      %4262 = vmatprep.subr.bf16.mxu0 0
      %4263 = vmatpush1.bf16.xpose.msra.mxu0 %v4254
      %4264 = vmatprep.subr.bf16.mxu0 0
      %4265 = vmatpush1.bf16.xpose.msra.mxu0 0
      %4266 = vmatprep.subr.bf16.mxu0 0
      %4267 = vmatpush1.bf16.xpose.msra.mxu0 0
      %4268 = vmatprep.subr.bf16.mxu0 0
      %4269 = vmatpush1.bf16.xpose.msra.mxu0 0
      %4270 = vmatprep.subr.bf16.mxu0 0
      %4271 = vmatpush1.bf16.xpose.msra.mxu0 0
      %4272 = vmatprep.subr.bf16.mxu0 0
      %4273 = vmatpush1.bf16.xpose.msra.mxu0 0
      %4274 = vmatprep.subr.bf16.mxu0 0
      %4275 = vmatpush1.bf16.xpose.msra.mxu0 0
      %4276 = vmatprep.subr.bf16.mxu0 0
      %4277 = vmatpush1.bf16.xpose.msra.mxu0 0
      %4278 = vmatprep.subr.bf16.mxu0 0
      %4279 = vmatpush1.bf16.xpose.msra.mxu0 0
      %4280 = vmatprep.subr.bf16.mxu0 0
      %4281 = vmatpush1.bf16.xpose.msra.mxu0 0
      %4282 = vmatprep.subr.bf16.mxu0 0
      %4283 = vmatpush1.bf16.xpose.msra.mxu0 0
      %4284 = vmatprep.subr.bf16.mxu0 0
      %4285 = vmatpush1.bf16.xpose.msra.mxu0 0
      %4286 = vmatprep.subr.bf16.mxu0 0
      %4287 = vmatpush1.bf16.xpose.msra.mxu0 0
      %4288 = vmatprep.mubr.bf16.mxu0 0
      %4289 = vmatmul.mubr.bf16.gmra.mrb[0].mxu0 %v4233
      %v4290 = vpop.f32.mrb[0].mxu0
      %v4291 = vadd.f32 0.0, %v4290
      %v4292 = vpop.f32.mrb[0].mxu0
      %v4293 = vpop.f32.mrb[0].mxu0
      %v4294 = vadd.f32 0.0, %v4293
      %v4295 = vpop.f32.mrb[0].mxu0
      %4296 = vmatprep.mubr.bf16.mxu0 0
      %4297 = vmatmul.mubr.bf16.gmra.mrb[0].mxu0 %v4236
      %v4298 = vpop.f32.mrb[0].mxu0
      %v4299 = vadd.f32 0.0, %v4298
      %v4300 = vpop.f32.mrb[0].mxu0
      %v4301 = vpop.f32.mrb[0].mxu0
      %v4302 = vadd.f32 0.0, %v4301
      %v4303 = vpop.f32.mrb[0].mxu0
      %4304 = vmatprep.mubr.bf16.mxu0 0
      %4305 = vmatmul.mubr.bf16.gmra.mrb[0].mxu0 %v4239
      %v4306 = vpop.f32.mrb[0].mxu0
      %v4307 = vadd.f32 0.0, %v4306
      %v4308 = vpop.f32.mrb[0].mxu0
      %v4309 = vpop.f32.mrb[0].mxu0
      %v4310 = vadd.f32 0.0, %v4309
      %v4311 = vpop.f32.mrb[0].mxu0
      %4312 = vmatprep.mubr.bf16.mxu0 0
      %4313 = vmatmul.mubr.bf16.gmra.mrb[0].mxu0 %v4242
      %v4314 = vpop.f32.mrb[0].mxu0
      %v4315 = vadd.f32 0.0, %v4314
      %v4316 = vpop.f32.mrb[0].mxu0
      %v4317 = vpop.f32.mrb[0].mxu0
      %v4318 = vadd.f32 0.0, %v4317
      %v4319 = vpop.f32.mrb[0].mxu0
      %4320 = vdwg.mxu0
      %v4321 = vmul.f32 %v4291, 0.5
      %v4322 = vmul.f32 %v4294, 0.5
      %v4323 = vmul.f32 %v4299, 0.5
      %v4324 = vmul.f32 %v4302, 0.5
      %v4325 = vmul.f32 %v4307, 0.5
      %v4326 = vmul.f32 %v4310, 0.5
      %v4327 = vmul.f32 %v4315, 0.5
      %v4328 = vmul.f32 %v4318, 0.5
      %v4329 = vsel %vm669, %v4321, -inf
      %4330 = vmax.xlane.f32.xlu0 %v4329
      %v4331 = vpop.xlane.xlu0 %4330
      %v4332 = vsel %vm669, %v4322, -inf
      %4333 = vmax.xlane.f32.xlu0 %v4332
      %v4334 = vpop.xlane.xlu0 %4333
      %v4335 = vsel %vm669, %v4323, -inf
      %4336 = vmax.xlane.f32.xlu0 %v4335
      %v4337 = vpop.xlane.xlu0 %4336
      %v4338 = vsel %vm669, %v4324, -inf
      %4339 = vmax.xlane.f32.xlu0 %v4338
      %v4340 = vpop.xlane.xlu0 %4339
      %v4341 = vsel %vm669, %v4325, -inf
      %4342 = vmax.xlane.f32.xlu0 %v4341
      %v4343 = vpop.xlane.xlu0 %4342
      %v4344 = vsel %vm669, %v4326, -inf
      %4345 = vmax.xlane.f32.xlu0 %v4344
      %v4346 = vpop.xlane.xlu0 %4345
      %v4347 = vsel %vm669, %v4327, -inf
      %4348 = vmax.xlane.f32.xlu0 %v4347
      %v4349 = vpop.xlane.xlu0 %4348
      %v4350 = vsel %vm669, %v4328, -inf
      %4351 = vmax.xlane.f32.xlu0 %v4350
      %v4352 = vpop.xlane.xlu0 %4351
      %v4353 = vsub.f32 %v4321, %v4331
      %v4354 = vsub.f32 %v4322, %v4334
      %v4355 = vsub.f32 %v4323, %v4337
      %v4356 = vsub.f32 %v4324, %v4340
      %v4357 = vsub.f32 %v4325, %v4343
      %v4358 = vsub.f32 %v4326, %v4346
      %v4359 = vsub.f32 %v4327, %v4349
      %v4360 = vsub.f32 %v4328, %v4352
      %v4361 = vmul.f32 %v4353, 1.442695
      %v4362 = vpow.pop %v4361
      %v4363 = vmul.f32 %v4354, 1.442695
      %v4364 = vpow.pop %v4363
      %v4365 = vmul.f32 %v4355, 1.442695
      %v4366 = vpow.pop %v4365
      %v4367 = vmul.f32 %v4356, 1.442695
      %v4368 = vpow.pop %v4367
      %v4369 = vmul.f32 %v4357, 1.442695
      %v4370 = vpow.pop %v4369
      %v4371 = vmul.f32 %v4358, 1.442695
      %v4372 = vpow.pop %v4371
      %v4373 = vmul.f32 %v4359, 1.442695
      %v4374 = vpow.pop %v4373
      %v4375 = vmul.f32 %v4360, 1.442695
      %v4376 = vpow.pop %v4375
      %v4377 = vsel %vm669, %v4362, 0.0
      %4378 = vadd.xlane.f32.xlu0 %v4377
      %v4379 = vpop.xlane.xlu0 %4378
      %v4380 = vsel %vm669, %v4364, 0.0
      %4381 = vadd.xlane.f32.xlu0 %v4380
      %v4382 = vpop.xlane.xlu0 %4381
      %v4383 = vsel %vm669, %v4366, 0.0
      %4384 = vadd.xlane.f32.xlu0 %v4383
      %v4385 = vpop.xlane.xlu0 %4384
      %v4386 = vsel %vm669, %v4368, 0.0
      %4387 = vadd.xlane.f32.xlu0 %v4386
      %v4388 = vpop.xlane.xlu0 %4387
      %v4389 = vsel %vm669, %v4370, 0.0
      %4390 = vadd.xlane.f32.xlu0 %v4389
      %v4391 = vpop.xlane.xlu0 %4390
      %v4392 = vsel %vm669, %v4372, 0.0
      %4393 = vadd.xlane.f32.xlu0 %v4392
      %v4394 = vpop.xlane.xlu0 %4393
      %v4395 = vsel %vm669, %v4374, 0.0
      %4396 = vadd.xlane.f32.xlu0 %v4395
      %v4397 = vpop.xlane.xlu0 %4396
      %v4398 = vsel %vm669, %v4376, 0.0
      %4399 = vadd.xlane.f32.xlu0 %v4398
      %v4400 = vpop.xlane.xlu0 %4399
      %v4401 = vrcp.pop %v4379
      %v4402 = vrcp.pop %v4382
      %v4403 = vrcp.pop %v4385
      %v4404 = vrcp.pop %v4388
      %v4405 = vrcp.pop %v4391
      %v4406 = vrcp.pop %v4394
      %v4407 = vrcp.pop %v4397
      %v4408 = vrcp.pop %v4400
      %v4409 = vmul.f32 %v4362, %v4401
      %v4410 = vmul.f32 %v4364, %v4402
      %v4411 = vmul.f32 %v4366, %v4403
      %v4412 = vmul.f32 %v4368, %v4404
      %v4413 = vmul.f32 %v4370, %v4405
      %v4414 = vmul.f32 %v4372, %v4406
      %v4415 = vmul.f32 %v4374, %v4407
      %v4416 = vmul.f32 %v4376, %v4408
      %v4417 = vpack.c.bf16 %v4410, %v4409
      %v4418 = vpack.c.bf16 %v4412, %v4411
      %v4419 = vpack.c.bf16 %v4414, %v4413
      %v4420 = vpack.c.bf16 %v4416, %v4415
      %4421 = vrot.lane.b32.xlu0 %v3922, 60
      %v4422 = vpop.permute.xlu0 %4421
      %4423 = vrot.lane.b32.xlu0 %v3923, 60
      %v4424 = vpop.permute.xlu0 %4423
      %4425 = vrot.lane.b32.xlu0 %v3924, 60
      %v4426 = vpop.permute.xlu0 %4425
      %4427 = vrot.lane.b32.xlu0 %v3925, 60
      %v4428 = vpop.permute.xlu0 %4427
      %v4434 = vsel %vm669, %v4417, 0
      %v4437 = vsel %vm669, %v4418, 0
      %v4440 = vsel %vm669, %v4419, 0
      %v4443 = vsel %vm669, %v4420, 0
      %4445 = vmatprep.subr.bf16.mxu0 0
      %4446 = vmatpush1.bf16.msra.mxu0 %v4422
      %4447 = vmatprep.subr.bf16.mxu0 0
      %4448 = vmatpush1.bf16.msra.mxu0 %v4424
      %4449 = vmatprep.subr.bf16.mxu0 0
      %4450 = vmatpush1.bf16.msra.mxu0 %v4426
      %4451 = vmatprep.subr.bf16.mxu0 0
      %4452 = vmatpush1.bf16.msra.mxu0 %v4428
      %4453 = vmatprep.subr.bf16.mxu0 0
      %4454 = vmatpush1.bf16.msra.mxu0 0
      %4455 = vmatprep.subr.bf16.mxu0 0
      %4456 = vmatpush1.bf16.msra.mxu0 0
      %4457 = vmatprep.subr.bf16.mxu0 0
      %4458 = vmatpush1.bf16.msra.mxu0 0
      %4459 = vmatprep.subr.bf16.mxu0 0
      %4460 = vmatpush1.bf16.msra.mxu0 0
      %4461 = vmatprep.subr.bf16.mxu0 0
      %4462 = vmatpush1.bf16.msra.mxu0 0
      %4463 = vmatprep.subr.bf16.mxu0 0
      %4464 = vmatpush1.bf16.msra.mxu0 0
      %4465 = vmatprep.subr.bf16.mxu0 0
      %4466 = vmatpush1.bf16.msra.mxu0 0
      %4467 = vmatprep.subr.bf16.mxu0 0
      %4468 = vmatpush1.bf16.msra.mxu0 0
      %4469 = vmatprep.subr.bf16.mxu0 0
      %4470 = vmatpush1.bf16.msra.mxu0 0
      %4471 = vmatprep.subr.bf16.mxu0 0
      %4472 = vmatpush1.bf16.msra.mxu0 0
      %4473 = vmatprep.subr.bf16.mxu0 0
      %4474 = vmatpush1.bf16.msra.mxu0 0
      %4475 = vmatprep.subr.bf16.mxu0 0
      %4476 = vmatpush1.bf16.msra.mxu0 0
      %4477 = vmatprep.mubr.bf16.mxu0 0
      %4478 = vmatmul.mubr.bf16.gmra.mrb[0].mxu0 %v4434
      %v4479 = vpop.f32.mrb[0].mxu0
      %v4480 = vadd.f32 0.0, %v4479
      %v4481 = vpop.f32.mrb[0].mxu0
      %v4482 = vpop.f32.mrb[0].mxu0
      %v4483 = vadd.f32 0.0, %v4482
      %v4484 = vpop.f32.mrb[0].mxu0
      %4485 = vmatprep.mubr.bf16.mxu0 0
      %4486 = vmatmul.mubr.bf16.gmra.mrb[0].mxu0 %v4437
      %v4487 = vpop.f32.mrb[0].mxu0
      %v4488 = vadd.f32 0.0, %v4487
      %v4489 = vpop.f32.mrb[0].mxu0
      %v4490 = vpop.f32.mrb[0].mxu0
      %v4491 = vadd.f32 0.0, %v4490
      %v4492 = vpop.f32.mrb[0].mxu0
      %4493 = vmatprep.mubr.bf16.mxu0 0
      %4494 = vmatmul.mubr.bf16.gmra.mrb[0].mxu0 %v4440
      %v4495 = vpop.f32.mrb[0].mxu0
      %v4496 = vadd.f32 0.0, %v4495
      %v4497 = vpop.f32.mrb[0].mxu0
      %v4498 = vpop.f32.mrb[0].mxu0
      %v4499 = vadd.f32 0.0, %v4498
      %v4500 = vpop.f32.mrb[0].mxu0
      %4501 = vmatprep.mubr.bf16.mxu0 0
      %4502 = vmatmul.mubr.bf16.gmra.mrb[0].mxu0 %v4443
      %v4503 = vpop.f32.mrb[0].mxu0
      %v4504 = vadd.f32 0.0, %v4503
      %v4505 = vpop.f32.mrb[0].mxu0
      %v4506 = vpop.f32.mrb[0].mxu0
      %v4507 = vadd.f32 0.0, %v4506
      %v4508 = vpop.f32.mrb[0].mxu0
      %4509 = vdwg.mxu0
      %4510 = vrot.lane.b32.xlu0 %v3922, 120
      %v4511 = vpop.permute.xlu0 %4510
      %4512 = vrot.lane.b32.xlu0 %v3923, 120
      %v4513 = vpop.permute.xlu0 %4512
      %4514 = vrot.lane.b32.xlu0 %v3924, 120
      %v4515 = vpop.permute.xlu0 %4514
      %4516 = vrot.lane.b32.xlu0 %v3925, 120
      %v4517 = vpop.permute.xlu0 %4516
      %4518 = vrot.lane.b32.xlu0 %v3922, 88
      %v4519 = vpop.permute.xlu0 %4518
      %4520 = vrot.lane.b32.xlu0 %v3923, 88
      %v4521 = vpop.permute.xlu0 %4520
      %4522 = vrot.lane.b32.xlu0 %v3924, 88
      %v4523 = vpop.permute.xlu0 %4522
      %4524 = vrot.lane.b32.xlu0 %v3925, 88
      %v4525 = vpop.permute.xlu0 %4524
      %v4527 = vsel %vm571, %v4511, 0
      %v4530 = vsel %vm571, %v4513, 0
      %v4533 = vsel %vm571, %v4515, 0
      %v4536 = vsel %vm571, %v4517, 0
      %v4539 = vsel %vm571, %v4519, 0
      %v4542 = vsel %vm571, %v4521, 0
      %v4545 = vsel %vm571, %v4523, 0
      %v4548 = vsel %vm571, %v4525, 0
      %4550 = vmatprep.subr.bf16.mxu0 0
      %4551 = vmatpush1.bf16.xpose.msra.mxu0 %v4539
      %4552 = vmatprep.subr.bf16.mxu0 0
      %4553 = vmatpush1.bf16.xpose.msra.mxu0 %v4542
      %4554 = vmatprep.subr.bf16.mxu0 0
      %4555 = vmatpush1.bf16.xpose.msra.mxu0 %v4545
      %4556 = vmatprep.subr.bf16.mxu0 0
      %4557 = vmatpush1.bf16.xpose.msra.mxu0 %v4548
      %4558 = vmatprep.subr.bf16.mxu0 0
      %4559 = vmatpush1.bf16.xpose.msra.mxu0 0
      %4560 = vmatprep.subr.bf16.mxu0 0
      %4561 = vmatpush1.bf16.xpose.msra.mxu0 0
      %4562 = vmatprep.subr.bf16.mxu0 0
      %4563 = vmatpush1.bf16.xpose.msra.mxu0 0
      %4564 = vmatprep.subr.bf16.mxu0 0
      %4565 = vmatpush1.bf16.xpose.msra.mxu0 0
      %4566 = vmatprep.subr.bf16.mxu0 0
      %4567 = vmatpush1.bf16.xpose.msra.mxu0 0
      %4568 = vmatprep.subr.bf16.mxu0 0
      %4569 = vmatpush1.bf16.xpose.msra.mxu0 0
      %4570 = vmatprep.subr.bf16.mxu0 0
      %4571 = vmatpush1.bf16.xpose.msra.mxu0 0
      %4572 = vmatprep.subr.bf16.mxu0 0
      %4573 = vmatpush1.bf16.xpose.msra.mxu0 0
      %4574 = vmatprep.subr.bf16.mxu0 0
      %4575 = vmatpush1.bf16.xpose.msra.mxu0 0
      %4576 = vmatprep.subr.bf16.mxu0 0
      %4577 = vmatpush1.bf16.xpose.msra.mxu0 0
      %4578 = vmatprep.subr.bf16.mxu0 0
      %4579 = vmatpush1.bf16.xpose.msra.mxu0 0
      %4580 = vmatprep.subr.bf16.mxu0 0
      %4581 = vmatpush1.bf16.xpose.msra.mxu0 0
      %4582 = vmatprep.mubr.bf16.mxu0 0
      %4583 = vmatmul.mubr.bf16.gmra.mrb[0].mxu0 %v4527
      %v4584 = vpop.f32.mrb[0].mxu0
      %v4585 = vadd.f32 0.0, %v4584
      %v4586 = vpop.f32.mrb[0].mxu0
      %v4587 = vpop.f32.mrb[0].mxu0
      %v4588 = vadd.f32 0.0, %v4587
      %v4589 = vpop.f32.mrb[0].mxu0
      %4590 = vmatprep.mubr.bf16.mxu0 0
      %4591 = vmatmul.mubr.bf16.gmra.mrb[0].mxu0 %v4530
      %v4592 = vpop.f32.mrb[0].mxu0
      %v4593 = vadd.f32 0.0, %v4592
      %v4594 = vpop.f32.mrb[0].mxu0
      %v4595 = vpop.f32.mrb[0].mxu0
      %v4596 = vadd.f32 0.0, %v4595
      %v4597 = vpop.f32.mrb[0].mxu0
      %4598 = vmatprep.mubr.bf16.mxu0 0
      %4599 = vmatmul.mubr.bf16.gmra.mrb[0].mxu0 %v4533
      %v4600 = vpop.f32.mrb[0].mxu0
      %v4601 = vadd.f32 0.0, %v4600
      %v4602 = vpop.f32.mrb[0].mxu0
      %v4603 = vpop.f32.mrb[0].mxu0
      %v4604 = vadd.f32 0.0, %v4603
      %v4605 = vpop.f32.mrb[0].mxu0
      %4606 = vmatprep.mubr.bf16.mxu0 0
      %4607 = vmatmul.mubr.bf16.gmra.mrb[0].mxu0 %v4536
      %v4608 = vpop.f32.mrb[0].mxu0
      %v4609 = vadd.f32 0.0, %v4608
      %v4610 = vpop.f32.mrb[0].mxu0
      %v4611 = vpop.f32.mrb[0].mxu0
      %v4612 = vadd.f32 0.0, %v4611
      %v4613 = vpop.f32.mrb[0].mxu0
      %4614 = vdwg.mxu0
      %v4615 = vmul.f32 %v4585, 0.5
      %v4616 = vmul.f32 %v4588, 0.5
      %v4617 = vmul.f32 %v4593, 0.5
      %v4618 = vmul.f32 %v4596, 0.5
      %v4619 = vmul.f32 %v4601, 0.5
      %v4620 = vmul.f32 %v4604, 0.5
      %v4621 = vmul.f32 %v4609, 0.5
      %v4622 = vmul.f32 %v4612, 0.5
      %v4623 = vsel %vm669, %v4615, -inf
      %4624 = vmax.xlane.f32.xlu0 %v4623
      %v4625 = vpop.xlane.xlu0 %4624
      %v4626 = vsel %vm669, %v4616, -inf
      %4627 = vmax.xlane.f32.xlu0 %v4626
      %v4628 = vpop.xlane.xlu0 %4627
      %v4629 = vsel %vm669, %v4617, -inf
      %4630 = vmax.xlane.f32.xlu0 %v4629
      %v4631 = vpop.xlane.xlu0 %4630
      %v4632 = vsel %vm669, %v4618, -inf
      %4633 = vmax.xlane.f32.xlu0 %v4632
      %v4634 = vpop.xlane.xlu0 %4633
      %v4635 = vsel %vm669, %v4619, -inf
      %4636 = vmax.xlane.f32.xlu0 %v4635
      %v4637 = vpop.xlane.xlu0 %4636
      %v4638 = vsel %vm669, %v4620, -inf
      %4639 = vmax.xlane.f32.xlu0 %v4638
      %v4640 = vpop.xlane.xlu0 %4639
      %v4641 = vsel %vm669, %v4621, -inf
      %4642 = vmax.xlane.f32.xlu0 %v4641
      %v4643 = vpop.xlane.xlu0 %4642
      %v4644 = vsel %vm669, %v4622, -inf
      %4645 = vmax.xlane.f32.xlu0 %v4644
      %v4646 = vpop.xlane.xlu0 %4645
      %v4647 = vsub.f32 %v4615, %v4625
      %v4648 = vsub.f32 %v4616, %v4628
      %v4649 = vsub.f32 %v4617, %v4631
      %v4650 = vsub.f32 %v4618, %v4634
      %v4651 = vsub.f32 %v4619, %v4637
      %v4652 = vsub.f32 %v4620, %v4640
      %v4653 = vsub.f32 %v4621, %v4643
      %v4654 = vsub.f32 %v4622, %v4646
      %v4655 = vmul.f32 %v4647, 1.442695
      %v4656 = vpow.pop %v4655
      %v4657 = vmul.f32 %v4648, 1.442695
      %v4658 = vpow.pop %v4657
      %v4659 = vmul.f32 %v4649, 1.442695
      %v4660 = vpow.pop %v4659
      %v4661 = vmul.f32 %v4650, 1.442695
      %v4662 = vpow.pop %v4661
      %v4663 = vmul.f32 %v4651, 1.442695
      %v4664 = vpow.pop %v4663
      %v4665 = vmul.f32 %v4652, 1.442695
      %v4666 = vpow.pop %v4665
      %v4667 = vmul.f32 %v4653, 1.442695
      %v4668 = vpow.pop %v4667
      %v4669 = vmul.f32 %v4654, 1.442695
      %v4670 = vpow.pop %v4669
      %v4671 = vsel %vm669, %v4656, 0.0
      %4672 = vadd.xlane.f32.xlu0 %v4671
      %v4673 = vpop.xlane.xlu0 %4672
      %v4674 = vsel %vm669, %v4658, 0.0
      %4675 = vadd.xlane.f32.xlu0 %v4674
      %v4676 = vpop.xlane.xlu0 %4675
      %v4677 = vsel %vm669, %v4660, 0.0
      %4678 = vadd.xlane.f32.xlu0 %v4677
      %v4679 = vpop.xlane.xlu0 %4678
      %v4680 = vsel %vm669, %v4662, 0.0
      %4681 = vadd.xlane.f32.xlu0 %v4680
      %v4682 = vpop.xlane.xlu0 %4681
      %v4683 = vsel %vm669, %v4664, 0.0
      %4684 = vadd.xlane.f32.xlu0 %v4683
      %v4685 = vpop.xlane.xlu0 %4684
      %v4686 = vsel %vm669, %v4666, 0.0
      %4687 = vadd.xlane.f32.xlu0 %v4686
      %v4688 = vpop.xlane.xlu0 %4687
      %v4689 = vsel %vm669, %v4668, 0.0
      %4690 = vadd.xlane.f32.xlu0 %v4689
      %v4691 = vpop.xlane.xlu0 %4690
      %v4692 = vsel %vm669, %v4670, 0.0
      %4693 = vadd.xlane.f32.xlu0 %v4692
      %v4694 = vpop.xlane.xlu0 %4693
      %v4695 = vrcp.pop %v4673
      %v4696 = vrcp.pop %v4676
      %v4697 = vrcp.pop %v4679
      %v4698 = vrcp.pop %v4682
      %v4699 = vrcp.pop %v4685
      %v4700 = vrcp.pop %v4688
      %v4701 = vrcp.pop %v4691
      %v4702 = vrcp.pop %v4694
      %v4703 = vmul.f32 %v4656, %v4695
      %v4704 = vmul.f32 %v4658, %v4696
      %v4705 = vmul.f32 %v4660, %v4697
      %v4706 = vmul.f32 %v4662, %v4698
      %v4707 = vmul.f32 %v4664, %v4699
      %v4708 = vmul.f32 %v4666, %v4700
      %v4709 = vmul.f32 %v4668, %v4701
      %v4710 = vmul.f32 %v4670, %v4702
      %v4711 = vpack.c.bf16 %v4704, %v4703
      %v4712 = vpack.c.bf16 %v4706, %v4705
      %v4713 = vpack.c.bf16 %v4708, %v4707
      %v4714 = vpack.c.bf16 %v4710, %v4709
      %4715 = vrot.lane.b32.xlu0 %v3922, 56
      %v4716 = vpop.permute.xlu0 %4715
      %4717 = vrot.lane.b32.xlu0 %v3923, 56
      %v4718 = vpop.permute.xlu0 %4717
      %4719 = vrot.lane.b32.xlu0 %v3924, 56
      %v4720 = vpop.permute.xlu0 %4719
      %4721 = vrot.lane.b32.xlu0 %v3925, 56
      %v4722 = vpop.permute.xlu0 %4721
      %v4728 = vsel %vm669, %v4711, 0
      %v4731 = vsel %vm669, %v4712, 0
      %v4734 = vsel %vm669, %v4713, 0
      %v4737 = vsel %vm669, %v4714, 0
      %4739 = vmatprep.subr.bf16.mxu0 0
      %4740 = vmatpush1.bf16.msra.mxu0 %v4716
      %4741 = vmatprep.subr.bf16.mxu0 0
      %4742 = vmatpush1.bf16.msra.mxu0 %v4718
      %4743 = vmatprep.subr.bf16.mxu0 0
      %4744 = vmatpush1.bf16.msra.mxu0 %v4720
      %4745 = vmatprep.subr.bf16.mxu0 0
      %4746 = vmatpush1.bf16.msra.mxu0 %v4722
      %4747 = vmatprep.subr.bf16.mxu0 0
      %4748 = vmatpush1.bf16.msra.mxu0 0
      %4749 = vmatprep.subr.bf16.mxu0 0
      %4750 = vmatpush1.bf16.msra.mxu0 0
      %4751 = vmatprep.subr.bf16.mxu0 0
      %4752 = vmatpush1.bf16.msra.mxu0 0
      %4753 = vmatprep.subr.bf16.mxu0 0
      %4754 = vmatpush1.bf16.msra.mxu0 0
      %4755 = vmatprep.subr.bf16.mxu0 0
      %4756 = vmatpush1.bf16.msra.mxu0 0
      %4757 = vmatprep.subr.bf16.mxu0 0
      %4758 = vmatpush1.bf16.msra.mxu0 0
      %4759 = vmatprep.subr.bf16.mxu0 0
      %4760 = vmatpush1.bf16.msra.mxu0 0
      %4761 = vmatprep.subr.bf16.mxu0 0
      %4762 = vmatpush1.bf16.msra.mxu0 0
      %4763 = vmatprep.subr.bf16.mxu0 0
      %4764 = vmatpush1.bf16.msra.mxu0 0
      %4765 = vmatprep.subr.bf16.mxu0 0
      %4766 = vmatpush1.bf16.msra.mxu0 0
      %4767 = vmatprep.subr.bf16.mxu0 0
      %4768 = vmatpush1.bf16.msra.mxu0 0
      %4769 = vmatprep.subr.bf16.mxu0 0
      %4770 = vmatpush1.bf16.msra.mxu0 0
      %4771 = vmatprep.mubr.bf16.mxu0 0
      %4772 = vmatmul.mubr.bf16.gmra.mrb[0].mxu0 %v4728
      %v4773 = vpop.f32.mrb[0].mxu0
      %v4774 = vadd.f32 0.0, %v4773
      %v4775 = vpop.f32.mrb[0].mxu0
      %v4776 = vpop.f32.mrb[0].mxu0
      %v4777 = vadd.f32 0.0, %v4776
      %v4778 = vpop.f32.mrb[0].mxu0
      %4779 = vmatprep.mubr.bf16.mxu0 0
      %4780 = vmatmul.mubr.bf16.gmra.mrb[0].mxu0 %v4731
      %v4781 = vpop.f32.mrb[0].mxu0
      %v4782 = vadd.f32 0.0, %v4781
      %v4783 = vpop.f32.mrb[0].mxu0
      %v4784 = vpop.f32.mrb[0].mxu0
      %v4785 = vadd.f32 0.0, %v4784
      %v4786 = vpop.f32.mrb[0].mxu0
      %4787 = vmatprep.mubr.bf16.mxu0 0
      %4788 = vmatmul.mubr.bf16.gmra.mrb[0].mxu0 %v4734
      %v4789 = vpop.f32.mrb[0].mxu0
      %v4790 = vadd.f32 0.0, %v4789
      %v4791 = vpop.f32.mrb[0].mxu0
      %v4792 = vpop.f32.mrb[0].mxu0
      %v4793 = vadd.f32 0.0, %v4792
      %v4794 = vpop.f32.mrb[0].mxu0
      %4795 = vmatprep.mubr.bf16.mxu0 0
      %4796 = vmatmul.mubr.bf16.gmra.mrb[0].mxu0 %v4737
      %v4797 = vpop.f32.mrb[0].mxu0
      %v4798 = vadd.f32 0.0, %v4797
      %v4799 = vpop.f32.mrb[0].mxu0
      %v4800 = vpop.f32.mrb[0].mxu0
      %v4801 = vadd.f32 0.0, %v4800
      %v4802 = vpop.f32.mrb[0].mxu0
      %4803 = vdwg.mxu0
      %4804 = vrot.lane.b32.xlu0 %v3922, 116
      %v4805 = vpop.permute.xlu0 %4804
      %4806 = vrot.lane.b32.xlu0 %v3923, 116
      %v4807 = vpop.permute.xlu0 %4806
      %4808 = vrot.lane.b32.xlu0 %v3924, 116
      %v4809 = vpop.permute.xlu0 %4808
      %4810 = vrot.lane.b32.xlu0 %v3925, 116
      %v4811 = vpop.permute.xlu0 %4810
      %4812 = vrot.lane.b32.xlu0 %v3922, 84
      %v4813 = vpop.permute.xlu0 %4812
      %4814 = vrot.lane.b32.xlu0 %v3923, 84
      %v4815 = vpop.permute.xlu0 %4814
      %4816 = vrot.lane.b32.xlu0 %v3924, 84
      %v4817 = vpop.permute.xlu0 %4816
      %4818 = vrot.lane.b32.xlu0 %v3925, 84
      %v4819 = vpop.permute.xlu0 %4818
      %v4821 = vsel %vm571, %v4805, 0
      %v4824 = vsel %vm571, %v4807, 0
      %v4827 = vsel %vm571, %v4809, 0
      %v4830 = vsel %vm571, %v4811, 0
      %v4833 = vsel %vm571, %v4813, 0
      %v4836 = vsel %vm571, %v4815, 0
      %v4839 = vsel %vm571, %v4817, 0
      %v4842 = vsel %vm571, %v4819, 0
      %4844 = vmatprep.subr.bf16.mxu0 0
      %4845 = vmatpush1.bf16.xpose.msra.mxu0 %v4833
      %4846 = vmatprep.subr.bf16.mxu0 0
      %4847 = vmatpush1.bf16.xpose.msra.mxu0 %v4836
      %4848 = vmatprep.subr.bf16.mxu0 0
      %4849 = vmatpush1.bf16.xpose.msra.mxu0 %v4839
      %4850 = vmatprep.subr.bf16.mxu0 0
      %4851 = vmatpush1.bf16.xpose.msra.mxu0 %v4842
      %4852 = vmatprep.subr.bf16.mxu0 0
      %4853 = vmatpush1.bf16.xpose.msra.mxu0 0
      %4854 = vmatprep.subr.bf16.mxu0 0
      %4855 = vmatpush1.bf16.xpose.msra.mxu0 0
      %4856 = vmatprep.subr.bf16.mxu0 0
      %4857 = vmatpush1.bf16.xpose.msra.mxu0 0
      %4858 = vmatprep.subr.bf16.mxu0 0
      %4859 = vmatpush1.bf16.xpose.msra.mxu0 0
      %4860 = vmatprep.subr.bf16.mxu0 0
      %4861 = vmatpush1.bf16.xpose.msra.mxu0 0
      %4862 = vmatprep.subr.bf16.mxu0 0
      %4863 = vmatpush1.bf16.xpose.msra.mxu0 0
      %4864 = vmatprep.subr.bf16.mxu0 0
      %4865 = vmatpush1.bf16.xpose.msra.mxu0 0
      %4866 = vmatprep.subr.bf16.mxu0 0
      %4867 = vmatpush1.bf16.xpose.msra.mxu0 0
      %4868 = vmatprep.subr.bf16.mxu0 0
      %4869 = vmatpush1.bf16.xpose.msra.mxu0 0
      %4870 = vmatprep.subr.bf16.mxu0 0
      %4871 = vmatpush1.bf16.xpose.msra.mxu0 0
      %4872 = vmatprep.subr.bf16.mxu0 0
      %4873 = vmatpush1.bf16.xpose.msra.mxu0 0
      %4874 = vmatprep.subr.bf16.mxu0 0
      %4875 = vmatpush1.bf16.xpose.msra.mxu0 0
      %4876 = vmatprep.mubr.bf16.mxu0 0
      %4877 = vmatmul.mubr.bf16.gmra.mrb[0].mxu0 %v4821
      %v4878 = vpop.f32.mrb[0].mxu0
      %v4879 = vadd.f32 0.0, %v4878
      %v4880 = vpop.f32.mrb[0].mxu0
      %v4881 = vpop.f32.mrb[0].mxu0
      %v4882 = vadd.f32 0.0, %v4881
      %v4883 = vpop.f32.mrb[0].mxu0
      %4884 = vmatprep.mubr.bf16.mxu0 0
      %4885 = vmatmul.mubr.bf16.gmra.mrb[0].mxu0 %v4824
      %v4886 = vpop.f32.mrb[0].mxu0
      %v4887 = vadd.f32 0.0, %v4886
      %v4888 = vpop.f32.mrb[0].mxu0
      %v4889 = vpop.f32.mrb[0].mxu0
      %v4890 = vadd.f32 0.0, %v4889
      %v4891 = vpop.f32.mrb[0].mxu0
      %4892 = vmatprep.mubr.bf16.mxu0 0
      %4893 = vmatmul.mubr.bf16.gmra.mrb[0].mxu0 %v4827
      %v4894 = vpop.f32.mrb[0].mxu0
      %v4895 = vadd.f32 0.0, %v4894
      %v4896 = vpop.f32.mrb[0].mxu0
      %v4897 = vpop.f32.mrb[0].mxu0
      %v4898 = vadd.f32 0.0, %v4897
      %v4899 = vpop.f32.mrb[0].mxu0
      %4900 = vmatprep.mubr.bf16.mxu0 0
      %4901 = vmatmul.mubr.bf16.gmra.mrb[0].mxu0 %v4830
      %v4902 = vpop.f32.mrb[0].mxu0
      %v4903 = vadd.f32 0.0, %v4902
      %v4904 = vpop.f32.mrb[0].mxu0
      %v4905 = vpop.f32.mrb[0].mxu0
      %v4906 = vadd.f32 0.0, %v4905
      %v4907 = vpop.f32.mrb[0].mxu0
      %4908 = vdwg.mxu0
      %v4909 = vmul.f32 %v4879, 0.5
      %v4910 = vmul.f32 %v4882, 0.5
      %v4911 = vmul.f32 %v4887, 0.5
      %v4912 = vmul.f32 %v4890, 0.5
      %v4913 = vmul.f32 %v4895, 0.5
      %v4914 = vmul.f32 %v4898, 0.5
      %v4915 = vmul.f32 %v4903, 0.5
      %v4916 = vmul.f32 %v4906, 0.5
      %v4917 = vsel %vm669, %v4909, -inf
      %4918 = vmax.xlane.f32.xlu0 %v4917
      %v4919 = vpop.xlane.xlu0 %4918
      %v4920 = vsel %vm669, %v4910, -inf
      %4921 = vmax.xlane.f32.xlu0 %v4920
      %v4922 = vpop.xlane.xlu0 %4921
      %v4923 = vsel %vm669, %v4911, -inf
      %4924 = vmax.xlane.f32.xlu0 %v4923
      %v4925 = vpop.xlane.xlu0 %4924
      %v4926 = vsel %vm669, %v4912, -inf
      %4927 = vmax.xlane.f32.xlu0 %v4926
      %v4928 = vpop.xlane.xlu0 %4927
      %v4929 = vsel %vm669, %v4913, -inf
      %4930 = vmax.xlane.f32.xlu0 %v4929
      %v4931 = vpop.xlane.xlu0 %4930
      %v4932 = vsel %vm669, %v4914, -inf
      %4933 = vmax.xlane.f32.xlu0 %v4932
      %v4934 = vpop.xlane.xlu0 %4933
      %v4935 = vsel %vm669, %v4915, -inf
      %4936 = vmax.xlane.f32.xlu0 %v4935
      %v4937 = vpop.xlane.xlu0 %4936
      %v4938 = vsel %vm669, %v4916, -inf
      %4939 = vmax.xlane.f32.xlu0 %v4938
      %v4940 = vpop.xlane.xlu0 %4939
      %v4941 = vsub.f32 %v4909, %v4919
      %v4942 = vsub.f32 %v4910, %v4922
      %v4943 = vsub.f32 %v4911, %v4925
      %v4944 = vsub.f32 %v4912, %v4928
      %v4945 = vsub.f32 %v4913, %v4931
      %v4946 = vsub.f32 %v4914, %v4934
      %v4947 = vsub.f32 %v4915, %v4937
      %v4948 = vsub.f32 %v4916, %v4940
      %v4949 = vmul.f32 %v4941, 1.442695
      %v4950 = vpow.pop %v4949
      %v4951 = vmul.f32 %v4942, 1.442695
      %v4952 = vpow.pop %v4951
      %v4953 = vmul.f32 %v4943, 1.442695
      %v4954 = vpow.pop %v4953
      %v4955 = vmul.f32 %v4944, 1.442695
      %v4956 = vpow.pop %v4955
      %v4957 = vmul.f32 %v4945, 1.442695
      %v4958 = vpow.pop %v4957
      %v4959 = vmul.f32 %v4946, 1.442695
      %v4960 = vpow.pop %v4959
      %v4961 = vmul.f32 %v4947, 1.442695
      %v4962 = vpow.pop %v4961
      %v4963 = vmul.f32 %v4948, 1.442695
      %v4964 = vpow.pop %v4963
      %v4965 = vsel %vm669, %v4950, 0.0
      %4966 = vadd.xlane.f32.xlu0 %v4965
      %v4967 = vpop.xlane.xlu0 %4966
      %v4968 = vsel %vm669, %v4952, 0.0
      %4969 = vadd.xlane.f32.xlu0 %v4968
      %v4970 = vpop.xlane.xlu0 %4969
      %v4971 = vsel %vm669, %v4954, 0.0
      %4972 = vadd.xlane.f32.xlu0 %v4971
      %v4973 = vpop.xlane.xlu0 %4972
      %v4974 = vsel %vm669, %v4956, 0.0
      %4975 = vadd.xlane.f32.xlu0 %v4974
      %v4976 = vpop.xlane.xlu0 %4975
      %v4977 = vsel %vm669, %v4958, 0.0
      %4978 = vadd.xlane.f32.xlu0 %v4977
      %v4979 = vpop.xlane.xlu0 %4978
      %v4980 = vsel %vm669, %v4960, 0.0
      %4981 = vadd.xlane.f32.xlu0 %v4980
      %v4982 = vpop.xlane.xlu0 %4981
      %v4983 = vsel %vm669, %v4962, 0.0
      %4984 = vadd.xlane.f32.xlu0 %v4983
      %v4985 = vpop.xlane.xlu0 %4984
      %v4986 = vsel %vm669, %v4964, 0.0
      %4987 = vadd.xlane.f32.xlu0 %v4986
      %v4988 = vpop.xlane.xlu0 %4987
      %v4989 = vrcp.pop %v4967
      %v4990 = vrcp.pop %v4970
      %v4991 = vrcp.pop %v4973
      %v4992 = vrcp.pop %v4976
      %v4993 = vrcp.pop %v4979
      %v4994 = vrcp.pop %v4982
      %v4995 = vrcp.pop %v4985
      %v4996 = vrcp.pop %v4988
      %v4997 = vmul.f32 %v4950, %v4989
      %v4998 = vmul.f32 %v4952, %v4990
      %v4999 = vmul.f32 %v4954, %v4991
      %v5000 = vmul.f32 %v4956, %v4992
      %v5001 = vmul.f32 %v4958, %v4993
      %v5002 = vmul.f32 %v4960, %v4994
      %v5003 = vmul.f32 %v4962, %v4995
      %v5004 = vmul.f32 %v4964, %v4996
      %v5005 = vpack.c.bf16 %v4998, %v4997
      %v5006 = vpack.c.bf16 %v5000, %v4999
      %v5007 = vpack.c.bf16 %v5002, %v5001
      %v5008 = vpack.c.bf16 %v5004, %v5003
      %5009 = vrot.lane.b32.xlu0 %v3922, 52
      %v5010 = vpop.permute.xlu0 %5009
      %5011 = vrot.lane.b32.xlu0 %v3923, 52
      %v5012 = vpop.permute.xlu0 %5011
      %5013 = vrot.lane.b32.xlu0 %v3924, 52
      %v5014 = vpop.permute.xlu0 %5013
      %5015 = vrot.lane.b32.xlu0 %v3925, 52
      %v5016 = vpop.permute.xlu0 %5015
      %v5022 = vsel %vm669, %v5005, 0
      %v5025 = vsel %vm669, %v5006, 0
      %v5028 = vsel %vm669, %v5007, 0
      %v5031 = vsel %vm669, %v5008, 0
      %5033 = vmatprep.subr.bf16.mxu0 0
      %5034 = vmatpush1.bf16.msra.mxu0 %v5010
      %5035 = vmatprep.subr.bf16.mxu0 0
      %5036 = vmatpush1.bf16.msra.mxu0 %v5012
      %5037 = vmatprep.subr.bf16.mxu0 0
      %5038 = vmatpush1.bf16.msra.mxu0 %v5014
      %5039 = vmatprep.subr.bf16.mxu0 0
      %5040 = vmatpush1.bf16.msra.mxu0 %v5016
      %5041 = vmatprep.subr.bf16.mxu0 0
      %5042 = vmatpush1.bf16.msra.mxu0 0
      %5043 = vmatprep.subr.bf16.mxu0 0
      %5044 = vmatpush1.bf16.msra.mxu0 0
      %5045 = vmatprep.subr.bf16.mxu0 0
      %5046 = vmatpush1.bf16.msra.mxu0 0
      %5047 = vmatprep.subr.bf16.mxu0 0
      %5048 = vmatpush1.bf16.msra.mxu0 0
      %5049 = vmatprep.subr.bf16.mxu0 0
      %5050 = vmatpush1.bf16.msra.mxu0 0
      %5051 = vmatprep.subr.bf16.mxu0 0
      %5052 = vmatpush1.bf16.msra.mxu0 0
      %5053 = vmatprep.subr.bf16.mxu0 0
      %5054 = vmatpush1.bf16.msra.mxu0 0
      %5055 = vmatprep.subr.bf16.mxu0 0
      %5056 = vmatpush1.bf16.msra.mxu0 0
      %5057 = vmatprep.subr.bf16.mxu0 0
      %5058 = vmatpush1.bf16.msra.mxu0 0
      %5059 = vmatprep.subr.bf16.mxu0 0
      %5060 = vmatpush1.bf16.msra.mxu0 0
      %5061 = vmatprep.subr.bf16.mxu0 0
      %5062 = vmatpush1.bf16.msra.mxu0 0
      %5063 = vmatprep.subr.bf16.mxu0 0
      %5064 = vmatpush1.bf16.msra.mxu0 0
      %5065 = vmatprep.mubr.bf16.mxu0 0
      %5066 = vmatmul.mubr.bf16.gmra.mrb[0].mxu0 %v5022
      %v5067 = vpop.f32.mrb[0].mxu0
      %v5068 = vadd.f32 0.0, %v5067
      %v5069 = vpop.f32.mrb[0].mxu0
      %v5070 = vpop.f32.mrb[0].mxu0
      %v5071 = vadd.f32 0.0, %v5070
      %v5072 = vpop.f32.mrb[0].mxu0
      %5073 = vmatprep.mubr.bf16.mxu0 0
      %5074 = vmatmul.mubr.bf16.gmra.mrb[0].mxu0 %v5025
      %v5075 = vpop.f32.mrb[0].mxu0
      %v5076 = vadd.f32 0.0, %v5075
      %v5077 = vpop.f32.mrb[0].mxu0
      %v5078 = vpop.f32.mrb[0].mxu0
      %v5079 = vadd.f32 0.0, %v5078
      %v5080 = vpop.f32.mrb[0].mxu0
      %5081 = vmatprep.mubr.bf16.mxu0 0
      %5082 = vmatmul.mubr.bf16.gmra.mrb[0].mxu0 %v5028
      %v5083 = vpop.f32.mrb[0].mxu0
      %v5084 = vadd.f32 0.0, %v5083
      %v5085 = vpop.f32.mrb[0].mxu0
      %v5086 = vpop.f32.mrb[0].mxu0
      %v5087 = vadd.f32 0.0, %v5086
      %v5088 = vpop.f32.mrb[0].mxu0
      %5089 = vmatprep.mubr.bf16.mxu0 0
      %5090 = vmatmul.mubr.bf16.gmra.mrb[0].mxu0 %v5031
      %v5091 = vpop.f32.mrb[0].mxu0
      %v5092 = vadd.f32 0.0, %v5091
      %v5093 = vpop.f32.mrb[0].mxu0
      %v5094 = vpop.f32.mrb[0].mxu0
      %v5095 = vadd.f32 0.0, %v5094
      %v5096 = vpop.f32.mrb[0].mxu0
      %5097 = vdwg.mxu0
      %5098 = vrot.lane.b32.xlu0 %v3922, 112
      %v5099 = vpop.permute.xlu0 %5098
      %5100 = vrot.lane.b32.xlu0 %v3923, 112
      %v5101 = vpop.permute.xlu0 %5100
      %5102 = vrot.lane.b32.xlu0 %v3924, 112
      %v5103 = vpop.permute.xlu0 %5102
      %5104 = vrot.lane.b32.xlu0 %v3925, 112
      %v5105 = vpop.permute.xlu0 %5104
      %5106 = vrot.lane.b32.xlu0 %v3922, 80
      %v5107 = vpop.permute.xlu0 %5106
      %5108 = vrot.lane.b32.xlu0 %v3923, 80
      %v5109 = vpop.permute.xlu0 %5108
      %5110 = vrot.lane.b32.xlu0 %v3924, 80
      %v5111 = vpop.permute.xlu0 %5110
      %5112 = vrot.lane.b32.xlu0 %v3925, 80
      %v5113 = vpop.permute.xlu0 %5112
      %v5115 = vsel %vm571, %v5099, 0
      %v5118 = vsel %vm571, %v5101, 0
      %v5121 = vsel %vm571, %v5103, 0
      %v5124 = vsel %vm571, %v5105, 0
      %v5127 = vsel %vm571, %v5107, 0
      %v5130 = vsel %vm571, %v5109, 0
      %v5133 = vsel %vm571, %v5111, 0
      %v5136 = vsel %vm571, %v5113, 0
      %5138 = vmatprep.subr.bf16.mxu0 0
      %5139 = vmatpush1.bf16.xpose.msra.mxu0 %v5127
      %5140 = vmatprep.subr.bf16.mxu0 0
      %5141 = vmatpush1.bf16.xpose.msra.mxu0 %v5130
      %5142 = vmatprep.subr.bf16.mxu0 0
      %5143 = vmatpush1.bf16.xpose.msra.mxu0 %v5133
      %5144 = vmatprep.subr.bf16.mxu0 0
      %5145 = vmatpush1.bf16.xpose.msra.mxu0 %v5136
      %5146 = vmatprep.subr.bf16.mxu0 0
      %5147 = vmatpush1.bf16.xpose.msra.mxu0 0
      %5148 = vmatprep.subr.bf16.mxu0 0
      %5149 = vmatpush1.bf16.xpose.msra.mxu0 0
      %5150 = vmatprep.subr.bf16.mxu0 0
      %5151 = vmatpush1.bf16.xpose.msra.mxu0 0
      %5152 = vmatprep.subr.bf16.mxu0 0
      %5153 = vmatpush1.bf16.xpose.msra.mxu0 0
      %5154 = vmatprep.subr.bf16.mxu0 0
      %5155 = vmatpush1.bf16.xpose.msra.mxu0 0
      %5156 = vmatprep.subr.bf16.mxu0 0
      %5157 = vmatpush1.bf16.xpose.msra.mxu0 0
      %5158 = vmatprep.subr.bf16.mxu0 0
      %5159 = vmatpush1.bf16.xpose.msra.mxu0 0
      %5160 = vmatprep.subr.bf16.mxu0 0
      %5161 = vmatpush1.bf16.xpose.msra.mxu0 0
      %5162 = vmatprep.subr.bf16.mxu0 0
      %5163 = vmatpush1.bf16.xpose.msra.mxu0 0
      %5164 = vmatprep.subr.bf16.mxu0 0
      %5165 = vmatpush1.bf16.xpose.msra.mxu0 0
      %5166 = vmatprep.subr.bf16.mxu0 0
      %5167 = vmatpush1.bf16.xpose.msra.mxu0 0
      %5168 = vmatprep.subr.bf16.mxu0 0
      %5169 = vmatpush1.bf16.xpose.msra.mxu0 0
      %5170 = vmatprep.mubr.bf16.mxu0 0
      %5171 = vmatmul.mubr.bf16.gmra.mrb[0].mxu0 %v5115
      %v5172 = vpop.f32.mrb[0].mxu0
      %v5173 = vadd.f32 0.0, %v5172
      %v5174 = vpop.f32.mrb[0].mxu0
      %v5175 = vpop.f32.mrb[0].mxu0
      %v5176 = vadd.f32 0.0, %v5175
      %v5177 = vpop.f32.mrb[0].mxu0
      %5178 = vmatprep.mubr.bf16.mxu0 0
      %5179 = vmatmul.mubr.bf16.gmra.mrb[0].mxu0 %v5118
      %v5180 = vpop.f32.mrb[0].mxu0
      %v5181 = vadd.f32 0.0, %v5180
      %v5182 = vpop.f32.mrb[0].mxu0
      %v5183 = vpop.f32.mrb[0].mxu0
      %v5184 = vadd.f32 0.0, %v5183
      %v5185 = vpop.f32.mrb[0].mxu0
      %5186 = vmatprep.mubr.bf16.mxu0 0
      %5187 = vmatmul.mubr.bf16.gmra.mrb[0].mxu0 %v5121
      %v5188 = vpop.f32.mrb[0].mxu0
      %v5189 = vadd.f32 0.0, %v5188
      %v5190 = vpop.f32.mrb[0].mxu0
      %v5191 = vpop.f32.mrb[0].mxu0
      %v5192 = vadd.f32 0.0, %v5191
      %v5193 = vpop.f32.mrb[0].mxu0
      %5194 = vmatprep.mubr.bf16.mxu0 0
      %5195 = vmatmul.mubr.bf16.gmra.mrb[0].mxu0 %v5124
      %v5196 = vpop.f32.mrb[0].mxu0
      %v5197 = vadd.f32 0.0, %v5196
      %v5198 = vpop.f32.mrb[0].mxu0
      %v5199 = vpop.f32.mrb[0].mxu0
      %v5200 = vadd.f32 0.0, %v5199
      %v5201 = vpop.f32.mrb[0].mxu0
      %5202 = vdwg.mxu0
      %v5203 = vmul.f32 %v5173, 0.5
      %v5204 = vmul.f32 %v5176, 0.5
      %v5205 = vmul.f32 %v5181, 0.5
      %v5206 = vmul.f32 %v5184, 0.5
      %v5207 = vmul.f32 %v5189, 0.5
      %v5208 = vmul.f32 %v5192, 0.5
      %v5209 = vmul.f32 %v5197, 0.5
      %v5210 = vmul.f32 %v5200, 0.5
      %v5211 = vsel %vm669, %v5203, -inf
      %5212 = vmax.xlane.f32.xlu0 %v5211
      %v5213 = vpop.xlane.xlu0 %5212
      %v5214 = vsel %vm669, %v5204, -inf
      %5215 = vmax.xlane.f32.xlu0 %v5214
      %v5216 = vpop.xlane.xlu0 %5215
      %v5217 = vsel %vm669, %v5205, -inf
      %5218 = vmax.xlane.f32.xlu0 %v5217
      %v5219 = vpop.xlane.xlu0 %5218
      %v5220 = vsel %vm669, %v5206, -inf
      %5221 = vmax.xlane.f32.xlu0 %v5220
      %v5222 = vpop.xlane.xlu0 %5221
      %v5223 = vsel %vm669, %v5207, -inf
      %5224 = vmax.xlane.f32.xlu0 %v5223
      %v5225 = vpop.xlane.xlu0 %5224
      %v5226 = vsel %vm669, %v5208, -inf
      %5227 = vmax.xlane.f32.xlu0 %v5226
      %v5228 = vpop.xlane.xlu0 %5227
      %v5229 = vsel %vm669, %v5209, -inf
      %5230 = vmax.xlane.f32.xlu0 %v5229
      %v5231 = vpop.xlane.xlu0 %5230
      %v5232 = vsel %vm669, %v5210, -inf
      %5233 = vmax.xlane.f32.xlu0 %v5232
      %v5234 = vpop.xlane.xlu0 %5233
      %v5235 = vsub.f32 %v5203, %v5213
      %v5236 = vsub.f32 %v5204, %v5216
      %v5237 = vsub.f32 %v5205, %v5219
      %v5238 = vsub.f32 %v5206, %v5222
      %v5239 = vsub.f32 %v5207, %v5225
      %v5240 = vsub.f32 %v5208, %v5228
      %v5241 = vsub.f32 %v5209, %v5231
      %v5242 = vsub.f32 %v5210, %v5234
      %v5243 = vmul.f32 %v5235, 1.442695
      %v5244 = vpow.pop %v5243
      %v5245 = vmul.f32 %v5236, 1.442695
      %v5246 = vpow.pop %v5245
      %v5247 = vmul.f32 %v5237, 1.442695
      %v5248 = vpow.pop %v5247
      %v5249 = vmul.f32 %v5238, 1.442695
      %v5250 = vpow.pop %v5249
      %v5251 = vmul.f32 %v5239, 1.442695
      %v5252 = vpow.pop %v5251
      %v5253 = vmul.f32 %v5240, 1.442695
      %v5254 = vpow.pop %v5253
      %v5255 = vmul.f32 %v5241, 1.442695
      %v5256 = vpow.pop %v5255
      %v5257 = vmul.f32 %v5242, 1.442695
      %v5258 = vpow.pop %v5257
      %v5259 = vsel %vm669, %v5244, 0.0
      %5260 = vadd.xlane.f32.xlu0 %v5259
      %v5261 = vpop.xlane.xlu0 %5260
      %v5262 = vsel %vm669, %v5246, 0.0
      %5263 = vadd.xlane.f32.xlu0 %v5262
      %v5264 = vpop.xlane.xlu0 %5263
      %v5265 = vsel %vm669, %v5248, 0.0
      %5266 = vadd.xlane.f32.xlu0 %v5265
      %v5267 = vpop.xlane.xlu0 %5266
      %v5268 = vsel %vm669, %v5250, 0.0
      %5269 = vadd.xlane.f32.xlu0 %v5268
      %v5270 = vpop.xlane.xlu0 %5269
      %v5271 = vsel %vm669, %v5252, 0.0
      %5272 = vadd.xlane.f32.xlu0 %v5271
      %v5273 = vpop.xlane.xlu0 %5272
      %v5274 = vsel %vm669, %v5254, 0.0
      %5275 = vadd.xlane.f32.xlu0 %v5274
      %v5276 = vpop.xlane.xlu0 %5275
      %v5277 = vsel %vm669, %v5256, 0.0
      %5278 = vadd.xlane.f32.xlu0 %v5277
      %v5279 = vpop.xlane.xlu0 %5278
      %v5280 = vsel %vm669, %v5258, 0.0
      %5281 = vadd.xlane.f32.xlu0 %v5280
      %v5282 = vpop.xlane.xlu0 %5281
      %v5283 = vrcp.pop %v5261
      %v5284 = vrcp.pop %v5264
      %v5285 = vrcp.pop %v5267
      %v5286 = vrcp.pop %v5270
      %v5287 = vrcp.pop %v5273
      %v5288 = vrcp.pop %v5276
      %v5289 = vrcp.pop %v5279
      %v5290 = vrcp.pop %v5282
      %v5291 = vmul.f32 %v5244, %v5283
      %v5292 = vmul.f32 %v5246, %v5284
      %v5293 = vmul.f32 %v5248, %v5285
      %v5294 = vmul.f32 %v5250, %v5286
      %v5295 = vmul.f32 %v5252, %v5287
      %v5296 = vmul.f32 %v5254, %v5288
      %v5297 = vmul.f32 %v5256, %v5289
      %v5298 = vmul.f32 %v5258, %v5290
      %v5299 = vpack.c.bf16 %v5292, %v5291
      %v5300 = vpack.c.bf16 %v5294, %v5293
      %v5301 = vpack.c.bf16 %v5296, %v5295
      %v5302 = vpack.c.bf16 %v5298, %v5297
      %5303 = vrot.lane.b32.xlu0 %v3922, 48
      %v5304 = vpop.permute.xlu0 %5303
      %5305 = vrot.lane.b32.xlu0 %v3923, 48
      %v5306 = vpop.permute.xlu0 %5305
      %5307 = vrot.lane.b32.xlu0 %v3924, 48
      %v5308 = vpop.permute.xlu0 %5307
      %5309 = vrot.lane.b32.xlu0 %v3925, 48
      %v5310 = vpop.permute.xlu0 %5309
      %v5316 = vsel %vm669, %v5299, 0
      %v5319 = vsel %vm669, %v5300, 0
      %v5322 = vsel %vm669, %v5301, 0
      %v5325 = vsel %vm669, %v5302, 0
      %5327 = vmatprep.subr.bf16.mxu0 0
      %5328 = vmatpush1.bf16.msra.mxu0 %v5304
      %5329 = vmatprep.subr.bf16.mxu0 0
      %5330 = vmatpush1.bf16.msra.mxu0 %v5306
      %5331 = vmatprep.subr.bf16.mxu0 0
      %5332 = vmatpush1.bf16.msra.mxu0 %v5308
      %5333 = vmatprep.subr.bf16.mxu0 0
      %5334 = vmatpush1.bf16.msra.mxu0 %v5310
      %5335 = vmatprep.subr.bf16.mxu0 0
      %5336 = vmatpush1.bf16.msra.mxu0 0
      %5337 = vmatprep.subr.bf16.mxu0 0
      %5338 = vmatpush1.bf16.msra.mxu0 0
      %5339 = vmatprep.subr.bf16.mxu0 0
      %5340 = vmatpush1.bf16.msra.mxu0 0
      %5341 = vmatprep.subr.bf16.mxu0 0
      %5342 = vmatpush1.bf16.msra.mxu0 0
      %5343 = vmatprep.subr.bf16.mxu0 0
      %5344 = vmatpush1.bf16.msra.mxu0 0
      %5345 = vmatprep.subr.bf16.mxu0 0
      %5346 = vmatpush1.bf16.msra.mxu0 0
      %5347 = vmatprep.subr.bf16.mxu0 0
      %5348 = vmatpush1.bf16.msra.mxu0 0
      %5349 = vmatprep.subr.bf16.mxu0 0
      %5350 = vmatpush1.bf16.msra.mxu0 0
      %5351 = vmatprep.subr.bf16.mxu0 0
      %5352 = vmatpush1.bf16.msra.mxu0 0
      %5353 = vmatprep.subr.bf16.mxu0 0
      %5354 = vmatpush1.bf16.msra.mxu0 0
      %5355 = vmatprep.subr.bf16.mxu0 0
      %5356 = vmatpush1.bf16.msra.mxu0 0
      %5357 = vmatprep.subr.bf16.mxu0 0
      %5358 = vmatpush1.bf16.msra.mxu0 0
      %5359 = vmatprep.mubr.bf16.mxu0 0
      %5360 = vmatmul.mubr.bf16.gmra.mrb[0].mxu0 %v5316
      %v5361 = vpop.f32.mrb[0].mxu0
      %v5362 = vadd.f32 0.0, %v5361
      %v5363 = vpop.f32.mrb[0].mxu0
      %v5364 = vpop.f32.mrb[0].mxu0
      %v5365 = vadd.f32 0.0, %v5364
      %v5366 = vpop.f32.mrb[0].mxu0
      %5367 = vmatprep.mubr.bf16.mxu0 0
      %5368 = vmatmul.mubr.bf16.gmra.mrb[0].mxu0 %v5319
      %v5369 = vpop.f32.mrb[0].mxu0
      %v5370 = vadd.f32 0.0, %v5369
      %v5371 = vpop.f32.mrb[0].mxu0
      %v5372 = vpop.f32.mrb[0].mxu0
      %v5373 = vadd.f32 0.0, %v5372
      %v5374 = vpop.f32.mrb[0].mxu0
      %5375 = vmatprep.mubr.bf16.mxu0 0
      %5376 = vmatmul.mubr.bf16.gmra.mrb[0].mxu0 %v5322
      %v5377 = vpop.f32.mrb[0].mxu0
      %v5378 = vadd.f32 0.0, %v5377
      %v5379 = vpop.f32.mrb[0].mxu0
      %v5380 = vpop.f32.mrb[0].mxu0
      %v5381 = vadd.f32 0.0, %v5380
      %v5382 = vpop.f32.mrb[0].mxu0
      %5383 = vmatprep.mubr.bf16.mxu0 0
      %5384 = vmatmul.mubr.bf16.gmra.mrb[0].mxu0 %v5325
      %v5385 = vpop.f32.mrb[0].mxu0
      %v5386 = vadd.f32 0.0, %v5385
      %v5387 = vpop.f32.mrb[0].mxu0
      %v5388 = vpop.f32.mrb[0].mxu0
      %v5389 = vadd.f32 0.0, %v5388
      %v5390 = vpop.f32.mrb[0].mxu0
      %5391 = vdwg.mxu0
      %5392 = vrot.lane.b32.xlu0 %v3922, 108
      %v5393 = vpop.permute.xlu0 %5392
      %5394 = vrot.lane.b32.xlu0 %v3923, 108
      %v5395 = vpop.permute.xlu0 %5394
      %5396 = vrot.lane.b32.xlu0 %v3924, 108
      %v5397 = vpop.permute.xlu0 %5396
      %5398 = vrot.lane.b32.xlu0 %v3925, 108
      %v5399 = vpop.permute.xlu0 %5398
      %5400 = vrot.lane.b32.xlu0 %v3922, 76
      %v5401 = vpop.permute.xlu0 %5400
      %5402 = vrot.lane.b32.xlu0 %v3923, 76
      %v5403 = vpop.permute.xlu0 %5402
      %5404 = vrot.lane.b32.xlu0 %v3924, 76
      %v5405 = vpop.permute.xlu0 %5404
      %5406 = vrot.lane.b32.xlu0 %v3925, 76
      %v5407 = vpop.permute.xlu0 %5406
      %v5409 = vsel %vm571, %v5393, 0
      %v5412 = vsel %vm571, %v5395, 0
      %v5415 = vsel %vm571, %v5397, 0
      %v5418 = vsel %vm571, %v5399, 0
      %v5421 = vsel %vm571, %v5401, 0
      %v5424 = vsel %vm571, %v5403, 0
      %v5427 = vsel %vm571, %v5405, 0
      %v5430 = vsel %vm571, %v5407, 0
      %5432 = vmatprep.subr.bf16.mxu0 0
      %5433 = vmatpush1.bf16.xpose.msra.mxu0 %v5421
      %5434 = vmatprep.subr.bf16.mxu0 0
      %5435 = vmatpush1.bf16.xpose.msra.mxu0 %v5424
      %5436 = vmatprep.subr.bf16.mxu0 0
      %5437 = vmatpush1.bf16.xpose.msra.mxu0 %v5427
      %5438 = vmatprep.subr.bf16.mxu0 0
      %5439 = vmatpush1.bf16.xpose.msra.mxu0 %v5430
      %5440 = vmatprep.subr.bf16.mxu0 0
      %5441 = vmatpush1.bf16.xpose.msra.mxu0 0
      %5442 = vmatprep.subr.bf16.mxu0 0
      %5443 = vmatpush1.bf16.xpose.msra.mxu0 0
      %5444 = vmatprep.subr.bf16.mxu0 0
      %5445 = vmatpush1.bf16.xpose.msra.mxu0 0
      %5446 = vmatprep.subr.bf16.mxu0 0
      %5447 = vmatpush1.bf16.xpose.msra.mxu0 0
      %5448 = vmatprep.subr.bf16.mxu0 0
      %5449 = vmatpush1.bf16.xpose.msra.mxu0 0
      %5450 = vmatprep.subr.bf16.mxu0 0
      %5451 = vmatpush1.bf16.xpose.msra.mxu0 0
      %5452 = vmatprep.subr.bf16.mxu0 0
      %5453 = vmatpush1.bf16.xpose.msra.mxu0 0
      %5454 = vmatprep.subr.bf16.mxu0 0
      %5455 = vmatpush1.bf16.xpose.msra.mxu0 0
      %5456 = vmatprep.subr.bf16.mxu0 0
      %5457 = vmatpush1.bf16.xpose.msra.mxu0 0
      %5458 = vmatprep.subr.bf16.mxu0 0
      %5459 = vmatpush1.bf16.xpose.msra.mxu0 0
      %5460 = vmatprep.subr.bf16.mxu0 0
      %5461 = vmatpush1.bf16.xpose.msra.mxu0 0
      %5462 = vmatprep.subr.bf16.mxu0 0
      %5463 = vmatpush1.bf16.xpose.msra.mxu0 0
      %5464 = vmatprep.mubr.bf16.mxu0 0
      %5465 = vmatmul.mubr.bf16.gmra.mrb[0].mxu0 %v5409
      %v5466 = vpop.f32.mrb[0].mxu0
      %v5467 = vadd.f32 0.0, %v5466
      %v5468 = vpop.f32.mrb[0].mxu0
      %v5469 = vpop.f32.mrb[0].mxu0
      %v5470 = vadd.f32 0.0, %v5469
      %v5471 = vpop.f32.mrb[0].mxu0
      %5472 = vmatprep.mubr.bf16.mxu0 0
      %5473 = vmatmul.mubr.bf16.gmra.mrb[0].mxu0 %v5412
      %v5474 = vpop.f32.mrb[0].mxu0
      %v5475 = vadd.f32 0.0, %v5474
      %v5476 = vpop.f32.mrb[0].mxu0
      %v5477 = vpop.f32.mrb[0].mxu0
      %v5478 = vadd.f32 0.0, %v5477
      %v5479 = vpop.f32.mrb[0].mxu0
      %5480 = vmatprep.mubr.bf16.mxu0 0
      %5481 = vmatmul.mubr.bf16.gmra.mrb[0].mxu0 %v5415
      %v5482 = vpop.f32.mrb[0].mxu0
      %v5483 = vadd.f32 0.0, %v5482
      %v5484 = vpop.f32.mrb[0].mxu0
      %v5485 = vpop.f32.mrb[0].mxu0
      %v5486 = vadd.f32 0.0, %v5485
      %v5487 = vpop.f32.mrb[0].mxu0
      %5488 = vmatprep.mubr.bf16.mxu0 0
      %5489 = vmatmul.mubr.bf16.gmra.mrb[0].mxu0 %v5418
      %v5490 = vpop.f32.mrb[0].mxu0
      %v5491 = vadd.f32 0.0, %v5490
      %v5492 = vpop.f32.mrb[0].mxu0
      %v5493 = vpop.f32.mrb[0].mxu0
      %v5494 = vadd.f32 0.0, %v5493
      %v5495 = vpop.f32.mrb[0].mxu0
      %5496 = vdwg.mxu0
      %v5497 = vmul.f32 %v5467, 0.5
      %v5498 = vmul.f32 %v5470, 0.5
      %v5499 = vmul.f32 %v5475, 0.5
      %v5500 = vmul.f32 %v5478, 0.5
      %v5501 = vmul.f32 %v5483, 0.5
      %v5502 = vmul.f32 %v5486, 0.5
      %v5503 = vmul.f32 %v5491, 0.5
      %v5504 = vmul.f32 %v5494, 0.5
      %v5505 = vsel %vm669, %v5497, -inf
      %5506 = vmax.xlane.f32.xlu0 %v5505
      %v5507 = vpop.xlane.xlu0 %5506
      %v5508 = vsel %vm669, %v5498, -inf
      %5509 = vmax.xlane.f32.xlu0 %v5508
      %v5510 = vpop.xlane.xlu0 %5509
      %v5511 = vsel %vm669, %v5499, -inf
      %5512 = vmax.xlane.f32.xlu0 %v5511
      %v5513 = vpop.xlane.xlu0 %5512
      %v5514 = vsel %vm669, %v5500, -inf
      %5515 = vmax.xlane.f32.xlu0 %v5514
      %v5516 = vpop.xlane.xlu0 %5515
      %v5517 = vsel %vm669, %v5501, -inf
      %5518 = vmax.xlane.f32.xlu0 %v5517
      %v5519 = vpop.xlane.xlu0 %5518
      %v5520 = vsel %vm669, %v5502, -inf
      %5521 = vmax.xlane.f32.xlu0 %v5520
      %v5522 = vpop.xlane.xlu0 %5521
      %v5523 = vsel %vm669, %v5503, -inf
      %5524 = vmax.xlane.f32.xlu0 %v5523
      %v5525 = vpop.xlane.xlu0 %5524
      %v5526 = vsel %vm669, %v5504, -inf
      %5527 = vmax.xlane.f32.xlu0 %v5526
      %v5528 = vpop.xlane.xlu0 %5527
      %v5529 = vsub.f32 %v5497, %v5507
      %v5530 = vsub.f32 %v5498, %v5510
      %v5531 = vsub.f32 %v5499, %v5513
      %v5532 = vsub.f32 %v5500, %v5516
      %v5533 = vsub.f32 %v5501, %v5519
      %v5534 = vsub.f32 %v5502, %v5522
      %v5535 = vsub.f32 %v5503, %v5525
      %v5536 = vsub.f32 %v5504, %v5528
      %v5537 = vmul.f32 %v5529, 1.442695
      %v5538 = vpow.pop %v5537
      %v5539 = vmul.f32 %v5530, 1.442695
      %v5540 = vpow.pop %v5539
      %v5541 = vmul.f32 %v5531, 1.442695
      %v5542 = vpow.pop %v5541
      %v5543 = vmul.f32 %v5532, 1.442695
      %v5544 = vpow.pop %v5543
      %v5545 = vmul.f32 %v5533, 1.442695
      %v5546 = vpow.pop %v5545
      %v5547 = vmul.f32 %v5534, 1.442695
      %v5548 = vpow.pop %v5547
      %v5549 = vmul.f32 %v5535, 1.442695
      %v5550 = vpow.pop %v5549
      %v5551 = vmul.f32 %v5536, 1.442695
      %v5552 = vpow.pop %v5551
      %v5553 = vsel %vm669, %v5538, 0.0
      %5554 = vadd.xlane.f32.xlu0 %v5553
      %v5555 = vpop.xlane.xlu0 %5554
      %v5556 = vsel %vm669, %v5540, 0.0
      %5557 = vadd.xlane.f32.xlu0 %v5556
      %v5558 = vpop.xlane.xlu0 %5557
      %v5559 = vsel %vm669, %v5542, 0.0
      %5560 = vadd.xlane.f32.xlu0 %v5559
      %v5561 = vpop.xlane.xlu0 %5560
      %v5562 = vsel %vm669, %v5544, 0.0
      %5563 = vadd.xlane.f32.xlu0 %v5562
      %v5564 = vpop.xlane.xlu0 %5563
      %v5565 = vsel %vm669, %v5546, 0.0
      %5566 = vadd.xlane.f32.xlu0 %v5565
      %v5567 = vpop.xlane.xlu0 %5566
      %v5568 = vsel %vm669, %v5548, 0.0
      %5569 = vadd.xlane.f32.xlu0 %v5568
      %v5570 = vpop.xlane.xlu0 %5569
      %v5571 = vsel %vm669, %v5550, 0.0
      %5572 = vadd.xlane.f32.xlu0 %v5571
      %v5573 = vpop.xlane.xlu0 %5572
      %v5574 = vsel %vm669, %v5552, 0.0
      %5575 = vadd.xlane.f32.xlu0 %v5574
      %v5576 = vpop.xlane.xlu0 %5575
      %v5577 = vrcp.pop %v5555
      %v5578 = vrcp.pop %v5558
      %v5579 = vrcp.pop %v5561
      %v5580 = vrcp.pop %v5564
      %v5581 = vrcp.pop %v5567
      %v5582 = vrcp.pop %v5570
      %v5583 = vrcp.pop %v5573
      %v5584 = vrcp.pop %v5576
      %v5585 = vmul.f32 %v5538, %v5577
      %v5586 = vmul.f32 %v5540, %v5578
      %v5587 = vmul.f32 %v5542, %v5579
      %v5588 = vmul.f32 %v5544, %v5580
      %v5589 = vmul.f32 %v5546, %v5581
      %v5590 = vmul.f32 %v5548, %v5582
      %v5591 = vmul.f32 %v5550, %v5583
      %v5592 = vmul.f32 %v5552, %v5584
      %v5593 = vpack.c.bf16 %v5586, %v5585
      %v5594 = vpack.c.bf16 %v5588, %v5587
      %v5595 = vpack.c.bf16 %v5590, %v5589
      %v5596 = vpack.c.bf16 %v5592, %v5591
      %5597 = vrot.lane.b32.xlu0 %v3922, 44
      %v5598 = vpop.permute.xlu0 %5597
      %5599 = vrot.lane.b32.xlu0 %v3923, 44
      %v5600 = vpop.permute.xlu0 %5599
      %5601 = vrot.lane.b32.xlu0 %v3924, 44
      %v5602 = vpop.permute.xlu0 %5601
      %5603 = vrot.lane.b32.xlu0 %v3925, 44
      %v5604 = vpop.permute.xlu0 %5603
      %v5610 = vsel %vm669, %v5593, 0
      %v5613 = vsel %vm669, %v5594, 0
      %v5616 = vsel %vm669, %v5595, 0
      %v5619 = vsel %vm669, %v5596, 0
      %5621 = vmatprep.subr.bf16.mxu0 0
      %5622 = vmatpush1.bf16.msra.mxu0 %v5598
      %5623 = vmatprep.subr.bf16.mxu0 0
      %5624 = vmatpush1.bf16.msra.mxu0 %v5600
      %5625 = vmatprep.subr.bf16.mxu0 0
      %5626 = vmatpush1.bf16.msra.mxu0 %v5602
      %5627 = vmatprep.subr.bf16.mxu0 0
      %5628 = vmatpush1.bf16.msra.mxu0 %v5604
      %5629 = vmatprep.subr.bf16.mxu0 0
      %5630 = vmatpush1.bf16.msra.mxu0 0
      %5631 = vmatprep.subr.bf16.mxu0 0
      %5632 = vmatpush1.bf16.msra.mxu0 0
      %5633 = vmatprep.subr.bf16.mxu0 0
      %5634 = vmatpush1.bf16.msra.mxu0 0
      %5635 = vmatprep.subr.bf16.mxu0 0
      %5636 = vmatpush1.bf16.msra.mxu0 0
      %5637 = vmatprep.subr.bf16.mxu0 0
      %5638 = vmatpush1.bf16.msra.mxu0 0
      %5639 = vmatprep.subr.bf16.mxu0 0
      %5640 = vmatpush1.bf16.msra.mxu0 0
      %5641 = vmatprep.subr.bf16.mxu0 0
      %5642 = vmatpush1.bf16.msra.mxu0 0
      %5643 = vmatprep.subr.bf16.mxu0 0
      %5644 = vmatpush1.bf16.msra.mxu0 0
      %5645 = vmatprep.subr.bf16.mxu0 0
      %5646 = vmatpush1.bf16.msra.mxu0 0
      %5647 = vmatprep.subr.bf16.mxu0 0
      %5648 = vmatpush1.bf16.msra.mxu0 0
      %5649 = vmatprep.subr.bf16.mxu0 0
      %5650 = vmatpush1.bf16.msra.mxu0 0
      %5651 = vmatprep.subr.bf16.mxu0 0
      %5652 = vmatpush1.bf16.msra.mxu0 0
      %5653 = vmatprep.mubr.bf16.mxu0 0
      %5654 = vmatmul.mubr.bf16.gmra.mrb[0].mxu0 %v5610
      %v5655 = vpop.f32.mrb[0].mxu0
      %v5656 = vadd.f32 0.0, %v5655
      %v5657 = vpop.f32.mrb[0].mxu0
      %v5658 = vpop.f32.mrb[0].mxu0
      %v5659 = vadd.f32 0.0, %v5658
      %v5660 = vpop.f32.mrb[0].mxu0
      %5661 = vmatprep.mubr.bf16.mxu0 0
      %5662 = vmatmul.mubr.bf16.gmra.mrb[0].mxu0 %v5613
      %v5663 = vpop.f32.mrb[0].mxu0
      %v5664 = vadd.f32 0.0, %v5663
      %v5665 = vpop.f32.mrb[0].mxu0
      %v5666 = vpop.f32.mrb[0].mxu0
      %v5667 = vadd.f32 0.0, %v5666
      %v5668 = vpop.f32.mrb[0].mxu0
      %5669 = vmatprep.mubr.bf16.mxu0 0
      %5670 = vmatmul.mubr.bf16.gmra.mrb[0].mxu0 %v5616
      %v5671 = vpop.f32.mrb[0].mxu0
      %v5672 = vadd.f32 0.0, %v5671
      %v5673 = vpop.f32.mrb[0].mxu0
      %v5674 = vpop.f32.mrb[0].mxu0
      %v5675 = vadd.f32 0.0, %v5674
      %v5676 = vpop.f32.mrb[0].mxu0
      %5677 = vmatprep.mubr.bf16.mxu0 0
      %5678 = vmatmul.mubr.bf16.gmra.mrb[0].mxu0 %v5619
      %v5679 = vpop.f32.mrb[0].mxu0
      %v5680 = vadd.f32 0.0, %v5679
      %v5681 = vpop.f32.mrb[0].mxu0
      %v5682 = vpop.f32.mrb[0].mxu0
      %v5683 = vadd.f32 0.0, %v5682
      %v5684 = vpop.f32.mrb[0].mxu0
      %5685 = vdwg.mxu0
      %5686 = vrot.lane.b32.xlu0 %v3922, 104
      %v5687 = vpop.permute.xlu0 %5686
      %5688 = vrot.lane.b32.xlu0 %v3923, 104
      %v5689 = vpop.permute.xlu0 %5688
      %5690 = vrot.lane.b32.xlu0 %v3924, 104
      %v5691 = vpop.permute.xlu0 %5690
      %5692 = vrot.lane.b32.xlu0 %v3925, 104
      %v5693 = vpop.permute.xlu0 %5692
      %5694 = vrot.lane.b32.xlu0 %v3922, 72
      %v5695 = vpop.permute.xlu0 %5694
      %5696 = vrot.lane.b32.xlu0 %v3923, 72
      %v5697 = vpop.permute.xlu0 %5696
      %5698 = vrot.lane.b32.xlu0 %v3924, 72
      %v5699 = vpop.permute.xlu0 %5698
      %5700 = vrot.lane.b32.xlu0 %v3925, 72
      %v5701 = vpop.permute.xlu0 %5700
      %v5703 = vsel %vm571, %v5687, 0
      %v5706 = vsel %vm571, %v5689, 0
      %v5709 = vsel %vm571, %v5691, 0
      %v5712 = vsel %vm571, %v5693, 0
      %v5715 = vsel %vm571, %v5695, 0
      %v5718 = vsel %vm571, %v5697, 0
      %v5721 = vsel %vm571, %v5699, 0
      %v5724 = vsel %vm571, %v5701, 0
      %5726 = vmatprep.subr.bf16.mxu0 0
      %5727 = vmatpush1.bf16.xpose.msra.mxu0 %v5715
      %5728 = vmatprep.subr.bf16.mxu0 0
      %5729 = vmatpush1.bf16.xpose.msra.mxu0 %v5718
      %5730 = vmatprep.subr.bf16.mxu0 0
      %5731 = vmatpush1.bf16.xpose.msra.mxu0 %v5721
      %5732 = vmatprep.subr.bf16.mxu0 0
      %5733 = vmatpush1.bf16.xpose.msra.mxu0 %v5724
      %5734 = vmatprep.subr.bf16.mxu0 0
      %5735 = vmatpush1.bf16.xpose.msra.mxu0 0
      %5736 = vmatprep.subr.bf16.mxu0 0
      %5737 = vmatpush1.bf16.xpose.msra.mxu0 0
      %5738 = vmatprep.subr.bf16.mxu0 0
      %5739 = vmatpush1.bf16.xpose.msra.mxu0 0
      %5740 = vmatprep.subr.bf16.mxu0 0
      %5741 = vmatpush1.bf16.xpose.msra.mxu0 0
      %5742 = vmatprep.subr.bf16.mxu0 0
      %5743 = vmatpush1.bf16.xpose.msra.mxu0 0
      %5744 = vmatprep.subr.bf16.mxu0 0
      %5745 = vmatpush1.bf16.xpose.msra.mxu0 0
      %5746 = vmatprep.subr.bf16.mxu0 0
      %5747 = vmatpush1.bf16.xpose.msra.mxu0 0
      %5748 = vmatprep.subr.bf16.mxu0 0
      %5749 = vmatpush1.bf16.xpose.msra.mxu0 0
      %5750 = vmatprep.subr.bf16.mxu0 0
      %5751 = vmatpush1.bf16.xpose.msra.mxu0 0
      %5752 = vmatprep.subr.bf16.mxu0 0
      %5753 = vmatpush1.bf16.xpose.msra.mxu0 0
      %5754 = vmatprep.subr.bf16.mxu0 0
      %5755 = vmatpush1.bf16.xpose.msra.mxu0 0
      %5756 = vmatprep.subr.bf16.mxu0 0
      %5757 = vmatpush1.bf16.xpose.msra.mxu0 0
      %5758 = vmatprep.mubr.bf16.mxu0 0
      %5759 = vmatmul.mubr.bf16.gmra.mrb[0].mxu0 %v5703
      %v5760 = vpop.f32.mrb[0].mxu0
      %v5761 = vadd.f32 0.0, %v5760
      %v5762 = vpop.f32.mrb[0].mxu0
      %v5763 = vpop.f32.mrb[0].mxu0
      %v5764 = vadd.f32 0.0, %v5763
      %v5765 = vpop.f32.mrb[0].mxu0
      %5766 = vmatprep.mubr.bf16.mxu0 0
      %5767 = vmatmul.mubr.bf16.gmra.mrb[0].mxu0 %v5706
      %v5768 = vpop.f32.mrb[0].mxu0
      %v5769 = vadd.f32 0.0, %v5768
      %v5770 = vpop.f32.mrb[0].mxu0
      %v5771 = vpop.f32.mrb[0].mxu0
      %v5772 = vadd.f32 0.0, %v5771
      %v5773 = vpop.f32.mrb[0].mxu0
      %5774 = vmatprep.mubr.bf16.mxu0 0
      %5775 = vmatmul.mubr.bf16.gmra.mrb[0].mxu0 %v5709
      %v5776 = vpop.f32.mrb[0].mxu0
      %v5777 = vadd.f32 0.0, %v5776
      %v5778 = vpop.f32.mrb[0].mxu0
      %v5779 = vpop.f32.mrb[0].mxu0
      %v5780 = vadd.f32 0.0, %v5779
      %v5781 = vpop.f32.mrb[0].mxu0
      %5782 = vmatprep.mubr.bf16.mxu0 0
      %5783 = vmatmul.mubr.bf16.gmra.mrb[0].mxu0 %v5712
      %v5784 = vpop.f32.mrb[0].mxu0
      %v5785 = vadd.f32 0.0, %v5784
      %v5786 = vpop.f32.mrb[0].mxu0
      %v5787 = vpop.f32.mrb[0].mxu0
      %v5788 = vadd.f32 0.0, %v5787
      %v5789 = vpop.f32.mrb[0].mxu0
      %5790 = vdwg.mxu0
      %v5791 = vmul.f32 %v5761, 0.5
      %v5792 = vmul.f32 %v5764, 0.5
      %v5793 = vmul.f32 %v5769, 0.5
      %v5794 = vmul.f32 %v5772, 0.5
      %v5795 = vmul.f32 %v5777, 0.5
      %v5796 = vmul.f32 %v5780, 0.5
      %v5797 = vmul.f32 %v5785, 0.5
      %v5798 = vmul.f32 %v5788, 0.5
      %v5799 = vsel %vm669, %v5791, -inf
      %5800 = vmax.xlane.f32.xlu0 %v5799
      %v5801 = vpop.xlane.xlu0 %5800
      %v5802 = vsel %vm669, %v5792, -inf
      %5803 = vmax.xlane.f32.xlu0 %v5802
      %v5804 = vpop.xlane.xlu0 %5803
      %v5805 = vsel %vm669, %v5793, -inf
      %5806 = vmax.xlane.f32.xlu0 %v5805
      %v5807 = vpop.xlane.xlu0 %5806
      %v5808 = vsel %vm669, %v5794, -inf
      %5809 = vmax.xlane.f32.xlu0 %v5808
      %v5810 = vpop.xlane.xlu0 %5809
      %v5811 = vsel %vm669, %v5795, -inf
      %5812 = vmax.xlane.f32.xlu0 %v5811
      %v5813 = vpop.xlane.xlu0 %5812
      %v5814 = vsel %vm669, %v5796, -inf
      %5815 = vmax.xlane.f32.xlu0 %v5814
      %v5816 = vpop.xlane.xlu0 %5815
      %v5817 = vsel %vm669, %v5797, -inf
      %5818 = vmax.xlane.f32.xlu0 %v5817
      %v5819 = vpop.xlane.xlu0 %5818
      %v5820 = vsel %vm669, %v5798, -inf
      %5821 = vmax.xlane.f32.xlu0 %v5820
      %v5822 = vpop.xlane.xlu0 %5821
      %v5823 = vsub.f32 %v5791, %v5801
      %v5824 = vsub.f32 %v5792, %v5804
      %v5825 = vsub.f32 %v5793, %v5807
      %v5826 = vsub.f32 %v5794, %v5810
      %v5827 = vsub.f32 %v5795, %v5813
      %v5828 = vsub.f32 %v5796, %v5816
      %v5829 = vsub.f32 %v5797, %v5819
      %v5830 = vsub.f32 %v5798, %v5822
      %v5831 = vmul.f32 %v5823, 1.442695
      %v5832 = vpow.pop %v5831
      %v5833 = vmul.f32 %v5824, 1.442695
      %v5834 = vpow.pop %v5833
      %v5835 = vmul.f32 %v5825, 1.442695
      %v5836 = vpow.pop %v5835
      %v5837 = vmul.f32 %v5826, 1.442695
      %v5838 = vpow.pop %v5837
      %v5839 = vmul.f32 %v5827, 1.442695
      %v5840 = vpow.pop %v5839
      %v5841 = vmul.f32 %v5828, 1.442695
      %v5842 = vpow.pop %v5841
      %v5843 = vmul.f32 %v5829, 1.442695
      %v5844 = vpow.pop %v5843
      %v5845 = vmul.f32 %v5830, 1.442695
      %v5846 = vpow.pop %v5845
      %v5847 = vsel %vm669, %v5832, 0.0
      %5848 = vadd.xlane.f32.xlu0 %v5847
      %v5849 = vpop.xlane.xlu0 %5848
      %v5850 = vsel %vm669, %v5834, 0.0
      %5851 = vadd.xlane.f32.xlu0 %v5850
      %v5852 = vpop.xlane.xlu0 %5851
      %v5853 = vsel %vm669, %v5836, 0.0
      %5854 = vadd.xlane.f32.xlu0 %v5853
      %v5855 = vpop.xlane.xlu0 %5854
      %v5856 = vsel %vm669, %v5838, 0.0
      %5857 = vadd.xlane.f32.xlu0 %v5856
      %v5858 = vpop.xlane.xlu0 %5857
      %v5859 = vsel %vm669, %v5840, 0.0
      %5860 = vadd.xlane.f32.xlu0 %v5859
      %v5861 = vpop.xlane.xlu0 %5860
      %v5862 = vsel %vm669, %v5842, 0.0
      %5863 = vadd.xlane.f32.xlu0 %v5862
      %v5864 = vpop.xlane.xlu0 %5863
      %v5865 = vsel %vm669, %v5844, 0.0
      %5866 = vadd.xlane.f32.xlu0 %v5865
      %v5867 = vpop.xlane.xlu0 %5866
      %v5868 = vsel %vm669, %v5846, 0.0
      %5869 = vadd.xlane.f32.xlu0 %v5868
      %v5870 = vpop.xlane.xlu0 %5869
      %v5871 = vrcp.pop %v5849
      %v5872 = vrcp.pop %v5852
      %v5873 = vrcp.pop %v5855
      %v5874 = vrcp.pop %v5858
      %v5875 = vrcp.pop %v5861
      %v5876 = vrcp.pop %v5864
      %v5877 = vrcp.pop %v5867
      %v5878 = vrcp.pop %v5870
      %v5879 = vmul.f32 %v5832, %v5871
      %v5880 = vmul.f32 %v5834, %v5872
      %v5881 = vmul.f32 %v5836, %v5873
      %v5882 = vmul.f32 %v5838, %v5874
      %v5883 = vmul.f32 %v5840, %v5875
      %v5884 = vmul.f32 %v5842, %v5876
      %v5885 = vmul.f32 %v5844, %v5877
      %v5886 = vmul.f32 %v5846, %v5878
      %v5887 = vpack.c.bf16 %v5880, %v5879
      %v5888 = vpack.c.bf16 %v5882, %v5881
      %v5889 = vpack.c.bf16 %v5884, %v5883
      %v5890 = vpack.c.bf16 %v5886, %v5885
      %5891 = vrot.lane.b32.xlu0 %v3922, 40
      %v5892 = vpop.permute.xlu0 %5891
      %5893 = vrot.lane.b32.xlu0 %v3923, 40
      %v5894 = vpop.permute.xlu0 %5893
      %5895 = vrot.lane.b32.xlu0 %v3924, 40
      %v5896 = vpop.permute.xlu0 %5895
      %5897 = vrot.lane.b32.xlu0 %v3925, 40
      %v5898 = vpop.permute.xlu0 %5897
      %v5904 = vsel %vm669, %v5887, 0
      %v5907 = vsel %vm669, %v5888, 0
      %v5910 = vsel %vm669, %v5889, 0
      %v5913 = vsel %vm669, %v5890, 0
      %5915 = vmatprep.subr.bf16.mxu0 0
      %5916 = vmatpush1.bf16.msra.mxu0 %v5892
      %5917 = vmatprep.subr.bf16.mxu0 0
      %5918 = vmatpush1.bf16.msra.mxu0 %v5894
      %5919 = vmatprep.subr.bf16.mxu0 0
      %5920 = vmatpush1.bf16.msra.mxu0 %v5896
      %5921 = vmatprep.subr.bf16.mxu0 0
      %5922 = vmatpush1.bf16.msra.mxu0 %v5898
      %5923 = vmatprep.subr.bf16.mxu0 0
      %5924 = vmatpush1.bf16.msra.mxu0 0
      %5925 = vmatprep.subr.bf16.mxu0 0
      %5926 = vmatpush1.bf16.msra.mxu0 0
      %5927 = vmatprep.subr.bf16.mxu0 0
      %5928 = vmatpush1.bf16.msra.mxu0 0
      %5929 = vmatprep.subr.bf16.mxu0 0
      %5930 = vmatpush1.bf16.msra.mxu0 0
      %5931 = vmatprep.subr.bf16.mxu0 0
      %5932 = vmatpush1.bf16.msra.mxu0 0
      %5933 = vmatprep.subr.bf16.mxu0 0
      %5934 = vmatpush1.bf16.msra.mxu0 0
      %5935 = vmatprep.subr.bf16.mxu0 0
      %5936 = vmatpush1.bf16.msra.mxu0 0
      %5937 = vmatprep.subr.bf16.mxu0 0
      %5938 = vmatpush1.bf16.msra.mxu0 0
      %5939 = vmatprep.subr.bf16.mxu0 0
      %5940 = vmatpush1.bf16.msra.mxu0 0
      %5941 = vmatprep.subr.bf16.mxu0 0
      %5942 = vmatpush1.bf16.msra.mxu0 0
      %5943 = vmatprep.subr.bf16.mxu0 0
      %5944 = vmatpush1.bf16.msra.mxu0 0
      %5945 = vmatprep.subr.bf16.mxu0 0
      %5946 = vmatpush1.bf16.msra.mxu0 0
      %5947 = vmatprep.mubr.bf16.mxu0 0
      %5948 = vmatmul.mubr.bf16.gmra.mrb[0].mxu0 %v5904
      %v5949 = vpop.f32.mrb[0].mxu0
      %v5950 = vadd.f32 0.0, %v5949
      %v5951 = vpop.f32.mrb[0].mxu0
      %v5952 = vpop.f32.mrb[0].mxu0
      %v5953 = vadd.f32 0.0, %v5952
      %v5954 = vpop.f32.mrb[0].mxu0
      %5955 = vmatprep.mubr.bf16.mxu0 0
      %5956 = vmatmul.mubr.bf16.gmra.mrb[0].mxu0 %v5907
      %v5957 = vpop.f32.mrb[0].mxu0
      %v5958 = vadd.f32 0.0, %v5957
      %v5959 = vpop.f32.mrb[0].mxu0
      %v5960 = vpop.f32.mrb[0].mxu0
      %v5961 = vadd.f32 0.0, %v5960
      %v5962 = vpop.f32.mrb[0].mxu0
      %5963 = vmatprep.mubr.bf16.mxu0 0
      %5964 = vmatmul.mubr.bf16.gmra.mrb[0].mxu0 %v5910
      %v5965 = vpop.f32.mrb[0].mxu0
      %v5966 = vadd.f32 0.0, %v5965
      %v5967 = vpop.f32.mrb[0].mxu0
      %v5968 = vpop.f32.mrb[0].mxu0
      %v5969 = vadd.f32 0.0, %v5968
      %v5970 = vpop.f32.mrb[0].mxu0
      %5971 = vmatprep.mubr.bf16.mxu0 0
      %5972 = vmatmul.mubr.bf16.gmra.mrb[0].mxu0 %v5913
      %v5973 = vpop.f32.mrb[0].mxu0
      %v5974 = vadd.f32 0.0, %v5973
      %v5975 = vpop.f32.mrb[0].mxu0
      %v5976 = vpop.f32.mrb[0].mxu0
      %v5977 = vadd.f32 0.0, %v5976
      %v5978 = vpop.f32.mrb[0].mxu0
      %5979 = vdwg.mxu0
      %5980 = vrot.lane.b32.xlu0 %v3922, 100
      %v5981 = vpop.permute.xlu0 %5980
      %5982 = vrot.lane.b32.xlu0 %v3923, 100
      %v5983 = vpop.permute.xlu0 %5982
      %5984 = vrot.lane.b32.xlu0 %v3924, 100
      %v5985 = vpop.permute.xlu0 %5984
      %5986 = vrot.lane.b32.xlu0 %v3925, 100
      %v5987 = vpop.permute.xlu0 %5986
      %5988 = vrot.lane.b32.xlu0 %v3922, 68
      %v5989 = vpop.permute.xlu0 %5988
      %5990 = vrot.lane.b32.xlu0 %v3923, 68
      %v5991 = vpop.permute.xlu0 %5990
      %5992 = vrot.lane.b32.xlu0 %v3924, 68
      %v5993 = vpop.permute.xlu0 %5992
      %5994 = vrot.lane.b32.xlu0 %v3925, 68
      %v5995 = vpop.permute.xlu0 %5994
      %v5997 = vsel %vm571, %v5981, 0
      %v6000 = vsel %vm571, %v5983, 0
      %v6003 = vsel %vm571, %v5985, 0
      %v6006 = vsel %vm571, %v5987, 0
      %v6009 = vsel %vm571, %v5989, 0
      %v6012 = vsel %vm571, %v5991, 0
      %v6015 = vsel %vm571, %v5993, 0
      %v6018 = vsel %vm571, %v5995, 0
      %6020 = vmatprep.subr.bf16.mxu0 0
      %6021 = vmatpush1.bf16.xpose.msra.mxu0 %v6009
      %6022 = vmatprep.subr.bf16.mxu0 0
      %6023 = vmatpush1.bf16.xpose.msra.mxu0 %v6012
      %6024 = vmatprep.subr.bf16.mxu0 0
      %6025 = vmatpush1.bf16.xpose.msra.mxu0 %v6015
      %6026 = vmatprep.subr.bf16.mxu0 0
      %6027 = vmatpush1.bf16.xpose.msra.mxu0 %v6018
      %6028 = vmatprep.subr.bf16.mxu0 0
      %6029 = vmatpush1.bf16.xpose.msra.mxu0 0
      %6030 = vmatprep.subr.bf16.mxu0 0
      %6031 = vmatpush1.bf16.xpose.msra.mxu0 0
      %6032 = vmatprep.subr.bf16.mxu0 0
      %6033 = vmatpush1.bf16.xpose.msra.mxu0 0
      %6034 = vmatprep.subr.bf16.mxu0 0
      %6035 = vmatpush1.bf16.xpose.msra.mxu0 0
      %6036 = vmatprep.subr.bf16.mxu0 0
      %6037 = vmatpush1.bf16.xpose.msra.mxu0 0
      %6038 = vmatprep.subr.bf16.mxu0 0
      %6039 = vmatpush1.bf16.xpose.msra.mxu0 0
      %6040 = vmatprep.subr.bf16.mxu0 0
      %6041 = vmatpush1.bf16.xpose.msra.mxu0 0
      %6042 = vmatprep.subr.bf16.mxu0 0
      %6043 = vmatpush1.bf16.xpose.msra.mxu0 0
      %6044 = vmatprep.subr.bf16.mxu0 0
      %6045 = vmatpush1.bf16.xpose.msra.mxu0 0
      %6046 = vmatprep.subr.bf16.mxu0 0
      %6047 = vmatpush1.bf16.xpose.msra.mxu0 0
      %6048 = vmatprep.subr.bf16.mxu0 0
      %6049 = vmatpush1.bf16.xpose.msra.mxu0 0
      %6050 = vmatprep.subr.bf16.mxu0 0
      %6051 = vmatpush1.bf16.xpose.msra.mxu0 0
      %6052 = vmatprep.mubr.bf16.mxu0 0
      %6053 = vmatmul.mubr.bf16.gmra.mrb[0].mxu0 %v5997
      %v6054 = vpop.f32.mrb[0].mxu0
      %v6055 = vadd.f32 0.0, %v6054
      %v6056 = vpop.f32.mrb[0].mxu0
      %v6057 = vpop.f32.mrb[0].mxu0
      %v6058 = vadd.f32 0.0, %v6057
      %v6059 = vpop.f32.mrb[0].mxu0
      %6060 = vmatprep.mubr.bf16.mxu0 0
      %6061 = vmatmul.mubr.bf16.gmra.mrb[0].mxu0 %v6000
      %v6062 = vpop.f32.mrb[0].mxu0
      %v6063 = vadd.f32 0.0, %v6062
      %v6064 = vpop.f32.mrb[0].mxu0
      %v6065 = vpop.f32.mrb[0].mxu0
      %v6066 = vadd.f32 0.0, %v6065
      %v6067 = vpop.f32.mrb[0].mxu0
      %6068 = vmatprep.mubr.bf16.mxu0 0
      %6069 = vmatmul.mubr.bf16.gmra.mrb[0].mxu0 %v6003
      %v6070 = vpop.f32.mrb[0].mxu0
      %v6071 = vadd.f32 0.0, %v6070
      %v6072 = vpop.f32.mrb[0].mxu0
      %v6073 = vpop.f32.mrb[0].mxu0
      %v6074 = vadd.f32 0.0, %v6073
      %v6075 = vpop.f32.mrb[0].mxu0
      %6076 = vmatprep.mubr.bf16.mxu0 0
      %6077 = vmatmul.mubr.bf16.gmra.mrb[0].mxu0 %v6006
      %v6078 = vpop.f32.mrb[0].mxu0
      %v6079 = vadd.f32 0.0, %v6078
      %v6080 = vpop.f32.mrb[0].mxu0
      %v6081 = vpop.f32.mrb[0].mxu0
      %v6082 = vadd.f32 0.0, %v6081
      %v6083 = vpop.f32.mrb[0].mxu0
      %6084 = vdwg.mxu0
      %v6085 = vmul.f32 %v6055, 0.5
      %v6086 = vmul.f32 %v6058, 0.5
      %v6087 = vmul.f32 %v6063, 0.5
      %v6088 = vmul.f32 %v6066, 0.5
      %v6089 = vmul.f32 %v6071, 0.5
      %v6090 = vmul.f32 %v6074, 0.5
      %v6091 = vmul.f32 %v6079, 0.5
      %v6092 = vmul.f32 %v6082, 0.5
      %v6093 = vsel %vm669, %v6085, -inf
      %6094 = vmax.xlane.f32.xlu0 %v6093
      %v6095 = vpop.xlane.xlu0 %6094
      %v6096 = vsel %vm669, %v6086, -inf
      %6097 = vmax.xlane.f32.xlu0 %v6096
      %v6098 = vpop.xlane.xlu0 %6097
      %v6099 = vsel %vm669, %v6087, -inf
      %6100 = vmax.xlane.f32.xlu0 %v6099
      %v6101 = vpop.xlane.xlu0 %6100
      %v6102 = vsel %vm669, %v6088, -inf
      %6103 = vmax.xlane.f32.xlu0 %v6102
      %v6104 = vpop.xlane.xlu0 %6103
      %v6105 = vsel %vm669, %v6089, -inf
      %6106 = vmax.xlane.f32.xlu0 %v6105
      %v6107 = vpop.xlane.xlu0 %6106
      %v6108 = vsel %vm669, %v6090, -inf
      %6109 = vmax.xlane.f32.xlu0 %v6108
      %v6110 = vpop.xlane.xlu0 %6109
      %v6111 = vsel %vm669, %v6091, -inf
      %6112 = vmax.xlane.f32.xlu0 %v6111
      %v6113 = vpop.xlane.xlu0 %6112
      %v6114 = vsel %vm669, %v6092, -inf
      %6115 = vmax.xlane.f32.xlu0 %v6114
      %v6116 = vpop.xlane.xlu0 %6115
      %v6117 = vsub.f32 %v6085, %v6095
      %v6118 = vsub.f32 %v6086, %v6098
      %v6119 = vsub.f32 %v6087, %v6101
      %v6120 = vsub.f32 %v6088, %v6104
      %v6121 = vsub.f32 %v6089, %v6107
      %v6122 = vsub.f32 %v6090, %v6110
      %v6123 = vsub.f32 %v6091, %v6113
      %v6124 = vsub.f32 %v6092, %v6116
      %v6125 = vmul.f32 %v6117, 1.442695
      %v6126 = vpow.pop %v6125
      %v6127 = vmul.f32 %v6118, 1.442695
      %v6128 = vpow.pop %v6127
      %v6129 = vmul.f32 %v6119, 1.442695
      %v6130 = vpow.pop %v6129
      %v6131 = vmul.f32 %v6120, 1.442695
      %v6132 = vpow.pop %v6131
      %v6133 = vmul.f32 %v6121, 1.442695
      %v6134 = vpow.pop %v6133
      %v6135 = vmul.f32 %v6122, 1.442695
      %v6136 = vpow.pop %v6135
      %v6137 = vmul.f32 %v6123, 1.442695
      %v6138 = vpow.pop %v6137
      %v6139 = vmul.f32 %v6124, 1.442695
      %v6140 = vpow.pop %v6139
      %v6141 = vsel %vm669, %v6126, 0.0
      %6142 = vadd.xlane.f32.xlu0 %v6141
      %v6143 = vpop.xlane.xlu0 %6142
      %v6144 = vsel %vm669, %v6128, 0.0
      %6145 = vadd.xlane.f32.xlu0 %v6144
      %v6146 = vpop.xlane.xlu0 %6145
      %v6147 = vsel %vm669, %v6130, 0.0
      %6148 = vadd.xlane.f32.xlu0 %v6147
      %v6149 = vpop.xlane.xlu0 %6148
      %v6150 = vsel %vm669, %v6132, 0.0
      %6151 = vadd.xlane.f32.xlu0 %v6150
      %v6152 = vpop.xlane.xlu0 %6151
      %v6153 = vsel %vm669, %v6134, 0.0
      %6154 = vadd.xlane.f32.xlu0 %v6153
      %v6155 = vpop.xlane.xlu0 %6154
      %v6156 = vsel %vm669, %v6136, 0.0
      %6157 = vadd.xlane.f32.xlu0 %v6156
      %v6158 = vpop.xlane.xlu0 %6157
      %v6159 = vsel %vm669, %v6138, 0.0
      %6160 = vadd.xlane.f32.xlu0 %v6159
      %v6161 = vpop.xlane.xlu0 %6160
      %v6162 = vsel %vm669, %v6140, 0.0
      %6163 = vadd.xlane.f32.xlu0 %v6162
      %v6164 = vpop.xlane.xlu0 %6163
      %v6165 = vrcp.pop %v6143
      %v6166 = vrcp.pop %v6146
      %v6167 = vrcp.pop %v6149
      %v6168 = vrcp.pop %v6152
      %v6169 = vrcp.pop %v6155
      %v6170 = vrcp.pop %v6158
      %v6171 = vrcp.pop %v6161
      %v6172 = vrcp.pop %v6164
      %v6173 = vmul.f32 %v6126, %v6165
      %v6174 = vmul.f32 %v6128, %v6166
      %v6175 = vmul.f32 %v6130, %v6167
      %v6176 = vmul.f32 %v6132, %v6168
      %v6177 = vmul.f32 %v6134, %v6169
      %v6178 = vmul.f32 %v6136, %v6170
      %v6179 = vmul.f32 %v6138, %v6171
      %v6180 = vmul.f32 %v6140, %v6172
      %v6181 = vpack.c.bf16 %v6174, %v6173
      %v6182 = vpack.c.bf16 %v6176, %v6175
      %v6183 = vpack.c.bf16 %v6178, %v6177
      %v6184 = vpack.c.bf16 %v6180, %v6179
      %6185 = vrot.lane.b32.xlu0 %v3922, 36
      %v6186 = vpop.permute.xlu0 %6185
      %6187 = vrot.lane.b32.xlu0 %v3923, 36
      %v6188 = vpop.permute.xlu0 %6187
      %6189 = vrot.lane.b32.xlu0 %v3924, 36
      %v6190 = vpop.permute.xlu0 %6189
      %6191 = vrot.lane.b32.xlu0 %v3925, 36
      %v6192 = vpop.permute.xlu0 %6191
      %v6198 = vsel %vm669, %v6181, 0
      %v6201 = vsel %vm669, %v6182, 0
      %v6204 = vsel %vm669, %v6183, 0
      %v6207 = vsel %vm669, %v6184, 0
      %6209 = vmatprep.subr.bf16.mxu0 0
      %6210 = vmatpush1.bf16.msra.mxu0 %v6186
      %6211 = vmatprep.subr.bf16.mxu0 0
      %6212 = vmatpush1.bf16.msra.mxu0 %v6188
      %6213 = vmatprep.subr.bf16.mxu0 0
      %6214 = vmatpush1.bf16.msra.mxu0 %v6190
      %6215 = vmatprep.subr.bf16.mxu0 0
      %6216 = vmatpush1.bf16.msra.mxu0 %v6192
      %6217 = vmatprep.subr.bf16.mxu0 0
      %6218 = vmatpush1.bf16.msra.mxu0 0
      %6219 = vmatprep.subr.bf16.mxu0 0
      %6220 = vmatpush1.bf16.msra.mxu0 0
      %6221 = vmatprep.subr.bf16.mxu0 0
      %6222 = vmatpush1.bf16.msra.mxu0 0
      %6223 = vmatprep.subr.bf16.mxu0 0
      %6224 = vmatpush1.bf16.msra.mxu0 0
      %6225 = vmatprep.subr.bf16.mxu0 0
      %6226 = vmatpush1.bf16.msra.mxu0 0
      %6227 = vmatprep.subr.bf16.mxu0 0
      %6228 = vmatpush1.bf16.msra.mxu0 0
      %6229 = vmatprep.subr.bf16.mxu0 0
      %6230 = vmatpush1.bf16.msra.mxu0 0
      %6231 = vmatprep.subr.bf16.mxu0 0
      %6232 = vmatpush1.bf16.msra.mxu0 0
      %6233 = vmatprep.subr.bf16.mxu0 0
      %6234 = vmatpush1.bf16.msra.mxu0 0
      %6235 = vmatprep.subr.bf16.mxu0 0
      %6236 = vmatpush1.bf16.msra.mxu0 0
      %6237 = vmatprep.subr.bf16.mxu0 0
      %6238 = vmatpush1.bf16.msra.mxu0 0
      %6239 = vmatprep.subr.bf16.mxu0 0
      %6240 = vmatpush1.bf16.msra.mxu0 0
      %6241 = vmatprep.mubr.bf16.mxu0 0
      %6242 = vmatmul.mubr.bf16.gmra.mrb[0].mxu0 %v6198
      %v6243 = vpop.f32.mrb[0].mxu0
      %v6244 = vadd.f32 0.0, %v6243
      %v6245 = vpop.f32.mrb[0].mxu0
      %v6246 = vpop.f32.mrb[0].mxu0
      %v6247 = vadd.f32 0.0, %v6246
      %v6248 = vpop.f32.mrb[0].mxu0
      %6249 = vmatprep.mubr.bf16.mxu0 0
      %6250 = vmatmul.mubr.bf16.gmra.mrb[0].mxu0 %v6201
      %v6251 = vpop.f32.mrb[0].mxu0
      %v6252 = vadd.f32 0.0, %v6251
      %v6253 = vpop.f32.mrb[0].mxu0
      %v6254 = vpop.f32.mrb[0].mxu0
      %v6255 = vadd.f32 0.0, %v6254
      %v6256 = vpop.f32.mrb[0].mxu0
      %6257 = vmatprep.mubr.bf16.mxu0 0
      %6258 = vmatmul.mubr.bf16.gmra.mrb[0].mxu0 %v6204
      %v6259 = vpop.f32.mrb[0].mxu0
      %v6260 = vadd.f32 0.0, %v6259
      %v6261 = vpop.f32.mrb[0].mxu0
      %v6262 = vpop.f32.mrb[0].mxu0
      %v6263 = vadd.f32 0.0, %v6262
      %v6264 = vpop.f32.mrb[0].mxu0
      %6265 = vmatprep.mubr.bf16.mxu0 0
      %6266 = vmatmul.mubr.bf16.gmra.mrb[0].mxu0 %v6207
      %v6267 = vpop.f32.mrb[0].mxu0
      %v6268 = vadd.f32 0.0, %v6267
      %v6269 = vpop.f32.mrb[0].mxu0
      %v6270 = vpop.f32.mrb[0].mxu0
      %v6271 = vadd.f32 0.0, %v6270
      %v6272 = vpop.f32.mrb[0].mxu0
      %6273 = vdwg.mxu0
      %6282 = vrot.lane.b32.xlu0 %v4480, 4
      %v6283 = vpop.permute.xlu0 %6282
      %6284 = vrot.lane.b32.xlu0 %v4483, 4
      %v6285 = vpop.permute.xlu0 %6284
      %6286 = vrot.lane.b32.xlu0 %v4488, 4
      %v6287 = vpop.permute.xlu0 %6286
      %6288 = vrot.lane.b32.xlu0 %v4491, 4
      %v6289 = vpop.permute.xlu0 %6288
      %6290 = vrot.lane.b32.xlu0 %v4496, 4
      %v6291 = vpop.permute.xlu0 %6290
      %6292 = vrot.lane.b32.xlu0 %v4499, 4
      %v6293 = vpop.permute.xlu0 %6292
      %6294 = vrot.lane.b32.xlu0 %v4504, 4
      %v6295 = vpop.permute.xlu0 %6294
      %6296 = vrot.lane.b32.xlu0 %v4507, 4
      %v6297 = vpop.permute.xlu0 %6296
      %6314 = vrot.lane.b32.xlu0 %v4774, 8
      %v6315 = vpop.permute.xlu0 %6314
      %6316 = vrot.lane.b32.xlu0 %v4777, 8
      %v6317 = vpop.permute.xlu0 %6316
      %6318 = vrot.lane.b32.xlu0 %v4782, 8
      %v6319 = vpop.permute.xlu0 %6318
      %6320 = vrot.lane.b32.xlu0 %v4785, 8
      %v6321 = vpop.permute.xlu0 %6320
      %6322 = vrot.lane.b32.xlu0 %v4790, 8
      %v6323 = vpop.permute.xlu0 %6322
      %6324 = vrot.lane.b32.xlu0 %v4793, 8
      %v6325 = vpop.permute.xlu0 %6324
      %6326 = vrot.lane.b32.xlu0 %v4798, 8
      %v6327 = vpop.permute.xlu0 %6326
      %6328 = vrot.lane.b32.xlu0 %v4801, 8
      %v6329 = vpop.permute.xlu0 %6328
      %6346 = vrot.lane.b32.xlu0 %v5068, 12
      %v6347 = vpop.permute.xlu0 %6346
      %6348 = vrot.lane.b32.xlu0 %v5071, 12
      %v6349 = vpop.permute.xlu0 %6348
      %6350 = vrot.lane.b32.xlu0 %v5076, 12
      %v6351 = vpop.permute.xlu0 %6350
      %6352 = vrot.lane.b32.xlu0 %v5079, 12
      %v6353 = vpop.permute.xlu0 %6352
      %6354 = vrot.lane.b32.xlu0 %v5084, 12
      %v6355 = vpop.permute.xlu0 %6354
      %6356 = vrot.lane.b32.xlu0 %v5087, 12
      %v6357 = vpop.permute.xlu0 %6356
      %6358 = vrot.lane.b32.xlu0 %v5092, 12
      %v6359 = vpop.permute.xlu0 %6358
      %6360 = vrot.lane.b32.xlu0 %v5095, 12
      %v6361 = vpop.permute.xlu0 %6360
      %6378 = vrot.lane.b32.xlu0 %v5362, 16
      %v6379 = vpop.permute.xlu0 %6378
      %6380 = vrot.lane.b32.xlu0 %v5365, 16
      %v6381 = vpop.permute.xlu0 %6380
      %6382 = vrot.lane.b32.xlu0 %v5370, 16
      %v6383 = vpop.permute.xlu0 %6382
      %6384 = vrot.lane.b32.xlu0 %v5373, 16
      %v6385 = vpop.permute.xlu0 %6384
      %6386 = vrot.lane.b32.xlu0 %v5378, 16
      %v6387 = vpop.permute.xlu0 %6386
      %6388 = vrot.lane.b32.xlu0 %v5381, 16
      %v6389 = vpop.permute.xlu0 %6388
      %6390 = vrot.lane.b32.xlu0 %v5386, 16
      %v6391 = vpop.permute.xlu0 %6390
      %6392 = vrot.lane.b32.xlu0 %v5389, 16
      %v6393 = vpop.permute.xlu0 %6392
      %6410 = vrot.lane.b32.xlu0 %v5656, 20
      %v6411 = vpop.permute.xlu0 %6410
      %6412 = vrot.lane.b32.xlu0 %v5659, 20
      %v6413 = vpop.permute.xlu0 %6412
      %6414 = vrot.lane.b32.xlu0 %v5664, 20
      %v6415 = vpop.permute.xlu0 %6414
      %6416 = vrot.lane.b32.xlu0 %v5667, 20
      %v6417 = vpop.permute.xlu0 %6416
      %6418 = vrot.lane.b32.xlu0 %v5672, 20
      %v6419 = vpop.permute.xlu0 %6418
      %6420 = vrot.lane.b32.xlu0 %v5675, 20
      %v6421 = vpop.permute.xlu0 %6420
      %6422 = vrot.lane.b32.xlu0 %v5680, 20
      %v6423 = vpop.permute.xlu0 %6422
      %6424 = vrot.lane.b32.xlu0 %v5683, 20
      %v6425 = vpop.permute.xlu0 %6424
      %6442 = vrot.lane.b32.xlu0 %v5950, 24
      %v6443 = vpop.permute.xlu0 %6442
      %6444 = vrot.lane.b32.xlu0 %v5953, 24
      %v6445 = vpop.permute.xlu0 %6444
      %6446 = vrot.lane.b32.xlu0 %v5958, 24
      %v6447 = vpop.permute.xlu0 %6446
      %6448 = vrot.lane.b32.xlu0 %v5961, 24
      %v6449 = vpop.permute.xlu0 %6448
      %6450 = vrot.lane.b32.xlu0 %v5966, 24
      %v6451 = vpop.permute.xlu0 %6450
      %6452 = vrot.lane.b32.xlu0 %v5969, 24
      %v6453 = vpop.permute.xlu0 %6452
      %6454 = vrot.lane.b32.xlu0 %v5974, 24
      %v6455 = vpop.permute.xlu0 %6454
      %6456 = vrot.lane.b32.xlu0 %v5977, 24
      %v6457 = vpop.permute.xlu0 %6456
      %6474 = vrot.lane.b32.xlu0 %v6244, 28
      %v6475 = vpop.permute.xlu0 %6474
      %6476 = vrot.lane.b32.xlu0 %v6247, 28
      %v6477 = vpop.permute.xlu0 %6476
      %6478 = vrot.lane.b32.xlu0 %v6252, 28
      %v6479 = vpop.permute.xlu0 %6478
      %6480 = vrot.lane.b32.xlu0 %v6255, 28
      %v6481 = vpop.permute.xlu0 %6480
      %6482 = vrot.lane.b32.xlu0 %v6260, 28
      %v6483 = vpop.permute.xlu0 %6482
      %6484 = vrot.lane.b32.xlu0 %v6263, 28
      %v6485 = vpop.permute.xlu0 %6484
      %6486 = vrot.lane.b32.xlu0 %v6268, 28
      %v6487 = vpop.permute.xlu0 %6486
      %6488 = vrot.lane.b32.xlu0 %v6271, 28
      %v6489 = vpop.permute.xlu0 %6488
      %v6498 = vsel %vm571, %v4186, %v6283
      %v6499 = vsel %vm571, %v4189, %v6285
      %v6500 = vsel %vm571, %v4194, %v6287
      %v6501 = vsel %vm571, %v4197, %v6289
      %v6502 = vsel %vm571, %v4202, %v6291
      %v6503 = vsel %vm571, %v4205, %v6293
      %v6504 = vsel %vm571, %v4210, %v6295
      %v6505 = vsel %vm571, %v4213, %v6297
      %v6506 = vsel %vm3141, %v6498, %v6315
      %v6507 = vsel %vm3141, %v6499, %v6317
      %v6508 = vsel %vm3141, %v6500, %v6319
      %v6509 = vsel %vm3141, %v6501, %v6321
      %v6510 = vsel %vm3141, %v6502, %v6323
      %v6511 = vsel %vm3141, %v6503, %v6325
      %v6512 = vsel %vm3141, %v6504, %v6327
      %v6513 = vsel %vm3141, %v6505, %v6329
      %v6514 = vsel %vm3150, %v6506, %v6347
      %v6515 = vsel %vm3150, %v6507, %v6349
      %v6516 = vsel %vm3150, %v6508, %v6351
      %v6517 = vsel %vm3150, %v6509, %v6353
      %v6518 = vsel %vm3150, %v6510, %v6355
      %v6519 = vsel %vm3150, %v6511, %v6357
      %v6520 = vsel %vm3150, %v6512, %v6359
      %v6521 = vsel %vm3150, %v6513, %v6361
      %v6522 = vsel %vm3159, %v6514, %v6379
      %v6523 = vsel %vm3159, %v6515, %v6381
      %v6524 = vsel %vm3159, %v6516, %v6383
      %v6525 = vsel %vm3159, %v6517, %v6385
      %v6526 = vsel %vm3159, %v6518, %v6387
      %v6527 = vsel %vm3159, %v6519, %v6389
      %v6528 = vsel %vm3159, %v6520, %v6391
      %v6529 = vsel %vm3159, %v6521, %v6393
      %v6530 = vsel %vm3168, %v6522, %v6411
      %v6531 = vsel %vm3168, %v6523, %v6413
      %v6532 = vsel %vm3168, %v6524, %v6415
      %v6533 = vsel %vm3168, %v6525, %v6417
      %v6534 = vsel %vm3168, %v6526, %v6419
      %v6535 = vsel %vm3168, %v6527, %v6421
      %v6536 = vsel %vm3168, %v6528, %v6423
      %v6537 = vsel %vm3168, %v6529, %v6425
      %v6538 = vsel %vm3177, %v6530, %v6443
      %v6539 = vsel %vm3177, %v6531, %v6445
      %v6540 = vsel %vm3177, %v6532, %v6447
      %v6541 = vsel %vm3177, %v6533, %v6449
      %v6542 = vsel %vm3177, %v6534, %v6451
      %v6543 = vsel %vm3177, %v6535, %v6453
      %v6544 = vsel %vm3177, %v6536, %v6455
      %v6545 = vsel %vm3177, %v6537, %v6457
      %v6546 = vsel %vm3186, %v6538, %v6475
      %v6547 = vsel %vm3186, %v6539, %v6477
      %v6548 = vsel %vm3186, %v6540, %v6479
      %v6549 = vsel %vm3186, %v6541, %v6481
      %v6550 = vsel %vm3186, %v6542, %v6483
      %v6551 = vsel %vm3186, %v6543, %v6485
      %v6552 = vsel %vm3186, %v6544, %v6487
      %v6553 = vsel %vm3186, %v6545, %v6489
      %v6554 = vpack.c.bf16 %v6547, %v6546
      %v6555 = vpack.c.bf16 %v6549, %v6548
      %v6556 = vpack.c.bf16 %v6551, %v6550
      %v6557 = vpack.c.bf16 %v6553, %v6552
      %s6558 = scalar_lea.vmem %s3, 16
      %v6559 = vld [vmem:[%s6558] sm:$0xf]
      %v6560 = vld [vmem:[%s6558 + $0x4] sm:$0xf]
      %v6561 = vld [vmem:[%s6558 + $0x8] sm:$0xf]
      %v6562 = vld [vmem:[%s6558 + $0xc] sm:$0xf]
      %s6563 = scalar_lea.vmem %s4, 1
      %v6564 = vld [vmem:[%s6563] sm:$0x1]
      %v6566 = vlaneseq
      %v6567 = vshrl.u32 %v6566, 7
      %v6568 = vsub.s32 0, %v6567
      %v6569 = vrot.slane %v6564, %v6568
      %v6575 = vunpack.c.l.b16 %v6559
      %v6576 = vunpack.c.l.b16 %v6560
      %v6577 = vunpack.c.l.b16 %v6561
      %v6578 = vunpack.c.l.b16 %v6562
      %v6579 = vpack.c.b16 %v6576, %v6575
      %v6580 = vpack.c.b16 %v6578, %v6577
      %v6584 = vsel %vm477, %v6554, 0
      %v6587 = vsel %vm477, %v6555, 0
      %v6590 = vsel %vm477, %v6556, 0
      %v6593 = vsel %vm477, %v6557, 0
      %6595 = vmatprep.subr.bf16.mxu0 0
      %6596 = vmatpush1.bf16.msra.mxu0 %v6579
      %6597 = vmatprep.subr.bf16.mxu0 0
      %6598 = vmatpush1.bf16.msra.mxu0 %v6580
      %6599 = vmatprep.subr.bf16.mxu0 0
      %6600 = vmatpush1.bf16.msra.mxu0 0
      %6601 = vmatprep.subr.bf16.mxu0 0
      %6602 = vmatpush1.bf16.msra.mxu0 0
      %6603 = vmatprep.subr.bf16.mxu0 0
      %6604 = vmatpush1.bf16.msra.mxu0 0
      %6605 = vmatprep.subr.bf16.mxu0 0
      %6606 = vmatpush1.bf16.msra.mxu0 0
      %6607 = vmatprep.subr.bf16.mxu0 0
      %6608 = vmatpush1.bf16.msra.mxu0 0
      %6609 = vmatprep.subr.bf16.mxu0 0
      %6610 = vmatpush1.bf16.msra.mxu0 0
      %6611 = vmatprep.subr.bf16.mxu0 0
      %6612 = vmatpush1.bf16.msra.mxu0 0
      %6613 = vmatprep.subr.bf16.mxu0 0
      %6614 = vmatpush1.bf16.msra.mxu0 0
      %6615 = vmatprep.subr.bf16.mxu0 0
      %6616 = vmatpush1.bf16.msra.mxu0 0
      %6617 = vmatprep.subr.bf16.mxu0 0
      %6618 = vmatpush1.bf16.msra.mxu0 0
      %6619 = vmatprep.subr.bf16.mxu0 0
      %6620 = vmatpush1.bf16.msra.mxu0 0
      %6621 = vmatprep.subr.bf16.mxu0 0
      %6622 = vmatpush1.bf16.msra.mxu0 0
      %6623 = vmatprep.subr.bf16.mxu0 0
      %6624 = vmatpush1.bf16.msra.mxu0 0
      %6625 = vmatprep.subr.bf16.mxu0 0
      %6626 = vmatpush1.bf16.msra.mxu0 0
      %6627 = vmatprep.mubr.bf16.mxu0 0
      %6628 = vmatmul.mubr.bf16.gmra.mrb[0].mxu0 %v6584
      %v6629 = vpop.f32.mrb[0].mxu0
      %v6630 = vadd.f32 %v6569, %v6629
      %v6631 = vpop.f32.mrb[0].mxu0
      %v6632 = vpop.f32.mrb[0].mxu0
      %v6633 = vadd.f32 %v6569, %v6632
      %v6634 = vpop.f32.mrb[0].mxu0
      %6635 = vmatprep.mubr.bf16.mxu0 0
      %6636 = vmatmul.mubr.bf16.gmra.mrb[0].mxu0 %v6587
      %v6637 = vpop.f32.mrb[0].mxu0
      %v6638 = vadd.f32 %v6569, %v6637
      %v6639 = vpop.f32.mrb[0].mxu0
      %v6640 = vpop.f32.mrb[0].mxu0
      %v6641 = vadd.f32 %v6569, %v6640
      %v6642 = vpop.f32.mrb[0].mxu0
      %6643 = vmatprep.mubr.bf16.mxu0 0
      %6644 = vmatmul.mubr.bf16.gmra.mrb[0].mxu0 %v6590
      %v6645 = vpop.f32.mrb[0].mxu0
      %v6646 = vadd.f32 %v6569, %v6645
      %v6647 = vpop.f32.mrb[0].mxu0
      %v6648 = vpop.f32.mrb[0].mxu0
      %v6649 = vadd.f32 %v6569, %v6648
      %v6650 = vpop.f32.mrb[0].mxu0
      %6651 = vmatprep.mubr.bf16.mxu0 0
      %6652 = vmatmul.mubr.bf16.gmra.mrb[0].mxu0 %v6593
      %v6653 = vpop.f32.mrb[0].mxu0
      %v6654 = vadd.f32 %v6569, %v6653
      %v6655 = vpop.f32.mrb[0].mxu0
      %v6656 = vpop.f32.mrb[0].mxu0
      %v6657 = vadd.f32 %v6569, %v6656
      %v6658 = vpop.f32.mrb[0].mxu0
      %6659 = vdwg.mxu0
      %v6660 = vadd.f32 %v3808, %v6630
      %v6661 = vadd.f32 %v3809, %v6633
      %v6662 = vadd.f32 %v3810, %v6638
      %v6663 = vadd.f32 %v3811, %v6641
      %v6664 = vadd.f32 %v3812, %v6646
      %v6665 = vadd.f32 %v3813, %v6649
      %v6666 = vadd.f32 %v3814, %v6654
      %v6667 = vadd.f32 %v3815, %v6657
      %s6668 = scalar_lea.vmem %s5, 1
      %v6669 = vld [vmem:[%s6668] sm:$0x1]
      %s6670 = scalar_lea.vmem %s6, 1
      %v6671 = vld [vmem:[%s6670] sm:$0x1]
      %v6672 = vsel %vm477, %v6660, 0.0
      %6673 = vadd.xlane.f32.xlu0 %v6672
      %v6674 = vpop.xlane.xlu0 %6673
      %v6675 = vsel %vm477, %v6661, 0.0
      %6676 = vadd.xlane.f32.xlu0 %v6675
      %v6677 = vpop.xlane.xlu0 %6676
      %v6678 = vsel %vm477, %v6662, 0.0
      %6679 = vadd.xlane.f32.xlu0 %v6678
      %v6680 = vpop.xlane.xlu0 %6679
      %v6681 = vsel %vm477, %v6663, 0.0
      %6682 = vadd.xlane.f32.xlu0 %v6681
      %v6683 = vpop.xlane.xlu0 %6682
      %v6684 = vsel %vm477, %v6664, 0.0
      %6685 = vadd.xlane.f32.xlu0 %v6684
      %v6686 = vpop.xlane.xlu0 %6685
      %v6687 = vsel %vm477, %v6665, 0.0
      %6688 = vadd.xlane.f32.xlu0 %v6687
      %v6689 = vpop.xlane.xlu0 %6688
      %v6690 = vsel %vm477, %v6666, 0.0
      %6691 = vadd.xlane.f32.xlu0 %v6690
      %v6692 = vpop.xlane.xlu0 %6691
      %v6693 = vsel %vm477, %v6667, 0.0
      %6694 = vadd.xlane.f32.xlu0 %v6693
      %v6695 = vpop.xlane.xlu0 %6694
      %v6696 = vmul.f32 %v6674, %v3333
      %v6697 = vmul.f32 %v6677, %v3333
      %v6698 = vmul.f32 %v6680, %v3333
      %v6699 = vmul.f32 %v6683, %v3333
      %v6700 = vmul.f32 %v6686, %v3333
      %v6701 = vmul.f32 %v6689, %v3333
      %v6702 = vmul.f32 %v6692, %v3333
      %v6703 = vmul.f32 %v6695, %v3333
      %v6704 = vsub.f32 %v6660, %v6696
      %v6705 = vsub.f32 %v6661, %v6697
      %v6706 = vsub.f32 %v6662, %v6698
      %v6707 = vsub.f32 %v6663, %v6699
      %v6708 = vsub.f32 %v6664, %v6700
      %v6709 = vsub.f32 %v6665, %v6701
      %v6710 = vsub.f32 %v6666, %v6702
      %v6711 = vsub.f32 %v6667, %v6703
      %v6712 = vmul.f32 %v6704, %v6704
      %v6713 = vmul.f32 %v6705, %v6705
      %v6714 = vmul.f32 %v6706, %v6706
      %v6715 = vmul.f32 %v6707, %v6707
      %v6716 = vmul.f32 %v6708, %v6708
      %v6717 = vmul.f32 %v6709, %v6709
      %v6718 = vmul.f32 %v6710, %v6710
      %v6719 = vmul.f32 %v6711, %v6711
      %v6720 = vsel %vm477, %v6712, 0.0
      %6721 = vadd.xlane.f32.xlu0 %v6720
      %v6722 = vpop.xlane.xlu0 %6721
      %v6723 = vsel %vm477, %v6713, 0.0
      %6724 = vadd.xlane.f32.xlu0 %v6723
      %v6725 = vpop.xlane.xlu0 %6724
      %v6726 = vsel %vm477, %v6714, 0.0
      %6727 = vadd.xlane.f32.xlu0 %v6726
      %v6728 = vpop.xlane.xlu0 %6727
      %v6729 = vsel %vm477, %v6715, 0.0
      %6730 = vadd.xlane.f32.xlu0 %v6729
      %v6731 = vpop.xlane.xlu0 %6730
      %v6732 = vsel %vm477, %v6716, 0.0
      %6733 = vadd.xlane.f32.xlu0 %v6732
      %v6734 = vpop.xlane.xlu0 %6733
      %v6735 = vsel %vm477, %v6717, 0.0
      %6736 = vadd.xlane.f32.xlu0 %v6735
      %v6737 = vpop.xlane.xlu0 %6736
      %v6738 = vsel %vm477, %v6718, 0.0
      %6739 = vadd.xlane.f32.xlu0 %v6738
      %v6740 = vpop.xlane.xlu0 %6739
      %v6741 = vsel %vm477, %v6719, 0.0
      %6742 = vadd.xlane.f32.xlu0 %v6741
      %v6743 = vpop.xlane.xlu0 %6742
      %v6744 = vmul.f32 %v6722, %v3333
      %v6745 = vmul.f32 %v6725, %v3333
      %v6746 = vmul.f32 %v6728, %v3333
      %v6747 = vmul.f32 %v6731, %v3333
      %v6748 = vmul.f32 %v6734, %v3333
      %v6749 = vmul.f32 %v6737, %v3333
      %v6750 = vmul.f32 %v6740, %v3333
      %v6751 = vmul.f32 %v6743, %v3333
      %v6752 = vadd.f32 %v6744, 1e-05
      %v6753 = vadd.f32 %v6745, 1e-05
      %v6754 = vadd.f32 %v6746, 1e-05
      %v6755 = vadd.f32 %v6747, 1e-05
      %v6756 = vadd.f32 %v6748, 1e-05
      %v6757 = vadd.f32 %v6749, 1e-05
      %v6758 = vadd.f32 %v6750, 1e-05
      %v6759 = vadd.f32 %v6751, 1e-05
      %v6760 = vrsqrt.pop %v6752
      %v6761 = vrsqrt.pop %v6753
      %v6762 = vrsqrt.pop %v6754
      %v6763 = vrsqrt.pop %v6755
      %v6764 = vrsqrt.pop %v6756
      %v6765 = vrsqrt.pop %v6757
      %v6766 = vrsqrt.pop %v6758
      %v6767 = vrsqrt.pop %v6759
      %v6768 = vmul.f32 %v6704, %v6760
      %v6769 = vmul.f32 %v6705, %v6761
      %v6770 = vmul.f32 %v6706, %v6762
      %v6771 = vmul.f32 %v6707, %v6763
      %v6772 = vmul.f32 %v6708, %v6764
      %v6773 = vmul.f32 %v6709, %v6765
      %v6774 = vmul.f32 %v6710, %v6766
      %v6775 = vmul.f32 %v6711, %v6767
      %v6777 = vlaneseq
      %v6778 = vshrl.u32 %v6777, 7
      %v6779 = vsub.s32 0, %v6778
      %v6780 = vrot.slane %v6669, %v6779
      %v6782 = vmul.f32 %v6768, %v6780
      %v6783 = vmul.f32 %v6769, %v6780
      %v6784 = vmul.f32 %v6770, %v6780
      %v6785 = vmul.f32 %v6771, %v6780
      %v6786 = vmul.f32 %v6772, %v6780
      %v6787 = vmul.f32 %v6773, %v6780
      %v6788 = vmul.f32 %v6774, %v6780
      %v6789 = vmul.f32 %v6775, %v6780
      %v6791 = vlaneseq
      %v6792 = vshrl.u32 %v6791, 7
      %v6793 = vsub.s32 0, %v6792
      %v6794 = vrot.slane %v6671, %v6793
      %v6796 = vadd.f32 %v6782, %v6794
      %v6797 = vadd.f32 %v6783, %v6794
      %v6798 = vadd.f32 %v6784, %v6794
      %v6799 = vadd.f32 %v6785, %v6794
      %v6800 = vadd.f32 %v6786, %v6794
      %v6801 = vadd.f32 %v6787, %v6794
      %v6802 = vadd.f32 %v6788, %v6794
      %v6803 = vadd.f32 %v6789, %v6794
      %v6804 = vpack.c.bf16 %v6797, %v6796
      %v6805 = vpack.c.bf16 %v6799, %v6798
      %v6806 = vpack.c.bf16 %v6801, %v6800
      %v6807 = vpack.c.bf16 %v6803, %v6802
      %s6808 = scalar_lea.vmem %s7, 16
      %v6809 = vld [vmem:[%s6808] sm:$0xf]
      %v6810 = vld [vmem:[%s6808 + $0x4] sm:$0xf]
      %v6811 = vld [vmem:[%s6808 + $0x8] sm:$0xf]
      %v6812 = vld [vmem:[%s6808 + $0xc] sm:$0xf]
      %s6813 = scalar_lea.vmem %s8, 1
      %v6814 = vld [vmem:[%s6813] sm:$0x1]
      %v6816 = vlaneseq
      %v6817 = vshrl.u32 %v6816, 7
      %v6818 = vsub.s32 0, %v6817
      %v6819 = vrot.slane %v6814, %v6818
      %v6825 = vunpack.c.l.b16 %v6809
      %v6826 = vunpack.c.l.b16 %v6810
      %v6827 = vunpack.c.l.b16 %v6811
      %v6828 = vunpack.c.l.b16 %v6812
      %v6829 = vpack.c.b16 %v6826, %v6825
      %v6830 = vpack.c.b16 %v6828, %v6827
      %v6834 = vsel %vm477, %v6804, 0
      %v6837 = vsel %vm477, %v6805, 0
      %v6840 = vsel %vm477, %v6806, 0
      %v6843 = vsel %vm477, %v6807, 0
      %6845 = vmatprep.subr.bf16.mxu0 0
      %6846 = vmatpush1.bf16.msra.mxu0 %v6829
      %6847 = vmatprep.subr.bf16.mxu0 0
      %6848 = vmatpush1.bf16.msra.mxu0 %v6830
      %6849 = vmatprep.subr.bf16.mxu0 0
      %6850 = vmatpush1.bf16.msra.mxu0 0
      %6851 = vmatprep.subr.bf16.mxu0 0
      %6852 = vmatpush1.bf16.msra.mxu0 0
      %6853 = vmatprep.subr.bf16.mxu0 0
      %6854 = vmatpush1.bf16.msra.mxu0 0
      %6855 = vmatprep.subr.bf16.mxu0 0
      %6856 = vmatpush1.bf16.msra.mxu0 0
      %6857 = vmatprep.subr.bf16.mxu0 0
      %6858 = vmatpush1.bf16.msra.mxu0 0
      %6859 = vmatprep.subr.bf16.mxu0 0
      %6860 = vmatpush1.bf16.msra.mxu0 0
      %6861 = vmatprep.subr.bf16.mxu0 0
      %6862 = vmatpush1.bf16.msra.mxu0 0
      %6863 = vmatprep.subr.bf16.mxu0 0
      %6864 = vmatpush1.bf16.msra.mxu0 0
      %6865 = vmatprep.subr.bf16.mxu0 0
      %6866 = vmatpush1.bf16.msra.mxu0 0
      %6867 = vmatprep.subr.bf16.mxu0 0
      %6868 = vmatpush1.bf16.msra.mxu0 0
      %6869 = vmatprep.subr.bf16.mxu0 0
      %6870 = vmatpush1.bf16.msra.mxu0 0
      %6871 = vmatprep.subr.bf16.mxu0 0
      %6872 = vmatpush1.bf16.msra.mxu0 0
      %6873 = vmatprep.subr.bf16.mxu0 0
      %6874 = vmatpush1.bf16.msra.mxu0 0
      %6875 = vmatprep.subr.bf16.mxu0 0
      %6876 = vmatpush1.bf16.msra.mxu0 0
      %6877 = vmatprep.mubr.bf16.mxu0 0
      %6878 = vmatmul.mubr.bf16.gmra.mrb[0].mxu0 %v6834
      %v6879 = vpop.f32.mrb[0].mxu0
      %v6880 = vadd.f32 %v6819, %v6879
      %v6881 = vpop.f32.mrb[0].mxu0
      %v6882 = vpop.f32.mrb[0].mxu0
      %v6883 = vadd.f32 %v6819, %v6882
      %v6884 = vpop.f32.mrb[0].mxu0
      %6885 = vmatprep.mubr.bf16.mxu0 0
      %6886 = vmatmul.mubr.bf16.gmra.mrb[0].mxu0 %v6837
      %v6887 = vpop.f32.mrb[0].mxu0
      %v6888 = vadd.f32 %v6819, %v6887
      %v6889 = vpop.f32.mrb[0].mxu0
      %v6890 = vpop.f32.mrb[0].mxu0
      %v6891 = vadd.f32 %v6819, %v6890
      %v6892 = vpop.f32.mrb[0].mxu0
      %6893 = vmatprep.mubr.bf16.mxu0 0
      %6894 = vmatmul.mubr.bf16.gmra.mrb[0].mxu0 %v6840
      %v6895 = vpop.f32.mrb[0].mxu0
      %v6896 = vadd.f32 %v6819, %v6895
      %v6897 = vpop.f32.mrb[0].mxu0
      %v6898 = vpop.f32.mrb[0].mxu0
      %v6899 = vadd.f32 %v6819, %v6898
      %v6900 = vpop.f32.mrb[0].mxu0
      %6901 = vmatprep.mubr.bf16.mxu0 0
      %6902 = vmatmul.mubr.bf16.gmra.mrb[0].mxu0 %v6843
      %v6903 = vpop.f32.mrb[0].mxu0
      %v6904 = vadd.f32 %v6819, %v6903
      %v6905 = vpop.f32.mrb[0].mxu0
      %v6906 = vpop.f32.mrb[0].mxu0
      %v6907 = vadd.f32 %v6819, %v6906
      %v6908 = vpop.f32.mrb[0].mxu0
      %6909 = vdwg.mxu0
      %v6910 = vmax.f32 %v6880, 0.0
      %v6911 = vmax.f32 %v6883, 0.0
      %v6912 = vmax.f32 %v6888, 0.0
      %v6913 = vmax.f32 %v6891, 0.0
      %v6914 = vmax.f32 %v6896, 0.0
      %v6915 = vmax.f32 %v6899, 0.0
      %v6916 = vmax.f32 %v6904, 0.0
      %v6917 = vmax.f32 %v6907, 0.0
      %v6918 = vpack.c.bf16 %v6911, %v6910
      %v6919 = vpack.c.bf16 %v6913, %v6912
      %v6920 = vpack.c.bf16 %v6915, %v6914
      %v6921 = vpack.c.bf16 %v6917, %v6916
      %s6922 = scalar_lea.vmem %s9, 32
      %v6923 = vld [vmem:[%s6922] sm:$0xf]
      %v6924 = vld [vmem:[%s6922 + $0x4] sm:$0xf]
      %v6925 = vld [vmem:[%s6922 + $0x8] sm:$0xf]
      %v6926 = vld [vmem:[%s6922 + $0xc] sm:$0xf]
      %v6927 = vld [vmem:[%s6922 + $0x10] sm:$0xf]
      %v6928 = vld [vmem:[%s6922 + $0x14] sm:$0xf]
      %v6929 = vld [vmem:[%s6922 + $0x18] sm:$0xf]
      %v6930 = vld [vmem:[%s6922 + $0x1c] sm:$0xf]
      %s6931 = scalar_lea.vmem %s10, 1
      %v6932 = vld [vmem:[%s6931] sm:$0x1]
      %v6934 = vlaneseq
      %v6935 = vshrl.u32 %v6934, 7
      %v6936 = vsub.s32 0, %v6935
      %v6937 = vrot.slane %v6932, %v6936
      %v6947 = vunpack.c.l.b16 %v6923
      %v6948 = vunpack.c.l.b16 %v6924
      %v6949 = vunpack.c.l.b16 %v6925
      %v6950 = vunpack.c.l.b16 %v6926
      %v6951 = vunpack.c.l.b16 %v6927
      %v6952 = vunpack.c.l.b16 %v6928
      %v6953 = vunpack.c.l.b16 %v6929
      %v6954 = vunpack.c.l.b16 %v6930
      %v6955 = vpack.c.b16 %v6948, %v6947
      %v6956 = vpack.c.b16 %v6950, %v6949
      %v6957 = vpack.c.b16 %v6952, %v6951
      %v6958 = vpack.c.b16 %v6954, %v6953
      %v6964 = vsel %vm669, %v6918, 0
      %v6967 = vsel %vm669, %v6919, 0
      %v6970 = vsel %vm669, %v6920, 0
      %v6973 = vsel %vm669, %v6921, 0
      %6975 = vmatprep.subr.bf16.mxu0 0
      %6976 = vmatpush1.bf16.msra.mxu0 %v6955
      %6977 = vmatprep.subr.bf16.mxu0 0
      %6978 = vmatpush1.bf16.msra.mxu0 %v6956
      %6979 = vmatprep.subr.bf16.mxu0 0
      %6980 = vmatpush1.bf16.msra.mxu0 %v6957
      %6981 = vmatprep.subr.bf16.mxu0 0
      %6982 = vmatpush1.bf16.msra.mxu0 %v6958
      %6983 = vmatprep.subr.bf16.mxu0 0
      %6984 = vmatpush1.bf16.msra.mxu0 0
      %6985 = vmatprep.subr.bf16.mxu0 0
      %6986 = vmatpush1.bf16.msra.mxu0 0
      %6987 = vmatprep.subr.bf16.mxu0 0
      %6988 = vmatpush1.bf16.msra.mxu0 0
      %6989 = vmatprep.subr.bf16.mxu0 0
      %6990 = vmatpush1.bf16.msra.mxu0 0
      %6991 = vmatprep.subr.bf16.mxu0 0
      %6992 = vmatpush1.bf16.msra.mxu0 0
      %6993 = vmatprep.subr.bf16.mxu0 0
      %6994 = vmatpush1.bf16.msra.mxu0 0
      %6995 = vmatprep.subr.bf16.mxu0 0
      %6996 = vmatpush1.bf16.msra.mxu0 0
      %6997 = vmatprep.subr.bf16.mxu0 0
      %6998 = vmatpush1.bf16.msra.mxu0 0
      %6999 = vmatprep.subr.bf16.mxu0 0
      %7000 = vmatpush1.bf16.msra.mxu0 0
      %7001 = vmatprep.subr.bf16.mxu0 0
      %7002 = vmatpush1.bf16.msra.mxu0 0
      %7003 = vmatprep.subr.bf16.mxu0 0
      %7004 = vmatpush1.bf16.msra.mxu0 0
      %7005 = vmatprep.subr.bf16.mxu0 0
      %7006 = vmatpush1.bf16.msra.mxu0 0
      %7007 = vmatprep.mubr.bf16.mxu0 0
      %7008 = vmatmul.mubr.bf16.gmra.mrb[0].mxu0 %v6964
      %v7009 = vpop.f32.mrb[0].mxu0
      %v7010 = vadd.f32 %v6937, %v7009
      %v7011 = vpop.f32.mrb[0].mxu0
      %v7012 = vpop.f32.mrb[0].mxu0
      %v7013 = vadd.f32 %v6937, %v7012
      %v7014 = vpop.f32.mrb[0].mxu0
      %7015 = vmatprep.mubr.bf16.mxu0 0
      %7016 = vmatmul.mubr.bf16.gmra.mrb[0].mxu0 %v6967
      %v7017 = vpop.f32.mrb[0].mxu0
      %v7018 = vadd.f32 %v6937, %v7017
      %v7019 = vpop.f32.mrb[0].mxu0
      %v7020 = vpop.f32.mrb[0].mxu0
      %v7021 = vadd.f32 %v6937, %v7020
      %v7022 = vpop.f32.mrb[0].mxu0
      %7023 = vmatprep.mubr.bf16.mxu0 0
      %7024 = vmatmul.mubr.bf16.gmra.mrb[0].mxu0 %v6970
      %v7025 = vpop.f32.mrb[0].mxu0
      %v7026 = vadd.f32 %v6937, %v7025
      %v7027 = vpop.f32.mrb[0].mxu0
      %v7028 = vpop.f32.mrb[0].mxu0
      %v7029 = vadd.f32 %v6937, %v7028
      %v7030 = vpop.f32.mrb[0].mxu0
      %7031 = vmatprep.mubr.bf16.mxu0 0
      %7032 = vmatmul.mubr.bf16.gmra.mrb[0].mxu0 %v6973
      %v7033 = vpop.f32.mrb[0].mxu0
      %v7034 = vadd.f32 %v6937, %v7033
      %v7035 = vpop.f32.mrb[0].mxu0
      %v7036 = vpop.f32.mrb[0].mxu0
      %v7037 = vadd.f32 %v6937, %v7036
      %v7038 = vpop.f32.mrb[0].mxu0
      %7039 = vdwg.mxu0
      %v7040 = vadd.f32 %v6796, %v7010
      %v7041 = vadd.f32 %v6797, %v7013
      %v7042 = vadd.f32 %v6798, %v7018
      %v7043 = vadd.f32 %v6799, %v7021
      %v7044 = vadd.f32 %v6800, %v7026
      %v7045 = vadd.f32 %v6801, %v7029
      %v7046 = vadd.f32 %v6802, %v7034
      %v7047 = vadd.f32 %v6803, %v7037
      %s7048 = scalar_lea.vmem %s11, 1
      %v7049 = vld [vmem:[%s7048] sm:$0x1]
      %s7050 = scalar_lea.vmem %s12, 1
      %v7051 = vld [vmem:[%s7050] sm:$0x1]
      %v7052 = vsel %vm477, %v7040, 0.0
      %7053 = vadd.xlane.f32.xlu0 %v7052
      %v7054 = vpop.xlane.xlu0 %7053
      %v7055 = vsel %vm477, %v7041, 0.0
      %7056 = vadd.xlane.f32.xlu0 %v7055
      %v7057 = vpop.xlane.xlu0 %7056
      %v7058 = vsel %vm477, %v7042, 0.0
      %7059 = vadd.xlane.f32.xlu0 %v7058
      %v7060 = vpop.xlane.xlu0 %7059
      %v7061 = vsel %vm477, %v7043, 0.0
      %7062 = vadd.xlane.f32.xlu0 %v7061
      %v7063 = vpop.xlane.xlu0 %7062
      %v7064 = vsel %vm477, %v7044, 0.0
      %7065 = vadd.xlane.f32.xlu0 %v7064
      %v7066 = vpop.xlane.xlu0 %7065
      %v7067 = vsel %vm477, %v7045, 0.0
      %7068 = vadd.xlane.f32.xlu0 %v7067
      %v7069 = vpop.xlane.xlu0 %7068
      %v7070 = vsel %vm477, %v7046, 0.0
      %7071 = vadd.xlane.f32.xlu0 %v7070
      %v7072 = vpop.xlane.xlu0 %7071
      %v7073 = vsel %vm477, %v7047, 0.0
      %7074 = vadd.xlane.f32.xlu0 %v7073
      %v7075 = vpop.xlane.xlu0 %7074
      %v7076 = vmul.f32 %v7054, %v3333
      %v7077 = vmul.f32 %v7057, %v3333
      %v7078 = vmul.f32 %v7060, %v3333
      %v7079 = vmul.f32 %v7063, %v3333
      %v7080 = vmul.f32 %v7066, %v3333
      %v7081 = vmul.f32 %v7069, %v3333
      %v7082 = vmul.f32 %v7072, %v3333
      %v7083 = vmul.f32 %v7075, %v3333
      %v7084 = vsub.f32 %v7040, %v7076
      %v7085 = vsub.f32 %v7041, %v7077
      %v7086 = vsub.f32 %v7042, %v7078
      %v7087 = vsub.f32 %v7043, %v7079
      %v7088 = vsub.f32 %v7044, %v7080
      %v7089 = vsub.f32 %v7045, %v7081
      %v7090 = vsub.f32 %v7046, %v7082
      %v7091 = vsub.f32 %v7047, %v7083
      %v7092 = vmul.f32 %v7084, %v7084
      %v7093 = vmul.f32 %v7085, %v7085
      %v7094 = vmul.f32 %v7086, %v7086
      %v7095 = vmul.f32 %v7087, %v7087
      %v7096 = vmul.f32 %v7088, %v7088
      %v7097 = vmul.f32 %v7089, %v7089
      %v7098 = vmul.f32 %v7090, %v7090
      %v7099 = vmul.f32 %v7091, %v7091
      %v7100 = vsel %vm477, %v7092, 0.0
      %7101 = vadd.xlane.f32.xlu0 %v7100
      %v7102 = vpop.xlane.xlu0 %7101
      %v7103 = vsel %vm477, %v7093, 0.0
      %7104 = vadd.xlane.f32.xlu0 %v7103
      %v7105 = vpop.xlane.xlu0 %7104
      %v7106 = vsel %vm477, %v7094, 0.0
      %7107 = vadd.xlane.f32.xlu0 %v7106
      %v7108 = vpop.xlane.xlu0 %7107
      %v7109 = vsel %vm477, %v7095, 0.0
      %7110 = vadd.xlane.f32.xlu0 %v7109
      %v7111 = vpop.xlane.xlu0 %7110
      %v7112 = vsel %vm477, %v7096, 0.0
      %7113 = vadd.xlane.f32.xlu0 %v7112
      %v7114 = vpop.xlane.xlu0 %7113
      %v7115 = vsel %vm477, %v7097, 0.0
      %7116 = vadd.xlane.f32.xlu0 %v7115
      %v7117 = vpop.xlane.xlu0 %7116
      %v7118 = vsel %vm477, %v7098, 0.0
      %7119 = vadd.xlane.f32.xlu0 %v7118
      %v7120 = vpop.xlane.xlu0 %7119
      %v7121 = vsel %vm477, %v7099, 0.0
      %7122 = vadd.xlane.f32.xlu0 %v7121
      %v7123 = vpop.xlane.xlu0 %7122
      %v7124 = vmul.f32 %v7102, %v3333
      %v7125 = vmul.f32 %v7105, %v3333
      %v7126 = vmul.f32 %v7108, %v3333
      %v7127 = vmul.f32 %v7111, %v3333
      %v7128 = vmul.f32 %v7114, %v3333
      %v7129 = vmul.f32 %v7117, %v3333
      %v7130 = vmul.f32 %v7120, %v3333
      %v7131 = vmul.f32 %v7123, %v3333
      %v7132 = vadd.f32 %v7124, 1e-05
      %v7133 = vadd.f32 %v7125, 1e-05
      %v7134 = vadd.f32 %v7126, 1e-05
      %v7135 = vadd.f32 %v7127, 1e-05
      %v7136 = vadd.f32 %v7128, 1e-05
      %v7137 = vadd.f32 %v7129, 1e-05
      %v7138 = vadd.f32 %v7130, 1e-05
      %v7139 = vadd.f32 %v7131, 1e-05
      %v7140 = vrsqrt.pop %v7132
      %v7141 = vrsqrt.pop %v7133
      %v7142 = vrsqrt.pop %v7134
      %v7143 = vrsqrt.pop %v7135
      %v7144 = vrsqrt.pop %v7136
      %v7145 = vrsqrt.pop %v7137
      %v7146 = vrsqrt.pop %v7138
      %v7147 = vrsqrt.pop %v7139
      %v7148 = vmul.f32 %v7084, %v7140
      %v7149 = vmul.f32 %v7085, %v7141
      %v7150 = vmul.f32 %v7086, %v7142
      %v7151 = vmul.f32 %v7087, %v7143
      %v7152 = vmul.f32 %v7088, %v7144
      %v7153 = vmul.f32 %v7089, %v7145
      %v7154 = vmul.f32 %v7090, %v7146
      %v7155 = vmul.f32 %v7091, %v7147
      %v7157 = vlaneseq
      %v7158 = vshrl.u32 %v7157, 7
      %v7159 = vsub.s32 0, %v7158
      %v7160 = vrot.slane %v7049, %v7159
      %v7162 = vmul.f32 %v7148, %v7160
      %v7163 = vmul.f32 %v7149, %v7160
      %v7164 = vmul.f32 %v7150, %v7160
      %v7165 = vmul.f32 %v7151, %v7160
      %v7166 = vmul.f32 %v7152, %v7160
      %v7167 = vmul.f32 %v7153, %v7160
      %v7168 = vmul.f32 %v7154, %v7160
      %v7169 = vmul.f32 %v7155, %v7160
      %v7171 = vlaneseq
      %v7172 = vshrl.u32 %v7171, 7
      %v7173 = vsub.s32 0, %v7172
      %v7174 = vrot.slane %v7051, %v7173
      %v7176 = vadd.f32 %v7162, %v7174
      %v7177 = vadd.f32 %v7163, %v7174
      %v7178 = vadd.f32 %v7164, %v7174
      %v7179 = vadd.f32 %v7165, %v7174
      %v7180 = vadd.f32 %v7166, %v7174
      %v7181 = vadd.f32 %v7167, %v7174
      %v7182 = vadd.f32 %v7168, %v7174
      %v7183 = vadd.f32 %v7169, %v7174
      %7184 = vst.msk [vmem:[%s440] sm:$0xff] %vm477, %v7176
      %7185 = vst.msk [vmem:[%s440 + $0x8] sm:$0xff] %vm477, %v7177
      %7186 = vst.msk [vmem:[%s440 + $0x10] sm:$0xff] %vm477, %v7178
      %7187 = vst.msk [vmem:[%s440 + $0x18] sm:$0xff] %vm477, %v7179
      %7188 = vst.msk [vmem:[%s440 + $0x20] sm:$0xff] %vm477, %v7180
      %7189 = vst.msk [vmem:[%s440 + $0x28] sm:$0xff] %vm477, %v7181
      %7190 = vst.msk [vmem:[%s440 + $0x30] sm:$0xff] %vm477, %v7182
      %7191 = vst.msk [vmem:[%s440 + $0x38] sm:$0xff] %vm477, %v7183
      %p7192 = scmp.lt.s32.totalorder %s24, 1
      %s7193 = scalar_select %p7192, %s24, 1
      %s7194 = smul.addr %s7193, 8
      %s7195 = smul.addr %s7194, 8
      %s7196 = scalar_lea.vmem %s13, %s7195
      // Predicated region
      $region73: #{tpu_custom_call.1} parent=71 // pred_check
        %p7197 = pneg %p320
      $region74: #{tpu_custom_call.1} parent=71 // pred_check_branch
        %7199 = sbr.rel (%p7197) target = $region76
      $region75: #{tpu_custom_call.1} parent=71 // pred_region
        _
      $region76: #{tpu_custom_call.1} parent=71 // pred_fallthru
        _
    $region72: #{tpu_custom_call.1} parent=5 // pred_fallthru
      _
    %p7200 = scmp.le.s32.totalorder 2, %s19
    // Predicated region
    $region77: #{tpu_custom_call.1} parent=5 // pred_check
      %p7201 = pneg %p7200
    $region78: #{tpu_custom_call.1} parent=5 // pred_check_branch
      %7203 = sbr.rel (%p7201) target = $region80
    $region79: #{tpu_custom_call.1} parent=5 // pred_region
      %s7204 = ssub.s32 %s19, 2
      // Predicated region
      $region81: #{tpu_custom_call.1} parent=79 // pred_check
        %p7205 = pneg %p326
      $region82: #{tpu_custom_call.1} parent=79 // pred_check_branch
        %7207 = sbr.rel (%p7205) target = $region84
      $region83: #{tpu_custom_call.1} parent=79 // pred_region
        %p7208 = scmp.lt.s32.totalorder %s25, 1
        %s7209 = scalar_select %p7208, %s25, 1
        %s7210 = smul.addr %s7209, 8
        %s7211 = smul.addr %s7210, 8
        %s7212 = scalar_lea.vmem %s13, %s7211
      $region84: #{tpu_custom_call.1} parent=79 // pred_fallthru
        _
    $region80: #{tpu_custom_call.1} parent=5 // pred_fallthru
      _
  $region6: #{tpu_custom_call.1} parent=0 // loop_footer
    %s23 = sadd.s32 1, %s19
  $region7: #{tpu_custom_call.1} parent=0 // loop_footer_branch
    %18 = sbr.rel target = $region3
  $region8: #{tpu_custom_call.1} parent=0 // loop_exit
    _

</llo_original>
